<compile_context>
chip_gen: v7x
topology: tpu7x:2x2x1
jax: 0.10.0
libtpu: 0.0.40
codegen_flags: <defaults>
</compile_context>

<pallas_src>
import functools

import jax
import jax.numpy as jnp
import numpy as np
from jax.experimental import pallas as pl
from jax.experimental.pallas import tpu as pltpu


# ---------------------------------------------------------------------------
# Fused kernel: all deconv layers for one batch element, fully VMEM-resident
# ---------------------------------------------------------------------------
def _fused_deconv_kernel(*refs, activations):
    """refs = (x_ref, [T_ref, S_ref, bias_ref] * n_layers, o_ref).

    x_ref  : (1, H_in, W_in*Cin)  current batch element, rows=h, lanes=(w,c)
    T_ref  : (KH, W_in*Cin, Wo*Cout)  width-Toeplitz weight per kh tap
    S_ref  : (KH, Ho, H_in)           0/1 row-scatter matrix per kh tap
    bias   : (1, Wo*Cout)             bias tiled over the output width
    o_ref  : (1, Ho_last, Wo_last*Cout_last)
    """
    x_ref, o_ref = refs[0], refs[-1]
    layer_refs = refs[1:-1]
    n_layers = len(layer_refs) // 3

    x = x_ref[0]  # (H_in, W_in*Cin), float32
    for li in range(n_layers):
        t_ref, s_ref, b_ref = layer_refs[3 * li:3 * li + 3]
        kh_taps = t_ref.shape[0]
        h_out = s_ref.shape[1]
        d_out = t_ref.shape[2]

        acc = jnp.zeros((h_out, d_out), jnp.float32)
        for kh in range(kh_taps):  # static, unrolled
            y = jnp.dot(x, t_ref[kh], preferred_element_type=jnp.float32)
            acc = acc + jnp.dot(s_ref[kh], y, preferred_element_type=jnp.float32)

        z = acc + b_ref[...]
        if activations[li] == "relu":
            x = jnp.maximum(z, 0.0)
        else:  # sigmoid
            x = 1.0 / (1.0 + jnp.exp(-z))

    o_ref[0] = x.astype(o_ref.dtype)


# ---------------------------------------------------------------------------
# Host-side (init-time) construction of the per-layer Toeplitz / scatter tables
# ---------------------------------------------------------------------------
def _build_layer_tables(w, b, stride, padding, h_in, w_in):
    """w: PyTorch ConvTranspose2d weight (Cin, Cout, KH, KW); b: (Cout,)."""
    cin, cout, kh_sz, kw_sz = w.shape
    h_out = (h_in - 1) * stride - 2 * padding + kh_sz
    w_out = (w_in - 1) * stride - 2 * padding + kw_sz

    # T[kh, iw*Cin + ci, ow*Cout + co] = w[ci, co, kh, kw] where ow = iw*s - p + kw
    T = np.zeros((kh_sz, w_in * cin, w_out * cout), np.float32)
    for kh in range(kh_sz):
        for iw in range(w_in):
            for kw in range(kw_sz):
                ow = iw * stride - padding + kw
                if 0 <= ow < w_out:
                    T[kh, iw * cin:(iw + 1) * cin,
                      ow * cout:(ow + 1) * cout] = w[:, :, kh, kw]

    # S[kh, oh, ih] = 1  iff  oh == ih*s - p + kh
    S = np.zeros((kh_sz, h_out, h_in), np.float32)
    for kh in range(kh_sz):
        for ih in range(h_in):
            oh = ih * stride - padding + kh
            if 0 <= oh < h_out:
                S[kh, oh, ih] = 1.0

    b_row = np.tile(np.asarray(b, np.float32), w_out)[None, :]  # (1, Wo*Cout)
    return T, S, b_row, h_out, w_out


# ---------------------------------------------------------------------------
# Full model
# ---------------------------------------------------------------------------
class DeConv2dModelPallas:
    def __init__(
        self,
        key,
        input_channel=64,
        channels=(64, 32, 4),
        kernel_sizes=(3, 4, 8),
        strides=(1, 2, 4),
        paddings=(0, 0, 1),
        activations=("relu", "relu", "sigmoid"),
    ):
        self.channels = channels
        self.strides = strides
        self.paddings = paddings
        self.activations = activations
        self.params = []
        for i, cout in enumerate(channels):
            cin = input_channel if i == 0 else channels[i - 1]
            k = kernel_sizes[i]
            key, wk, bk = jax.random.split(key, 3)
            bound = 1.0 / np.sqrt(cin * k * k)
            w = jax.random.uniform(wk, (cin, cout, k, k), jnp.float32, -bound, bound)
            b = jax.random.uniform(bk, (cout,), jnp.float32, -bound, bound)
            self.params.append((w, b))
        self._table_cache = {}

    def _tables(self, h_in, w_in):
        """Per-(input spatial size) precomputed Toeplitz/scatter/bias tables."""
        cache_key = (h_in, w_in)
        if cache_key in self._table_cache:
            return self._table_cache[cache_key]
        tables = []
        h, w_sp = h_in, w_in
        for (wt, b), s, p in zip(self.params, self.strides, self.paddings):
            T, S, b_row, h, w_sp = _build_layer_tables(
                np.asarray(wt), np.asarray(b), s, p, h, w_sp)
            tables.append((jnp.asarray(T), jnp.asarray(S), jnp.asarray(b_row)))
        entry = (tables, (h, w_sp))
        self._table_cache[cache_key] = entry
        return entry

    def __call__(self, x_nchw):
        if x_nchw.ndim == 3:  # matches torch: unsqueeze(0) for 3-D input
            x_nchw = x_nchw[None]
        n, c, h, w = x_nchw.shape
        tables, (h_out, w_out) = self._tables(h, w)
        cout_last = self.channels[-1]
        d_out = w_out * cout_last

        # NCHW -> NHWC -> (N, H, W*C): rows = h, lanes = (w, c)  [lane-dense]
        x2d = jnp.transpose(x_nchw, (0, 2, 3, 1)).reshape(n, h, w * c)

        operands = [x2d]
        in_specs = [pl.BlockSpec((1, h, w * c), lambda i: (i, 0, 0))]
        for (T, S, b_row) in tables:
            operands += [T, S, b_row]
            in_specs += [
                pl.BlockSpec(T.shape, lambda i: (0, 0, 0)),
                pl.BlockSpec(S.shape, lambda i: (0, 0, 0)),
                pl.BlockSpec(b_row.shape, lambda i: (0, 0)),
            ]

        out = pl.pallas_call(
            functools.partial(_fused_deconv_kernel, activations=self.activations),
            out_shape=jax.ShapeDtypeStruct((n, h_out, d_out), jnp.float32),
            grid_spec=pltpu.PrefetchScalarGridSpec(
                num_scalar_prefetch=0,
                grid=(n,),
                in_specs=in_specs,
                out_specs=pl.BlockSpec((1, h_out, d_out), lambda i: (i, 0, 0)),
            ),
            compiler_params=pltpu.CompilerParams(
                dimension_semantics=("parallel",),      # both TCs on v7x
                vmem_limit_bytes=40 * 1024 * 1024,      # fits v5e/v6e/v7x
            ),
        )(*operands)

        # (N, Ho, Wo*Cout) -> NCHW
        y = out.reshape(n, h_out, w_out, cout_last)
        return jnp.transpose(y, (0, 3, 1, 2))


# ---------------------------------------------------------------------------
# Independent reference path through XLA's dilated convolution.
# ---------------------------------------------------------------------------
def _ref_forward(model, x_nchw):
    if x_nchw.ndim == 3:
        x_nchw = x_nchw[None]
    x = jnp.transpose(x_nchw, (0, 2, 3, 1))
    for (w, b), s, p, act in zip(
        model.params, model.strides, model.paddings, model.activations
    ):
        k = w.shape[2]
        wf = jnp.transpose(w[:, :, ::-1, ::-1], (2, 3, 0, 1))
        y = jax.lax.conv_general_dilated(
            x,
            wf,
            window_strides=(1, 1),
            padding=[(k - 1 - p, k - 1 - p)] * 2,
            lhs_dilation=(s, s),
            dimension_numbers=("NHWC", "HWIO", "NHWC"),
        )
        y = y + b
        y = jnp.maximum(y, 0.0) if act == "relu" else jax.nn.sigmoid(y)
        x = y
    return jnp.transpose(x, (0, 3, 1, 2))


if __name__ == "__main__":
    key = jax.random.PRNGKey(0)
    pkey, xkey = jax.random.split(key)

    model = DeConv2dModelPallas(pkey)
    # NCHW input, PyTorch convention: batch=2, channels=64, spatial=4x4
    x = jax.random.normal(xkey, (2, 64, 4, 4), jnp.float32)

    out = jax.block_until_ready(model(x))
    assert out.shape == (2, 4, 58, 58), out.shape

    ref = jax.block_until_ready(_ref_forward(model, x))
    np.testing.assert_allclose(
        np.asarray(out), np.asarray(ref), atol=5e-4, rtol=5e-4
    )
    print("KERNEL_OK")
</pallas_src>

<mosaic_0001>
module attributes {stable_mosaic.version = 11 : i64} {
  func.func @_fused_deconv_kernel(%arg0: i32, %arg1: memref<1x4x256xf32, #tpu.memory_space<vmem>>, %arg2: memref<3x256x384xf32, #tpu.memory_space<vmem>>, %arg3: memref<3x6x4xf32, #tpu.memory_space<vmem>>, %arg4: memref<1x384xf32, #tpu.memory_space<vmem>>, %arg5: memref<4x384x448xf32, #tpu.memory_space<vmem>>, %arg6: memref<4x14x6xf32, #tpu.memory_space<vmem>>, %arg7: memref<1x448xf32, #tpu.memory_space<vmem>>, %arg8: memref<8x448x232xf32, #tpu.memory_space<vmem>>, %arg9: memref<8x58x14xf32, #tpu.memory_space<vmem>>, %arg10: memref<1x232xf32, #tpu.memory_space<vmem>>, %arg11: memref<1x58x232xf32, #tpu.memory_space<vmem>>) attributes {dimension_semantics = [#tpu.dimension_semantics<parallel>], iteration_bounds = array<i64: 2>, scalar_prefetch = 0 : i64, scratch_operands = 0 : i64, tpu.core_type = #tpu.core_type<tc>, window_params = [{transform_indices = @transform_0, window_bounds = array<i64: 1, 4, 256>}, {pipeline_mode = #tpu.pipeline_mode<synchronous>, transform_indices = @transform_1, window_bounds = array<i64: 3, 256, 384>}, {pipeline_mode = #tpu.pipeline_mode<synchronous>, transform_indices = @transform_2, window_bounds = array<i64: 3, 6, 4>}, {pipeline_mode = #tpu.pipeline_mode<synchronous>, transform_indices = @transform_3, window_bounds = array<i64: 1, 384>}, {pipeline_mode = #tpu.pipeline_mode<synchronous>, transform_indices = @transform_4, window_bounds = array<i64: 4, 384, 448>}, {pipeline_mode = #tpu.pipeline_mode<synchronous>, transform_indices = @transform_5, window_bounds = array<i64: 4, 14, 6>}, {pipeline_mode = #tpu.pipeline_mode<synchronous>, transform_indices = @transform_6, window_bounds = array<i64: 1, 448>}, {pipeline_mode = #tpu.pipeline_mode<synchronous>, transform_indices = @transform_7, window_bounds = array<i64: 8, 448, 232>}, {pipeline_mode = #tpu.pipeline_mode<synchronous>, transform_indices = @transform_8, window_bounds = array<i64: 8, 58, 14>}, {pipeline_mode = #tpu.pipeline_mode<synchronous>, transform_indices = @transform_9, window_bounds = array<i64: 1, 232>}, {transform_indices = @transform_10, window_bounds = array<i64: 1, 58, 232>}]} {
    %c0 = arith.constant 0 : index
    %c0_0 = arith.constant 0 : index
    %c0_1 = arith.constant 0 : index
    %0 = vector.load %arg1[%c0, %c0_0, %c0_1] : memref<1x4x256xf32, #tpu.memory_space<vmem>>, vector<1x4x256xf32>
    %1 = vector.shape_cast %0 : vector<1x4x256xf32> to vector<4x256xf32>
    %cst = arith.constant 0.000000e+00 : f32
    %2 = vector.broadcast %cst : f32 to vector<6x384xf32>
    %c0_2 = arith.constant 0 : index
    %c0_3 = arith.constant 0 : index
    %c0_4 = arith.constant 0 : index
    %3 = vector.load %arg2[%c0_2, %c0_3, %c0_4] : memref<3x256x384xf32, #tpu.memory_space<vmem>>, vector<1x256x384xf32>
    %4 = vector.shape_cast %3 : vector<1x256x384xf32> to vector<256x384xf32>
    %cst_5 = arith.constant dense<0.000000e+00> : vector<4x384xf32>
    %5 = tpu.matmul %1, %4, %cst_5 {dimension_numbers = #tpu.dot_dimension_numbers<[1], [0], [0], [1], [0, 0, 1, 1], [], []>} : vector<4x256xf32>, vector<256x384xf32>, vector<4x384xf32> -> vector<4x384xf32>
    %c0_6 = arith.constant 0 : index
    %c0_7 = arith.constant 0 : index
    %c0_8 = arith.constant 0 : index
    %6 = vector.load %arg3[%c0_6, %c0_7, %c0_8] : memref<3x6x4xf32, #tpu.memory_space<vmem>>, vector<1x6x4xf32>
    %7 = vector.shape_cast %6 : vector<1x6x4xf32> to vector<6x4xf32>
    %cst_9 = arith.constant dense<0.000000e+00> : vector<6x384xf32>
    %8 = tpu.matmul %7, %5, %cst_9 {dimension_numbers = #tpu.dot_dimension_numbers<[1], [0], [0], [1], [0, 0, 1, 1], [], []>} : vector<6x4xf32>, vector<4x384xf32>, vector<6x384xf32> -> vector<6x384xf32>
    %9 = arith.addf %2, %8 : vector<6x384xf32>
    %c1 = arith.constant 1 : index
    %c0_10 = arith.constant 0 : index
    %c0_11 = arith.constant 0 : index
    %10 = vector.load %arg2[%c1, %c0_10, %c0_11] : memref<3x256x384xf32, #tpu.memory_space<vmem>>, vector<1x256x384xf32>
    %11 = vector.shape_cast %10 : vector<1x256x384xf32> to vector<256x384xf32>
    %cst_12 = arith.constant dense<0.000000e+00> : vector<4x384xf32>
    %12 = tpu.matmul %1, %11, %cst_12 {dimension_numbers = #tpu.dot_dimension_numbers<[1], [0], [0], [1], [0, 0, 1, 1], [], []>} : vector<4x256xf32>, vector<256x384xf32>, vector<4x384xf32> -> vector<4x384xf32>
    %c1_13 = arith.constant 1 : index
    %c0_14 = arith.constant 0 : index
    %c0_15 = arith.constant 0 : index
    %13 = vector.load %arg3[%c1_13, %c0_14, %c0_15] : memref<3x6x4xf32, #tpu.memory_space<vmem>>, vector<1x6x4xf32>
    %14 = vector.shape_cast %13 : vector<1x6x4xf32> to vector<6x4xf32>
    %cst_16 = arith.constant dense<0.000000e+00> : vector<6x384xf32>
    %15 = tpu.matmul %14, %12, %cst_16 {dimension_numbers = #tpu.dot_dimension_numbers<[1], [0], [0], [1], [0, 0, 1, 1], [], []>} : vector<6x4xf32>, vector<4x384xf32>, vector<6x384xf32> -> vector<6x384xf32>
    %16 = arith.addf %9, %15 : vector<6x384xf32>
    %c2 = arith.constant 2 : index
    %c0_17 = arith.constant 0 : index
    %c0_18 = arith.constant 0 : index
    %17 = vector.load %arg2[%c2, %c0_17, %c0_18] : memref<3x256x384xf32, #tpu.memory_space<vmem>>, vector<1x256x384xf32>
    %18 = vector.shape_cast %17 : vector<1x256x384xf32> to vector<256x384xf32>
    %cst_19 = arith.constant dense<0.000000e+00> : vector<4x384xf32>
    %19 = tpu.matmul %1, %18, %cst_19 {dimension_numbers = #tpu.dot_dimension_numbers<[1], [0], [0], [1], [0, 0, 1, 1], [], []>} : vector<4x256xf32>, vector<256x384xf32>, vector<4x384xf32> -> vector<4x384xf32>
    %c2_20 = arith.constant 2 : index
    %c0_21 = arith.constant 0 : index
    %c0_22 = arith.constant 0 : index
    %20 = vector.load %arg3[%c2_20, %c0_21, %c0_22] : memref<3x6x4xf32, #tpu.memory_space<vmem>>, vector<1x6x4xf32>
    %21 = vector.shape_cast %20 : vector<1x6x4xf32> to vector<6x4xf32>
    %cst_23 = arith.constant dense<0.000000e+00> : vector<6x384xf32>
    %22 = tpu.matmul %21, %19, %cst_23 {dimension_numbers = #tpu.dot_dimension_numbers<[1], [0], [0], [1], [0, 0, 1, 1], [], []>} : vector<6x4xf32>, vector<4x384xf32>, vector<6x384xf32> -> vector<6x384xf32>
    %23 = arith.addf %16, %22 : vector<6x384xf32>
    %c0_24 = arith.constant 0 : index
    %c0_25 = arith.constant 0 : index
    %24 = vector.load %arg4[%c0_24, %c0_25] : memref<1x384xf32, #tpu.memory_space<vmem>>, vector<1x384xf32>
    %25 = vector.broadcast %24 : vector<1x384xf32> to vector<6x384xf32>
    %26 = arith.addf %23, %25 : vector<6x384xf32>
    %cst_26 = arith.constant 0.000000e+00 : f32
    %27 = vector.broadcast %cst_26 : f32 to vector<6x384xf32>
    %28 = arith.maximumf %26, %27 : vector<6x384xf32>
    %cst_27 = arith.constant 0.000000e+00 : f32
    %29 = vector.broadcast %cst_27 : f32 to vector<14x448xf32>
    %c0_28 = arith.constant 0 : index
    %c0_29 = arith.constant 0 : index
    %c0_30 = arith.constant 0 : index
    %30 = vector.load %arg5[%c0_28, %c0_29, %c0_30] : memref<4x384x448xf32, #tpu.memory_space<vmem>>, vector<1x384x448xf32>
    %31 = vector.shape_cast %30 : vector<1x384x448xf32> to vector<384x448xf32>
    %cst_31 = arith.constant dense<0.000000e+00> : vector<6x448xf32>
    %32 = tpu.matmul %28, %31, %cst_31 {dimension_numbers = #tpu.dot_dimension_numbers<[1], [0], [0], [1], [0, 0, 1, 1], [], []>} : vector<6x384xf32>, vector<384x448xf32>, vector<6x448xf32> -> vector<6x448xf32>
    %c0_32 = arith.constant 0 : index
    %c0_33 = arith.constant 0 : index
    %c0_34 = arith.constant 0 : index
    %33 = vector.load %arg6[%c0_32, %c0_33, %c0_34] : memref<4x14x6xf32, #tpu.memory_space<vmem>>, vector<1x14x6xf32>
    %34 = vector.shape_cast %33 : vector<1x14x6xf32> to vector<14x6xf32>
    %cst_35 = arith.constant dense<0.000000e+00> : vector<14x448xf32>
    %35 = tpu.matmul %34, %32, %cst_35 {dimension_numbers = #tpu.dot_dimension_numbers<[1], [0], [0], [1], [0, 0, 1, 1], [], []>} : vector<14x6xf32>, vector<6x448xf32>, vector<14x448xf32> -> vector<14x448xf32>
    %36 = arith.addf %29, %35 : vector<14x448xf32>
    %c1_36 = arith.constant 1 : index
    %c0_37 = arith.constant 0 : index
    %c0_38 = arith.constant 0 : index
    %37 = vector.load %arg5[%c1_36, %c0_37, %c0_38] : memref<4x384x448xf32, #tpu.memory_space<vmem>>, vector<1x384x448xf32>
    %38 = vector.shape_cast %37 : vector<1x384x448xf32> to vector<384x448xf32>
    %cst_39 = arith.constant dense<0.000000e+00> : vector<6x448xf32>
    %39 = tpu.matmul %28, %38, %cst_39 {dimension_numbers = #tpu.dot_dimension_numbers<[1], [0], [0], [1], [0, 0, 1, 1], [], []>} : vector<6x384xf32>, vector<384x448xf32>, vector<6x448xf32> -> vector<6x448xf32>
    %c1_40 = arith.constant 1 : index
    %c0_41 = arith.constant 0 : index
    %c0_42 = arith.constant 0 : index
    %40 = vector.load %arg6[%c1_40, %c0_41, %c0_42] : memref<4x14x6xf32, #tpu.memory_space<vmem>>, vector<1x14x6xf32>
    %41 = vector.shape_cast %40 : vector<1x14x6xf32> to vector<14x6xf32>
    %cst_43 = arith.constant dense<0.000000e+00> : vector<14x448xf32>
    %42 = tpu.matmul %41, %39, %cst_43 {dimension_numbers = #tpu.dot_dimension_numbers<[1], [0], [0], [1], [0, 0, 1, 1], [], []>} : vector<14x6xf32>, vector<6x448xf32>, vector<14x448xf32> -> vector<14x448xf32>
    %43 = arith.addf %36, %42 : vector<14x448xf32>
    %c2_44 = arith.constant 2 : index
    %c0_45 = arith.constant 0 : index
    %c0_46 = arith.constant 0 : index
    %44 = vector.load %arg5[%c2_44, %c0_45, %c0_46] : memref<4x384x448xf32, #tpu.memory_space<vmem>>, vector<1x384x448xf32>
    %45 = vector.shape_cast %44 : vector<1x384x448xf32> to vector<384x448xf32>
    %cst_47 = arith.constant dense<0.000000e+00> : vector<6x448xf32>
    %46 = tpu.matmul %28, %45, %cst_47 {dimension_numbers = #tpu.dot_dimension_numbers<[1], [0], [0], [1], [0, 0, 1, 1], [], []>} : vector<6x384xf32>, vector<384x448xf32>, vector<6x448xf32> -> vector<6x448xf32>
    %c2_48 = arith.constant 2 : index
    %c0_49 = arith.constant 0 : index
    %c0_50 = arith.constant 0 : index
    %47 = vector.load %arg6[%c2_48, %c0_49, %c0_50] : memref<4x14x6xf32, #tpu.memory_space<vmem>>, vector<1x14x6xf32>
    %48 = vector.shape_cast %47 : vector<1x14x6xf32> to vector<14x6xf32>
    %cst_51 = arith.constant dense<0.000000e+00> : vector<14x448xf32>
    %49 = tpu.matmul %48, %46, %cst_51 {dimension_numbers = #tpu.dot_dimension_numbers<[1], [0], [0], [1], [0, 0, 1, 1], [], []>} : vector<14x6xf32>, vector<6x448xf32>, vector<14x448xf32> -> vector<14x448xf32>
    %50 = arith.addf %43, %49 : vector<14x448xf32>
    %c3 = arith.constant 3 : index
    %c0_52 = arith.constant 0 : index
    %c0_53 = arith.constant 0 : index
    %51 = vector.load %arg5[%c3, %c0_52, %c0_53] : memref<4x384x448xf32, #tpu.memory_space<vmem>>, vector<1x384x448xf32>
    %52 = vector.shape_cast %51 : vector<1x384x448xf32> to vector<384x448xf32>
    %cst_54 = arith.constant dense<0.000000e+00> : vector<6x448xf32>
    %53 = tpu.matmul %28, %52, %cst_54 {dimension_numbers = #tpu.dot_dimension_numbers<[1], [0], [0], [1], [0, 0, 1, 1], [], []>} : vector<6x384xf32>, vector<384x448xf32>, vector<6x448xf32> -> vector<6x448xf32>
    %c3_55 = arith.constant 3 : index
    %c0_56 = arith.constant 0 : index
    %c0_57 = arith.constant 0 : index
    %54 = vector.load %arg6[%c3_55, %c0_56, %c0_57] : memref<4x14x6xf32, #tpu.memory_space<vmem>>, vector<1x14x6xf32>
    %55 = vector.shape_cast %54 : vector<1x14x6xf32> to vector<14x6xf32>
    %cst_58 = arith.constant dense<0.000000e+00> : vector<14x448xf32>
    %56 = tpu.matmul %55, %53, %cst_58 {dimension_numbers = #tpu.dot_dimension_numbers<[1], [0], [0], [1], [0, 0, 1, 1], [], []>} : vector<14x6xf32>, vector<6x448xf32>, vector<14x448xf32> -> vector<14x448xf32>
    %57 = arith.addf %50, %56 : vector<14x448xf32>
    %c0_59 = arith.constant 0 : index
    %c0_60 = arith.constant 0 : index
    %58 = vector.load %arg7[%c0_59, %c0_60] : memref<1x448xf32, #tpu.memory_space<vmem>>, vector<1x448xf32>
    %59 = vector.broadcast %58 : vector<1x448xf32> to vector<14x448xf32>
    %60 = arith.addf %57, %59 : vector<14x448xf32>
    %cst_61 = arith.constant 0.000000e+00 : f32
    %61 = vector.broadcast %cst_61 : f32 to vector<14x448xf32>
    %62 = arith.maximumf %60, %61 : vector<14x448xf32>
    %cst_62 = arith.constant 0.000000e+00 : f32
    %63 = vector.broadcast %cst_62 : f32 to vector<58x232xf32>
    %c0_63 = arith.constant 0 : index
    %c0_64 = arith.constant 0 : index
    %c0_65 = arith.constant 0 : index
    %64 = vector.load %arg8[%c0_63, %c0_64, %c0_65] : memref<8x448x232xf32, #tpu.memory_space<vmem>>, vector<1x448x232xf32>
    %65 = vector.shape_cast %64 : vector<1x448x232xf32> to vector<448x232xf32>
    %cst_66 = arith.constant dense<0.000000e+00> : vector<14x232xf32>
    %66 = tpu.matmul %62, %65, %cst_66 {dimension_numbers = #tpu.dot_dimension_numbers<[1], [0], [0], [1], [0, 0, 1, 1], [], []>} : vector<14x448xf32>, vector<448x232xf32>, vector<14x232xf32> -> vector<14x232xf32>
    %c0_67 = arith.constant 0 : index
    %c0_68 = arith.constant 0 : index
    %c0_69 = arith.constant 0 : index
    %67 = vector.load %arg9[%c0_67, %c0_68, %c0_69] : memref<8x58x14xf32, #tpu.memory_space<vmem>>, vector<1x58x14xf32>
    %68 = vector.shape_cast %67 : vector<1x58x14xf32> to vector<58x14xf32>
    %cst_70 = arith.constant dense<0.000000e+00> : vector<58x232xf32>
    %69 = tpu.matmul %68, %66, %cst_70 {dimension_numbers = #tpu.dot_dimension_numbers<[1], [0], [0], [1], [0, 0, 1, 1], [], []>} : vector<58x14xf32>, vector<14x232xf32>, vector<58x232xf32> -> vector<58x232xf32>
    %70 = arith.addf %63, %69 : vector<58x232xf32>
    %c1_71 = arith.constant 1 : index
    %c0_72 = arith.constant 0 : index
    %c0_73 = arith.constant 0 : index
    %71 = vector.load %arg8[%c1_71, %c0_72, %c0_73] : memref<8x448x232xf32, #tpu.memory_space<vmem>>, vector<1x448x232xf32>
    %72 = vector.shape_cast %71 : vector<1x448x232xf32> to vector<448x232xf32>
    %cst_74 = arith.constant dense<0.000000e+00> : vector<14x232xf32>
    %73 = tpu.matmul %62, %72, %cst_74 {dimension_numbers = #tpu.dot_dimension_numbers<[1], [0], [0], [1], [0, 0, 1, 1], [], []>} : vector<14x448xf32>, vector<448x232xf32>, vector<14x232xf32> -> vector<14x232xf32>
    %c1_75 = arith.constant 1 : index
    %c0_76 = arith.constant 0 : index
    %c0_77 = arith.constant 0 : index
    %74 = vector.load %arg9[%c1_75, %c0_76, %c0_77] : memref<8x58x14xf32, #tpu.memory_space<vmem>>, vector<1x58x14xf32>
    %75 = vector.shape_cast %74 : vector<1x58x14xf32> to vector<58x14xf32>
    %cst_78 = arith.constant dense<0.000000e+00> : vector<58x232xf32>
    %76 = tpu.matmul %75, %73, %cst_78 {dimension_numbers = #tpu.dot_dimension_numbers<[1], [0], [0], [1], [0, 0, 1, 1], [], []>} : vector<58x14xf32>, vector<14x232xf32>, vector<58x232xf32> -> vector<58x232xf32>
    %77 = arith.addf %70, %76 : vector<58x232xf32>
    %c2_79 = arith.constant 2 : index
    %c0_80 = arith.constant 0 : index
    %c0_81 = arith.constant 0 : index
    %78 = vector.load %arg8[%c2_79, %c0_80, %c0_81] : memref<8x448x232xf32, #tpu.memory_space<vmem>>, vector<1x448x232xf32>
    %79 = vector.shape_cast %78 : vector<1x448x232xf32> to vector<448x232xf32>
    %cst_82 = arith.constant dense<0.000000e+00> : vector<14x232xf32>
    %80 = tpu.matmul %62, %79, %cst_82 {dimension_numbers = #tpu.dot_dimension_numbers<[1], [0], [0], [1], [0, 0, 1, 1], [], []>} : vector<14x448xf32>, vector<448x232xf32>, vector<14x232xf32> -> vector<14x232xf32>
    %c2_83 = arith.constant 2 : index
    %c0_84 = arith.constant 0 : index
    %c0_85 = arith.constant 0 : index
    %81 = vector.load %arg9[%c2_83, %c0_84, %c0_85] : memref<8x58x14xf32, #tpu.memory_space<vmem>>, vector<1x58x14xf32>
    %82 = vector.shape_cast %81 : vector<1x58x14xf32> to vector<58x14xf32>
    %cst_86 = arith.constant dense<0.000000e+00> : vector<58x232xf32>
    %83 = tpu.matmul %82, %80, %cst_86 {dimension_numbers = #tpu.dot_dimension_numbers<[1], [0], [0], [1], [0, 0, 1, 1], [], []>} : vector<58x14xf32>, vector<14x232xf32>, vector<58x232xf32> -> vector<58x232xf32>
    %84 = arith.addf %77, %83 : vector<58x232xf32>
    %c3_87 = arith.constant 3 : index
    %c0_88 = arith.constant 0 : index
    %c0_89 = arith.constant 0 : index
    %85 = vector.load %arg8[%c3_87, %c0_88, %c0_89] : memref<8x448x232xf32, #tpu.memory_space<vmem>>, vector<1x448x232xf32>
    %86 = vector.shape_cast %85 : vector<1x448x232xf32> to vector<448x232xf32>
    %cst_90 = arith.constant dense<0.000000e+00> : vector<14x232xf32>
    %87 = tpu.matmul %62, %86, %cst_90 {dimension_numbers = #tpu.dot_dimension_numbers<[1], [0], [0], [1], [0, 0, 1, 1], [], []>} : vector<14x448xf32>, vector<448x232xf32>, vector<14x232xf32> -> vector<14x232xf32>
    %c3_91 = arith.constant 3 : index
    %c0_92 = arith.constant 0 : index
    %c0_93 = arith.constant 0 : index
    %88 = vector.load %arg9[%c3_91, %c0_92, %c0_93] : memref<8x58x14xf32, #tpu.memory_space<vmem>>, vector<1x58x14xf32>
    %89 = vector.shape_cast %88 : vector<1x58x14xf32> to vector<58x14xf32>
    %cst_94 = arith.constant dense<0.000000e+00> : vector<58x232xf32>
    %90 = tpu.matmul %89, %87, %cst_94 {dimension_numbers = #tpu.dot_dimension_numbers<[1], [0], [0], [1], [0, 0, 1, 1], [], []>} : vector<58x14xf32>, vector<14x232xf32>, vector<58x232xf32> -> vector<58x232xf32>
    %91 = arith.addf %84, %90 : vector<58x232xf32>
    %c4 = arith.constant 4 : index
    %c0_95 = arith.constant 0 : index
    %c0_96 = arith.constant 0 : index
    %92 = vector.load %arg8[%c4, %c0_95, %c0_96] : memref<8x448x232xf32, #tpu.memory_space<vmem>>, vector<1x448x232xf32>
    %93 = vector.shape_cast %92 : vector<1x448x232xf32> to vector<448x232xf32>
    %cst_97 = arith.constant dense<0.000000e+00> : vector<14x232xf32>
    %94 = tpu.matmul %62, %93, %cst_97 {dimension_numbers = #tpu.dot_dimension_numbers<[1], [0], [0], [1], [0, 0, 1, 1], [], []>} : vector<14x448xf32>, vector<448x232xf32>, vector<14x232xf32> -> vector<14x232xf32>
    %c4_98 = arith.constant 4 : index
    %c0_99 = arith.constant 0 : index
    %c0_100 = arith.constant 0 : index
    %95 = vector.load %arg9[%c4_98, %c0_99, %c0_100] : memref<8x58x14xf32, #tpu.memory_space<vmem>>, vector<1x58x14xf32>
    %96 = vector.shape_cast %95 : vector<1x58x14xf32> to vector<58x14xf32>
    %cst_101 = arith.constant dense<0.000000e+00> : vector<58x232xf32>
    %97 = tpu.matmul %96, %94, %cst_101 {dimension_numbers = #tpu.dot_dimension_numbers<[1], [0], [0], [1], [0, 0, 1, 1], [], []>} : vector<58x14xf32>, vector<14x232xf32>, vector<58x232xf32> -> vector<58x232xf32>
    %98 = arith.addf %91, %97 : vector<58x232xf32>
    %c5 = arith.constant 5 : index
    %c0_102 = arith.constant 0 : index
    %c0_103 = arith.constant 0 : index
    %99 = vector.load %arg8[%c5, %c0_102, %c0_103] : memref<8x448x232xf32, #tpu.memory_space<vmem>>, vector<1x448x232xf32>
    %100 = vector.shape_cast %99 : vector<1x448x232xf32> to vector<448x232xf32>
    %cst_104 = arith.constant dense<0.000000e+00> : vector<14x232xf32>
    %101 = tpu.matmul %62, %100, %cst_104 {dimension_numbers = #tpu.dot_dimension_numbers<[1], [0], [0], [1], [0, 0, 1, 1], [], []>} : vector<14x448xf32>, vector<448x232xf32>, vector<14x232xf32> -> vector<14x232xf32>
    %c5_105 = arith.constant 5 : index
    %c0_106 = arith.constant 0 : index
    %c0_107 = arith.constant 0 : index
    %102 = vector.load %arg9[%c5_105, %c0_106, %c0_107] : memref<8x58x14xf32, #tpu.memory_space<vmem>>, vector<1x58x14xf32>
    %103 = vector.shape_cast %102 : vector<1x58x14xf32> to vector<58x14xf32>
    %cst_108 = arith.constant dense<0.000000e+00> : vector<58x232xf32>
    %104 = tpu.matmul %103, %101, %cst_108 {dimension_numbers = #tpu.dot_dimension_numbers<[1], [0], [0], [1], [0, 0, 1, 1], [], []>} : vector<58x14xf32>, vector<14x232xf32>, vector<58x232xf32> -> vector<58x232xf32>
    %105 = arith.addf %98, %104 : vector<58x232xf32>
    %c6 = arith.constant 6 : index
    %c0_109 = arith.constant 0 : index
    %c0_110 = arith.constant 0 : index
    %106 = vector.load %arg8[%c6, %c0_109, %c0_110] : memref<8x448x232xf32, #tpu.memory_space<vmem>>, vector<1x448x232xf32>
    %107 = vector.shape_cast %106 : vector<1x448x232xf32> to vector<448x232xf32>
    %cst_111 = arith.constant dense<0.000000e+00> : vector<14x232xf32>
    %108 = tpu.matmul %62, %107, %cst_111 {dimension_numbers = #tpu.dot_dimension_numbers<[1], [0], [0], [1], [0, 0, 1, 1], [], []>} : vector<14x448xf32>, vector<448x232xf32>, vector<14x232xf32> -> vector<14x232xf32>
    %c6_112 = arith.constant 6 : index
    %c0_113 = arith.constant 0 : index
    %c0_114 = arith.constant 0 : index
    %109 = vector.load %arg9[%c6_112, %c0_113, %c0_114] : memref<8x58x14xf32, #tpu.memory_space<vmem>>, vector<1x58x14xf32>
    %110 = vector.shape_cast %109 : vector<1x58x14xf32> to vector<58x14xf32>
    %cst_115 = arith.constant dense<0.000000e+00> : vector<58x232xf32>
    %111 = tpu.matmul %110, %108, %cst_115 {dimension_numbers = #tpu.dot_dimension_numbers<[1], [0], [0], [1], [0, 0, 1, 1], [], []>} : vector<58x14xf32>, vector<14x232xf32>, vector<58x232xf32> -> vector<58x232xf32>
    %112 = arith.addf %105, %111 : vector<58x232xf32>
    %c7 = arith.constant 7 : index
    %c0_116 = arith.constant 0 : index
    %c0_117 = arith.constant 0 : index
    %113 = vector.load %arg8[%c7, %c0_116, %c0_117] : memref<8x448x232xf32, #tpu.memory_space<vmem>>, vector<1x448x232xf32>
    %114 = vector.shape_cast %113 : vector<1x448x232xf32> to vector<448x232xf32>
    %cst_118 = arith.constant dense<0.000000e+00> : vector<14x232xf32>
    %115 = tpu.matmul %62, %114, %cst_118 {dimension_numbers = #tpu.dot_dimension_numbers<[1], [0], [0], [1], [0, 0, 1, 1], [], []>} : vector<14x448xf32>, vector<448x232xf32>, vector<14x232xf32> -> vector<14x232xf32>
    %c7_119 = arith.constant 7 : index
    %c0_120 = arith.constant 0 : index
    %c0_121 = arith.constant 0 : index
    %116 = vector.load %arg9[%c7_119, %c0_120, %c0_121] : memref<8x58x14xf32, #tpu.memory_space<vmem>>, vector<1x58x14xf32>
    %117 = vector.shape_cast %116 : vector<1x58x14xf32> to vector<58x14xf32>
    %cst_122 = arith.constant dense<0.000000e+00> : vector<58x232xf32>
    %118 = tpu.matmul %117, %115, %cst_122 {dimension_numbers = #tpu.dot_dimension_numbers<[1], [0], [0], [1], [0, 0, 1, 1], [], []>} : vector<58x14xf32>, vector<14x232xf32>, vector<58x232xf32> -> vector<58x232xf32>
    %119 = arith.addf %112, %118 : vector<58x232xf32>
    %c0_123 = arith.constant 0 : index
    %c0_124 = arith.constant 0 : index
    %120 = vector.load %arg10[%c0_123, %c0_124] : memref<1x232xf32, #tpu.memory_space<vmem>>, vector<1x232xf32>
    %121 = vector.broadcast %120 : vector<1x232xf32> to vector<58x232xf32>
    %122 = arith.addf %119, %121 : vector<58x232xf32>
    %cst_125 = arith.constant 0.000000e+00 : f32
    %123 = vector.broadcast %cst_125 : f32 to vector<58x232xf32>
    %124 = arith.subf %123, %122 : vector<58x232xf32>
    %125 = math.exp %124 : vector<58x232xf32>
    %cst_126 = arith.constant 1.000000e+00 : f32
    %126 = vector.broadcast %cst_126 : f32 to vector<58x232xf32>
    %127 = arith.addf %126, %125 : vector<58x232xf32>
    %cst_127 = arith.constant 1.000000e+00 : f32
    %128 = vector.broadcast %cst_127 : f32 to vector<58x232xf32>
    %129 = arith.divf %128, %127 : vector<58x232xf32>
    %c0_128 = arith.constant 0 : index
    %c0_129 = arith.constant 0 : index
    %c0_130 = arith.constant 0 : index
    %130 = vector.load %arg11[%c0_128, %c0_129, %c0_130] : memref<1x58x232xf32, #tpu.memory_space<vmem>>, vector<1x58x232xf32>
    %131 = vector.shape_cast %130 : vector<1x58x232xf32> to vector<58x232xf32>
    %132 = vector.shape_cast %129 : vector<58x232xf32> to vector<1x58x232xf32>
    tpu.vector_store %arg11[%c0_128, %c0_129, %c0_130], %132 {strides = array<i32>} : memref<1x58x232xf32, #tpu.memory_space<vmem>>, vector<1x58x232xf32>,
    return
  }
  func.func @transform_0(%arg0: i32) -> (i32, i32, i32) {
    %c0_i32 = arith.constant 0 : i32
    %c0_i32_0 = arith.constant 0 : i32
    %c0_i32_1 = arith.constant 0 : i32
    return %arg0, %c0_i32, %c0_i32_0 : i32, i32, i32
  }
  func.func @transform_1(%arg0: i32) -> (i32, i32, i32) {
    %c0_i32 = arith.constant 0 : i32
    %c0_i32_0 = arith.constant 0 : i32
    %c0_i32_1 = arith.constant 0 : i32
    %c0_i32_2 = arith.constant 0 : i32
    return %c0_i32, %c0_i32_0, %c0_i32_1 : i32, i32, i32
  }
  func.func @transform_2(%arg0: i32) -> (i32, i32, i32) {
    %c0_i32 = arith.constant 0 : i32
    %c0_i32_0 = arith.constant 0 : i32
    %c0_i32_1 = arith.constant 0 : i32
    %c0_i32_2 = arith.constant 0 : i32
    return %c0_i32, %c0_i32_0, %c0_i32_1 : i32, i32, i32
  }
  func.func @transform_3(%arg0: i32) -> (i32, i32) {
    %c0_i32 = arith.constant 0 : i32
    %c0_i32_0 = arith.constant 0 : i32
    %c0_i32_1 = arith.constant 0 : i32
    return %c0_i32, %c0_i32_0 : i32, i32
  }
  func.func @transform_4(%arg0: i32) -> (i32, i32, i32) {
    %c0_i32 = arith.constant 0 : i32
    %c0_i32_0 = arith.constant 0 : i32
    %c0_i32_1 = arith.constant 0 : i32
    %c0_i32_2 = arith.constant 0 : i32
    return %c0_i32, %c0_i32_0, %c0_i32_1 : i32, i32, i32
  }
  func.func @transform_5(%arg0: i32) -> (i32, i32, i32) {
    %c0_i32 = arith.constant 0 : i32
    %c0_i32_0 = arith.constant 0 : i32
    %c0_i32_1 = arith.constant 0 : i32
    %c0_i32_2 = arith.constant 0 : i32
    return %c0_i32, %c0_i32_0, %c0_i32_1 : i32, i32, i32
  }
  func.func @transform_6(%arg0: i32) -> (i32, i32) {
    %c0_i32 = arith.constant 0 : i32
    %c0_i32_0 = arith.constant 0 : i32
    %c0_i32_1 = arith.constant 0 : i32
    return %c0_i32, %c0_i32_0 : i32, i32
  }
  func.func @transform_7(%arg0: i32) -> (i32, i32, i32) {
    %c0_i32 = arith.constant 0 : i32
    %c0_i32_0 = arith.constant 0 : i32
    %c0_i32_1 = arith.constant 0 : i32
    %c0_i32_2 = arith.constant 0 : i32
    return %c0_i32, %c0_i32_0, %c0_i32_1 : i32, i32, i32
  }
  func.func @transform_8(%arg0: i32) -> (i32, i32, i32) {
    %c0_i32 = arith.constant 0 : i32
    %c0_i32_0 = arith.constant 0 : i32
    %c0_i32_1 = arith.constant 0 : i32
    %c0_i32_2 = arith.constant 0 : i32
    return %c0_i32, %c0_i32_0, %c0_i32_1 : i32, i32, i32
  }
  func.func @transform_9(%arg0: i32) -> (i32, i32) {
    %c0_i32 = arith.constant 0 : i32
    %c0_i32_0 = arith.constant 0 : i32
    %c0_i32_1 = arith.constant 0 : i32
    return %c0_i32, %c0_i32_0 : i32, i32
  }
  func.func @transform_10(%arg0: i32) -> (i32, i32, i32) {
    %c0_i32 = arith.constant 0 : i32
    %c0_i32_0 = arith.constant 0 : i32
    %c0_i32_1 = arith.constant 0 : i32
    return %arg0, %c0_i32, %c0_i32_0 : i32, i32, i32
  }
}

</mosaic_0001>

<llo_original>
// kernel: tpu_custom_call.1
$region0: #{tpu_custom_call.1}
  #allocation0 [shape = 'u32[]', space=smem, size = 0x4, offset = 0x4, fixed_abs, tag = 'smem constant byte address 0x4 - core index']
  #allocation1 [shape = 'u32[144,128]{1,0:T(1,128)}', space=vmem, size = 0x12000, scoped, tag = 'internal scratch']
  %s0 = inlined_call_operand.vmem [shape: f32[2,4,256], index: 0, kind: input, shape index: {}]
  %s1 = inlined_call_operand.vmem [shape: f32[3,256,384], index: 1, kind: input, shape index: {}]
  %s2 = inlined_call_operand.vmem [shape: f32[3,6,4], index: 2, kind: input, shape index: {}]
  %s3 = inlined_call_operand.vmem [shape: f32[1,384], index: 3, kind: input, shape index: {}]
  %s4 = inlined_call_operand.vmem [shape: f32[4,384,448], index: 4, kind: input, shape index: {}]
  %s5 = inlined_call_operand.vmem [shape: f32[4,14,6], index: 5, kind: input, shape index: {}]
  %s6 = inlined_call_operand.vmem [shape: f32[1,448], index: 6, kind: input, shape index: {}]
  %s7 = inlined_call_operand.vmem [shape: f32[8,448,232], index: 7, kind: input, shape index: {}]
  %s8 = inlined_call_operand.vmem [shape: f32[8,58,14], index: 8, kind: input, shape index: {}]
  %s9 = inlined_call_operand.vmem [shape: f32[1,232], index: 9, kind: input, shape index: {}]
  %s10 = inlined_call_operand.vmem [shape: f32[2,58,232], index: 10, kind: output, shape index: {}]
  %s11 = sld [smem:[#allocation0]]
  $region73: #{tpu_custom_call.1} parent=0
    _
  %s13 = ssub.s32 1, %s11
  %s14 = scalar_select 0, %s13, %s11
  loop: start=0, step=1, limit=4
  $region2: #{tpu_custom_call.1} parent=0 // loop_pre_header
    _
  $region3: #{tpu_custom_call.1} parent=0 // loop_header
    %s16 = sphi 0, %s20
    %p17 = scmp.ge.s32.totalorder %s16, 4
    %s26 = sphi 0, %s28
    %s29 = sphi 0, %s26
    %s30 = sphi 0, %s29
    %s46 = sphi 0, %s30
    %s50 = sphi 0, %s50
    %s52 = sphi 0, %s50
    %s53 = sphi 0, %s52
    %s67 = sphi 0, %s53
    %s71 = sphi 0, %s71
    %s73 = sphi 0, %s71
    %s74 = sphi 0, %s73
    %s88 = sphi 0, %s74
    %s92 = sphi 0, %s92
    %s94 = sphi 0, %s92
    %s95 = sphi 0, %s94
    %s109 = sphi 0, %s95
    %s113 = sphi 0, %s113
    %s115 = sphi 0, %s113
    %s116 = sphi 0, %s115
    %s130 = sphi 0, %s116
    %s134 = sphi 0, %s134
    %s136 = sphi 0, %s134
    %s137 = sphi 0, %s136
    %s151 = sphi 0, %s137
    %s155 = sphi 0, %s155
    %s157 = sphi 0, %s155
    %s158 = sphi 0, %s157
    %s172 = sphi 0, %s158
    %s176 = sphi 0, %s176
    %s178 = sphi 0, %s176
    %s179 = sphi 0, %s178
    %s193 = sphi 0, %s179
    %s197 = sphi 0, %s197
    %s199 = sphi 0, %s197
    %s200 = sphi 0, %s199
    %s214 = sphi 0, %s200
    %s218 = sphi 0, %s218
    %s220 = sphi 0, %s218
    %s221 = sphi 0, %s220
    %s235 = sphi 0, %s221
    %s241 = sphi 0, %s243
    %s244 = sphi 0, %s241
    %s245 = sphi 0, %s244
    %s261 = sphi 0, %s245
  $region4: #{tpu_custom_call.1} parent=0 // loop_header_branch
    %19 = sbr.rel (%p17) target = $region8
  $region5: #{tpu_custom_call.1} parent=0 // loop_body
    %s21 = ssub.s32 %s16, 1
    %s22 = ssub.s32 %s16, 2
    %s23 = sadd.s32 %s16, 1
    %s24 = ssub.s32 %s16, %s23
    %p25 = scmp.eq.s32.totalorder %s24, 0
    %s27 = sadd.s32 %s26, 1
    %s28 = scalar_select %p25, %s26, %s27
    %p31 = pneg %p25
    %p32 = scmp.eq.s32.totalorder %s16, 1
    %p33 = por %p31, %p32
    %p34 = scmp.ne.s32.totalorder %s26, %s29
    %p35 = scmp.eq.s32.totalorder %s16, 0
    %p36 = por %p34, %p35
    %p37 = scmp.ne.s32.totalorder %s26, %s29
    %p38 = scmp.eq.s32.totalorder %s21, 1
    %p39 = por %p37, %p38
    %p40 = scmp.ne.s32.totalorder %s29, %s30
    %p41 = scmp.eq.s32.totalorder %s21, 0
    %p42 = por %p40, %p41
    %p43 = scmp.ne.s32.totalorder %s29, %s30
    %p44 = scmp.eq.s32.totalorder %s22, 1
    %p45 = por %p43, %p44
    %p47 = scmp.ne.s32.totalorder %s30, %s46
    %p48 = scmp.eq.s32.totalorder %s22, 0
    %p49 = por %p47, %p48
    %s51 = sadd.s32 %s50, 1
    %p54 = scmp.eq.s32.totalorder %s16, 1
    %p55 = scmp.ne.s32.totalorder %s50, %s52
    %p56 = scmp.eq.s32.totalorder %s16, 0
    %p57 = por %p55, %p56
    %p58 = scmp.ne.s32.totalorder %s50, %s52
    %p59 = scmp.eq.s32.totalorder %s21, 1
    %p60 = por %p58, %p59
    %p61 = scmp.ne.s32.totalorder %s52, %s53
    %p62 = scmp.eq.s32.totalorder %s21, 0
    %p63 = por %p61, %p62
    %p64 = scmp.ne.s32.totalorder %s52, %s53
    %p65 = scmp.eq.s32.totalorder %s22, 1
    %p66 = por %p64, %p65
    %p68 = scmp.ne.s32.totalorder %s53, %s67
    %p69 = scmp.eq.s32.totalorder %s22, 0
    %p70 = por %p68, %p69
    %s72 = sadd.s32 %s71, 1
    %p75 = scmp.eq.s32.totalorder %s16, 1
    %p76 = scmp.ne.s32.totalorder %s71, %s73
    %p77 = scmp.eq.s32.totalorder %s16, 0
    %p78 = por %p76, %p77
    %p79 = scmp.ne.s32.totalorder %s71, %s73
    %p80 = scmp.eq.s32.totalorder %s21, 1
    %p81 = por %p79, %p80
    %p82 = scmp.ne.s32.totalorder %s73, %s74
    %p83 = scmp.eq.s32.totalorder %s21, 0
    %p84 = por %p82, %p83
    %p85 = scmp.ne.s32.totalorder %s73, %s74
    %p86 = scmp.eq.s32.totalorder %s22, 1
    %p87 = por %p85, %p86
    %p89 = scmp.ne.s32.totalorder %s74, %s88
    %p90 = scmp.eq.s32.totalorder %s22, 0
    %p91 = por %p89, %p90
    %s93 = sadd.s32 %s92, 1
    %p96 = scmp.eq.s32.totalorder %s16, 1
    %p97 = scmp.ne.s32.totalorder %s92, %s94
    %p98 = scmp.eq.s32.totalorder %s16, 0
    %p99 = por %p97, %p98
    %p100 = scmp.ne.s32.totalorder %s92, %s94
    %p101 = scmp.eq.s32.totalorder %s21, 1
    %p102 = por %p100, %p101
    %p103 = scmp.ne.s32.totalorder %s94, %s95
    %p104 = scmp.eq.s32.totalorder %s21, 0
    %p105 = por %p103, %p104
    %p106 = scmp.ne.s32.totalorder %s94, %s95
    %p107 = scmp.eq.s32.totalorder %s22, 1
    %p108 = por %p106, %p107
    %p110 = scmp.ne.s32.totalorder %s95, %s109
    %p111 = scmp.eq.s32.totalorder %s22, 0
    %p112 = por %p110, %p111
    %s114 = sadd.s32 %s113, 1
    %p117 = scmp.eq.s32.totalorder %s16, 1
    %p118 = scmp.ne.s32.totalorder %s113, %s115
    %p119 = scmp.eq.s32.totalorder %s16, 0
    %p120 = por %p118, %p119
    %p121 = scmp.ne.s32.totalorder %s113, %s115
    %p122 = scmp.eq.s32.totalorder %s21, 1
    %p123 = por %p121, %p122
    %p124 = scmp.ne.s32.totalorder %s115, %s116
    %p125 = scmp.eq.s32.totalorder %s21, 0
    %p126 = por %p124, %p125
    %p127 = scmp.ne.s32.totalorder %s115, %s116
    %p128 = scmp.eq.s32.totalorder %s22, 1
    %p129 = por %p127, %p128
    %p131 = scmp.ne.s32.totalorder %s116, %s130
    %p132 = scmp.eq.s32.totalorder %s22, 0
    %p133 = por %p131, %p132
    %s135 = sadd.s32 %s134, 1
    %p138 = scmp.eq.s32.totalorder %s16, 1
    %p139 = scmp.ne.s32.totalorder %s134, %s136
    %p140 = scmp.eq.s32.totalorder %s16, 0
    %p141 = por %p139, %p140
    %p142 = scmp.ne.s32.totalorder %s134, %s136
    %p143 = scmp.eq.s32.totalorder %s21, 1
    %p144 = por %p142, %p143
    %p145 = scmp.ne.s32.totalorder %s136, %s137
    %p146 = scmp.eq.s32.totalorder %s21, 0
    %p147 = por %p145, %p146
    %p148 = scmp.ne.s32.totalorder %s136, %s137
    %p149 = scmp.eq.s32.totalorder %s22, 1
    %p150 = por %p148, %p149
    %p152 = scmp.ne.s32.totalorder %s137, %s151
    %p153 = scmp.eq.s32.totalorder %s22, 0
    %p154 = por %p152, %p153
    %s156 = sadd.s32 %s155, 1
    %p159 = scmp.eq.s32.totalorder %s16, 1
    %p160 = scmp.ne.s32.totalorder %s155, %s157
    %p161 = scmp.eq.s32.totalorder %s16, 0
    %p162 = por %p160, %p161
    %p163 = scmp.ne.s32.totalorder %s155, %s157
    %p164 = scmp.eq.s32.totalorder %s21, 1
    %p165 = por %p163, %p164
    %p166 = scmp.ne.s32.totalorder %s157, %s158
    %p167 = scmp.eq.s32.totalorder %s21, 0
    %p168 = por %p166, %p167
    %p169 = scmp.ne.s32.totalorder %s157, %s158
    %p170 = scmp.eq.s32.totalorder %s22, 1
    %p171 = por %p169, %p170
    %p173 = scmp.ne.s32.totalorder %s158, %s172
    %p174 = scmp.eq.s32.totalorder %s22, 0
    %p175 = por %p173, %p174
    %s177 = sadd.s32 %s176, 1
    %p180 = scmp.eq.s32.totalorder %s16, 1
    %p181 = scmp.ne.s32.totalorder %s176, %s178
    %p182 = scmp.eq.s32.totalorder %s16, 0
    %p183 = por %p181, %p182
    %p184 = scmp.ne.s32.totalorder %s176, %s178
    %p185 = scmp.eq.s32.totalorder %s21, 1
    %p186 = por %p184, %p185
    %p187 = scmp.ne.s32.totalorder %s178, %s179
    %p188 = scmp.eq.s32.totalorder %s21, 0
    %p189 = por %p187, %p188
    %p190 = scmp.ne.s32.totalorder %s178, %s179
    %p191 = scmp.eq.s32.totalorder %s22, 1
    %p192 = por %p190, %p191
    %p194 = scmp.ne.s32.totalorder %s179, %s193
    %p195 = scmp.eq.s32.totalorder %s22, 0
    %p196 = por %p194, %p195
    %s198 = sadd.s32 %s197, 1
    %p201 = scmp.eq.s32.totalorder %s16, 1
    %p202 = scmp.ne.s32.totalorder %s197, %s199
    %p203 = scmp.eq.s32.totalorder %s16, 0
    %p204 = por %p202, %p203
    %p205 = scmp.ne.s32.totalorder %s197, %s199
    %p206 = scmp.eq.s32.totalorder %s21, 1
    %p207 = por %p205, %p206
    %p208 = scmp.ne.s32.totalorder %s199, %s200
    %p209 = scmp.eq.s32.totalorder %s21, 0
    %p210 = por %p208, %p209
    %p211 = scmp.ne.s32.totalorder %s199, %s200
    %p212 = scmp.eq.s32.totalorder %s22, 1
    %p213 = por %p211, %p212
    %p215 = scmp.ne.s32.totalorder %s200, %s214
    %p216 = scmp.eq.s32.totalorder %s22, 0
    %p217 = por %p215, %p216
    %s219 = sadd.s32 %s218, 1
    %p222 = scmp.eq.s32.totalorder %s16, 1
    %p223 = scmp.ne.s32.totalorder %s218, %s220
    %p224 = scmp.eq.s32.totalorder %s16, 0
    %p225 = por %p223, %p224
    %p226 = scmp.ne.s32.totalorder %s218, %s220
    %p227 = scmp.eq.s32.totalorder %s21, 1
    %p228 = por %p226, %p227
    %p229 = scmp.ne.s32.totalorder %s220, %s221
    %p230 = scmp.eq.s32.totalorder %s21, 0
    %p231 = por %p229, %p230
    %p232 = scmp.ne.s32.totalorder %s220, %s221
    %p233 = scmp.eq.s32.totalorder %s22, 1
    %p234 = por %p232, %p233
    %p236 = scmp.ne.s32.totalorder %s221, %s235
    %p237 = scmp.eq.s32.totalorder %s22, 0
    %p238 = por %p236, %p237
    %s239 = ssub.s32 %s16, %s23
    %p240 = scmp.eq.s32.totalorder %s239, 0
    %s242 = sadd.s32 %s241, 1
    %s243 = scalar_select %p240, %s241, %s242
    %p246 = pneg %p240
    %p247 = scmp.eq.s32.totalorder %s16, 1
    %p248 = por %p246, %p247
    %p249 = scmp.ne.s32.totalorder %s241, %s244
    %p250 = scmp.eq.s32.totalorder %s16, 0
    %p251 = por %p249, %p250
    %p252 = scmp.ne.s32.totalorder %s241, %s244
    %p253 = scmp.eq.s32.totalorder %s21, 1
    %p254 = por %p252, %p253
    %p255 = scmp.ne.s32.totalorder %s244, %s245
    %p256 = scmp.eq.s32.totalorder %s21, 0
    %p257 = por %p255, %p256
    %p258 = scmp.ne.s32.totalorder %s244, %s245
    %p259 = scmp.eq.s32.totalorder %s22, 1
    %p260 = por %p258, %p259
    %p262 = scmp.ne.s32.totalorder %s245, %s261
    %p263 = scmp.eq.s32.totalorder %s22, 0
    %p264 = por %p262, %p263
    %p265 = scmp.le.s32.totalorder 1, %s16
    %p266 = scmp.lt.s32.totalorder %s16, 3
    %p267 = pnand %p265, %p266
    %p268 = pneg %p267
    // Predicated region
    $region9: #{tpu_custom_call.1} parent=5 // pred_check
      _
    $region10: #{tpu_custom_call.1} parent=5 // pred_check_branch
      %270 = sbr.rel (%p267) target = $region12
    $region11: #{tpu_custom_call.1} parent=5 // pred_region
      %s271 = ssub.s32 %s16, 1
      // Predicated region
      $region13: #{tpu_custom_call.1} parent=11 // pred_check
        %p272 = pneg %p63
      $region14: #{tpu_custom_call.1} parent=11 // pred_check_branch
        %274 = sbr.rel (%p272) target = $region16
      $region15: #{tpu_custom_call.1} parent=11 // pred_region
        _
      $region16: #{tpu_custom_call.1} parent=11 // pred_fallthru
        _
      // Predicated region
      $region17: #{tpu_custom_call.1} parent=11 // pred_check
        %p275 = pneg %p84
      $region18: #{tpu_custom_call.1} parent=11 // pred_check_branch
        %277 = sbr.rel (%p275) target = $region20
      $region19: #{tpu_custom_call.1} parent=11 // pred_region
        _
      $region20: #{tpu_custom_call.1} parent=11 // pred_fallthru
        _
      // Predicated region
      $region21: #{tpu_custom_call.1} parent=11 // pred_check
        %p278 = pneg %p105
      $region22: #{tpu_custom_call.1} parent=11 // pred_check_branch
        %280 = sbr.rel (%p278) target = $region24
      $region23: #{tpu_custom_call.1} parent=11 // pred_region
        _
      $region24: #{tpu_custom_call.1} parent=11 // pred_fallthru
        _
      // Predicated region
      $region25: #{tpu_custom_call.1} parent=11 // pred_check
        %p281 = pneg %p126
      $region26: #{tpu_custom_call.1} parent=11 // pred_check_branch
        %283 = sbr.rel (%p281) target = $region28
      $region27: #{tpu_custom_call.1} parent=11 // pred_region
        _
      $region28: #{tpu_custom_call.1} parent=11 // pred_fallthru
        _
      // Predicated region
      $region29: #{tpu_custom_call.1} parent=11 // pred_check
        %p284 = pneg %p147
      $region30: #{tpu_custom_call.1} parent=11 // pred_check_branch
        %286 = sbr.rel (%p284) target = $region32
      $region31: #{tpu_custom_call.1} parent=11 // pred_region
        _
      $region32: #{tpu_custom_call.1} parent=11 // pred_fallthru
        _
      // Predicated region
      $region33: #{tpu_custom_call.1} parent=11 // pred_check
        %p287 = pneg %p168
      $region34: #{tpu_custom_call.1} parent=11 // pred_check_branch
        %289 = sbr.rel (%p287) target = $region36
      $region35: #{tpu_custom_call.1} parent=11 // pred_region
        _
      $region36: #{tpu_custom_call.1} parent=11 // pred_fallthru
        _
      // Predicated region
      $region37: #{tpu_custom_call.1} parent=11 // pred_check
        %p290 = pneg %p189
      $region38: #{tpu_custom_call.1} parent=11 // pred_check_branch
        %292 = sbr.rel (%p290) target = $region40
      $region39: #{tpu_custom_call.1} parent=11 // pred_region
        _
      $region40: #{tpu_custom_call.1} parent=11 // pred_fallthru
        _
      // Predicated region
      $region41: #{tpu_custom_call.1} parent=11 // pred_check
        %p293 = pneg %p210
      $region42: #{tpu_custom_call.1} parent=11 // pred_check_branch
        %295 = sbr.rel (%p293) target = $region44
      $region43: #{tpu_custom_call.1} parent=11 // pred_region
        _
      $region44: #{tpu_custom_call.1} parent=11 // pred_fallthru
        _
      // Predicated region
      $region45: #{tpu_custom_call.1} parent=11 // pred_check
        %p296 = pneg %p231
      $region46: #{tpu_custom_call.1} parent=11 // pred_check_branch
        %298 = sbr.rel (%p296) target = $region48
      $region47: #{tpu_custom_call.1} parent=11 // pred_region
        _
      $region48: #{tpu_custom_call.1} parent=11 // pred_fallthru
        _
    $region12: #{tpu_custom_call.1} parent=5 // pred_fallthru
      _
    %p299 = scmp.lt.s32.totalorder %s16, 2
    // Predicated region
    $region49: #{tpu_custom_call.1} parent=5 // pred_check
      %p300 = pneg %p299
    $region50: #{tpu_custom_call.1} parent=5 // pred_check_branch
      %302 = sbr.rel (%p300) target = $region52
    $region51: #{tpu_custom_call.1} parent=5 // pred_region
      // Predicated region
      $region53: #{tpu_custom_call.1} parent=51 // pred_check
        %p303 = pneg %p36
      $region54: #{tpu_custom_call.1} parent=51 // pred_check_branch
        %305 = sbr.rel (%p303) target = $region56
      $region55: #{tpu_custom_call.1} parent=51 // pred_region
        %p306 = scmp.lt.s32.totalorder %s16, 1
        %s307 = scalar_select %p306, %s16, 1
        %s308 = smul.addr %s307, 2
        %s309 = smul.addr %s308, 4
        %s310 = scalar_lea.vmem %s0, %s309
      $region56: #{tpu_custom_call.1} parent=51 // pred_fallthru
        _
    $region52: #{tpu_custom_call.1} parent=5 // pred_fallthru
      _
    %p311 = scmp.le.s32.totalorder 1, %s16
    %p312 = scmp.lt.s32.totalorder %s16, 3
    %p313 = pnand %p311, %p312
    %p314 = pneg %p313
    // Predicated region
    $region57: #{tpu_custom_call.1} parent=5 // pred_check
      _
    $region58: #{tpu_custom_call.1} parent=5 // pred_check_branch
      %316 = sbr.rel (%p313) target = $region60
    $region59: #{tpu_custom_call.1} parent=5 // pred_region
      %s317 = ssub.s32 %s16, 1
      %p318 = scmp.lt.s32.totalorder %s21, 1
      %s319 = scalar_select %p318, %s21, 1
      %s320 = smul.addr %s319, 2
      %s321 = smul.addr %s320, 4
      %s322 = scalar_lea.vmem %s0, %s321
      %p323 = pneg %p42
      %p324 = pneg %p39
      %p325 = pneg %p63
      %p326 = pneg %p60
      %p327 = pneg %p84
      %p328 = pneg %p81
      %p329 = pneg %p105
      %p330 = pneg %p102
      %p331 = pneg %p126
      %p332 = pneg %p123
      %p333 = pneg %p147
      %p334 = pneg %p144
      %p335 = pneg %p168
      %p336 = pneg %p165
      %p337 = pneg %p189
      %p338 = pneg %p186
      %p339 = pneg %p210
      %p340 = pneg %p207
      %p341 = pneg %p231
      %p342 = pneg %p228
      %p343 = pneg %p257
      %p344 = pneg %p254
      %p345 = scmp.lt.s32.totalorder %s21, 1
      %s346 = scalar_select %p345, %s21, 1
      %s347 = smul.addr %s346, 16
      %s348 = smul.addr %s347, 8
      %s349 = scalar_lea.vmem %s10, %s348
      %p350 = scmp.lt.s32.totalorder %s21, 1
      %s351 = scalar_select %p350, %s21, 1
      %s352 = smul.addr %s351, 2
      %s353 = smul.addr %s352, 4
      %s354 = scalar_lea.vmem %s0, %s353
      %p355 = scmp.lt.s32.totalorder %s21, 1
      %s356 = scalar_select %p355, %s21, 1
      %s357 = smul.addr %s356, 16
      %s358 = smul.addr %s357, 8
      %s359 = scalar_lea.vmem %s10, %s358
      %v360 = vld [vmem:[%s354] sm:$0xff]
      %v361 = vld [vmem:[%s1] sm:$0xff]
      %v362 = vld [vmem:[%s1 + $0x8] sm:$0xff]
      %v363 = vld [vmem:[%s1 + $0x10] sm:$0xff]
      %v364 = vld [vmem:[%s1 + $0x18] sm:$0xff]
      %v365 = vld [vmem:[%s1 + $0x20] sm:$0xff]
      %v366 = vld [vmem:[%s1 + $0x28] sm:$0xff]
      %v367 = vld [vmem:[%s1 + $0x30] sm:$0xff]
      %v368 = vld [vmem:[%s1 + $0x38] sm:$0xff]
      %v369 = vld [vmem:[%s1 + $0x40] sm:$0xff]
      %v370 = vld [vmem:[%s1 + $0x48] sm:$0xff]
      %v371 = vld [vmem:[%s1 + $0x50] sm:$0xff]
      %v372 = vld [vmem:[%s1 + $0x58] sm:$0xff]
      %v373 = vld [vmem:[%s1 + $0x60] sm:$0xff]
      %v374 = vld [vmem:[%s1 + $0x68] sm:$0xff]
      %v375 = vld [vmem:[%s1 + $0x70] sm:$0xff]
      %v376 = vld [vmem:[%s1 + $0x78] sm:$0xff]
      %v377 = vld [vmem:[%s1 + $0x80] sm:$0xff]
      %v378 = vld [vmem:[%s1 + $0x88] sm:$0xff]
      %v379 = vld [vmem:[%s1 + $0x90] sm:$0xff]
      %v380 = vld [vmem:[%s1 + $0x98] sm:$0xff]
      %v381 = vld [vmem:[%s1 + $0xa0] sm:$0xff]
      %v382 = vld [vmem:[%s1 + $0xa8] sm:$0xff]
      %v383 = vld [vmem:[%s1 + $0xb0] sm:$0xff]
      %v384 = vld [vmem:[%s1 + $0xb8] sm:$0xff]
      %v385 = vld [vmem:[%s1 + $0xc0] sm:$0xff]
      %v386 = vld [vmem:[%s1 + $0xc8] sm:$0xff]
      %v387 = vld [vmem:[%s1 + $0xd0] sm:$0xff]
      %v388 = vld [vmem:[%s1 + $0xd8] sm:$0xff]
      %v389 = vld [vmem:[%s1 + $0xe0] sm:$0xff]
      %v390 = vld [vmem:[%s1 + $0xe8] sm:$0xff]
      %v391 = vld [vmem:[%s1 + $0xf0] sm:$0xff]
      %v392 = vld [vmem:[%s1 + $0xf8] sm:$0xff]
      %v393 = vld [vmem:[%s1 + $0x100] sm:$0xff]
      %v394 = vld [vmem:[%s1 + $0x108] sm:$0xff]
      %v395 = vld [vmem:[%s1 + $0x110] sm:$0xff]
      %v396 = vld [vmem:[%s1 + $0x118] sm:$0xff]
      %v397 = vld [vmem:[%s1 + $0x120] sm:$0xff]
      %v398 = vld [vmem:[%s1 + $0x128] sm:$0xff]
      %v399 = vld [vmem:[%s1 + $0x130] sm:$0xff]
      %v400 = vld [vmem:[%s1 + $0x138] sm:$0xff]
      %v401 = vld [vmem:[%s1 + $0x140] sm:$0xff]
      %v402 = vld [vmem:[%s1 + $0x148] sm:$0xff]
      %v403 = vld [vmem:[%s1 + $0x150] sm:$0xff]
      %v404 = vld [vmem:[%s1 + $0x158] sm:$0xff]
      %v405 = vld [vmem:[%s1 + $0x160] sm:$0xff]
      %v406 = vld [vmem:[%s1 + $0x168] sm:$0xff]
      %v407 = vld [vmem:[%s1 + $0x170] sm:$0xff]
      %v408 = vld [vmem:[%s1 + $0x178] sm:$0xff]
      %v409 = vld [vmem:[%s1 + $0x180] sm:$0xff]
      %v410 = vld [vmem:[%s1 + $0x188] sm:$0xff]
      %v411 = vld [vmem:[%s1 + $0x190] sm:$0xff]
      %v412 = vld [vmem:[%s1 + $0x198] sm:$0xff]
      %v413 = vld [vmem:[%s1 + $0x1a0] sm:$0xff]
      %v414 = vld [vmem:[%s1 + $0x1a8] sm:$0xff]
      %v415 = vld [vmem:[%s1 + $0x1b0] sm:$0xff]
      %v416 = vld [vmem:[%s1 + $0x1b8] sm:$0xff]
      %v417 = vld [vmem:[%s1 + $0x1c0] sm:$0xff]
      %v418 = vld [vmem:[%s1 + $0x1c8] sm:$0xff]
      %v419 = vld [vmem:[%s1 + $0x1d0] sm:$0xff]
      %v420 = vld [vmem:[%s1 + $0x1d8] sm:$0xff]
      %v421 = vld [vmem:[%s1 + $0x1e0] sm:$0xff]
      %v422 = vld [vmem:[%s1 + $0x1e8] sm:$0xff]
      %v423 = vld [vmem:[%s1 + $0x1f0] sm:$0xff]
      %v424 = vld [vmem:[%s1 + $0x1f8] sm:$0xff]
      %v425 = vld [vmem:[%s1 + $0x200] sm:$0xff]
      %v426 = vld [vmem:[%s1 + $0x208] sm:$0xff]
      %v427 = vld [vmem:[%s1 + $0x210] sm:$0xff]
      %v428 = vld [vmem:[%s1 + $0x218] sm:$0xff]
      %v429 = vld [vmem:[%s1 + $0x220] sm:$0xff]
      %v430 = vld [vmem:[%s1 + $0x228] sm:$0xff]
      %v431 = vld [vmem:[%s1 + $0x230] sm:$0xff]
      %v432 = vld [vmem:[%s1 + $0x238] sm:$0xff]
      %v433 = vld [vmem:[%s1 + $0x240] sm:$0xff]
      %v434 = vld [vmem:[%s1 + $0x248] sm:$0xff]
      %v435 = vld [vmem:[%s1 + $0x250] sm:$0xff]
      %v436 = vld [vmem:[%s1 + $0x258] sm:$0xff]
      %v437 = vld [vmem:[%s1 + $0x260] sm:$0xff]
      %v438 = vld [vmem:[%s1 + $0x268] sm:$0xff]
      %v439 = vld [vmem:[%s1 + $0x270] sm:$0xff]
      %v440 = vld [vmem:[%s1 + $0x278] sm:$0xff]
      %v441 = vld [vmem:[%s1 + $0x280] sm:$0xff]
      %v442 = vld [vmem:[%s1 + $0x288] sm:$0xff]
      %v443 = vld [vmem:[%s1 + $0x290] sm:$0xff]
      %v444 = vld [vmem:[%s1 + $0x298] sm:$0xff]
      %v445 = vld [vmem:[%s1 + $0x2a0] sm:$0xff]
      %v446 = vld [vmem:[%s1 + $0x2a8] sm:$0xff]
      %v447 = vld [vmem:[%s1 + $0x2b0] sm:$0xff]
      %v448 = vld [vmem:[%s1 + $0x2b8] sm:$0xff]
      %v449 = vld [vmem:[%s1 + $0x2c0] sm:$0xff]
      %v450 = vld [vmem:[%s1 + $0x2c8] sm:$0xff]
      %v451 = vld [vmem:[%s1 + $0x2d0] sm:$0xff]
      %v452 = vld [vmem:[%s1 + $0x2d8] sm:$0xff]
      %v453 = vld [vmem:[%s1 + $0x2e0] sm:$0xff]
      %v454 = vld [vmem:[%s1 + $0x2e8] sm:$0xff]
      %v455 = vld [vmem:[%s1 + $0x2f0] sm:$0xff]
      %v456 = vld [vmem:[%s1 + $0x2f8] sm:$0xff]
      %v458 = vcombine.high %v360, %v360
      %460 = vmatprep.subr.mxu0 %v362
      %461 = vmatpush1.msra.mxu0 %v361
      %462 = vmatprep.subr.mxu0 %v365
      %463 = vmatpush1.msra.mxu0 %v364
      %464 = vmatprep.subr.mxu0 %v368
      %465 = vmatpush1.msra.mxu0 %v367
      %466 = vmatprep.subr.mxu0 %v371
      %467 = vmatpush1.msra.mxu0 %v370
      %468 = vmatprep.subr.mxu0 %v374
      %469 = vmatpush1.msra.mxu0 %v373
      %470 = vmatprep.subr.mxu0 %v377
      %471 = vmatpush1.msra.mxu0 %v376
      %472 = vmatprep.subr.mxu0 %v380
      %473 = vmatpush1.msra.mxu0 %v379
      %474 = vmatprep.subr.mxu0 %v383
      %475 = vmatpush1.msra.mxu0 %v382
      %476 = vmatprep.subr.mxu0 %v386
      %477 = vmatpush1.msra.mxu0 %v385
      %478 = vmatprep.subr.mxu0 %v389
      %479 = vmatpush1.msra.mxu0 %v388
      %480 = vmatprep.subr.mxu0 %v392
      %481 = vmatpush1.msra.mxu0 %v391
      %482 = vmatprep.subr.mxu0 %v395
      %483 = vmatpush1.msra.mxu0 %v394
      %484 = vmatprep.subr.mxu0 %v398
      %485 = vmatpush1.msra.mxu0 %v397
      %486 = vmatprep.subr.mxu0 %v401
      %487 = vmatpush1.msra.mxu0 %v400
      %488 = vmatprep.subr.mxu0 %v404
      %489 = vmatpush1.msra.mxu0 %v403
      %490 = vmatprep.subr.mxu0 %v407
      %491 = vmatpush1.msra.mxu0 %v406
      %492 = vmatprep.subr.mxu0 %v410
      %493 = vmatpush1.msra.mxu0 %v409
      %494 = vmatprep.subr.mxu0 %v413
      %495 = vmatpush1.msra.mxu0 %v412
      %496 = vmatprep.subr.mxu0 %v416
      %497 = vmatpush1.msra.mxu0 %v415
      %498 = vmatprep.subr.mxu0 %v419
      %499 = vmatpush1.msra.mxu0 %v418
      %500 = vmatprep.subr.mxu0 %v422
      %501 = vmatpush1.msra.mxu0 %v421
      %502 = vmatprep.subr.mxu0 %v425
      %503 = vmatpush1.msra.mxu0 %v424
      %504 = vmatprep.subr.mxu0 %v428
      %505 = vmatpush1.msra.mxu0 %v427
      %506 = vmatprep.subr.mxu0 %v431
      %507 = vmatpush1.msra.mxu0 %v430
      %508 = vmatprep.subr.mxu0 %v434
      %509 = vmatpush1.msra.mxu0 %v433
      %510 = vmatprep.subr.mxu0 %v437
      %511 = vmatpush1.msra.mxu0 %v436
      %512 = vmatprep.subr.mxu0 %v440
      %513 = vmatpush1.msra.mxu0 %v439
      %514 = vmatprep.subr.mxu0 %v443
      %515 = vmatpush1.msra.mxu0 %v442
      %516 = vmatprep.subr.mxu0 %v446
      %517 = vmatpush1.msra.mxu0 %v445
      %518 = vmatprep.subr.mxu0 %v449
      %519 = vmatpush1.msra.mxu0 %v448
      %520 = vmatprep.subr.mxu0 %v452
      %521 = vmatpush1.msra.mxu0 %v451
      %522 = vmatprep.subr.mxu0 %v455
      %523 = vmatpush1.msra.mxu0 %v454
      %524 = vmatprep.mubr.f32.mxu0 %v458
      %525 = vmatmul.mubr.f32.gmra.mrb[0].mxu0 %v360
      %v526 = vpop.f32.mrb[0].mxu0
      %v527 = vadd.f32 0.0, %v526
      %v528 = vpop.f32.mrb[0].mxu0
      %v529 = vadd.f32 0.0, %v528
      %530 = vdwg.mxu0
      %531 = vmatprep.subr.mxu0 0.0
      %532 = vmatpush1.msra.mxu0 %v363
      %533 = vmatprep.subr.mxu0 0.0
      %534 = vmatpush1.msra.mxu0 %v366
      %535 = vmatprep.subr.mxu0 0.0
      %536 = vmatpush1.msra.mxu0 %v369
      %537 = vmatprep.subr.mxu0 0.0
      %538 = vmatpush1.msra.mxu0 %v372
      %539 = vmatprep.subr.mxu0 0.0
      %540 = vmatpush1.msra.mxu0 %v375
      %541 = vmatprep.subr.mxu0 0.0
      %542 = vmatpush1.msra.mxu0 %v378
      %543 = vmatprep.subr.mxu0 0.0
      %544 = vmatpush1.msra.mxu0 %v381
      %545 = vmatprep.subr.mxu0 0.0
      %546 = vmatpush1.msra.mxu0 %v384
      %547 = vmatprep.subr.mxu0 0.0
      %548 = vmatpush1.msra.mxu0 %v387
      %549 = vmatprep.subr.mxu0 0.0
      %550 = vmatpush1.msra.mxu0 %v390
      %551 = vmatprep.subr.mxu0 0.0
      %552 = vmatpush1.msra.mxu0 %v393
      %553 = vmatprep.subr.mxu0 0.0
      %554 = vmatpush1.msra.mxu0 %v396
      %555 = vmatprep.subr.mxu0 0.0
      %556 = vmatpush1.msra.mxu0 %v399
      %557 = vmatprep.subr.mxu0 0.0
      %558 = vmatpush1.msra.mxu0 %v402
      %559 = vmatprep.subr.mxu0 0.0
      %560 = vmatpush1.msra.mxu0 %v405
      %561 = vmatprep.subr.mxu0 0.0
      %562 = vmatpush1.msra.mxu0 %v408
      %563 = vmatprep.subr.mxu0 0.0
      %564 = vmatpush1.msra.mxu0 %v411
      %565 = vmatprep.subr.mxu0 0.0
      %566 = vmatpush1.msra.mxu0 %v414
      %567 = vmatprep.subr.mxu0 0.0
      %568 = vmatpush1.msra.mxu0 %v417
      %569 = vmatprep.subr.mxu0 0.0
      %570 = vmatpush1.msra.mxu0 %v420
      %571 = vmatprep.subr.mxu0 0.0
      %572 = vmatpush1.msra.mxu0 %v423
      %573 = vmatprep.subr.mxu0 0.0
      %574 = vmatpush1.msra.mxu0 %v426
      %575 = vmatprep.subr.mxu0 0.0
      %576 = vmatpush1.msra.mxu0 %v429
      %577 = vmatprep.subr.mxu0 0.0
      %578 = vmatpush1.msra.mxu0 %v432
      %579 = vmatprep.subr.mxu0 0.0
      %580 = vmatpush1.msra.mxu0 %v435
      %581 = vmatprep.subr.mxu0 0.0
      %582 = vmatpush1.msra.mxu0 %v438
      %583 = vmatprep.subr.mxu0 0.0
      %584 = vmatpush1.msra.mxu0 %v441
      %585 = vmatprep.subr.mxu0 0.0
      %586 = vmatpush1.msra.mxu0 %v444
      %587 = vmatprep.subr.mxu0 0.0
      %588 = vmatpush1.msra.mxu0 %v447
      %589 = vmatprep.subr.mxu0 0.0
      %590 = vmatpush1.msra.mxu0 %v450
      %591 = vmatprep.subr.mxu0 0.0
      %592 = vmatpush1.msra.mxu0 %v453
      %593 = vmatprep.subr.mxu0 0.0
      %594 = vmatpush1.msra.mxu0 %v456
      %595 = vmatprep.mubr.f32.mxu0 %v458
      %596 = vmatmul.mubr.f32.gmra.mrb[0].mxu0 %v360
      %v597 = vpop.f32.mrb[0].mxu0
      %v598 = vadd.f32 0.0, %v597
      %v599 = vpop.f32.mrb[0].mxu0
      %600 = vdwg.mxu0
      %v601 = vld [vmem:[%s2] sm:$0x3f]
      %s602 = scalar_lea.vmem %s1, 768
      %v603 = vld [vmem:[%s602] sm:$0xff]
      %v604 = vld [vmem:[%s602 + $0x8] sm:$0xff]
      %v605 = vld [vmem:[%s602 + $0x10] sm:$0xff]
      %v606 = vld [vmem:[%s602 + $0x18] sm:$0xff]
      %v607 = vld [vmem:[%s602 + $0x20] sm:$0xff]
      %v608 = vld [vmem:[%s602 + $0x28] sm:$0xff]
      %v609 = vld [vmem:[%s602 + $0x30] sm:$0xff]
      %v610 = vld [vmem:[%s602 + $0x38] sm:$0xff]
      %v611 = vld [vmem:[%s602 + $0x40] sm:$0xff]
      %v612 = vld [vmem:[%s602 + $0x48] sm:$0xff]
      %v613 = vld [vmem:[%s602 + $0x50] sm:$0xff]
      %v614 = vld [vmem:[%s602 + $0x58] sm:$0xff]
      %v615 = vld [vmem:[%s602 + $0x60] sm:$0xff]
      %v616 = vld [vmem:[%s602 + $0x68] sm:$0xff]
      %v617 = vld [vmem:[%s602 + $0x70] sm:$0xff]
      %v618 = vld [vmem:[%s602 + $0x78] sm:$0xff]
      %v619 = vld [vmem:[%s602 + $0x80] sm:$0xff]
      %v620 = vld [vmem:[%s602 + $0x88] sm:$0xff]
      %v621 = vld [vmem:[%s602 + $0x90] sm:$0xff]
      %v622 = vld [vmem:[%s602 + $0x98] sm:$0xff]
      %v623 = vld [vmem:[%s602 + $0xa0] sm:$0xff]
      %v624 = vld [vmem:[%s602 + $0xa8] sm:$0xff]
      %v625 = vld [vmem:[%s602 + $0xb0] sm:$0xff]
      %v626 = vld [vmem:[%s602 + $0xb8] sm:$0xff]
      %v627 = vld [vmem:[%s602 + $0xc0] sm:$0xff]
      %v628 = vld [vmem:[%s602 + $0xc8] sm:$0xff]
      %v629 = vld [vmem:[%s602 + $0xd0] sm:$0xff]
      %v630 = vld [vmem:[%s602 + $0xd8] sm:$0xff]
      %v631 = vld [vmem:[%s602 + $0xe0] sm:$0xff]
      %v632 = vld [vmem:[%s602 + $0xe8] sm:$0xff]
      %v633 = vld [vmem:[%s602 + $0xf0] sm:$0xff]
      %v634 = vld [vmem:[%s602 + $0xf8] sm:$0xff]
      %v635 = vld [vmem:[%s602 + $0x100] sm:$0xff]
      %v636 = vld [vmem:[%s602 + $0x108] sm:$0xff]
      %v637 = vld [vmem:[%s602 + $0x110] sm:$0xff]
      %v638 = vld [vmem:[%s602 + $0x118] sm:$0xff]
      %v639 = vld [vmem:[%s602 + $0x120] sm:$0xff]
      %v640 = vld [vmem:[%s602 + $0x128] sm:$0xff]
      %v641 = vld [vmem:[%s602 + $0x130] sm:$0xff]
      %v642 = vld [vmem:[%s602 + $0x138] sm:$0xff]
      %v643 = vld [vmem:[%s602 + $0x140] sm:$0xff]
      %v644 = vld [vmem:[%s602 + $0x148] sm:$0xff]
      %v645 = vld [vmem:[%s602 + $0x150] sm:$0xff]
      %v646 = vld [vmem:[%s602 + $0x158] sm:$0xff]
      %v647 = vld [vmem:[%s602 + $0x160] sm:$0xff]
      %v648 = vld [vmem:[%s602 + $0x168] sm:$0xff]
      %v649 = vld [vmem:[%s602 + $0x170] sm:$0xff]
      %v650 = vld [vmem:[%s602 + $0x178] sm:$0xff]
      %v651 = vld [vmem:[%s602 + $0x180] sm:$0xff]
      %v652 = vld [vmem:[%s602 + $0x188] sm:$0xff]
      %v653 = vld [vmem:[%s602 + $0x190] sm:$0xff]
      %v654 = vld [vmem:[%s602 + $0x198] sm:$0xff]
      %v655 = vld [vmem:[%s602 + $0x1a0] sm:$0xff]
      %v656 = vld [vmem:[%s602 + $0x1a8] sm:$0xff]
      %v657 = vld [vmem:[%s602 + $0x1b0] sm:$0xff]
      %v658 = vld [vmem:[%s602 + $0x1b8] sm:$0xff]
      %v659 = vld [vmem:[%s602 + $0x1c0] sm:$0xff]
      %v660 = vld [vmem:[%s602 + $0x1c8] sm:$0xff]
      %v661 = vld [vmem:[%s602 + $0x1d0] sm:$0xff]
      %v662 = vld [vmem:[%s602 + $0x1d8] sm:$0xff]
      %v663 = vld [vmem:[%s602 + $0x1e0] sm:$0xff]
      %v664 = vld [vmem:[%s602 + $0x1e8] sm:$0xff]
      %v665 = vld [vmem:[%s602 + $0x1f0] sm:$0xff]
      %v666 = vld [vmem:[%s602 + $0x1f8] sm:$0xff]
      %v667 = vld [vmem:[%s602 + $0x200] sm:$0xff]
      %v668 = vld [vmem:[%s602 + $0x208] sm:$0xff]
      %v669 = vld [vmem:[%s602 + $0x210] sm:$0xff]
      %v670 = vld [vmem:[%s602 + $0x218] sm:$0xff]
      %v671 = vld [vmem:[%s602 + $0x220] sm:$0xff]
      %v672 = vld [vmem:[%s602 + $0x228] sm:$0xff]
      %v673 = vld [vmem:[%s602 + $0x230] sm:$0xff]
      %v674 = vld [vmem:[%s602 + $0x238] sm:$0xff]
      %v675 = vld [vmem:[%s602 + $0x240] sm:$0xff]
      %v676 = vld [vmem:[%s602 + $0x248] sm:$0xff]
      %v677 = vld [vmem:[%s602 + $0x250] sm:$0xff]
      %v678 = vld [vmem:[%s602 + $0x258] sm:$0xff]
      %v679 = vld [vmem:[%s602 + $0x260] sm:$0xff]
      %v680 = vld [vmem:[%s602 + $0x268] sm:$0xff]
      %v681 = vld [vmem:[%s602 + $0x270] sm:$0xff]
      %v682 = vld [vmem:[%s602 + $0x278] sm:$0xff]
      %v683 = vld [vmem:[%s602 + $0x280] sm:$0xff]
      %v684 = vld [vmem:[%s602 + $0x288] sm:$0xff]
      %v685 = vld [vmem:[%s602 + $0x290] sm:$0xff]
      %v686 = vld [vmem:[%s602 + $0x298] sm:$0xff]
      %v687 = vld [vmem:[%s602 + $0x2a0] sm:$0xff]
      %v688 = vld [vmem:[%s602 + $0x2a8] sm:$0xff]
      %v689 = vld [vmem:[%s602 + $0x2b0] sm:$0xff]
      %v690 = vld [vmem:[%s602 + $0x2b8] sm:$0xff]
      %v691 = vld [vmem:[%s602 + $0x2c0] sm:$0xff]
      %v692 = vld [vmem:[%s602 + $0x2c8] sm:$0xff]
      %v693 = vld [vmem:[%s602 + $0x2d0] sm:$0xff]
      %v694 = vld [vmem:[%s602 + $0x2d8] sm:$0xff]
      %v695 = vld [vmem:[%s602 + $0x2e0] sm:$0xff]
      %v696 = vld [vmem:[%s602 + $0x2e8] sm:$0xff]
      %v697 = vld [vmem:[%s602 + $0x2f0] sm:$0xff]
      %v698 = vld [vmem:[%s602 + $0x2f8] sm:$0xff]
      %699 = vmatprep.subr.mxu0 %v604
      %700 = vmatpush1.msra.mxu0 %v603
      %701 = vmatprep.subr.mxu0 %v607
      %702 = vmatpush1.msra.mxu0 %v606
      %703 = vmatprep.subr.mxu0 %v610
      %704 = vmatpush1.msra.mxu0 %v609
      %705 = vmatprep.subr.mxu0 %v613
      %706 = vmatpush1.msra.mxu0 %v612
      %707 = vmatprep.subr.mxu0 %v616
      %708 = vmatpush1.msra.mxu0 %v615
      %709 = vmatprep.subr.mxu0 %v619
      %710 = vmatpush1.msra.mxu0 %v618
      %711 = vmatprep.subr.mxu0 %v622
      %712 = vmatpush1.msra.mxu0 %v621
      %713 = vmatprep.subr.mxu0 %v625
      %714 = vmatpush1.msra.mxu0 %v624
      %715 = vmatprep.subr.mxu0 %v628
      %716 = vmatpush1.msra.mxu0 %v627
      %717 = vmatprep.subr.mxu0 %v631
      %718 = vmatpush1.msra.mxu0 %v630
      %719 = vmatprep.subr.mxu0 %v634
      %720 = vmatpush1.msra.mxu0 %v633
      %721 = vmatprep.subr.mxu0 %v637
      %722 = vmatpush1.msra.mxu0 %v636
      %723 = vmatprep.subr.mxu0 %v640
      %724 = vmatpush1.msra.mxu0 %v639
      %725 = vmatprep.subr.mxu0 %v643
      %726 = vmatpush1.msra.mxu0 %v642
      %727 = vmatprep.subr.mxu0 %v646
      %728 = vmatpush1.msra.mxu0 %v645
      %729 = vmatprep.subr.mxu0 %v649
      %730 = vmatpush1.msra.mxu0 %v648
      %731 = vmatprep.subr.mxu0 %v652
      %732 = vmatpush1.msra.mxu0 %v651
      %733 = vmatprep.subr.mxu0 %v655
      %734 = vmatpush1.msra.mxu0 %v654
      %735 = vmatprep.subr.mxu0 %v658
      %736 = vmatpush1.msra.mxu0 %v657
      %737 = vmatprep.subr.mxu0 %v661
      %738 = vmatpush1.msra.mxu0 %v660
      %739 = vmatprep.subr.mxu0 %v664
      %740 = vmatpush1.msra.mxu0 %v663
      %741 = vmatprep.subr.mxu0 %v667
      %742 = vmatpush1.msra.mxu0 %v666
      %743 = vmatprep.subr.mxu0 %v670
      %744 = vmatpush1.msra.mxu0 %v669
      %745 = vmatprep.subr.mxu0 %v673
      %746 = vmatpush1.msra.mxu0 %v672
      %747 = vmatprep.subr.mxu0 %v676
      %748 = vmatpush1.msra.mxu0 %v675
      %749 = vmatprep.subr.mxu0 %v679
      %750 = vmatpush1.msra.mxu0 %v678
      %751 = vmatprep.subr.mxu0 %v682
      %752 = vmatpush1.msra.mxu0 %v681
      %753 = vmatprep.subr.mxu0 %v685
      %754 = vmatpush1.msra.mxu0 %v684
      %755 = vmatprep.subr.mxu0 %v688
      %756 = vmatpush1.msra.mxu0 %v687
      %757 = vmatprep.subr.mxu0 %v691
      %758 = vmatpush1.msra.mxu0 %v690
      %759 = vmatprep.subr.mxu0 %v694
      %760 = vmatpush1.msra.mxu0 %v693
      %761 = vmatprep.subr.mxu0 %v697
      %762 = vmatpush1.msra.mxu0 %v696
      %763 = vmatprep.mubr.f32.mxu0 %v458
      %764 = vmatmul.mubr.f32.gmra.mrb[0].mxu0 %v360
      %v765 = vpop.f32.mrb[0].mxu0
      %v766 = vadd.f32 0.0, %v765
      %v767 = vpop.f32.mrb[0].mxu0
      %v768 = vadd.f32 0.0, %v767
      %769 = vdwg.mxu0
      %770 = vmatprep.subr.mxu0 0.0
      %771 = vmatpush1.msra.mxu0 %v605
      %772 = vmatprep.subr.mxu0 0.0
      %773 = vmatpush1.msra.mxu0 %v608
      %774 = vmatprep.subr.mxu0 0.0
      %775 = vmatpush1.msra.mxu0 %v611
      %776 = vmatprep.subr.mxu0 0.0
      %777 = vmatpush1.msra.mxu0 %v614
      %778 = vmatprep.subr.mxu0 0.0
      %779 = vmatpush1.msra.mxu0 %v617
      %780 = vmatprep.subr.mxu0 0.0
      %781 = vmatpush1.msra.mxu0 %v620
      %782 = vmatprep.subr.mxu0 0.0
      %783 = vmatpush1.msra.mxu0 %v623
      %784 = vmatprep.subr.mxu0 0.0
      %785 = vmatpush1.msra.mxu0 %v626
      %786 = vmatprep.subr.mxu0 0.0
      %787 = vmatpush1.msra.mxu0 %v629
      %788 = vmatprep.subr.mxu0 0.0
      %789 = vmatpush1.msra.mxu0 %v632
      %790 = vmatprep.subr.mxu0 0.0
      %791 = vmatpush1.msra.mxu0 %v635
      %792 = vmatprep.subr.mxu0 0.0
      %793 = vmatpush1.msra.mxu0 %v638
      %794 = vmatprep.subr.mxu0 0.0
      %795 = vmatpush1.msra.mxu0 %v641
      %796 = vmatprep.subr.mxu0 0.0
      %797 = vmatpush1.msra.mxu0 %v644
      %798 = vmatprep.subr.mxu0 0.0
      %799 = vmatpush1.msra.mxu0 %v647
      %800 = vmatprep.subr.mxu0 0.0
      %801 = vmatpush1.msra.mxu0 %v650
      %802 = vmatprep.subr.mxu0 0.0
      %803 = vmatpush1.msra.mxu0 %v653
      %804 = vmatprep.subr.mxu0 0.0
      %805 = vmatpush1.msra.mxu0 %v656
      %806 = vmatprep.subr.mxu0 0.0
      %807 = vmatpush1.msra.mxu0 %v659
      %808 = vmatprep.subr.mxu0 0.0
      %809 = vmatpush1.msra.mxu0 %v662
      %810 = vmatprep.subr.mxu0 0.0
      %811 = vmatpush1.msra.mxu0 %v665
      %812 = vmatprep.subr.mxu0 0.0
      %813 = vmatpush1.msra.mxu0 %v668
      %814 = vmatprep.subr.mxu0 0.0
      %815 = vmatpush1.msra.mxu0 %v671
      %816 = vmatprep.subr.mxu0 0.0
      %817 = vmatpush1.msra.mxu0 %v674
      %818 = vmatprep.subr.mxu0 0.0
      %819 = vmatpush1.msra.mxu0 %v677
      %820 = vmatprep.subr.mxu0 0.0
      %821 = vmatpush1.msra.mxu0 %v680
      %822 = vmatprep.subr.mxu0 0.0
      %823 = vmatpush1.msra.mxu0 %v683
      %824 = vmatprep.subr.mxu0 0.0
      %825 = vmatpush1.msra.mxu0 %v686
      %826 = vmatprep.subr.mxu0 0.0
      %827 = vmatpush1.msra.mxu0 %v689
      %828 = vmatprep.subr.mxu0 0.0
      %829 = vmatpush1.msra.mxu0 %v692
      %830 = vmatprep.subr.mxu0 0.0
      %831 = vmatpush1.msra.mxu0 %v695
      %832 = vmatprep.subr.mxu0 0.0
      %833 = vmatpush1.msra.mxu0 %v698
      %834 = vmatprep.mubr.f32.mxu0 %v458
      %835 = vmatmul.mubr.f32.gmra.mrb[0].mxu0 %v360
      %v836 = vpop.f32.mrb[0].mxu0
      %v837 = vadd.f32 0.0, %v836
      %v838 = vpop.f32.mrb[0].mxu0
      %839 = vdwg.mxu0
      %s840 = scalar_lea.vmem %s2, 8
      %v841 = vld [vmem:[%s840] sm:$0x3f]
      %vm842 = vcmask 31744
      %v844 = vsel %vm842, %v841, 0
      %vm846 = vcmask 1043456
      %v848 = vsel %vm846, %v766, 0
      %v851 = vsel %vm846, %v768, 0
      %v854 = vsel %vm846, %v837, 0
      %856 = vmatprep.subr.mxu0 %v851
      %857 = vmatpush1.msra.mxu0 %v848
      %858 = vmatprep.subr.mxu0 0.0
      %859 = vmatpush1.msra.mxu0 0.0
      %860 = vmatprep.subr.mxu0 0.0
      %861 = vmatpush1.msra.mxu0 0.0
      %862 = vmatprep.subr.mxu0 0.0
      %863 = vmatpush1.msra.mxu0 0.0
      %864 = vmatprep.subr.mxu0 0.0
      %865 = vmatpush1.msra.mxu0 0.0
      %866 = vmatprep.subr.mxu0 0.0
      %867 = vmatpush1.msra.mxu0 0.0
      %868 = vmatprep.subr.mxu0 0.0
      %869 = vmatpush1.msra.mxu0 0.0
      %870 = vmatprep.subr.mxu0 0.0
      %871 = vmatpush1.msra.mxu0 0.0
      %872 = vmatprep.subr.mxu0 0.0
      %873 = vmatpush1.msra.mxu0 0.0
      %874 = vmatprep.subr.mxu0 0.0
      %875 = vmatpush1.msra.mxu0 0.0
      %876 = vmatprep.subr.mxu0 0.0
      %877 = vmatpush1.msra.mxu0 0.0
      %878 = vmatprep.subr.mxu0 0.0
      %879 = vmatpush1.msra.mxu0 0.0
      %880 = vmatprep.subr.mxu0 0.0
      %881 = vmatpush1.msra.mxu0 0.0
      %882 = vmatprep.subr.mxu0 0.0
      %883 = vmatpush1.msra.mxu0 0.0
      %884 = vmatprep.subr.mxu0 0.0
      %885 = vmatpush1.msra.mxu0 0.0
      %886 = vmatprep.subr.mxu0 0.0
      %887 = vmatpush1.msra.mxu0 0.0
      %888 = vmatprep.subr.mxu0 0.0
      %889 = vmatpush1.msra.mxu0 0.0
      %890 = vmatprep.subr.mxu0 0.0
      %891 = vmatpush1.msra.mxu0 0.0
      %892 = vmatprep.subr.mxu0 0.0
      %893 = vmatpush1.msra.mxu0 0.0
      %894 = vmatprep.subr.mxu0 0.0
      %895 = vmatpush1.msra.mxu0 0.0
      %896 = vmatprep.subr.mxu0 0.0
      %897 = vmatpush1.msra.mxu0 0.0
      %898 = vmatprep.subr.mxu0 0.0
      %899 = vmatpush1.msra.mxu0 0.0
      %900 = vmatprep.subr.mxu0 0.0
      %901 = vmatpush1.msra.mxu0 0.0
      %902 = vmatprep.subr.mxu0 0.0
      %903 = vmatpush1.msra.mxu0 0.0
      %904 = vmatprep.subr.mxu0 0.0
      %905 = vmatpush1.msra.mxu0 0.0
      %906 = vmatprep.subr.mxu0 0.0
      %907 = vmatpush1.msra.mxu0 0.0
      %908 = vmatprep.subr.mxu0 0.0
      %909 = vmatpush1.msra.mxu0 0.0
      %910 = vmatprep.subr.mxu0 0.0
      %911 = vmatpush1.msra.mxu0 0.0
      %912 = vmatprep.subr.mxu0 0.0
      %913 = vmatpush1.msra.mxu0 0.0
      %914 = vmatprep.subr.mxu0 0.0
      %915 = vmatpush1.msra.mxu0 0.0
      %916 = vmatprep.subr.mxu0 0.0
      %917 = vmatpush1.msra.mxu0 0.0
      %918 = vmatprep.subr.mxu0 0.0
      %919 = vmatpush1.msra.mxu0 0.0
      %920 = vmatprep.mubr.f32.mxu0 0.0
      %921 = vmatmul.mubr.f32.gmra.mrb[0].mxu0 %v844
      %v922 = vpop.f32.mrb[0].mxu0
      %v923 = vadd.f32 0.0, %v922
      %v924 = vpop.f32.mrb[0].mxu0
      %v925 = vadd.f32 0.0, %v924
      %926 = vdwg.mxu0
      %927 = vmatprep.subr.mxu0 0.0
      %928 = vmatpush1.msra.mxu0 %v854
      %929 = vmatprep.subr.mxu0 0.0
      %930 = vmatpush1.msra.mxu0 0.0
      %931 = vmatprep.subr.mxu0 0.0
      %932 = vmatpush1.msra.mxu0 0.0
      %933 = vmatprep.subr.mxu0 0.0
      %934 = vmatpush1.msra.mxu0 0.0
      %935 = vmatprep.subr.mxu0 0.0
      %936 = vmatpush1.msra.mxu0 0.0
      %937 = vmatprep.subr.mxu0 0.0
      %938 = vmatpush1.msra.mxu0 0.0
      %939 = vmatprep.subr.mxu0 0.0
      %940 = vmatpush1.msra.mxu0 0.0
      %941 = vmatprep.subr.mxu0 0.0
      %942 = vmatpush1.msra.mxu0 0.0
      %943 = vmatprep.subr.mxu0 0.0
      %944 = vmatpush1.msra.mxu0 0.0
      %945 = vmatprep.subr.mxu0 0.0
      %946 = vmatpush1.msra.mxu0 0.0
      %947 = vmatprep.subr.mxu0 0.0
      %948 = vmatpush1.msra.mxu0 0.0
      %949 = vmatprep.subr.mxu0 0.0
      %950 = vmatpush1.msra.mxu0 0.0
      %951 = vmatprep.subr.mxu0 0.0
      %952 = vmatpush1.msra.mxu0 0.0
      %953 = vmatprep.subr.mxu0 0.0
      %954 = vmatpush1.msra.mxu0 0.0
      %955 = vmatprep.subr.mxu0 0.0
      %956 = vmatpush1.msra.mxu0 0.0
      %957 = vmatprep.subr.mxu0 0.0
      %958 = vmatpush1.msra.mxu0 0.0
      %959 = vmatprep.subr.mxu0 0.0
      %960 = vmatpush1.msra.mxu0 0.0
      %961 = vmatprep.subr.mxu0 0.0
      %962 = vmatpush1.msra.mxu0 0.0
      %963 = vmatprep.subr.mxu0 0.0
      %964 = vmatpush1.msra.mxu0 0.0
      %965 = vmatprep.subr.mxu0 0.0
      %966 = vmatpush1.msra.mxu0 0.0
      %967 = vmatprep.subr.mxu0 0.0
      %968 = vmatpush1.msra.mxu0 0.0
      %969 = vmatprep.subr.mxu0 0.0
      %970 = vmatpush1.msra.mxu0 0.0
      %971 = vmatprep.subr.mxu0 0.0
      %972 = vmatpush1.msra.mxu0 0.0
      %973 = vmatprep.subr.mxu0 0.0
      %974 = vmatpush1.msra.mxu0 0.0
      %975 = vmatprep.subr.mxu0 0.0
      %976 = vmatpush1.msra.mxu0 0.0
      %977 = vmatprep.subr.mxu0 0.0
      %978 = vmatpush1.msra.mxu0 0.0
      %979 = vmatprep.subr.mxu0 0.0
      %980 = vmatpush1.msra.mxu0 0.0
      %981 = vmatprep.subr.mxu0 0.0
      %982 = vmatpush1.msra.mxu0 0.0
      %983 = vmatprep.subr.mxu0 0.0
      %984 = vmatpush1.msra.mxu0 0.0
      %985 = vmatprep.subr.mxu0 0.0
      %986 = vmatpush1.msra.mxu0 0.0
      %987 = vmatprep.subr.mxu0 0.0
      %988 = vmatpush1.msra.mxu0 0.0
      %989 = vmatprep.subr.mxu0 0.0
      %990 = vmatpush1.msra.mxu0 0.0
      %991 = vmatprep.mubr.f32.mxu0 0.0
      %992 = vmatmul.mubr.f32.gmra.mrb[0].mxu0 %v844
      %v993 = vpop.f32.mrb[0].mxu0
      %v994 = vadd.f32 0.0, %v993
      %v995 = vpop.f32.mrb[0].mxu0
      %996 = vdwg.mxu0
      %v998 = vsel %vm842, %v601, 0
      %v1001 = vsel %vm846, %v527, 0
      %v1004 = vsel %vm846, %v529, 0
      %v1007 = vsel %vm846, %v598, 0
      %1009 = vmatprep.subr.mxu0 %v1004
      %1010 = vmatpush1.msra.mxu0 %v1001
      %1011 = vmatprep.subr.mxu0 0.0
      %1012 = vmatpush1.msra.mxu0 0.0
      %1013 = vmatprep.subr.mxu0 0.0
      %1014 = vmatpush1.msra.mxu0 0.0
      %1015 = vmatprep.subr.mxu0 0.0
      %1016 = vmatpush1.msra.mxu0 0.0
      %1017 = vmatprep.subr.mxu0 0.0
      %1018 = vmatpush1.msra.mxu0 0.0
      %1019 = vmatprep.subr.mxu0 0.0
      %1020 = vmatpush1.msra.mxu0 0.0
      %1021 = vmatprep.subr.mxu0 0.0
      %1022 = vmatpush1.msra.mxu0 0.0
      %1023 = vmatprep.subr.mxu0 0.0
      %1024 = vmatpush1.msra.mxu0 0.0
      %1025 = vmatprep.subr.mxu0 0.0
      %1026 = vmatpush1.msra.mxu0 0.0
      %1027 = vmatprep.subr.mxu0 0.0
      %1028 = vmatpush1.msra.mxu0 0.0
      %1029 = vmatprep.subr.mxu0 0.0
      %1030 = vmatpush1.msra.mxu0 0.0
      %1031 = vmatprep.subr.mxu0 0.0
      %1032 = vmatpush1.msra.mxu0 0.0
      %1033 = vmatprep.subr.mxu0 0.0
      %1034 = vmatpush1.msra.mxu0 0.0
      %1035 = vmatprep.subr.mxu0 0.0
      %1036 = vmatpush1.msra.mxu0 0.0
      %1037 = vmatprep.subr.mxu0 0.0
      %1038 = vmatpush1.msra.mxu0 0.0
      %1039 = vmatprep.subr.mxu0 0.0
      %1040 = vmatpush1.msra.mxu0 0.0
      %1041 = vmatprep.subr.mxu0 0.0
      %1042 = vmatpush1.msra.mxu0 0.0
      %1043 = vmatprep.subr.mxu0 0.0
      %1044 = vmatpush1.msra.mxu0 0.0
      %1045 = vmatprep.subr.mxu0 0.0
      %1046 = vmatpush1.msra.mxu0 0.0
      %1047 = vmatprep.subr.mxu0 0.0
      %1048 = vmatpush1.msra.mxu0 0.0
      %1049 = vmatprep.subr.mxu0 0.0
      %1050 = vmatpush1.msra.mxu0 0.0
      %1051 = vmatprep.subr.mxu0 0.0
      %1052 = vmatpush1.msra.mxu0 0.0
      %1053 = vmatprep.subr.mxu0 0.0
      %1054 = vmatpush1.msra.mxu0 0.0
      %1055 = vmatprep.subr.mxu0 0.0
      %1056 = vmatpush1.msra.mxu0 0.0
      %1057 = vmatprep.subr.mxu0 0.0
      %1058 = vmatpush1.msra.mxu0 0.0
      %1059 = vmatprep.subr.mxu0 0.0
      %1060 = vmatpush1.msra.mxu0 0.0
      %1061 = vmatprep.subr.mxu0 0.0
      %1062 = vmatpush1.msra.mxu0 0.0
      %1063 = vmatprep.subr.mxu0 0.0
      %1064 = vmatpush1.msra.mxu0 0.0
      %1065 = vmatprep.subr.mxu0 0.0
      %1066 = vmatpush1.msra.mxu0 0.0
      %1067 = vmatprep.subr.mxu0 0.0
      %1068 = vmatpush1.msra.mxu0 0.0
      %1069 = vmatprep.subr.mxu0 0.0
      %1070 = vmatpush1.msra.mxu0 0.0
      %1071 = vmatprep.subr.mxu0 0.0
      %1072 = vmatpush1.msra.mxu0 0.0
      %1073 = vmatprep.mubr.f32.mxu0 0.0
      %1074 = vmatmul.mubr.f32.gmra.mrb[0].mxu0 %v998
      %v1075 = vpop.f32.mrb[0].mxu0
      %v1076 = vadd.f32 %v923, %v1075
      %v1077 = vpop.f32.mrb[0].mxu0
      %v1078 = vadd.f32 %v925, %v1077
      %1079 = vdwg.mxu0
      %1080 = vmatprep.subr.mxu0 0.0
      %1081 = vmatpush1.msra.mxu0 %v1007
      %1082 = vmatprep.subr.mxu0 0.0
      %1083 = vmatpush1.msra.mxu0 0.0
      %1084 = vmatprep.subr.mxu0 0.0
      %1085 = vmatpush1.msra.mxu0 0.0
      %1086 = vmatprep.subr.mxu0 0.0
      %1087 = vmatpush1.msra.mxu0 0.0
      %1088 = vmatprep.subr.mxu0 0.0
      %1089 = vmatpush1.msra.mxu0 0.0
      %1090 = vmatprep.subr.mxu0 0.0
      %1091 = vmatpush1.msra.mxu0 0.0
      %1092 = vmatprep.subr.mxu0 0.0
      %1093 = vmatpush1.msra.mxu0 0.0
      %1094 = vmatprep.subr.mxu0 0.0
      %1095 = vmatpush1.msra.mxu0 0.0
      %1096 = vmatprep.subr.mxu0 0.0
      %1097 = vmatpush1.msra.mxu0 0.0
      %1098 = vmatprep.subr.mxu0 0.0
      %1099 = vmatpush1.msra.mxu0 0.0
      %1100 = vmatprep.subr.mxu0 0.0
      %1101 = vmatpush1.msra.mxu0 0.0
      %1102 = vmatprep.subr.mxu0 0.0
      %1103 = vmatpush1.msra.mxu0 0.0
      %1104 = vmatprep.subr.mxu0 0.0
      %1105 = vmatpush1.msra.mxu0 0.0
      %1106 = vmatprep.subr.mxu0 0.0
      %1107 = vmatpush1.msra.mxu0 0.0
      %1108 = vmatprep.subr.mxu0 0.0
      %1109 = vmatpush1.msra.mxu0 0.0
      %1110 = vmatprep.subr.mxu0 0.0
      %1111 = vmatpush1.msra.mxu0 0.0
      %1112 = vmatprep.subr.mxu0 0.0
      %1113 = vmatpush1.msra.mxu0 0.0
      %1114 = vmatprep.subr.mxu0 0.0
      %1115 = vmatpush1.msra.mxu0 0.0
      %1116 = vmatprep.subr.mxu0 0.0
      %1117 = vmatpush1.msra.mxu0 0.0
      %1118 = vmatprep.subr.mxu0 0.0
      %1119 = vmatpush1.msra.mxu0 0.0
      %1120 = vmatprep.subr.mxu0 0.0
      %1121 = vmatpush1.msra.mxu0 0.0
      %1122 = vmatprep.subr.mxu0 0.0
      %1123 = vmatpush1.msra.mxu0 0.0
      %1124 = vmatprep.subr.mxu0 0.0
      %1125 = vmatpush1.msra.mxu0 0.0
      %1126 = vmatprep.subr.mxu0 0.0
      %1127 = vmatpush1.msra.mxu0 0.0
      %1128 = vmatprep.subr.mxu0 0.0
      %1129 = vmatpush1.msra.mxu0 0.0
      %1130 = vmatprep.subr.mxu0 0.0
      %1131 = vmatpush1.msra.mxu0 0.0
      %1132 = vmatprep.subr.mxu0 0.0
      %1133 = vmatpush1.msra.mxu0 0.0
      %1134 = vmatprep.subr.mxu0 0.0
      %1135 = vmatpush1.msra.mxu0 0.0
      %1136 = vmatprep.subr.mxu0 0.0
      %1137 = vmatpush1.msra.mxu0 0.0
      %1138 = vmatprep.subr.mxu0 0.0
      %1139 = vmatpush1.msra.mxu0 0.0
      %1140 = vmatprep.subr.mxu0 0.0
      %1141 = vmatpush1.msra.mxu0 0.0
      %1142 = vmatprep.subr.mxu0 0.0
      %1143 = vmatpush1.msra.mxu0 0.0
      %1144 = vmatprep.mubr.f32.mxu0 0.0
      %1145 = vmatmul.mubr.f32.gmra.mrb[0].mxu0 %v998
      %v1146 = vpop.f32.mrb[0].mxu0
      %v1147 = vadd.f32 %v994, %v1146
      %v1148 = vpop.f32.mrb[0].mxu0
      %1149 = vdwg.mxu0
      %s1150 = scalar_lea.vmem %s1, 1536
      %v1151 = vld [vmem:[%s1150] sm:$0xff]
      %v1152 = vld [vmem:[%s1150 + $0x8] sm:$0xff]
      %v1153 = vld [vmem:[%s1150 + $0x10] sm:$0xff]
      %v1154 = vld [vmem:[%s1150 + $0x18] sm:$0xff]
      %v1155 = vld [vmem:[%s1150 + $0x20] sm:$0xff]
      %v1156 = vld [vmem:[%s1150 + $0x28] sm:$0xff]
      %v1157 = vld [vmem:[%s1150 + $0x30] sm:$0xff]
      %v1158 = vld [vmem:[%s1150 + $0x38] sm:$0xff]
      %v1159 = vld [vmem:[%s1150 + $0x40] sm:$0xff]
      %v1160 = vld [vmem:[%s1150 + $0x48] sm:$0xff]
      %v1161 = vld [vmem:[%s1150 + $0x50] sm:$0xff]
      %v1162 = vld [vmem:[%s1150 + $0x58] sm:$0xff]
      %v1163 = vld [vmem:[%s1150 + $0x60] sm:$0xff]
      %v1164 = vld [vmem:[%s1150 + $0x68] sm:$0xff]
      %v1165 = vld [vmem:[%s1150 + $0x70] sm:$0xff]
      %v1166 = vld [vmem:[%s1150 + $0x78] sm:$0xff]
      %v1167 = vld [vmem:[%s1150 + $0x80] sm:$0xff]
      %v1168 = vld [vmem:[%s1150 + $0x88] sm:$0xff]
      %v1169 = vld [vmem:[%s1150 + $0x90] sm:$0xff]
      %v1170 = vld [vmem:[%s1150 + $0x98] sm:$0xff]
      %v1171 = vld [vmem:[%s1150 + $0xa0] sm:$0xff]
      %v1172 = vld [vmem:[%s1150 + $0xa8] sm:$0xff]
      %v1173 = vld [vmem:[%s1150 + $0xb0] sm:$0xff]
      %v1174 = vld [vmem:[%s1150 + $0xb8] sm:$0xff]
      %v1175 = vld [vmem:[%s1150 + $0xc0] sm:$0xff]
      %v1176 = vld [vmem:[%s1150 + $0xc8] sm:$0xff]
      %v1177 = vld [vmem:[%s1150 + $0xd0] sm:$0xff]
      %v1178 = vld [vmem:[%s1150 + $0xd8] sm:$0xff]
      %v1179 = vld [vmem:[%s1150 + $0xe0] sm:$0xff]
      %v1180 = vld [vmem:[%s1150 + $0xe8] sm:$0xff]
      %v1181 = vld [vmem:[%s1150 + $0xf0] sm:$0xff]
      %v1182 = vld [vmem:[%s1150 + $0xf8] sm:$0xff]
      %v1183 = vld [vmem:[%s1150 + $0x100] sm:$0xff]
      %v1184 = vld [vmem:[%s1150 + $0x108] sm:$0xff]
      %v1185 = vld [vmem:[%s1150 + $0x110] sm:$0xff]
      %v1186 = vld [vmem:[%s1150 + $0x118] sm:$0xff]
      %v1187 = vld [vmem:[%s1150 + $0x120] sm:$0xff]
      %v1188 = vld [vmem:[%s1150 + $0x128] sm:$0xff]
      %v1189 = vld [vmem:[%s1150 + $0x130] sm:$0xff]
      %v1190 = vld [vmem:[%s1150 + $0x138] sm:$0xff]
      %v1191 = vld [vmem:[%s1150 + $0x140] sm:$0xff]
      %v1192 = vld [vmem:[%s1150 + $0x148] sm:$0xff]
      %v1193 = vld [vmem:[%s1150 + $0x150] sm:$0xff]
      %v1194 = vld [vmem:[%s1150 + $0x158] sm:$0xff]
      %v1195 = vld [vmem:[%s1150 + $0x160] sm:$0xff]
      %v1196 = vld [vmem:[%s1150 + $0x168] sm:$0xff]
      %v1197 = vld [vmem:[%s1150 + $0x170] sm:$0xff]
      %v1198 = vld [vmem:[%s1150 + $0x178] sm:$0xff]
      %v1199 = vld [vmem:[%s1150 + $0x180] sm:$0xff]
      %v1200 = vld [vmem:[%s1150 + $0x188] sm:$0xff]
      %v1201 = vld [vmem:[%s1150 + $0x190] sm:$0xff]
      %v1202 = vld [vmem:[%s1150 + $0x198] sm:$0xff]
      %v1203 = vld [vmem:[%s1150 + $0x1a0] sm:$0xff]
      %v1204 = vld [vmem:[%s1150 + $0x1a8] sm:$0xff]
      %v1205 = vld [vmem:[%s1150 + $0x1b0] sm:$0xff]
      %v1206 = vld [vmem:[%s1150 + $0x1b8] sm:$0xff]
      %v1207 = vld [vmem:[%s1150 + $0x1c0] sm:$0xff]
      %v1208 = vld [vmem:[%s1150 + $0x1c8] sm:$0xff]
      %v1209 = vld [vmem:[%s1150 + $0x1d0] sm:$0xff]
      %v1210 = vld [vmem:[%s1150 + $0x1d8] sm:$0xff]
      %v1211 = vld [vmem:[%s1150 + $0x1e0] sm:$0xff]
      %v1212 = vld [vmem:[%s1150 + $0x1e8] sm:$0xff]
      %v1213 = vld [vmem:[%s1150 + $0x1f0] sm:$0xff]
      %v1214 = vld [vmem:[%s1150 + $0x1f8] sm:$0xff]
      %v1215 = vld [vmem:[%s1150 + $0x200] sm:$0xff]
      %v1216 = vld [vmem:[%s1150 + $0x208] sm:$0xff]
      %v1217 = vld [vmem:[%s1150 + $0x210] sm:$0xff]
      %v1218 = vld [vmem:[%s1150 + $0x218] sm:$0xff]
      %v1219 = vld [vmem:[%s1150 + $0x220] sm:$0xff]
      %v1220 = vld [vmem:[%s1150 + $0x228] sm:$0xff]
      %v1221 = vld [vmem:[%s1150 + $0x230] sm:$0xff]
      %v1222 = vld [vmem:[%s1150 + $0x238] sm:$0xff]
      %v1223 = vld [vmem:[%s1150 + $0x240] sm:$0xff]
      %v1224 = vld [vmem:[%s1150 + $0x248] sm:$0xff]
      %v1225 = vld [vmem:[%s1150 + $0x250] sm:$0xff]
      %v1226 = vld [vmem:[%s1150 + $0x258] sm:$0xff]
      %v1227 = vld [vmem:[%s1150 + $0x260] sm:$0xff]
      %v1228 = vld [vmem:[%s1150 + $0x268] sm:$0xff]
      %v1229 = vld [vmem:[%s1150 + $0x270] sm:$0xff]
      %v1230 = vld [vmem:[%s1150 + $0x278] sm:$0xff]
      %v1231 = vld [vmem:[%s1150 + $0x280] sm:$0xff]
      %v1232 = vld [vmem:[%s1150 + $0x288] sm:$0xff]
      %v1233 = vld [vmem:[%s1150 + $0x290] sm:$0xff]
      %v1234 = vld [vmem:[%s1150 + $0x298] sm:$0xff]
      %v1235 = vld [vmem:[%s1150 + $0x2a0] sm:$0xff]
      %v1236 = vld [vmem:[%s1150 + $0x2a8] sm:$0xff]
      %v1237 = vld [vmem:[%s1150 + $0x2b0] sm:$0xff]
      %v1238 = vld [vmem:[%s1150 + $0x2b8] sm:$0xff]
      %v1239 = vld [vmem:[%s1150 + $0x2c0] sm:$0xff]
      %v1240 = vld [vmem:[%s1150 + $0x2c8] sm:$0xff]
      %v1241 = vld [vmem:[%s1150 + $0x2d0] sm:$0xff]
      %v1242 = vld [vmem:[%s1150 + $0x2d8] sm:$0xff]
      %v1243 = vld [vmem:[%s1150 + $0x2e0] sm:$0xff]
      %v1244 = vld [vmem:[%s1150 + $0x2e8] sm:$0xff]
      %v1245 = vld [vmem:[%s1150 + $0x2f0] sm:$0xff]
      %v1246 = vld [vmem:[%s1150 + $0x2f8] sm:$0xff]
      %1247 = vmatprep.subr.mxu0 %v1152
      %1248 = vmatpush1.msra.mxu0 %v1151
      %1249 = vmatprep.subr.mxu0 %v1155
      %1250 = vmatpush1.msra.mxu0 %v1154
      %1251 = vmatprep.subr.mxu0 %v1158
      %1252 = vmatpush1.msra.mxu0 %v1157
      %1253 = vmatprep.subr.mxu0 %v1161
      %1254 = vmatpush1.msra.mxu0 %v1160
      %1255 = vmatprep.subr.mxu0 %v1164
      %1256 = vmatpush1.msra.mxu0 %v1163
      %1257 = vmatprep.subr.mxu0 %v1167
      %1258 = vmatpush1.msra.mxu0 %v1166
      %1259 = vmatprep.subr.mxu0 %v1170
      %1260 = vmatpush1.msra.mxu0 %v1169
      %1261 = vmatprep.subr.mxu0 %v1173
      %1262 = vmatpush1.msra.mxu0 %v1172
      %1263 = vmatprep.subr.mxu0 %v1176
      %1264 = vmatpush1.msra.mxu0 %v1175
      %1265 = vmatprep.subr.mxu0 %v1179
      %1266 = vmatpush1.msra.mxu0 %v1178
      %1267 = vmatprep.subr.mxu0 %v1182
      %1268 = vmatpush1.msra.mxu0 %v1181
      %1269 = vmatprep.subr.mxu0 %v1185
      %1270 = vmatpush1.msra.mxu0 %v1184
      %1271 = vmatprep.subr.mxu0 %v1188
      %1272 = vmatpush1.msra.mxu0 %v1187
      %1273 = vmatprep.subr.mxu0 %v1191
      %1274 = vmatpush1.msra.mxu0 %v1190
      %1275 = vmatprep.subr.mxu0 %v1194
      %1276 = vmatpush1.msra.mxu0 %v1193
      %1277 = vmatprep.subr.mxu0 %v1197
      %1278 = vmatpush1.msra.mxu0 %v1196
      %1279 = vmatprep.subr.mxu0 %v1200
      %1280 = vmatpush1.msra.mxu0 %v1199
      %1281 = vmatprep.subr.mxu0 %v1203
      %1282 = vmatpush1.msra.mxu0 %v1202
      %1283 = vmatprep.subr.mxu0 %v1206
      %1284 = vmatpush1.msra.mxu0 %v1205
      %1285 = vmatprep.subr.mxu0 %v1209
      %1286 = vmatpush1.msra.mxu0 %v1208
      %1287 = vmatprep.subr.mxu0 %v1212
      %1288 = vmatpush1.msra.mxu0 %v1211
      %1289 = vmatprep.subr.mxu0 %v1215
      %1290 = vmatpush1.msra.mxu0 %v1214
      %1291 = vmatprep.subr.mxu0 %v1218
      %1292 = vmatpush1.msra.mxu0 %v1217
      %1293 = vmatprep.subr.mxu0 %v1221
      %1294 = vmatpush1.msra.mxu0 %v1220
      %1295 = vmatprep.subr.mxu0 %v1224
      %1296 = vmatpush1.msra.mxu0 %v1223
      %1297 = vmatprep.subr.mxu0 %v1227
      %1298 = vmatpush1.msra.mxu0 %v1226
      %1299 = vmatprep.subr.mxu0 %v1230
      %1300 = vmatpush1.msra.mxu0 %v1229
      %1301 = vmatprep.subr.mxu0 %v1233
      %1302 = vmatpush1.msra.mxu0 %v1232
      %1303 = vmatprep.subr.mxu0 %v1236
      %1304 = vmatpush1.msra.mxu0 %v1235
      %1305 = vmatprep.subr.mxu0 %v1239
      %1306 = vmatpush1.msra.mxu0 %v1238
      %1307 = vmatprep.subr.mxu0 %v1242
      %1308 = vmatpush1.msra.mxu0 %v1241
      %1309 = vmatprep.subr.mxu0 %v1245
      %1310 = vmatpush1.msra.mxu0 %v1244
      %1311 = vmatprep.mubr.f32.mxu0 %v458
      %1312 = vmatmul.mubr.f32.gmra.mrb[0].mxu0 %v360
      %v1313 = vpop.f32.mrb[0].mxu0
      %v1314 = vadd.f32 0.0, %v1313
      %v1315 = vpop.f32.mrb[0].mxu0
      %v1316 = vadd.f32 0.0, %v1315
      %1317 = vdwg.mxu0
      %1318 = vmatprep.subr.mxu0 0.0
      %1319 = vmatpush1.msra.mxu0 %v1153
      %1320 = vmatprep.subr.mxu0 0.0
      %1321 = vmatpush1.msra.mxu0 %v1156
      %1322 = vmatprep.subr.mxu0 0.0
      %1323 = vmatpush1.msra.mxu0 %v1159
      %1324 = vmatprep.subr.mxu0 0.0
      %1325 = vmatpush1.msra.mxu0 %v1162
      %1326 = vmatprep.subr.mxu0 0.0
      %1327 = vmatpush1.msra.mxu0 %v1165
      %1328 = vmatprep.subr.mxu0 0.0
      %1329 = vmatpush1.msra.mxu0 %v1168
      %1330 = vmatprep.subr.mxu0 0.0
      %1331 = vmatpush1.msra.mxu0 %v1171
      %1332 = vmatprep.subr.mxu0 0.0
      %1333 = vmatpush1.msra.mxu0 %v1174
      %1334 = vmatprep.subr.mxu0 0.0
      %1335 = vmatpush1.msra.mxu0 %v1177
      %1336 = vmatprep.subr.mxu0 0.0
      %1337 = vmatpush1.msra.mxu0 %v1180
      %1338 = vmatprep.subr.mxu0 0.0
      %1339 = vmatpush1.msra.mxu0 %v1183
      %1340 = vmatprep.subr.mxu0 0.0
      %1341 = vmatpush1.msra.mxu0 %v1186
      %1342 = vmatprep.subr.mxu0 0.0
      %1343 = vmatpush1.msra.mxu0 %v1189
      %1344 = vmatprep.subr.mxu0 0.0
      %1345 = vmatpush1.msra.mxu0 %v1192
      %1346 = vmatprep.subr.mxu0 0.0
      %1347 = vmatpush1.msra.mxu0 %v1195
      %1348 = vmatprep.subr.mxu0 0.0
      %1349 = vmatpush1.msra.mxu0 %v1198
      %1350 = vmatprep.subr.mxu0 0.0
      %1351 = vmatpush1.msra.mxu0 %v1201
      %1352 = vmatprep.subr.mxu0 0.0
      %1353 = vmatpush1.msra.mxu0 %v1204
      %1354 = vmatprep.subr.mxu0 0.0
      %1355 = vmatpush1.msra.mxu0 %v1207
      %1356 = vmatprep.subr.mxu0 0.0
      %1357 = vmatpush1.msra.mxu0 %v1210
      %1358 = vmatprep.subr.mxu0 0.0
      %1359 = vmatpush1.msra.mxu0 %v1213
      %1360 = vmatprep.subr.mxu0 0.0
      %1361 = vmatpush1.msra.mxu0 %v1216
      %1362 = vmatprep.subr.mxu0 0.0
      %1363 = vmatpush1.msra.mxu0 %v1219
      %1364 = vmatprep.subr.mxu0 0.0
      %1365 = vmatpush1.msra.mxu0 %v1222
      %1366 = vmatprep.subr.mxu0 0.0
      %1367 = vmatpush1.msra.mxu0 %v1225
      %1368 = vmatprep.subr.mxu0 0.0
      %1369 = vmatpush1.msra.mxu0 %v1228
      %1370 = vmatprep.subr.mxu0 0.0
      %1371 = vmatpush1.msra.mxu0 %v1231
      %1372 = vmatprep.subr.mxu0 0.0
      %1373 = vmatpush1.msra.mxu0 %v1234
      %1374 = vmatprep.subr.mxu0 0.0
      %1375 = vmatpush1.msra.mxu0 %v1237
      %1376 = vmatprep.subr.mxu0 0.0
      %1377 = vmatpush1.msra.mxu0 %v1240
      %1378 = vmatprep.subr.mxu0 0.0
      %1379 = vmatpush1.msra.mxu0 %v1243
      %1380 = vmatprep.subr.mxu0 0.0
      %1381 = vmatpush1.msra.mxu0 %v1246
      %1382 = vmatprep.mubr.f32.mxu0 %v458
      %1383 = vmatmul.mubr.f32.gmra.mrb[0].mxu0 %v360
      %v1384 = vpop.f32.mrb[0].mxu0
      %v1385 = vadd.f32 0.0, %v1384
      %v1386 = vpop.f32.mrb[0].mxu0
      %1387 = vdwg.mxu0
      %s1388 = scalar_lea.vmem %s2, 16
      %v1389 = vld [vmem:[%s1388] sm:$0x3f]
      %v1391 = vsel %vm842, %v1389, 0
      %v1394 = vsel %vm846, %v1314, 0
      %v1397 = vsel %vm846, %v1316, 0
      %v1400 = vsel %vm846, %v1385, 0
      %1402 = vmatprep.subr.mxu0 %v1397
      %1403 = vmatpush1.msra.mxu0 %v1394
      %1404 = vmatprep.subr.mxu0 0.0
      %1405 = vmatpush1.msra.mxu0 0.0
      %1406 = vmatprep.subr.mxu0 0.0
      %1407 = vmatpush1.msra.mxu0 0.0
      %1408 = vmatprep.subr.mxu0 0.0
      %1409 = vmatpush1.msra.mxu0 0.0
      %1410 = vmatprep.subr.mxu0 0.0
      %1411 = vmatpush1.msra.mxu0 0.0
      %1412 = vmatprep.subr.mxu0 0.0
      %1413 = vmatpush1.msra.mxu0 0.0
      %1414 = vmatprep.subr.mxu0 0.0
      %1415 = vmatpush1.msra.mxu0 0.0
      %1416 = vmatprep.subr.mxu0 0.0
      %1417 = vmatpush1.msra.mxu0 0.0
      %1418 = vmatprep.subr.mxu0 0.0
      %1419 = vmatpush1.msra.mxu0 0.0
      %1420 = vmatprep.subr.mxu0 0.0
      %1421 = vmatpush1.msra.mxu0 0.0
      %1422 = vmatprep.subr.mxu0 0.0
      %1423 = vmatpush1.msra.mxu0 0.0
      %1424 = vmatprep.subr.mxu0 0.0
      %1425 = vmatpush1.msra.mxu0 0.0
      %1426 = vmatprep.subr.mxu0 0.0
      %1427 = vmatpush1.msra.mxu0 0.0
      %1428 = vmatprep.subr.mxu0 0.0
      %1429 = vmatpush1.msra.mxu0 0.0
      %1430 = vmatprep.subr.mxu0 0.0
      %1431 = vmatpush1.msra.mxu0 0.0
      %1432 = vmatprep.subr.mxu0 0.0
      %1433 = vmatpush1.msra.mxu0 0.0
      %1434 = vmatprep.subr.mxu0 0.0
      %1435 = vmatpush1.msra.mxu0 0.0
      %1436 = vmatprep.subr.mxu0 0.0
      %1437 = vmatpush1.msra.mxu0 0.0
      %1438 = vmatprep.subr.mxu0 0.0
      %1439 = vmatpush1.msra.mxu0 0.0
      %1440 = vmatprep.subr.mxu0 0.0
      %1441 = vmatpush1.msra.mxu0 0.0
      %1442 = vmatprep.subr.mxu0 0.0
      %1443 = vmatpush1.msra.mxu0 0.0
      %1444 = vmatprep.subr.mxu0 0.0
      %1445 = vmatpush1.msra.mxu0 0.0
      %1446 = vmatprep.subr.mxu0 0.0
      %1447 = vmatpush1.msra.mxu0 0.0
      %1448 = vmatprep.subr.mxu0 0.0
      %1449 = vmatpush1.msra.mxu0 0.0
      %1450 = vmatprep.subr.mxu0 0.0
      %1451 = vmatpush1.msra.mxu0 0.0
      %1452 = vmatprep.subr.mxu0 0.0
      %1453 = vmatpush1.msra.mxu0 0.0
      %1454 = vmatprep.subr.mxu0 0.0
      %1455 = vmatpush1.msra.mxu0 0.0
      %1456 = vmatprep.subr.mxu0 0.0
      %1457 = vmatpush1.msra.mxu0 0.0
      %1458 = vmatprep.subr.mxu0 0.0
      %1459 = vmatpush1.msra.mxu0 0.0
      %1460 = vmatprep.subr.mxu0 0.0
      %1461 = vmatpush1.msra.mxu0 0.0
      %1462 = vmatprep.subr.mxu0 0.0
      %1463 = vmatpush1.msra.mxu0 0.0
      %1464 = vmatprep.subr.mxu0 0.0
      %1465 = vmatpush1.msra.mxu0 0.0
      %1466 = vmatprep.mubr.f32.mxu0 0.0
      %1467 = vmatmul.mubr.f32.gmra.mrb[0].mxu0 %v1391
      %v1468 = vpop.f32.mrb[0].mxu0
      %v1469 = vadd.f32 0.0, %v1468
      %v1470 = vpop.f32.mrb[0].mxu0
      %v1471 = vadd.f32 0.0, %v1470
      %1472 = vdwg.mxu0
      %1473 = vmatprep.subr.mxu0 0.0
      %1474 = vmatpush1.msra.mxu0 %v1400
      %1475 = vmatprep.subr.mxu0 0.0
      %1476 = vmatpush1.msra.mxu0 0.0
      %1477 = vmatprep.subr.mxu0 0.0
      %1478 = vmatpush1.msra.mxu0 0.0
      %1479 = vmatprep.subr.mxu0 0.0
      %1480 = vmatpush1.msra.mxu0 0.0
      %1481 = vmatprep.subr.mxu0 0.0
      %1482 = vmatpush1.msra.mxu0 0.0
      %1483 = vmatprep.subr.mxu0 0.0
      %1484 = vmatpush1.msra.mxu0 0.0
      %1485 = vmatprep.subr.mxu0 0.0
      %1486 = vmatpush1.msra.mxu0 0.0
      %1487 = vmatprep.subr.mxu0 0.0
      %1488 = vmatpush1.msra.mxu0 0.0
      %1489 = vmatprep.subr.mxu0 0.0
      %1490 = vmatpush1.msra.mxu0 0.0
      %1491 = vmatprep.subr.mxu0 0.0
      %1492 = vmatpush1.msra.mxu0 0.0
      %1493 = vmatprep.subr.mxu0 0.0
      %1494 = vmatpush1.msra.mxu0 0.0
      %1495 = vmatprep.subr.mxu0 0.0
      %1496 = vmatpush1.msra.mxu0 0.0
      %1497 = vmatprep.subr.mxu0 0.0
      %1498 = vmatpush1.msra.mxu0 0.0
      %1499 = vmatprep.subr.mxu0 0.0
      %1500 = vmatpush1.msra.mxu0 0.0
      %1501 = vmatprep.subr.mxu0 0.0
      %1502 = vmatpush1.msra.mxu0 0.0
      %1503 = vmatprep.subr.mxu0 0.0
      %1504 = vmatpush1.msra.mxu0 0.0
      %1505 = vmatprep.subr.mxu0 0.0
      %1506 = vmatpush1.msra.mxu0 0.0
      %1507 = vmatprep.subr.mxu0 0.0
      %1508 = vmatpush1.msra.mxu0 0.0
      %1509 = vmatprep.subr.mxu0 0.0
      %1510 = vmatpush1.msra.mxu0 0.0
      %1511 = vmatprep.subr.mxu0 0.0
      %1512 = vmatpush1.msra.mxu0 0.0
      %1513 = vmatprep.subr.mxu0 0.0
      %1514 = vmatpush1.msra.mxu0 0.0
      %1515 = vmatprep.subr.mxu0 0.0
      %1516 = vmatpush1.msra.mxu0 0.0
      %1517 = vmatprep.subr.mxu0 0.0
      %1518 = vmatpush1.msra.mxu0 0.0
      %1519 = vmatprep.subr.mxu0 0.0
      %1520 = vmatpush1.msra.mxu0 0.0
      %1521 = vmatprep.subr.mxu0 0.0
      %1522 = vmatpush1.msra.mxu0 0.0
      %1523 = vmatprep.subr.mxu0 0.0
      %1524 = vmatpush1.msra.mxu0 0.0
      %1525 = vmatprep.subr.mxu0 0.0
      %1526 = vmatpush1.msra.mxu0 0.0
      %1527 = vmatprep.subr.mxu0 0.0
      %1528 = vmatpush1.msra.mxu0 0.0
      %1529 = vmatprep.subr.mxu0 0.0
      %1530 = vmatpush1.msra.mxu0 0.0
      %1531 = vmatprep.subr.mxu0 0.0
      %1532 = vmatpush1.msra.mxu0 0.0
      %1533 = vmatprep.subr.mxu0 0.0
      %1534 = vmatpush1.msra.mxu0 0.0
      %1535 = vmatprep.subr.mxu0 0.0
      %1536 = vmatpush1.msra.mxu0 0.0
      %1537 = vmatprep.mubr.f32.mxu0 0.0
      %1538 = vmatmul.mubr.f32.gmra.mrb[0].mxu0 %v1391
      %v1539 = vpop.f32.mrb[0].mxu0
      %v1540 = vadd.f32 0.0, %v1539
      %v1541 = vpop.f32.mrb[0].mxu0
      %1542 = vdwg.mxu0
      %v1543 = vadd.f32 %v1076, %v1469
      %v1544 = vadd.f32 %v1078, %v1471
      %v1545 = vadd.f32 %v1147, %v1540
      %v1546 = vld [vmem:[%s3] sm:$0x7]
      %v1548 = vlaneseq
      %v1549 = vshrl.u32 %v1548, 7
      %v1550 = vsub.s32 0, %v1549
      %v1551 = vrot.slane %v1546, %v1550
      %v1552 = vlaneseq
      %v1553 = vshrl.u32 %v1552, 7
      %v1554 = vsub.s32 1, %v1553
      %v1555 = vrot.slane %v1546, %v1554
      %v1556 = vlaneseq
      %v1557 = vshrl.u32 %v1556, 7
      %v1558 = vsub.s32 2, %v1557
      %v1559 = vrot.slane %v1546, %v1558
      %v1563 = vadd.f32 %v1543, %v1551
      %v1564 = vadd.f32 %v1544, %v1555
      %v1565 = vadd.f32 %v1545, %v1559
      %v1566 = vmax.f32 %v1563, 0.0
      %v1567 = vmax.f32 %v1564, 0.0
      %v1568 = vmax.f32 %v1565, 0.0
      %v1569 = vld [vmem:[%s4] sm:$0xff]
      %v1570 = vld [vmem:[%s4 + $0x8] sm:$0xff]
      %v1571 = vld [vmem:[%s4 + $0x10] sm:$0xff]
      %v1572 = vld [vmem:[%s4 + $0x18] sm:$0xff]
      %v1573 = vld [vmem:[%s4 + $0x20] sm:$0xff]
      %v1574 = vld [vmem:[%s4 + $0x28] sm:$0xff]
      %v1575 = vld [vmem:[%s4 + $0x30] sm:$0xff]
      %v1576 = vld [vmem:[%s4 + $0x38] sm:$0xff]
      %v1577 = vld [vmem:[%s4 + $0x40] sm:$0xff]
      %v1578 = vld [vmem:[%s4 + $0x48] sm:$0xff]
      %v1579 = vld [vmem:[%s4 + $0x50] sm:$0xff]
      %v1580 = vld [vmem:[%s4 + $0x58] sm:$0xff]
      %v1581 = vld [vmem:[%s4 + $0x60] sm:$0xff]
      %v1582 = vld [vmem:[%s4 + $0x68] sm:$0xff]
      %v1583 = vld [vmem:[%s4 + $0x70] sm:$0xff]
      %v1584 = vld [vmem:[%s4 + $0x78] sm:$0xff]
      %v1585 = vld [vmem:[%s4 + $0x80] sm:$0xff]
      %v1586 = vld [vmem:[%s4 + $0x88] sm:$0xff]
      %v1587 = vld [vmem:[%s4 + $0x90] sm:$0xff]
      %v1588 = vld [vmem:[%s4 + $0x98] sm:$0xff]
      %v1589 = vld [vmem:[%s4 + $0xa0] sm:$0xff]
      %v1590 = vld [vmem:[%s4 + $0xa8] sm:$0xff]
      %v1591 = vld [vmem:[%s4 + $0xb0] sm:$0xff]
      %v1592 = vld [vmem:[%s4 + $0xb8] sm:$0xff]
      %v1593 = vld [vmem:[%s4 + $0xc0] sm:$0xff]
      %v1594 = vld [vmem:[%s4 + $0xc8] sm:$0xff]
      %v1595 = vld [vmem:[%s4 + $0xd0] sm:$0xff]
      %v1596 = vld [vmem:[%s4 + $0xd8] sm:$0xff]
      %v1597 = vld [vmem:[%s4 + $0xe0] sm:$0xff]
      %v1598 = vld [vmem:[%s4 + $0xe8] sm:$0xff]
      %v1599 = vld [vmem:[%s4 + $0xf0] sm:$0xff]
      %v1600 = vld [vmem:[%s4 + $0xf8] sm:$0xff]
      %v1601 = vld [vmem:[%s4 + $0x100] sm:$0xff]
      %v1602 = vld [vmem:[%s4 + $0x108] sm:$0xff]
      %v1603 = vld [vmem:[%s4 + $0x110] sm:$0xff]
      %v1604 = vld [vmem:[%s4 + $0x118] sm:$0xff]
      %v1605 = vld [vmem:[%s4 + $0x120] sm:$0xff]
      %v1606 = vld [vmem:[%s4 + $0x128] sm:$0xff]
      %v1607 = vld [vmem:[%s4 + $0x130] sm:$0xff]
      %v1608 = vld [vmem:[%s4 + $0x138] sm:$0xff]
      %v1609 = vld [vmem:[%s4 + $0x140] sm:$0xff]
      %v1610 = vld [vmem:[%s4 + $0x148] sm:$0xff]
      %v1611 = vld [vmem:[%s4 + $0x150] sm:$0xff]
      %v1612 = vld [vmem:[%s4 + $0x158] sm:$0xff]
      %v1613 = vld [vmem:[%s4 + $0x160] sm:$0xff]
      %v1614 = vld [vmem:[%s4 + $0x168] sm:$0xff]
      %v1615 = vld [vmem:[%s4 + $0x170] sm:$0xff]
      %v1616 = vld [vmem:[%s4 + $0x178] sm:$0xff]
      %v1617 = vld [vmem:[%s4 + $0x180] sm:$0xff]
      %v1618 = vld [vmem:[%s4 + $0x188] sm:$0xff]
      %v1619 = vld [vmem:[%s4 + $0x190] sm:$0xff]
      %v1620 = vld [vmem:[%s4 + $0x198] sm:$0xff]
      %v1621 = vld [vmem:[%s4 + $0x1a0] sm:$0xff]
      %v1622 = vld [vmem:[%s4 + $0x1a8] sm:$0xff]
      %v1623 = vld [vmem:[%s4 + $0x1b0] sm:$0xff]
      %v1624 = vld [vmem:[%s4 + $0x1b8] sm:$0xff]
      %v1625 = vld [vmem:[%s4 + $0x1c0] sm:$0xff]
      %v1626 = vld [vmem:[%s4 + $0x1c8] sm:$0xff]
      %v1627 = vld [vmem:[%s4 + $0x1d0] sm:$0xff]
      %v1628 = vld [vmem:[%s4 + $0x1d8] sm:$0xff]
      %v1629 = vld [vmem:[%s4 + $0x1e0] sm:$0xff]
      %v1630 = vld [vmem:[%s4 + $0x1e8] sm:$0xff]
      %v1631 = vld [vmem:[%s4 + $0x1f0] sm:$0xff]
      %v1632 = vld [vmem:[%s4 + $0x1f8] sm:$0xff]
      %v1633 = vld [vmem:[%s4 + $0x200] sm:$0xff]
      %v1634 = vld [vmem:[%s4 + $0x208] sm:$0xff]
      %v1635 = vld [vmem:[%s4 + $0x210] sm:$0xff]
      %v1636 = vld [vmem:[%s4 + $0x218] sm:$0xff]
      %v1637 = vld [vmem:[%s4 + $0x220] sm:$0xff]
      %v1638 = vld [vmem:[%s4 + $0x228] sm:$0xff]
      %v1639 = vld [vmem:[%s4 + $0x230] sm:$0xff]
      %v1640 = vld [vmem:[%s4 + $0x238] sm:$0xff]
      %v1641 = vld [vmem:[%s4 + $0x240] sm:$0xff]
      %v1642 = vld [vmem:[%s4 + $0x248] sm:$0xff]
      %v1643 = vld [vmem:[%s4 + $0x250] sm:$0xff]
      %v1644 = vld [vmem:[%s4 + $0x258] sm:$0xff]
      %v1645 = vld [vmem:[%s4 + $0x260] sm:$0xff]
      %v1646 = vld [vmem:[%s4 + $0x268] sm:$0xff]
      %v1647 = vld [vmem:[%s4 + $0x270] sm:$0xff]
      %v1648 = vld [vmem:[%s4 + $0x278] sm:$0xff]
      %v1649 = vld [vmem:[%s4 + $0x280] sm:$0xff]
      %v1650 = vld [vmem:[%s4 + $0x288] sm:$0xff]
      %v1651 = vld [vmem:[%s4 + $0x290] sm:$0xff]
      %v1652 = vld [vmem:[%s4 + $0x298] sm:$0xff]
      %v1653 = vld [vmem:[%s4 + $0x2a0] sm:$0xff]
      %v1654 = vld [vmem:[%s4 + $0x2a8] sm:$0xff]
      %v1655 = vld [vmem:[%s4 + $0x2b0] sm:$0xff]
      %v1656 = vld [vmem:[%s4 + $0x2b8] sm:$0xff]
      %v1657 = vld [vmem:[%s4 + $0x2c0] sm:$0xff]
      %v1658 = vld [vmem:[%s4 + $0x2c8] sm:$0xff]
      %v1659 = vld [vmem:[%s4 + $0x2d0] sm:$0xff]
      %v1660 = vld [vmem:[%s4 + $0x2d8] sm:$0xff]
      %v1661 = vld [vmem:[%s4 + $0x2e0] sm:$0xff]
      %v1662 = vld [vmem:[%s4 + $0x2e8] sm:$0xff]
      %v1663 = vld [vmem:[%s4 + $0x2f0] sm:$0xff]
      %v1664 = vld [vmem:[%s4 + $0x2f8] sm:$0xff]
      %v1665 = vld [vmem:[%s4 + $0x300] sm:$0xff]
      %v1666 = vld [vmem:[%s4 + $0x308] sm:$0xff]
      %v1667 = vld [vmem:[%s4 + $0x310] sm:$0xff]
      %v1668 = vld [vmem:[%s4 + $0x318] sm:$0xff]
      %v1669 = vld [vmem:[%s4 + $0x320] sm:$0xff]
      %v1670 = vld [vmem:[%s4 + $0x328] sm:$0xff]
      %v1671 = vld [vmem:[%s4 + $0x330] sm:$0xff]
      %v1672 = vld [vmem:[%s4 + $0x338] sm:$0xff]
      %v1673 = vld [vmem:[%s4 + $0x340] sm:$0xff]
      %v1674 = vld [vmem:[%s4 + $0x348] sm:$0xff]
      %v1675 = vld [vmem:[%s4 + $0x350] sm:$0xff]
      %v1676 = vld [vmem:[%s4 + $0x358] sm:$0xff]
      %v1677 = vld [vmem:[%s4 + $0x360] sm:$0xff]
      %v1678 = vld [vmem:[%s4 + $0x368] sm:$0xff]
      %v1679 = vld [vmem:[%s4 + $0x370] sm:$0xff]
      %v1680 = vld [vmem:[%s4 + $0x378] sm:$0xff]
      %v1681 = vld [vmem:[%s4 + $0x380] sm:$0xff]
      %v1682 = vld [vmem:[%s4 + $0x388] sm:$0xff]
      %v1683 = vld [vmem:[%s4 + $0x390] sm:$0xff]
      %v1684 = vld [vmem:[%s4 + $0x398] sm:$0xff]
      %v1685 = vld [vmem:[%s4 + $0x3a0] sm:$0xff]
      %v1686 = vld [vmem:[%s4 + $0x3a8] sm:$0xff]
      %v1687 = vld [vmem:[%s4 + $0x3b0] sm:$0xff]
      %v1688 = vld [vmem:[%s4 + $0x3b8] sm:$0xff]
      %v1689 = vld [vmem:[%s4 + $0x3c0] sm:$0xff]
      %v1690 = vld [vmem:[%s4 + $0x3c8] sm:$0xff]
      %v1691 = vld [vmem:[%s4 + $0x3d0] sm:$0xff]
      %v1692 = vld [vmem:[%s4 + $0x3d8] sm:$0xff]
      %v1693 = vld [vmem:[%s4 + $0x3e0] sm:$0xff]
      %v1694 = vld [vmem:[%s4 + $0x3e8] sm:$0xff]
      %v1695 = vld [vmem:[%s4 + $0x3f0] sm:$0xff]
      %v1696 = vld [vmem:[%s4 + $0x3f8] sm:$0xff]
      %v1697 = vld [vmem:[%s4 + $0x400] sm:$0xff]
      %v1698 = vld [vmem:[%s4 + $0x408] sm:$0xff]
      %v1699 = vld [vmem:[%s4 + $0x410] sm:$0xff]
      %v1700 = vld [vmem:[%s4 + $0x418] sm:$0xff]
      %v1701 = vld [vmem:[%s4 + $0x420] sm:$0xff]
      %v1702 = vld [vmem:[%s4 + $0x428] sm:$0xff]
      %v1703 = vld [vmem:[%s4 + $0x430] sm:$0xff]
      %v1704 = vld [vmem:[%s4 + $0x438] sm:$0xff]
      %v1705 = vld [vmem:[%s4 + $0x440] sm:$0xff]
      %v1706 = vld [vmem:[%s4 + $0x448] sm:$0xff]
      %v1707 = vld [vmem:[%s4 + $0x450] sm:$0xff]
      %v1708 = vld [vmem:[%s4 + $0x458] sm:$0xff]
      %v1709 = vld [vmem:[%s4 + $0x460] sm:$0xff]
      %v1710 = vld [vmem:[%s4 + $0x468] sm:$0xff]
      %v1711 = vld [vmem:[%s4 + $0x470] sm:$0xff]
      %v1712 = vld [vmem:[%s4 + $0x478] sm:$0xff]
      %v1713 = vld [vmem:[%s4 + $0x480] sm:$0xff]
      %v1714 = vld [vmem:[%s4 + $0x488] sm:$0xff]
      %v1715 = vld [vmem:[%s4 + $0x490] sm:$0xff]
      %v1716 = vld [vmem:[%s4 + $0x498] sm:$0xff]
      %v1717 = vld [vmem:[%s4 + $0x4a0] sm:$0xff]
      %v1718 = vld [vmem:[%s4 + $0x4a8] sm:$0xff]
      %v1719 = vld [vmem:[%s4 + $0x4b0] sm:$0xff]
      %v1720 = vld [vmem:[%s4 + $0x4b8] sm:$0xff]
      %v1721 = vld [vmem:[%s4 + $0x4c0] sm:$0xff]
      %v1722 = vld [vmem:[%s4 + $0x4c8] sm:$0xff]
      %v1723 = vld [vmem:[%s4 + $0x4d0] sm:$0xff]
      %v1724 = vld [vmem:[%s4 + $0x4d8] sm:$0xff]
      %v1725 = vld [vmem:[%s4 + $0x4e0] sm:$0xff]
      %v1726 = vld [vmem:[%s4 + $0x4e8] sm:$0xff]
      %v1727 = vld [vmem:[%s4 + $0x4f0] sm:$0xff]
      %v1728 = vld [vmem:[%s4 + $0x4f8] sm:$0xff]
      %v1729 = vld [vmem:[%s4 + $0x500] sm:$0xff]
      %v1730 = vld [vmem:[%s4 + $0x508] sm:$0xff]
      %v1731 = vld [vmem:[%s4 + $0x510] sm:$0xff]
      %v1732 = vld [vmem:[%s4 + $0x518] sm:$0xff]
      %v1733 = vld [vmem:[%s4 + $0x520] sm:$0xff]
      %v1734 = vld [vmem:[%s4 + $0x528] sm:$0xff]
      %v1735 = vld [vmem:[%s4 + $0x530] sm:$0xff]
      %v1736 = vld [vmem:[%s4 + $0x538] sm:$0xff]
      %v1737 = vld [vmem:[%s4 + $0x540] sm:$0xff]
      %v1738 = vld [vmem:[%s4 + $0x548] sm:$0xff]
      %v1739 = vld [vmem:[%s4 + $0x550] sm:$0xff]
      %v1740 = vld [vmem:[%s4 + $0x558] sm:$0xff]
      %v1741 = vld [vmem:[%s4 + $0x560] sm:$0xff]
      %v1742 = vld [vmem:[%s4 + $0x568] sm:$0xff]
      %v1743 = vld [vmem:[%s4 + $0x570] sm:$0xff]
      %v1744 = vld [vmem:[%s4 + $0x578] sm:$0xff]
      %v1745 = vld [vmem:[%s4 + $0x580] sm:$0xff]
      %v1746 = vld [vmem:[%s4 + $0x588] sm:$0xff]
      %v1747 = vld [vmem:[%s4 + $0x590] sm:$0xff]
      %v1748 = vld [vmem:[%s4 + $0x598] sm:$0xff]
      %v1749 = vld [vmem:[%s4 + $0x5a0] sm:$0xff]
      %v1750 = vld [vmem:[%s4 + $0x5a8] sm:$0xff]
      %v1751 = vld [vmem:[%s4 + $0x5b0] sm:$0xff]
      %v1752 = vld [vmem:[%s4 + $0x5b8] sm:$0xff]
      %v1753 = vld [vmem:[%s4 + $0x5c0] sm:$0xff]
      %v1754 = vld [vmem:[%s4 + $0x5c8] sm:$0xff]
      %v1755 = vld [vmem:[%s4 + $0x5d0] sm:$0xff]
      %v1756 = vld [vmem:[%s4 + $0x5d8] sm:$0xff]
      %v1757 = vld [vmem:[%s4 + $0x5e0] sm:$0xff]
      %v1758 = vld [vmem:[%s4 + $0x5e8] sm:$0xff]
      %v1759 = vld [vmem:[%s4 + $0x5f0] sm:$0xff]
      %v1760 = vld [vmem:[%s4 + $0x5f8] sm:$0xff]
      %1761 = vmatprep.subr.mxu0 %v1570
      %1762 = vmatpush1.msra.mxu0 %v1569
      %1763 = vmatprep.subr.mxu0 %v1574
      %1764 = vmatpush1.msra.mxu0 %v1573
      %1765 = vmatprep.subr.mxu0 %v1578
      %1766 = vmatpush1.msra.mxu0 %v1577
      %1767 = vmatprep.subr.mxu0 %v1582
      %1768 = vmatpush1.msra.mxu0 %v1581
      %1769 = vmatprep.subr.mxu0 %v1586
      %1770 = vmatpush1.msra.mxu0 %v1585
      %1771 = vmatprep.subr.mxu0 %v1590
      %1772 = vmatpush1.msra.mxu0 %v1589
      %1773 = vmatprep.subr.mxu0 %v1594
      %1774 = vmatpush1.msra.mxu0 %v1593
      %1775 = vmatprep.subr.mxu0 %v1598
      %1776 = vmatpush1.msra.mxu0 %v1597
      %1777 = vmatprep.subr.mxu0 %v1602
      %1778 = vmatpush1.msra.mxu0 %v1601
      %1779 = vmatprep.subr.mxu0 %v1606
      %1780 = vmatpush1.msra.mxu0 %v1605
      %1781 = vmatprep.subr.mxu0 %v1610
      %1782 = vmatpush1.msra.mxu0 %v1609
      %1783 = vmatprep.subr.mxu0 %v1614
      %1784 = vmatpush1.msra.mxu0 %v1613
      %1785 = vmatprep.subr.mxu0 %v1618
      %1786 = vmatpush1.msra.mxu0 %v1617
      %1787 = vmatprep.subr.mxu0 %v1622
      %1788 = vmatpush1.msra.mxu0 %v1621
      %1789 = vmatprep.subr.mxu0 %v1626
      %1790 = vmatpush1.msra.mxu0 %v1625
      %1791 = vmatprep.subr.mxu0 %v1630
      %1792 = vmatpush1.msra.mxu0 %v1629
      %1793 = vmatprep.subr.mxu0 %v1634
      %1794 = vmatpush1.msra.mxu0 %v1633
      %1795 = vmatprep.subr.mxu0 %v1638
      %1796 = vmatpush1.msra.mxu0 %v1637
      %1797 = vmatprep.subr.mxu0 %v1642
      %1798 = vmatpush1.msra.mxu0 %v1641
      %1799 = vmatprep.subr.mxu0 %v1646
      %1800 = vmatpush1.msra.mxu0 %v1645
      %1801 = vmatprep.subr.mxu0 %v1650
      %1802 = vmatpush1.msra.mxu0 %v1649
      %1803 = vmatprep.subr.mxu0 %v1654
      %1804 = vmatpush1.msra.mxu0 %v1653
      %1805 = vmatprep.subr.mxu0 %v1658
      %1806 = vmatpush1.msra.mxu0 %v1657
      %1807 = vmatprep.subr.mxu0 %v1662
      %1808 = vmatpush1.msra.mxu0 %v1661
      %1809 = vmatprep.subr.mxu0 %v1666
      %1810 = vmatpush1.msra.mxu0 %v1665
      %1811 = vmatprep.subr.mxu0 %v1670
      %1812 = vmatpush1.msra.mxu0 %v1669
      %1813 = vmatprep.subr.mxu0 %v1674
      %1814 = vmatpush1.msra.mxu0 %v1673
      %1815 = vmatprep.subr.mxu0 %v1678
      %1816 = vmatpush1.msra.mxu0 %v1677
      %1817 = vmatprep.subr.mxu0 %v1682
      %1818 = vmatpush1.msra.mxu0 %v1681
      %1819 = vmatprep.subr.mxu0 %v1686
      %1820 = vmatpush1.msra.mxu0 %v1685
      %1821 = vmatprep.subr.mxu0 %v1690
      %1822 = vmatpush1.msra.mxu0 %v1689
      %1823 = vmatprep.subr.mxu0 %v1694
      %1824 = vmatpush1.msra.mxu0 %v1693
      %1825 = vmatprep.mubr.f32.mxu0 %v1567
      %1826 = vmatmul.mubr.f32.gmra.mrb[0].mxu0 %v1566
      %v1827 = vpop.f32.mrb[0].mxu0
      %v1828 = vadd.f32 0.0, %v1827
      %v1829 = vpop.f32.mrb[0].mxu0
      %v1830 = vadd.f32 0.0, %v1829
      %1831 = vdwg.mxu0
      %1832 = vmatprep.subr.mxu0 %v1698
      %1833 = vmatpush1.msra.mxu0 %v1697
      %1834 = vmatprep.subr.mxu0 %v1702
      %1835 = vmatpush1.msra.mxu0 %v1701
      %1836 = vmatprep.subr.mxu0 %v1706
      %1837 = vmatpush1.msra.mxu0 %v1705
      %1838 = vmatprep.subr.mxu0 %v1710
      %1839 = vmatpush1.msra.mxu0 %v1709
      %1840 = vmatprep.subr.mxu0 %v1714
      %1841 = vmatpush1.msra.mxu0 %v1713
      %1842 = vmatprep.subr.mxu0 %v1718
      %1843 = vmatpush1.msra.mxu0 %v1717
      %1844 = vmatprep.subr.mxu0 %v1722
      %1845 = vmatpush1.msra.mxu0 %v1721
      %1846 = vmatprep.subr.mxu0 %v1726
      %1847 = vmatpush1.msra.mxu0 %v1725
      %1848 = vmatprep.subr.mxu0 %v1730
      %1849 = vmatpush1.msra.mxu0 %v1729
      %1850 = vmatprep.subr.mxu0 %v1734
      %1851 = vmatpush1.msra.mxu0 %v1733
      %1852 = vmatprep.subr.mxu0 %v1738
      %1853 = vmatpush1.msra.mxu0 %v1737
      %1854 = vmatprep.subr.mxu0 %v1742
      %1855 = vmatpush1.msra.mxu0 %v1741
      %1856 = vmatprep.subr.mxu0 %v1746
      %1857 = vmatpush1.msra.mxu0 %v1745
      %1858 = vmatprep.subr.mxu0 %v1750
      %1859 = vmatpush1.msra.mxu0 %v1749
      %1860 = vmatprep.subr.mxu0 %v1754
      %1861 = vmatpush1.msra.mxu0 %v1753
      %1862 = vmatprep.subr.mxu0 %v1758
      %1863 = vmatpush1.msra.mxu0 %v1757
      %1864 = vmatprep.subr.mxu0 0.0
      %1865 = vmatpush1.msra.mxu0 0.0
      %1866 = vmatprep.subr.mxu0 0.0
      %1867 = vmatpush1.msra.mxu0 0.0
      %1868 = vmatprep.subr.mxu0 0.0
      %1869 = vmatpush1.msra.mxu0 0.0
      %1870 = vmatprep.subr.mxu0 0.0
      %1871 = vmatpush1.msra.mxu0 0.0
      %1872 = vmatprep.subr.mxu0 0.0
      %1873 = vmatpush1.msra.mxu0 0.0
      %1874 = vmatprep.subr.mxu0 0.0
      %1875 = vmatpush1.msra.mxu0 0.0
      %1876 = vmatprep.subr.mxu0 0.0
      %1877 = vmatpush1.msra.mxu0 0.0
      %1878 = vmatprep.subr.mxu0 0.0
      %1879 = vmatpush1.msra.mxu0 0.0
      %1880 = vmatprep.subr.mxu0 0.0
      %1881 = vmatpush1.msra.mxu0 0.0
      %1882 = vmatprep.subr.mxu0 0.0
      %1883 = vmatpush1.msra.mxu0 0.0
      %1884 = vmatprep.subr.mxu0 0.0
      %1885 = vmatpush1.msra.mxu0 0.0
      %1886 = vmatprep.subr.mxu0 0.0
      %1887 = vmatpush1.msra.mxu0 0.0
      %1888 = vmatprep.subr.mxu0 0.0
      %1889 = vmatpush1.msra.mxu0 0.0
      %1890 = vmatprep.subr.mxu0 0.0
      %1891 = vmatpush1.msra.mxu0 0.0
      %1892 = vmatprep.subr.mxu0 0.0
      %1893 = vmatpush1.msra.mxu0 0.0
      %1894 = vmatprep.subr.mxu0 0.0
      %1895 = vmatpush1.msra.mxu0 0.0
      %1896 = vmatprep.mubr.f32.mxu0 0.0
      %1897 = vmatmul.mubr.f32.gmra.mrb[0].mxu0 %v1568
      %v1898 = vpop.f32.mrb[0].mxu0
      %v1899 = vadd.f32 %v1828, %v1898
      %v1900 = vpop.f32.mrb[0].mxu0
      %v1901 = vadd.f32 %v1830, %v1900
      %1902 = vdwg.mxu0
      %1903 = vmatprep.subr.mxu0 %v1572
      %1904 = vmatpush1.msra.mxu0 %v1571
      %1905 = vmatprep.subr.mxu0 %v1576
      %1906 = vmatpush1.msra.mxu0 %v1575
      %1907 = vmatprep.subr.mxu0 %v1580
      %1908 = vmatpush1.msra.mxu0 %v1579
      %1909 = vmatprep.subr.mxu0 %v1584
      %1910 = vmatpush1.msra.mxu0 %v1583
      %1911 = vmatprep.subr.mxu0 %v1588
      %1912 = vmatpush1.msra.mxu0 %v1587
      %1913 = vmatprep.subr.mxu0 %v1592
      %1914 = vmatpush1.msra.mxu0 %v1591
      %1915 = vmatprep.subr.mxu0 %v1596
      %1916 = vmatpush1.msra.mxu0 %v1595
      %1917 = vmatprep.subr.mxu0 %v1600
      %1918 = vmatpush1.msra.mxu0 %v1599
      %1919 = vmatprep.subr.mxu0 %v1604
      %1920 = vmatpush1.msra.mxu0 %v1603
      %1921 = vmatprep.subr.mxu0 %v1608
      %1922 = vmatpush1.msra.mxu0 %v1607
      %1923 = vmatprep.subr.mxu0 %v1612
      %1924 = vmatpush1.msra.mxu0 %v1611
      %1925 = vmatprep.subr.mxu0 %v1616
      %1926 = vmatpush1.msra.mxu0 %v1615
      %1927 = vmatprep.subr.mxu0 %v1620
      %1928 = vmatpush1.msra.mxu0 %v1619
      %1929 = vmatprep.subr.mxu0 %v1624
      %1930 = vmatpush1.msra.mxu0 %v1623
      %1931 = vmatprep.subr.mxu0 %v1628
      %1932 = vmatpush1.msra.mxu0 %v1627
      %1933 = vmatprep.subr.mxu0 %v1632
      %1934 = vmatpush1.msra.mxu0 %v1631
      %1935 = vmatprep.subr.mxu0 %v1636
      %1936 = vmatpush1.msra.mxu0 %v1635
      %1937 = vmatprep.subr.mxu0 %v1640
      %1938 = vmatpush1.msra.mxu0 %v1639
      %1939 = vmatprep.subr.mxu0 %v1644
      %1940 = vmatpush1.msra.mxu0 %v1643
      %1941 = vmatprep.subr.mxu0 %v1648
      %1942 = vmatpush1.msra.mxu0 %v1647
      %1943 = vmatprep.subr.mxu0 %v1652
      %1944 = vmatpush1.msra.mxu0 %v1651
      %1945 = vmatprep.subr.mxu0 %v1656
      %1946 = vmatpush1.msra.mxu0 %v1655
      %1947 = vmatprep.subr.mxu0 %v1660
      %1948 = vmatpush1.msra.mxu0 %v1659
      %1949 = vmatprep.subr.mxu0 %v1664
      %1950 = vmatpush1.msra.mxu0 %v1663
      %1951 = vmatprep.subr.mxu0 %v1668
      %1952 = vmatpush1.msra.mxu0 %v1667
      %1953 = vmatprep.subr.mxu0 %v1672
      %1954 = vmatpush1.msra.mxu0 %v1671
      %1955 = vmatprep.subr.mxu0 %v1676
      %1956 = vmatpush1.msra.mxu0 %v1675
      %1957 = vmatprep.subr.mxu0 %v1680
      %1958 = vmatpush1.msra.mxu0 %v1679
      %1959 = vmatprep.subr.mxu0 %v1684
      %1960 = vmatpush1.msra.mxu0 %v1683
      %1961 = vmatprep.subr.mxu0 %v1688
      %1962 = vmatpush1.msra.mxu0 %v1687
      %1963 = vmatprep.subr.mxu0 %v1692
      %1964 = vmatpush1.msra.mxu0 %v1691
      %1965 = vmatprep.subr.mxu0 %v1696
      %1966 = vmatpush1.msra.mxu0 %v1695
      %1967 = vmatprep.mubr.f32.mxu0 %v1567
      %1968 = vmatmul.mubr.f32.gmra.mrb[0].mxu0 %v1566
      %v1969 = vpop.f32.mrb[0].mxu0
      %v1970 = vadd.f32 0.0, %v1969
      %v1971 = vpop.f32.mrb[0].mxu0
      %v1972 = vadd.f32 0.0, %v1971
      %1973 = vdwg.mxu0
      %1974 = vmatprep.subr.mxu0 %v1700
      %1975 = vmatpush1.msra.mxu0 %v1699
      %1976 = vmatprep.subr.mxu0 %v1704
      %1977 = vmatpush1.msra.mxu0 %v1703
      %1978 = vmatprep.subr.mxu0 %v1708
      %1979 = vmatpush1.msra.mxu0 %v1707
      %1980 = vmatprep.subr.mxu0 %v1712
      %1981 = vmatpush1.msra.mxu0 %v1711
      %1982 = vmatprep.subr.mxu0 %v1716
      %1983 = vmatpush1.msra.mxu0 %v1715
      %1984 = vmatprep.subr.mxu0 %v1720
      %1985 = vmatpush1.msra.mxu0 %v1719
      %1986 = vmatprep.subr.mxu0 %v1724
      %1987 = vmatpush1.msra.mxu0 %v1723
      %1988 = vmatprep.subr.mxu0 %v1728
      %1989 = vmatpush1.msra.mxu0 %v1727
      %1990 = vmatprep.subr.mxu0 %v1732
      %1991 = vmatpush1.msra.mxu0 %v1731
      %1992 = vmatprep.subr.mxu0 %v1736
      %1993 = vmatpush1.msra.mxu0 %v1735
      %1994 = vmatprep.subr.mxu0 %v1740
      %1995 = vmatpush1.msra.mxu0 %v1739
      %1996 = vmatprep.subr.mxu0 %v1744
      %1997 = vmatpush1.msra.mxu0 %v1743
      %1998 = vmatprep.subr.mxu0 %v1748
      %1999 = vmatpush1.msra.mxu0 %v1747
      %2000 = vmatprep.subr.mxu0 %v1752
      %2001 = vmatpush1.msra.mxu0 %v1751
      %2002 = vmatprep.subr.mxu0 %v1756
      %2003 = vmatpush1.msra.mxu0 %v1755
      %2004 = vmatprep.subr.mxu0 %v1760
      %2005 = vmatpush1.msra.mxu0 %v1759
      %2006 = vmatprep.subr.mxu0 0.0
      %2007 = vmatpush1.msra.mxu0 0.0
      %2008 = vmatprep.subr.mxu0 0.0
      %2009 = vmatpush1.msra.mxu0 0.0
      %2010 = vmatprep.subr.mxu0 0.0
      %2011 = vmatpush1.msra.mxu0 0.0
      %2012 = vmatprep.subr.mxu0 0.0
      %2013 = vmatpush1.msra.mxu0 0.0
      %2014 = vmatprep.subr.mxu0 0.0
      %2015 = vmatpush1.msra.mxu0 0.0
      %2016 = vmatprep.subr.mxu0 0.0
      %2017 = vmatpush1.msra.mxu0 0.0
      %2018 = vmatprep.subr.mxu0 0.0
      %2019 = vmatpush1.msra.mxu0 0.0
      %2020 = vmatprep.subr.mxu0 0.0
      %2021 = vmatpush1.msra.mxu0 0.0
      %2022 = vmatprep.subr.mxu0 0.0
      %2023 = vmatpush1.msra.mxu0 0.0
      %2024 = vmatprep.subr.mxu0 0.0
      %2025 = vmatpush1.msra.mxu0 0.0
      %2026 = vmatprep.subr.mxu0 0.0
      %2027 = vmatpush1.msra.mxu0 0.0
      %2028 = vmatprep.subr.mxu0 0.0
      %2029 = vmatpush1.msra.mxu0 0.0
      %2030 = vmatprep.subr.mxu0 0.0
      %2031 = vmatpush1.msra.mxu0 0.0
      %2032 = vmatprep.subr.mxu0 0.0
      %2033 = vmatpush1.msra.mxu0 0.0
      %2034 = vmatprep.subr.mxu0 0.0
      %2035 = vmatpush1.msra.mxu0 0.0
      %2036 = vmatprep.subr.mxu0 0.0
      %2037 = vmatpush1.msra.mxu0 0.0
      %2038 = vmatprep.mubr.f32.mxu0 0.0
      %2039 = vmatmul.mubr.f32.gmra.mrb[0].mxu0 %v1568
      %v2040 = vpop.f32.mrb[0].mxu0
      %v2041 = vadd.f32 %v1970, %v2040
      %v2042 = vpop.f32.mrb[0].mxu0
      %v2043 = vadd.f32 %v1972, %v2042
      %2044 = vdwg.mxu0
      %v2045 = vld [vmem:[%s5] sm:$0xff]
      %v2046 = vld [vmem:[%s5 + $0x8] sm:$0x3f]
      %s2047 = scalar_lea.vmem %s4, 1536
      %v2048 = vld [vmem:[%s2047] sm:$0xff]
      %v2049 = vld [vmem:[%s2047 + $0x8] sm:$0xff]
      %v2050 = vld [vmem:[%s2047 + $0x10] sm:$0xff]
      %v2051 = vld [vmem:[%s2047 + $0x18] sm:$0xff]
      %v2052 = vld [vmem:[%s2047 + $0x20] sm:$0xff]
      %v2053 = vld [vmem:[%s2047 + $0x28] sm:$0xff]
      %v2054 = vld [vmem:[%s2047 + $0x30] sm:$0xff]
      %v2055 = vld [vmem:[%s2047 + $0x38] sm:$0xff]
      %v2056 = vld [vmem:[%s2047 + $0x40] sm:$0xff]
      %v2057 = vld [vmem:[%s2047 + $0x48] sm:$0xff]
      %v2058 = vld [vmem:[%s2047 + $0x50] sm:$0xff]
      %v2059 = vld [vmem:[%s2047 + $0x58] sm:$0xff]
      %v2060 = vld [vmem:[%s2047 + $0x60] sm:$0xff]
      %v2061 = vld [vmem:[%s2047 + $0x68] sm:$0xff]
      %v2062 = vld [vmem:[%s2047 + $0x70] sm:$0xff]
      %v2063 = vld [vmem:[%s2047 + $0x78] sm:$0xff]
      %v2064 = vld [vmem:[%s2047 + $0x80] sm:$0xff]
      %v2065 = vld [vmem:[%s2047 + $0x88] sm:$0xff]
      %v2066 = vld [vmem:[%s2047 + $0x90] sm:$0xff]
      %v2067 = vld [vmem:[%s2047 + $0x98] sm:$0xff]
      %v2068 = vld [vmem:[%s2047 + $0xa0] sm:$0xff]
      %v2069 = vld [vmem:[%s2047 + $0xa8] sm:$0xff]
      %v2070 = vld [vmem:[%s2047 + $0xb0] sm:$0xff]
      %v2071 = vld [vmem:[%s2047 + $0xb8] sm:$0xff]
      %v2072 = vld [vmem:[%s2047 + $0xc0] sm:$0xff]
      %v2073 = vld [vmem:[%s2047 + $0xc8] sm:$0xff]
      %v2074 = vld [vmem:[%s2047 + $0xd0] sm:$0xff]
      %v2075 = vld [vmem:[%s2047 + $0xd8] sm:$0xff]
      %v2076 = vld [vmem:[%s2047 + $0xe0] sm:$0xff]
      %v2077 = vld [vmem:[%s2047 + $0xe8] sm:$0xff]
      %v2078 = vld [vmem:[%s2047 + $0xf0] sm:$0xff]
      %v2079 = vld [vmem:[%s2047 + $0xf8] sm:$0xff]
      %v2080 = vld [vmem:[%s2047 + $0x100] sm:$0xff]
      %v2081 = vld [vmem:[%s2047 + $0x108] sm:$0xff]
      %v2082 = vld [vmem:[%s2047 + $0x110] sm:$0xff]
      %v2083 = vld [vmem:[%s2047 + $0x118] sm:$0xff]
      %v2084 = vld [vmem:[%s2047 + $0x120] sm:$0xff]
      %v2085 = vld [vmem:[%s2047 + $0x128] sm:$0xff]
      %v2086 = vld [vmem:[%s2047 + $0x130] sm:$0xff]
      %v2087 = vld [vmem:[%s2047 + $0x138] sm:$0xff]
      %v2088 = vld [vmem:[%s2047 + $0x140] sm:$0xff]
      %v2089 = vld [vmem:[%s2047 + $0x148] sm:$0xff]
      %v2090 = vld [vmem:[%s2047 + $0x150] sm:$0xff]
      %v2091 = vld [vmem:[%s2047 + $0x158] sm:$0xff]
      %v2092 = vld [vmem:[%s2047 + $0x160] sm:$0xff]
      %v2093 = vld [vmem:[%s2047 + $0x168] sm:$0xff]
      %v2094 = vld [vmem:[%s2047 + $0x170] sm:$0xff]
      %v2095 = vld [vmem:[%s2047 + $0x178] sm:$0xff]
      %v2096 = vld [vmem:[%s2047 + $0x180] sm:$0xff]
      %v2097 = vld [vmem:[%s2047 + $0x188] sm:$0xff]
      %v2098 = vld [vmem:[%s2047 + $0x190] sm:$0xff]
      %v2099 = vld [vmem:[%s2047 + $0x198] sm:$0xff]
      %v2100 = vld [vmem:[%s2047 + $0x1a0] sm:$0xff]
      %v2101 = vld [vmem:[%s2047 + $0x1a8] sm:$0xff]
      %v2102 = vld [vmem:[%s2047 + $0x1b0] sm:$0xff]
      %v2103 = vld [vmem:[%s2047 + $0x1b8] sm:$0xff]
      %v2104 = vld [vmem:[%s2047 + $0x1c0] sm:$0xff]
      %v2105 = vld [vmem:[%s2047 + $0x1c8] sm:$0xff]
      %v2106 = vld [vmem:[%s2047 + $0x1d0] sm:$0xff]
      %v2107 = vld [vmem:[%s2047 + $0x1d8] sm:$0xff]
      %v2108 = vld [vmem:[%s2047 + $0x1e0] sm:$0xff]
      %v2109 = vld [vmem:[%s2047 + $0x1e8] sm:$0xff]
      %v2110 = vld [vmem:[%s2047 + $0x1f0] sm:$0xff]
      %v2111 = vld [vmem:[%s2047 + $0x1f8] sm:$0xff]
      %v2112 = vld [vmem:[%s2047 + $0x200] sm:$0xff]
      %v2113 = vld [vmem:[%s2047 + $0x208] sm:$0xff]
      %v2114 = vld [vmem:[%s2047 + $0x210] sm:$0xff]
      %v2115 = vld [vmem:[%s2047 + $0x218] sm:$0xff]
      %v2116 = vld [vmem:[%s2047 + $0x220] sm:$0xff]
      %v2117 = vld [vmem:[%s2047 + $0x228] sm:$0xff]
      %v2118 = vld [vmem:[%s2047 + $0x230] sm:$0xff]
      %v2119 = vld [vmem:[%s2047 + $0x238] sm:$0xff]
      %v2120 = vld [vmem:[%s2047 + $0x240] sm:$0xff]
      %v2121 = vld [vmem:[%s2047 + $0x248] sm:$0xff]
      %v2122 = vld [vmem:[%s2047 + $0x250] sm:$0xff]
      %v2123 = vld [vmem:[%s2047 + $0x258] sm:$0xff]
      %v2124 = vld [vmem:[%s2047 + $0x260] sm:$0xff]
      %v2125 = vld [vmem:[%s2047 + $0x268] sm:$0xff]
      %v2126 = vld [vmem:[%s2047 + $0x270] sm:$0xff]
      %v2127 = vld [vmem:[%s2047 + $0x278] sm:$0xff]
      %v2128 = vld [vmem:[%s2047 + $0x280] sm:$0xff]
      %v2129 = vld [vmem:[%s2047 + $0x288] sm:$0xff]
      %v2130 = vld [vmem:[%s2047 + $0x290] sm:$0xff]
      %v2131 = vld [vmem:[%s2047 + $0x298] sm:$0xff]
      %v2132 = vld [vmem:[%s2047 + $0x2a0] sm:$0xff]
      %v2133 = vld [vmem:[%s2047 + $0x2a8] sm:$0xff]
      %v2134 = vld [vmem:[%s2047 + $0x2b0] sm:$0xff]
      %v2135 = vld [vmem:[%s2047 + $0x2b8] sm:$0xff]
      %v2136 = vld [vmem:[%s2047 + $0x2c0] sm:$0xff]
      %v2137 = vld [vmem:[%s2047 + $0x2c8] sm:$0xff]
      %v2138 = vld [vmem:[%s2047 + $0x2d0] sm:$0xff]
      %v2139 = vld [vmem:[%s2047 + $0x2d8] sm:$0xff]
      %v2140 = vld [vmem:[%s2047 + $0x2e0] sm:$0xff]
      %v2141 = vld [vmem:[%s2047 + $0x2e8] sm:$0xff]
      %v2142 = vld [vmem:[%s2047 + $0x2f0] sm:$0xff]
      %v2143 = vld [vmem:[%s2047 + $0x2f8] sm:$0xff]
      %v2144 = vld [vmem:[%s2047 + $0x300] sm:$0xff]
      %v2145 = vld [vmem:[%s2047 + $0x308] sm:$0xff]
      %v2146 = vld [vmem:[%s2047 + $0x310] sm:$0xff]
      %v2147 = vld [vmem:[%s2047 + $0x318] sm:$0xff]
      %v2148 = vld [vmem:[%s2047 + $0x320] sm:$0xff]
      %v2149 = vld [vmem:[%s2047 + $0x328] sm:$0xff]
      %v2150 = vld [vmem:[%s2047 + $0x330] sm:$0xff]
      %v2151 = vld [vmem:[%s2047 + $0x338] sm:$0xff]
      %v2152 = vld [vmem:[%s2047 + $0x340] sm:$0xff]
      %v2153 = vld [vmem:[%s2047 + $0x348] sm:$0xff]
      %v2154 = vld [vmem:[%s2047 + $0x350] sm:$0xff]
      %v2155 = vld [vmem:[%s2047 + $0x358] sm:$0xff]
      %v2156 = vld [vmem:[%s2047 + $0x360] sm:$0xff]
      %v2157 = vld [vmem:[%s2047 + $0x368] sm:$0xff]
      %v2158 = vld [vmem:[%s2047 + $0x370] sm:$0xff]
      %v2159 = vld [vmem:[%s2047 + $0x378] sm:$0xff]
      %v2160 = vld [vmem:[%s2047 + $0x380] sm:$0xff]
      %v2161 = vld [vmem:[%s2047 + $0x388] sm:$0xff]
      %v2162 = vld [vmem:[%s2047 + $0x390] sm:$0xff]
      %v2163 = vld [vmem:[%s2047 + $0x398] sm:$0xff]
      %v2164 = vld [vmem:[%s2047 + $0x3a0] sm:$0xff]
      %v2165 = vld [vmem:[%s2047 + $0x3a8] sm:$0xff]
      %v2166 = vld [vmem:[%s2047 + $0x3b0] sm:$0xff]
      %v2167 = vld [vmem:[%s2047 + $0x3b8] sm:$0xff]
      %v2168 = vld [vmem:[%s2047 + $0x3c0] sm:$0xff]
      %v2169 = vld [vmem:[%s2047 + $0x3c8] sm:$0xff]
      %v2170 = vld [vmem:[%s2047 + $0x3d0] sm:$0xff]
      %v2171 = vld [vmem:[%s2047 + $0x3d8] sm:$0xff]
      %v2172 = vld [vmem:[%s2047 + $0x3e0] sm:$0xff]
      %v2173 = vld [vmem:[%s2047 + $0x3e8] sm:$0xff]
      %v2174 = vld [vmem:[%s2047 + $0x3f0] sm:$0xff]
      %v2175 = vld [vmem:[%s2047 + $0x3f8] sm:$0xff]
      %v2176 = vld [vmem:[%s2047 + $0x400] sm:$0xff]
      %v2177 = vld [vmem:[%s2047 + $0x408] sm:$0xff]
      %v2178 = vld [vmem:[%s2047 + $0x410] sm:$0xff]
      %v2179 = vld [vmem:[%s2047 + $0x418] sm:$0xff]
      %v2180 = vld [vmem:[%s2047 + $0x420] sm:$0xff]
      %v2181 = vld [vmem:[%s2047 + $0x428] sm:$0xff]
      %v2182 = vld [vmem:[%s2047 + $0x430] sm:$0xff]
      %v2183 = vld [vmem:[%s2047 + $0x438] sm:$0xff]
      %v2184 = vld [vmem:[%s2047 + $0x440] sm:$0xff]
      %v2185 = vld [vmem:[%s2047 + $0x448] sm:$0xff]
      %v2186 = vld [vmem:[%s2047 + $0x450] sm:$0xff]
      %v2187 = vld [vmem:[%s2047 + $0x458] sm:$0xff]
      %v2188 = vld [vmem:[%s2047 + $0x460] sm:$0xff]
      %v2189 = vld [vmem:[%s2047 + $0x468] sm:$0xff]
      %v2190 = vld [vmem:[%s2047 + $0x470] sm:$0xff]
      %v2191 = vld [vmem:[%s2047 + $0x478] sm:$0xff]
      %v2192 = vld [vmem:[%s2047 + $0x480] sm:$0xff]
      %v2193 = vld [vmem:[%s2047 + $0x488] sm:$0xff]
      %v2194 = vld [vmem:[%s2047 + $0x490] sm:$0xff]
      %v2195 = vld [vmem:[%s2047 + $0x498] sm:$0xff]
      %v2196 = vld [vmem:[%s2047 + $0x4a0] sm:$0xff]
      %v2197 = vld [vmem:[%s2047 + $0x4a8] sm:$0xff]
      %v2198 = vld [vmem:[%s2047 + $0x4b0] sm:$0xff]
      %v2199 = vld [vmem:[%s2047 + $0x4b8] sm:$0xff]
      %v2200 = vld [vmem:[%s2047 + $0x4c0] sm:$0xff]
      %v2201 = vld [vmem:[%s2047 + $0x4c8] sm:$0xff]
      %v2202 = vld [vmem:[%s2047 + $0x4d0] sm:$0xff]
      %v2203 = vld [vmem:[%s2047 + $0x4d8] sm:$0xff]
      %v2204 = vld [vmem:[%s2047 + $0x4e0] sm:$0xff]
      %v2205 = vld [vmem:[%s2047 + $0x4e8] sm:$0xff]
      %v2206 = vld [vmem:[%s2047 + $0x4f0] sm:$0xff]
      %v2207 = vld [vmem:[%s2047 + $0x4f8] sm:$0xff]
      %v2208 = vld [vmem:[%s2047 + $0x500] sm:$0xff]
      %v2209 = vld [vmem:[%s2047 + $0x508] sm:$0xff]
      %v2210 = vld [vmem:[%s2047 + $0x510] sm:$0xff]
      %v2211 = vld [vmem:[%s2047 + $0x518] sm:$0xff]
      %v2212 = vld [vmem:[%s2047 + $0x520] sm:$0xff]
      %v2213 = vld [vmem:[%s2047 + $0x528] sm:$0xff]
      %v2214 = vld [vmem:[%s2047 + $0x530] sm:$0xff]
      %v2215 = vld [vmem:[%s2047 + $0x538] sm:$0xff]
      %v2216 = vld [vmem:[%s2047 + $0x540] sm:$0xff]
      %v2217 = vld [vmem:[%s2047 + $0x548] sm:$0xff]
      %v2218 = vld [vmem:[%s2047 + $0x550] sm:$0xff]
      %v2219 = vld [vmem:[%s2047 + $0x558] sm:$0xff]
      %v2220 = vld [vmem:[%s2047 + $0x560] sm:$0xff]
      %v2221 = vld [vmem:[%s2047 + $0x568] sm:$0xff]
      %v2222 = vld [vmem:[%s2047 + $0x570] sm:$0xff]
      %v2223 = vld [vmem:[%s2047 + $0x578] sm:$0xff]
      %v2224 = vld [vmem:[%s2047 + $0x580] sm:$0xff]
      %v2225 = vld [vmem:[%s2047 + $0x588] sm:$0xff]
      %v2226 = vld [vmem:[%s2047 + $0x590] sm:$0xff]
      %v2227 = vld [vmem:[%s2047 + $0x598] sm:$0xff]
      %v2228 = vld [vmem:[%s2047 + $0x5a0] sm:$0xff]
      %v2229 = vld [vmem:[%s2047 + $0x5a8] sm:$0xff]
      %v2230 = vld [vmem:[%s2047 + $0x5b0] sm:$0xff]
      %v2231 = vld [vmem:[%s2047 + $0x5b8] sm:$0xff]
      %v2232 = vld [vmem:[%s2047 + $0x5c0] sm:$0xff]
      %v2233 = vld [vmem:[%s2047 + $0x5c8] sm:$0xff]
      %v2234 = vld [vmem:[%s2047 + $0x5d0] sm:$0xff]
      %v2235 = vld [vmem:[%s2047 + $0x5d8] sm:$0xff]
      %v2236 = vld [vmem:[%s2047 + $0x5e0] sm:$0xff]
      %v2237 = vld [vmem:[%s2047 + $0x5e8] sm:$0xff]
      %v2238 = vld [vmem:[%s2047 + $0x5f0] sm:$0xff]
      %v2239 = vld [vmem:[%s2047 + $0x5f8] sm:$0xff]
      %2240 = vmatprep.subr.mxu0 %v2049
      %2241 = vmatpush1.msra.mxu0 %v2048
      %2242 = vmatprep.subr.mxu0 %v2053
      %2243 = vmatpush1.msra.mxu0 %v2052
      %2244 = vmatprep.subr.mxu0 %v2057
      %2245 = vmatpush1.msra.mxu0 %v2056
      %2246 = vmatprep.subr.mxu0 %v2061
      %2247 = vmatpush1.msra.mxu0 %v2060
      %2248 = vmatprep.subr.mxu0 %v2065
      %2249 = vmatpush1.msra.mxu0 %v2064
      %2250 = vmatprep.subr.mxu0 %v2069
      %2251 = vmatpush1.msra.mxu0 %v2068
      %2252 = vmatprep.subr.mxu0 %v2073
      %2253 = vmatpush1.msra.mxu0 %v2072
      %2254 = vmatprep.subr.mxu0 %v2077
      %2255 = vmatpush1.msra.mxu0 %v2076
      %2256 = vmatprep.subr.mxu0 %v2081
      %2257 = vmatpush1.msra.mxu0 %v2080
      %2258 = vmatprep.subr.mxu0 %v2085
      %2259 = vmatpush1.msra.mxu0 %v2084
      %2260 = vmatprep.subr.mxu0 %v2089
      %2261 = vmatpush1.msra.mxu0 %v2088
      %2262 = vmatprep.subr.mxu0 %v2093
      %2263 = vmatpush1.msra.mxu0 %v2092
      %2264 = vmatprep.subr.mxu0 %v2097
      %2265 = vmatpush1.msra.mxu0 %v2096
      %2266 = vmatprep.subr.mxu0 %v2101
      %2267 = vmatpush1.msra.mxu0 %v2100
      %2268 = vmatprep.subr.mxu0 %v2105
      %2269 = vmatpush1.msra.mxu0 %v2104
      %2270 = vmatprep.subr.mxu0 %v2109
      %2271 = vmatpush1.msra.mxu0 %v2108
      %2272 = vmatprep.subr.mxu0 %v2113
      %2273 = vmatpush1.msra.mxu0 %v2112
      %2274 = vmatprep.subr.mxu0 %v2117
      %2275 = vmatpush1.msra.mxu0 %v2116
      %2276 = vmatprep.subr.mxu0 %v2121
      %2277 = vmatpush1.msra.mxu0 %v2120
      %2278 = vmatprep.subr.mxu0 %v2125
      %2279 = vmatpush1.msra.mxu0 %v2124
      %2280 = vmatprep.subr.mxu0 %v2129
      %2281 = vmatpush1.msra.mxu0 %v2128
      %2282 = vmatprep.subr.mxu0 %v2133
      %2283 = vmatpush1.msra.mxu0 %v2132
      %2284 = vmatprep.subr.mxu0 %v2137
      %2285 = vmatpush1.msra.mxu0 %v2136
      %2286 = vmatprep.subr.mxu0 %v2141
      %2287 = vmatpush1.msra.mxu0 %v2140
      %2288 = vmatprep.subr.mxu0 %v2145
      %2289 = vmatpush1.msra.mxu0 %v2144
      %2290 = vmatprep.subr.mxu0 %v2149
      %2291 = vmatpush1.msra.mxu0 %v2148
      %2292 = vmatprep.subr.mxu0 %v2153
      %2293 = vmatpush1.msra.mxu0 %v2152
      %2294 = vmatprep.subr.mxu0 %v2157
      %2295 = vmatpush1.msra.mxu0 %v2156
      %2296 = vmatprep.subr.mxu0 %v2161
      %2297 = vmatpush1.msra.mxu0 %v2160
      %2298 = vmatprep.subr.mxu0 %v2165
      %2299 = vmatpush1.msra.mxu0 %v2164
      %2300 = vmatprep.subr.mxu0 %v2169
      %2301 = vmatpush1.msra.mxu0 %v2168
      %2302 = vmatprep.subr.mxu0 %v2173
      %2303 = vmatpush1.msra.mxu0 %v2172
      %2304 = vmatprep.mubr.f32.mxu0 %v1567
      %2305 = vmatmul.mubr.f32.gmra.mrb[0].mxu0 %v1566
      %v2306 = vpop.f32.mrb[0].mxu0
      %v2307 = vadd.f32 0.0, %v2306
      %v2308 = vpop.f32.mrb[0].mxu0
      %v2309 = vadd.f32 0.0, %v2308
      %2310 = vdwg.mxu0
      %2311 = vmatprep.subr.mxu0 %v2177
      %2312 = vmatpush1.msra.mxu0 %v2176
      %2313 = vmatprep.subr.mxu0 %v2181
      %2314 = vmatpush1.msra.mxu0 %v2180
      %2315 = vmatprep.subr.mxu0 %v2185
      %2316 = vmatpush1.msra.mxu0 %v2184
      %2317 = vmatprep.subr.mxu0 %v2189
      %2318 = vmatpush1.msra.mxu0 %v2188
      %2319 = vmatprep.subr.mxu0 %v2193
      %2320 = vmatpush1.msra.mxu0 %v2192
      %2321 = vmatprep.subr.mxu0 %v2197
      %2322 = vmatpush1.msra.mxu0 %v2196
      %2323 = vmatprep.subr.mxu0 %v2201
      %2324 = vmatpush1.msra.mxu0 %v2200
      %2325 = vmatprep.subr.mxu0 %v2205
      %2326 = vmatpush1.msra.mxu0 %v2204
      %2327 = vmatprep.subr.mxu0 %v2209
      %2328 = vmatpush1.msra.mxu0 %v2208
      %2329 = vmatprep.subr.mxu0 %v2213
      %2330 = vmatpush1.msra.mxu0 %v2212
      %2331 = vmatprep.subr.mxu0 %v2217
      %2332 = vmatpush1.msra.mxu0 %v2216
      %2333 = vmatprep.subr.mxu0 %v2221
      %2334 = vmatpush1.msra.mxu0 %v2220
      %2335 = vmatprep.subr.mxu0 %v2225
      %2336 = vmatpush1.msra.mxu0 %v2224
      %2337 = vmatprep.subr.mxu0 %v2229
      %2338 = vmatpush1.msra.mxu0 %v2228
      %2339 = vmatprep.subr.mxu0 %v2233
      %2340 = vmatpush1.msra.mxu0 %v2232
      %2341 = vmatprep.subr.mxu0 %v2237
      %2342 = vmatpush1.msra.mxu0 %v2236
      %2343 = vmatprep.subr.mxu0 0.0
      %2344 = vmatpush1.msra.mxu0 0.0
      %2345 = vmatprep.subr.mxu0 0.0
      %2346 = vmatpush1.msra.mxu0 0.0
      %2347 = vmatprep.subr.mxu0 0.0
      %2348 = vmatpush1.msra.mxu0 0.0
      %2349 = vmatprep.subr.mxu0 0.0
      %2350 = vmatpush1.msra.mxu0 0.0
      %2351 = vmatprep.subr.mxu0 0.0
      %2352 = vmatpush1.msra.mxu0 0.0
      %2353 = vmatprep.subr.mxu0 0.0
      %2354 = vmatpush1.msra.mxu0 0.0
      %2355 = vmatprep.subr.mxu0 0.0
      %2356 = vmatpush1.msra.mxu0 0.0
      %2357 = vmatprep.subr.mxu0 0.0
      %2358 = vmatpush1.msra.mxu0 0.0
      %2359 = vmatprep.subr.mxu0 0.0
      %2360 = vmatpush1.msra.mxu0 0.0
      %2361 = vmatprep.subr.mxu0 0.0
      %2362 = vmatpush1.msra.mxu0 0.0
      %2363 = vmatprep.subr.mxu0 0.0
      %2364 = vmatpush1.msra.mxu0 0.0
      %2365 = vmatprep.subr.mxu0 0.0
      %2366 = vmatpush1.msra.mxu0 0.0
      %2367 = vmatprep.subr.mxu0 0.0
      %2368 = vmatpush1.msra.mxu0 0.0
      %2369 = vmatprep.subr.mxu0 0.0
      %2370 = vmatpush1.msra.mxu0 0.0
      %2371 = vmatprep.subr.mxu0 0.0
      %2372 = vmatpush1.msra.mxu0 0.0
      %2373 = vmatprep.subr.mxu0 0.0
      %2374 = vmatpush1.msra.mxu0 0.0
      %2375 = vmatprep.mubr.f32.mxu0 0.0
      %2376 = vmatmul.mubr.f32.gmra.mrb[0].mxu0 %v1568
      %v2377 = vpop.f32.mrb[0].mxu0
      %v2378 = vadd.f32 %v2307, %v2377
      %v2379 = vpop.f32.mrb[0].mxu0
      %v2380 = vadd.f32 %v2309, %v2379
      %2381 = vdwg.mxu0
      %2382 = vmatprep.subr.mxu0 %v2051
      %2383 = vmatpush1.msra.mxu0 %v2050
      %2384 = vmatprep.subr.mxu0 %v2055
      %2385 = vmatpush1.msra.mxu0 %v2054
      %2386 = vmatprep.subr.mxu0 %v2059
      %2387 = vmatpush1.msra.mxu0 %v2058
      %2388 = vmatprep.subr.mxu0 %v2063
      %2389 = vmatpush1.msra.mxu0 %v2062
      %2390 = vmatprep.subr.mxu0 %v2067
      %2391 = vmatpush1.msra.mxu0 %v2066
      %2392 = vmatprep.subr.mxu0 %v2071
      %2393 = vmatpush1.msra.mxu0 %v2070
      %2394 = vmatprep.subr.mxu0 %v2075
      %2395 = vmatpush1.msra.mxu0 %v2074
      %2396 = vmatprep.subr.mxu0 %v2079
      %2397 = vmatpush1.msra.mxu0 %v2078
      %2398 = vmatprep.subr.mxu0 %v2083
      %2399 = vmatpush1.msra.mxu0 %v2082
      %2400 = vmatprep.subr.mxu0 %v2087
      %2401 = vmatpush1.msra.mxu0 %v2086
      %2402 = vmatprep.subr.mxu0 %v2091
      %2403 = vmatpush1.msra.mxu0 %v2090
      %2404 = vmatprep.subr.mxu0 %v2095
      %2405 = vmatpush1.msra.mxu0 %v2094
      %2406 = vmatprep.subr.mxu0 %v2099
      %2407 = vmatpush1.msra.mxu0 %v2098
      %2408 = vmatprep.subr.mxu0 %v2103
      %2409 = vmatpush1.msra.mxu0 %v2102
      %2410 = vmatprep.subr.mxu0 %v2107
      %2411 = vmatpush1.msra.mxu0 %v2106
      %2412 = vmatprep.subr.mxu0 %v2111
      %2413 = vmatpush1.msra.mxu0 %v2110
      %2414 = vmatprep.subr.mxu0 %v2115
      %2415 = vmatpush1.msra.mxu0 %v2114
      %2416 = vmatprep.subr.mxu0 %v2119
      %2417 = vmatpush1.msra.mxu0 %v2118
      %2418 = vmatprep.subr.mxu0 %v2123
      %2419 = vmatpush1.msra.mxu0 %v2122
      %2420 = vmatprep.subr.mxu0 %v2127
      %2421 = vmatpush1.msra.mxu0 %v2126
      %2422 = vmatprep.subr.mxu0 %v2131
      %2423 = vmatpush1.msra.mxu0 %v2130
      %2424 = vmatprep.subr.mxu0 %v2135
      %2425 = vmatpush1.msra.mxu0 %v2134
      %2426 = vmatprep.subr.mxu0 %v2139
      %2427 = vmatpush1.msra.mxu0 %v2138
      %2428 = vmatprep.subr.mxu0 %v2143
      %2429 = vmatpush1.msra.mxu0 %v2142
      %2430 = vmatprep.subr.mxu0 %v2147
      %2431 = vmatpush1.msra.mxu0 %v2146
      %2432 = vmatprep.subr.mxu0 %v2151
      %2433 = vmatpush1.msra.mxu0 %v2150
      %2434 = vmatprep.subr.mxu0 %v2155
      %2435 = vmatpush1.msra.mxu0 %v2154
      %2436 = vmatprep.subr.mxu0 %v2159
      %2437 = vmatpush1.msra.mxu0 %v2158
      %2438 = vmatprep.subr.mxu0 %v2163
      %2439 = vmatpush1.msra.mxu0 %v2162
      %2440 = vmatprep.subr.mxu0 %v2167
      %2441 = vmatpush1.msra.mxu0 %v2166
      %2442 = vmatprep.subr.mxu0 %v2171
      %2443 = vmatpush1.msra.mxu0 %v2170
      %2444 = vmatprep.subr.mxu0 %v2175
      %2445 = vmatpush1.msra.mxu0 %v2174
      %2446 = vmatprep.mubr.f32.mxu0 %v1567
      %2447 = vmatmul.mubr.f32.gmra.mrb[0].mxu0 %v1566
      %v2448 = vpop.f32.mrb[0].mxu0
      %v2449 = vadd.f32 0.0, %v2448
      %v2450 = vpop.f32.mrb[0].mxu0
      %v2451 = vadd.f32 0.0, %v2450
      %2452 = vdwg.mxu0
      %2453 = vmatprep.subr.mxu0 %v2179
      %2454 = vmatpush1.msra.mxu0 %v2178
      %2455 = vmatprep.subr.mxu0 %v2183
      %2456 = vmatpush1.msra.mxu0 %v2182
      %2457 = vmatprep.subr.mxu0 %v2187
      %2458 = vmatpush1.msra.mxu0 %v2186
      %2459 = vmatprep.subr.mxu0 %v2191
      %2460 = vmatpush1.msra.mxu0 %v2190
      %2461 = vmatprep.subr.mxu0 %v2195
      %2462 = vmatpush1.msra.mxu0 %v2194
      %2463 = vmatprep.subr.mxu0 %v2199
      %2464 = vmatpush1.msra.mxu0 %v2198
      %2465 = vmatprep.subr.mxu0 %v2203
      %2466 = vmatpush1.msra.mxu0 %v2202
      %2467 = vmatprep.subr.mxu0 %v2207
      %2468 = vmatpush1.msra.mxu0 %v2206
      %2469 = vmatprep.subr.mxu0 %v2211
      %2470 = vmatpush1.msra.mxu0 %v2210
      %2471 = vmatprep.subr.mxu0 %v2215
      %2472 = vmatpush1.msra.mxu0 %v2214
      %2473 = vmatprep.subr.mxu0 %v2219
      %2474 = vmatpush1.msra.mxu0 %v2218
      %2475 = vmatprep.subr.mxu0 %v2223
      %2476 = vmatpush1.msra.mxu0 %v2222
      %2477 = vmatprep.subr.mxu0 %v2227
      %2478 = vmatpush1.msra.mxu0 %v2226
      %2479 = vmatprep.subr.mxu0 %v2231
      %2480 = vmatpush1.msra.mxu0 %v2230
      %2481 = vmatprep.subr.mxu0 %v2235
      %2482 = vmatpush1.msra.mxu0 %v2234
      %2483 = vmatprep.subr.mxu0 %v2239
      %2484 = vmatpush1.msra.mxu0 %v2238
      %2485 = vmatprep.subr.mxu0 0.0
      %2486 = vmatpush1.msra.mxu0 0.0
      %2487 = vmatprep.subr.mxu0 0.0
      %2488 = vmatpush1.msra.mxu0 0.0
      %2489 = vmatprep.subr.mxu0 0.0
      %2490 = vmatpush1.msra.mxu0 0.0
      %2491 = vmatprep.subr.mxu0 0.0
      %2492 = vmatpush1.msra.mxu0 0.0
      %2493 = vmatprep.subr.mxu0 0.0
      %2494 = vmatpush1.msra.mxu0 0.0
      %2495 = vmatprep.subr.mxu0 0.0
      %2496 = vmatpush1.msra.mxu0 0.0
      %2497 = vmatprep.subr.mxu0 0.0
      %2498 = vmatpush1.msra.mxu0 0.0
      %2499 = vmatprep.subr.mxu0 0.0
      %2500 = vmatpush1.msra.mxu0 0.0
      %2501 = vmatprep.subr.mxu0 0.0
      %2502 = vmatpush1.msra.mxu0 0.0
      %2503 = vmatprep.subr.mxu0 0.0
      %2504 = vmatpush1.msra.mxu0 0.0
      %2505 = vmatprep.subr.mxu0 0.0
      %2506 = vmatpush1.msra.mxu0 0.0
      %2507 = vmatprep.subr.mxu0 0.0
      %2508 = vmatpush1.msra.mxu0 0.0
      %2509 = vmatprep.subr.mxu0 0.0
      %2510 = vmatpush1.msra.mxu0 0.0
      %2511 = vmatprep.subr.mxu0 0.0
      %2512 = vmatpush1.msra.mxu0 0.0
      %2513 = vmatprep.subr.mxu0 0.0
      %2514 = vmatpush1.msra.mxu0 0.0
      %2515 = vmatprep.subr.mxu0 0.0
      %2516 = vmatpush1.msra.mxu0 0.0
      %2517 = vmatprep.mubr.f32.mxu0 0.0
      %2518 = vmatmul.mubr.f32.gmra.mrb[0].mxu0 %v1568
      %v2519 = vpop.f32.mrb[0].mxu0
      %v2520 = vadd.f32 %v2449, %v2519
      %v2521 = vpop.f32.mrb[0].mxu0
      %v2522 = vadd.f32 %v2451, %v2521
      %2523 = vdwg.mxu0
      %s2524 = scalar_lea.vmem %s5, 16
      %v2525 = vld [vmem:[%s2524] sm:$0xff]
      %v2526 = vld [vmem:[%s2524 + $0x8] sm:$0x3f]
      %vm2527 = vcmask 48128
      %v2529 = vsel %vm2527, %v2525, 0
      %v2532 = vsel %vm2527, %v2526, 0
      %vm2534 = vcmask 1045504
      %v2536 = vsel %vm2534, %v2378, 0
      %v2539 = vsel %vm2534, %v2380, 0
      %v2542 = vsel %vm2534, %v2520, 0
      %v2545 = vsel %vm2534, %v2522, 0
      %2547 = vmatprep.subr.mxu0 %v2539
      %2548 = vmatpush1.msra.mxu0 %v2536
      %2549 = vmatprep.subr.mxu0 0.0
      %2550 = vmatpush1.msra.mxu0 0.0
      %2551 = vmatprep.subr.mxu0 0.0
      %2552 = vmatpush1.msra.mxu0 0.0
      %2553 = vmatprep.subr.mxu0 0.0
      %2554 = vmatpush1.msra.mxu0 0.0
      %2555 = vmatprep.subr.mxu0 0.0
      %2556 = vmatpush1.msra.mxu0 0.0
      %2557 = vmatprep.subr.mxu0 0.0
      %2558 = vmatpush1.msra.mxu0 0.0
      %2559 = vmatprep.subr.mxu0 0.0
      %2560 = vmatpush1.msra.mxu0 0.0
      %2561 = vmatprep.subr.mxu0 0.0
      %2562 = vmatpush1.msra.mxu0 0.0
      %2563 = vmatprep.subr.mxu0 0.0
      %2564 = vmatpush1.msra.mxu0 0.0
      %2565 = vmatprep.subr.mxu0 0.0
      %2566 = vmatpush1.msra.mxu0 0.0
      %2567 = vmatprep.subr.mxu0 0.0
      %2568 = vmatpush1.msra.mxu0 0.0
      %2569 = vmatprep.subr.mxu0 0.0
      %2570 = vmatpush1.msra.mxu0 0.0
      %2571 = vmatprep.subr.mxu0 0.0
      %2572 = vmatpush1.msra.mxu0 0.0
      %2573 = vmatprep.subr.mxu0 0.0
      %2574 = vmatpush1.msra.mxu0 0.0
      %2575 = vmatprep.subr.mxu0 0.0
      %2576 = vmatpush1.msra.mxu0 0.0
      %2577 = vmatprep.subr.mxu0 0.0
      %2578 = vmatpush1.msra.mxu0 0.0
      %2579 = vmatprep.subr.mxu0 0.0
      %2580 = vmatpush1.msra.mxu0 0.0
      %2581 = vmatprep.subr.mxu0 0.0
      %2582 = vmatpush1.msra.mxu0 0.0
      %2583 = vmatprep.subr.mxu0 0.0
      %2584 = vmatpush1.msra.mxu0 0.0
      %2585 = vmatprep.subr.mxu0 0.0
      %2586 = vmatpush1.msra.mxu0 0.0
      %2587 = vmatprep.subr.mxu0 0.0
      %2588 = vmatpush1.msra.mxu0 0.0
      %2589 = vmatprep.subr.mxu0 0.0
      %2590 = vmatpush1.msra.mxu0 0.0
      %2591 = vmatprep.subr.mxu0 0.0
      %2592 = vmatpush1.msra.mxu0 0.0
      %2593 = vmatprep.subr.mxu0 0.0
      %2594 = vmatpush1.msra.mxu0 0.0
      %2595 = vmatprep.subr.mxu0 0.0
      %2596 = vmatpush1.msra.mxu0 0.0
      %2597 = vmatprep.subr.mxu0 0.0
      %2598 = vmatpush1.msra.mxu0 0.0
      %2599 = vmatprep.subr.mxu0 0.0
      %2600 = vmatpush1.msra.mxu0 0.0
      %2601 = vmatprep.subr.mxu0 0.0
      %2602 = vmatpush1.msra.mxu0 0.0
      %2603 = vmatprep.subr.mxu0 0.0
      %2604 = vmatpush1.msra.mxu0 0.0
      %2605 = vmatprep.subr.mxu0 0.0
      %2606 = vmatpush1.msra.mxu0 0.0
      %2607 = vmatprep.subr.mxu0 0.0
      %2608 = vmatpush1.msra.mxu0 0.0
      %2609 = vmatprep.subr.mxu0 0.0
      %2610 = vmatpush1.msra.mxu0 0.0
      %2611 = vmatprep.mubr.f32.mxu0 0.0
      %2612 = vmatmul.mubr.f32.gmra.mrb[0].mxu0 %v2529
      %v2613 = vpop.f32.mrb[0].mxu0
      %v2614 = vadd.f32 0.0, %v2613
      %v2615 = vpop.f32.mrb[0].mxu0
      %v2616 = vadd.f32 0.0, %v2615
      %2617 = vmatprep.mubr.f32.mxu0 0.0
      %2618 = vmatmul.mubr.f32.gmra.mrb[0].mxu0 %v2532
      %v2619 = vpop.f32.mrb[0].mxu0
      %v2620 = vadd.f32 0.0, %v2619
      %v2621 = vpop.f32.mrb[0].mxu0
      %v2622 = vadd.f32 0.0, %v2621
      %2623 = vdwg.mxu0
      %2624 = vmatprep.subr.mxu0 %v2545
      %2625 = vmatpush1.msra.mxu0 %v2542
      %2626 = vmatprep.subr.mxu0 0.0
      %2627 = vmatpush1.msra.mxu0 0.0
      %2628 = vmatprep.subr.mxu0 0.0
      %2629 = vmatpush1.msra.mxu0 0.0
      %2630 = vmatprep.subr.mxu0 0.0
      %2631 = vmatpush1.msra.mxu0 0.0
      %2632 = vmatprep.subr.mxu0 0.0
      %2633 = vmatpush1.msra.mxu0 0.0
      %2634 = vmatprep.subr.mxu0 0.0
      %2635 = vmatpush1.msra.mxu0 0.0
      %2636 = vmatprep.subr.mxu0 0.0
      %2637 = vmatpush1.msra.mxu0 0.0
      %2638 = vmatprep.subr.mxu0 0.0
      %2639 = vmatpush1.msra.mxu0 0.0
      %2640 = vmatprep.subr.mxu0 0.0
      %2641 = vmatpush1.msra.mxu0 0.0
      %2642 = vmatprep.subr.mxu0 0.0
      %2643 = vmatpush1.msra.mxu0 0.0
      %2644 = vmatprep.subr.mxu0 0.0
      %2645 = vmatpush1.msra.mxu0 0.0
      %2646 = vmatprep.subr.mxu0 0.0
      %2647 = vmatpush1.msra.mxu0 0.0
      %2648 = vmatprep.subr.mxu0 0.0
      %2649 = vmatpush1.msra.mxu0 0.0
      %2650 = vmatprep.subr.mxu0 0.0
      %2651 = vmatpush1.msra.mxu0 0.0
      %2652 = vmatprep.subr.mxu0 0.0
      %2653 = vmatpush1.msra.mxu0 0.0
      %2654 = vmatprep.subr.mxu0 0.0
      %2655 = vmatpush1.msra.mxu0 0.0
      %2656 = vmatprep.subr.mxu0 0.0
      %2657 = vmatpush1.msra.mxu0 0.0
      %2658 = vmatprep.subr.mxu0 0.0
      %2659 = vmatpush1.msra.mxu0 0.0
      %2660 = vmatprep.subr.mxu0 0.0
      %2661 = vmatpush1.msra.mxu0 0.0
      %2662 = vmatprep.subr.mxu0 0.0
      %2663 = vmatpush1.msra.mxu0 0.0
      %2664 = vmatprep.subr.mxu0 0.0
      %2665 = vmatpush1.msra.mxu0 0.0
      %2666 = vmatprep.subr.mxu0 0.0
      %2667 = vmatpush1.msra.mxu0 0.0
      %2668 = vmatprep.subr.mxu0 0.0
      %2669 = vmatpush1.msra.mxu0 0.0
      %2670 = vmatprep.subr.mxu0 0.0
      %2671 = vmatpush1.msra.mxu0 0.0
      %2672 = vmatprep.subr.mxu0 0.0
      %2673 = vmatpush1.msra.mxu0 0.0
      %2674 = vmatprep.subr.mxu0 0.0
      %2675 = vmatpush1.msra.mxu0 0.0
      %2676 = vmatprep.subr.mxu0 0.0
      %2677 = vmatpush1.msra.mxu0 0.0
      %2678 = vmatprep.subr.mxu0 0.0
      %2679 = vmatpush1.msra.mxu0 0.0
      %2680 = vmatprep.subr.mxu0 0.0
      %2681 = vmatpush1.msra.mxu0 0.0
      %2682 = vmatprep.subr.mxu0 0.0
      %2683 = vmatpush1.msra.mxu0 0.0
      %2684 = vmatprep.subr.mxu0 0.0
      %2685 = vmatpush1.msra.mxu0 0.0
      %2686 = vmatprep.subr.mxu0 0.0
      %2687 = vmatpush1.msra.mxu0 0.0
      %2688 = vmatprep.mubr.f32.mxu0 0.0
      %2689 = vmatmul.mubr.f32.gmra.mrb[0].mxu0 %v2529
      %v2690 = vpop.f32.mrb[0].mxu0
      %v2691 = vadd.f32 0.0, %v2690
      %v2692 = vpop.f32.mrb[0].mxu0
      %v2693 = vadd.f32 0.0, %v2692
      %2694 = vmatprep.mubr.f32.mxu0 0.0
      %2695 = vmatmul.mubr.f32.gmra.mrb[0].mxu0 %v2532
      %v2696 = vpop.f32.mrb[0].mxu0
      %v2697 = vadd.f32 0.0, %v2696
      %v2698 = vpop.f32.mrb[0].mxu0
      %v2699 = vadd.f32 0.0, %v2698
      %2700 = vdwg.mxu0
      %v2702 = vsel %vm2527, %v2045, 0
      %v2705 = vsel %vm2527, %v2046, 0
      %v2708 = vsel %vm2534, %v1899, 0
      %v2711 = vsel %vm2534, %v1901, 0
      %v2714 = vsel %vm2534, %v2041, 0
      %v2717 = vsel %vm2534, %v2043, 0
      %2719 = vmatprep.subr.mxu0 %v2711
      %2720 = vmatpush1.msra.mxu0 %v2708
      %2721 = vmatprep.subr.mxu0 0.0
      %2722 = vmatpush1.msra.mxu0 0.0
      %2723 = vmatprep.subr.mxu0 0.0
      %2724 = vmatpush1.msra.mxu0 0.0
      %2725 = vmatprep.subr.mxu0 0.0
      %2726 = vmatpush1.msra.mxu0 0.0
      %2727 = vmatprep.subr.mxu0 0.0
      %2728 = vmatpush1.msra.mxu0 0.0
      %2729 = vmatprep.subr.mxu0 0.0
      %2730 = vmatpush1.msra.mxu0 0.0
      %2731 = vmatprep.subr.mxu0 0.0
      %2732 = vmatpush1.msra.mxu0 0.0
      %2733 = vmatprep.subr.mxu0 0.0
      %2734 = vmatpush1.msra.mxu0 0.0
      %2735 = vmatprep.subr.mxu0 0.0
      %2736 = vmatpush1.msra.mxu0 0.0
      %2737 = vmatprep.subr.mxu0 0.0
      %2738 = vmatpush1.msra.mxu0 0.0
      %2739 = vmatprep.subr.mxu0 0.0
      %2740 = vmatpush1.msra.mxu0 0.0
      %2741 = vmatprep.subr.mxu0 0.0
      %2742 = vmatpush1.msra.mxu0 0.0
      %2743 = vmatprep.subr.mxu0 0.0
      %2744 = vmatpush1.msra.mxu0 0.0
      %2745 = vmatprep.subr.mxu0 0.0
      %2746 = vmatpush1.msra.mxu0 0.0
      %2747 = vmatprep.subr.mxu0 0.0
      %2748 = vmatpush1.msra.mxu0 0.0
      %2749 = vmatprep.subr.mxu0 0.0
      %2750 = vmatpush1.msra.mxu0 0.0
      %2751 = vmatprep.subr.mxu0 0.0
      %2752 = vmatpush1.msra.mxu0 0.0
      %2753 = vmatprep.subr.mxu0 0.0
      %2754 = vmatpush1.msra.mxu0 0.0
      %2755 = vmatprep.subr.mxu0 0.0
      %2756 = vmatpush1.msra.mxu0 0.0
      %2757 = vmatprep.subr.mxu0 0.0
      %2758 = vmatpush1.msra.mxu0 0.0
      %2759 = vmatprep.subr.mxu0 0.0
      %2760 = vmatpush1.msra.mxu0 0.0
      %2761 = vmatprep.subr.mxu0 0.0
      %2762 = vmatpush1.msra.mxu0 0.0
      %2763 = vmatprep.subr.mxu0 0.0
      %2764 = vmatpush1.msra.mxu0 0.0
      %2765 = vmatprep.subr.mxu0 0.0
      %2766 = vmatpush1.msra.mxu0 0.0
      %2767 = vmatprep.subr.mxu0 0.0
      %2768 = vmatpush1.msra.mxu0 0.0
      %2769 = vmatprep.subr.mxu0 0.0
      %2770 = vmatpush1.msra.mxu0 0.0
      %2771 = vmatprep.subr.mxu0 0.0
      %2772 = vmatpush1.msra.mxu0 0.0
      %2773 = vmatprep.subr.mxu0 0.0
      %2774 = vmatpush1.msra.mxu0 0.0
      %2775 = vmatprep.subr.mxu0 0.0
      %2776 = vmatpush1.msra.mxu0 0.0
      %2777 = vmatprep.subr.mxu0 0.0
      %2778 = vmatpush1.msra.mxu0 0.0
      %2779 = vmatprep.subr.mxu0 0.0
      %2780 = vmatpush1.msra.mxu0 0.0
      %2781 = vmatprep.subr.mxu0 0.0
      %2782 = vmatpush1.msra.mxu0 0.0
      %2783 = vmatprep.mubr.f32.mxu0 0.0
      %2784 = vmatmul.mubr.f32.gmra.mrb[0].mxu0 %v2702
      %v2785 = vpop.f32.mrb[0].mxu0
      %v2786 = vadd.f32 %v2614, %v2785
      %v2787 = vpop.f32.mrb[0].mxu0
      %v2788 = vadd.f32 %v2616, %v2787
      %2789 = vmatprep.mubr.f32.mxu0 0.0
      %2790 = vmatmul.mubr.f32.gmra.mrb[0].mxu0 %v2705
      %v2791 = vpop.f32.mrb[0].mxu0
      %v2792 = vadd.f32 %v2620, %v2791
      %v2793 = vpop.f32.mrb[0].mxu0
      %v2794 = vadd.f32 %v2622, %v2793
      %2795 = vdwg.mxu0
      %2796 = vmatprep.subr.mxu0 %v2717
      %2797 = vmatpush1.msra.mxu0 %v2714
      %2798 = vmatprep.subr.mxu0 0.0
      %2799 = vmatpush1.msra.mxu0 0.0
      %2800 = vmatprep.subr.mxu0 0.0
      %2801 = vmatpush1.msra.mxu0 0.0
      %2802 = vmatprep.subr.mxu0 0.0
      %2803 = vmatpush1.msra.mxu0 0.0
      %2804 = vmatprep.subr.mxu0 0.0
      %2805 = vmatpush1.msra.mxu0 0.0
      %2806 = vmatprep.subr.mxu0 0.0
      %2807 = vmatpush1.msra.mxu0 0.0
      %2808 = vmatprep.subr.mxu0 0.0
      %2809 = vmatpush1.msra.mxu0 0.0
      %2810 = vmatprep.subr.mxu0 0.0
      %2811 = vmatpush1.msra.mxu0 0.0
      %2812 = vmatprep.subr.mxu0 0.0
      %2813 = vmatpush1.msra.mxu0 0.0
      %2814 = vmatprep.subr.mxu0 0.0
      %2815 = vmatpush1.msra.mxu0 0.0
      %2816 = vmatprep.subr.mxu0 0.0
      %2817 = vmatpush1.msra.mxu0 0.0
      %2818 = vmatprep.subr.mxu0 0.0
      %2819 = vmatpush1.msra.mxu0 0.0
      %2820 = vmatprep.subr.mxu0 0.0
      %2821 = vmatpush1.msra.mxu0 0.0
      %2822 = vmatprep.subr.mxu0 0.0
      %2823 = vmatpush1.msra.mxu0 0.0
      %2824 = vmatprep.subr.mxu0 0.0
      %2825 = vmatpush1.msra.mxu0 0.0
      %2826 = vmatprep.subr.mxu0 0.0
      %2827 = vmatpush1.msra.mxu0 0.0
      %2828 = vmatprep.subr.mxu0 0.0
      %2829 = vmatpush1.msra.mxu0 0.0
      %2830 = vmatprep.subr.mxu0 0.0
      %2831 = vmatpush1.msra.mxu0 0.0
      %2832 = vmatprep.subr.mxu0 0.0
      %2833 = vmatpush1.msra.mxu0 0.0
      %2834 = vmatprep.subr.mxu0 0.0
      %2835 = vmatpush1.msra.mxu0 0.0
      %2836 = vmatprep.subr.mxu0 0.0
      %2837 = vmatpush1.msra.mxu0 0.0
      %2838 = vmatprep.subr.mxu0 0.0
      %2839 = vmatpush1.msra.mxu0 0.0
      %2840 = vmatprep.subr.mxu0 0.0
      %2841 = vmatpush1.msra.mxu0 0.0
      %2842 = vmatprep.subr.mxu0 0.0
      %2843 = vmatpush1.msra.mxu0 0.0
      %2844 = vmatprep.subr.mxu0 0.0
      %2845 = vmatpush1.msra.mxu0 0.0
      %2846 = vmatprep.subr.mxu0 0.0
      %2847 = vmatpush1.msra.mxu0 0.0
      %2848 = vmatprep.subr.mxu0 0.0
      %2849 = vmatpush1.msra.mxu0 0.0
      %2850 = vmatprep.subr.mxu0 0.0
      %2851 = vmatpush1.msra.mxu0 0.0
      %2852 = vmatprep.subr.mxu0 0.0
      %2853 = vmatpush1.msra.mxu0 0.0
      %2854 = vmatprep.subr.mxu0 0.0
      %2855 = vmatpush1.msra.mxu0 0.0
      %2856 = vmatprep.subr.mxu0 0.0
      %2857 = vmatpush1.msra.mxu0 0.0
      %2858 = vmatprep.subr.mxu0 0.0
      %2859 = vmatpush1.msra.mxu0 0.0
      %2860 = vmatprep.mubr.f32.mxu0 0.0
      %2861 = vmatmul.mubr.f32.gmra.mrb[0].mxu0 %v2702
      %v2862 = vpop.f32.mrb[0].mxu0
      %v2863 = vadd.f32 %v2691, %v2862
      %v2864 = vpop.f32.mrb[0].mxu0
      %v2865 = vadd.f32 %v2693, %v2864
      %2866 = vmatprep.mubr.f32.mxu0 0.0
      %2867 = vmatmul.mubr.f32.gmra.mrb[0].mxu0 %v2705
      %v2868 = vpop.f32.mrb[0].mxu0
      %v2869 = vadd.f32 %v2697, %v2868
      %v2870 = vpop.f32.mrb[0].mxu0
      %v2871 = vadd.f32 %v2699, %v2870
      %2872 = vdwg.mxu0
      %s2873 = scalar_lea.vmem %s4, 3072
      %v2874 = vld [vmem:[%s2873] sm:$0xff]
      %v2875 = vld [vmem:[%s2873 + $0x8] sm:$0xff]
      %v2876 = vld [vmem:[%s2873 + $0x10] sm:$0xff]
      %v2877 = vld [vmem:[%s2873 + $0x18] sm:$0xff]
      %v2878 = vld [vmem:[%s2873 + $0x20] sm:$0xff]
      %v2879 = vld [vmem:[%s2873 + $0x28] sm:$0xff]
      %v2880 = vld [vmem:[%s2873 + $0x30] sm:$0xff]
      %v2881 = vld [vmem:[%s2873 + $0x38] sm:$0xff]
      %v2882 = vld [vmem:[%s2873 + $0x40] sm:$0xff]
      %v2883 = vld [vmem:[%s2873 + $0x48] sm:$0xff]
      %v2884 = vld [vmem:[%s2873 + $0x50] sm:$0xff]
      %v2885 = vld [vmem:[%s2873 + $0x58] sm:$0xff]
      %v2886 = vld [vmem:[%s2873 + $0x60] sm:$0xff]
      %v2887 = vld [vmem:[%s2873 + $0x68] sm:$0xff]
      %v2888 = vld [vmem:[%s2873 + $0x70] sm:$0xff]
      %v2889 = vld [vmem:[%s2873 + $0x78] sm:$0xff]
      %v2890 = vld [vmem:[%s2873 + $0x80] sm:$0xff]
      %v2891 = vld [vmem:[%s2873 + $0x88] sm:$0xff]
      %v2892 = vld [vmem:[%s2873 + $0x90] sm:$0xff]
      %v2893 = vld [vmem:[%s2873 + $0x98] sm:$0xff]
      %v2894 = vld [vmem:[%s2873 + $0xa0] sm:$0xff]
      %v2895 = vld [vmem:[%s2873 + $0xa8] sm:$0xff]
      %v2896 = vld [vmem:[%s2873 + $0xb0] sm:$0xff]
      %v2897 = vld [vmem:[%s2873 + $0xb8] sm:$0xff]
      %v2898 = vld [vmem:[%s2873 + $0xc0] sm:$0xff]
      %v2899 = vld [vmem:[%s2873 + $0xc8] sm:$0xff]
      %v2900 = vld [vmem:[%s2873 + $0xd0] sm:$0xff]
      %v2901 = vld [vmem:[%s2873 + $0xd8] sm:$0xff]
      %v2902 = vld [vmem:[%s2873 + $0xe0] sm:$0xff]
      %v2903 = vld [vmem:[%s2873 + $0xe8] sm:$0xff]
      %v2904 = vld [vmem:[%s2873 + $0xf0] sm:$0xff]
      %v2905 = vld [vmem:[%s2873 + $0xf8] sm:$0xff]
      %v2906 = vld [vmem:[%s2873 + $0x100] sm:$0xff]
      %v2907 = vld [vmem:[%s2873 + $0x108] sm:$0xff]
      %v2908 = vld [vmem:[%s2873 + $0x110] sm:$0xff]
      %v2909 = vld [vmem:[%s2873 + $0x118] sm:$0xff]
      %v2910 = vld [vmem:[%s2873 + $0x120] sm:$0xff]
      %v2911 = vld [vmem:[%s2873 + $0x128] sm:$0xff]
      %v2912 = vld [vmem:[%s2873 + $0x130] sm:$0xff]
      %v2913 = vld [vmem:[%s2873 + $0x138] sm:$0xff]
      %v2914 = vld [vmem:[%s2873 + $0x140] sm:$0xff]
      %v2915 = vld [vmem:[%s2873 + $0x148] sm:$0xff]
      %v2916 = vld [vmem:[%s2873 + $0x150] sm:$0xff]
      %v2917 = vld [vmem:[%s2873 + $0x158] sm:$0xff]
      %v2918 = vld [vmem:[%s2873 + $0x160] sm:$0xff]
      %v2919 = vld [vmem:[%s2873 + $0x168] sm:$0xff]
      %v2920 = vld [vmem:[%s2873 + $0x170] sm:$0xff]
      %v2921 = vld [vmem:[%s2873 + $0x178] sm:$0xff]
      %v2922 = vld [vmem:[%s2873 + $0x180] sm:$0xff]
      %v2923 = vld [vmem:[%s2873 + $0x188] sm:$0xff]
      %v2924 = vld [vmem:[%s2873 + $0x190] sm:$0xff]
      %v2925 = vld [vmem:[%s2873 + $0x198] sm:$0xff]
      %v2926 = vld [vmem:[%s2873 + $0x1a0] sm:$0xff]
      %v2927 = vld [vmem:[%s2873 + $0x1a8] sm:$0xff]
      %v2928 = vld [vmem:[%s2873 + $0x1b0] sm:$0xff]
      %v2929 = vld [vmem:[%s2873 + $0x1b8] sm:$0xff]
      %v2930 = vld [vmem:[%s2873 + $0x1c0] sm:$0xff]
      %v2931 = vld [vmem:[%s2873 + $0x1c8] sm:$0xff]
      %v2932 = vld [vmem:[%s2873 + $0x1d0] sm:$0xff]
      %v2933 = vld [vmem:[%s2873 + $0x1d8] sm:$0xff]
      %v2934 = vld [vmem:[%s2873 + $0x1e0] sm:$0xff]
      %v2935 = vld [vmem:[%s2873 + $0x1e8] sm:$0xff]
      %v2936 = vld [vmem:[%s2873 + $0x1f0] sm:$0xff]
      %v2937 = vld [vmem:[%s2873 + $0x1f8] sm:$0xff]
      %v2938 = vld [vmem:[%s2873 + $0x200] sm:$0xff]
      %v2939 = vld [vmem:[%s2873 + $0x208] sm:$0xff]
      %v2940 = vld [vmem:[%s2873 + $0x210] sm:$0xff]
      %v2941 = vld [vmem:[%s2873 + $0x218] sm:$0xff]
      %v2942 = vld [vmem:[%s2873 + $0x220] sm:$0xff]
      %v2943 = vld [vmem:[%s2873 + $0x228] sm:$0xff]
      %v2944 = vld [vmem:[%s2873 + $0x230] sm:$0xff]
      %v2945 = vld [vmem:[%s2873 + $0x238] sm:$0xff]
      %v2946 = vld [vmem:[%s2873 + $0x240] sm:$0xff]
      %v2947 = vld [vmem:[%s2873 + $0x248] sm:$0xff]
      %v2948 = vld [vmem:[%s2873 + $0x250] sm:$0xff]
      %v2949 = vld [vmem:[%s2873 + $0x258] sm:$0xff]
      %v2950 = vld [vmem:[%s2873 + $0x260] sm:$0xff]
      %v2951 = vld [vmem:[%s2873 + $0x268] sm:$0xff]
      %v2952 = vld [vmem:[%s2873 + $0x270] sm:$0xff]
      %v2953 = vld [vmem:[%s2873 + $0x278] sm:$0xff]
      %v2954 = vld [vmem:[%s2873 + $0x280] sm:$0xff]
      %v2955 = vld [vmem:[%s2873 + $0x288] sm:$0xff]
      %v2956 = vld [vmem:[%s2873 + $0x290] sm:$0xff]
      %v2957 = vld [vmem:[%s2873 + $0x298] sm:$0xff]
      %v2958 = vld [vmem:[%s2873 + $0x2a0] sm:$0xff]
      %v2959 = vld [vmem:[%s2873 + $0x2a8] sm:$0xff]
      %v2960 = vld [vmem:[%s2873 + $0x2b0] sm:$0xff]
      %v2961 = vld [vmem:[%s2873 + $0x2b8] sm:$0xff]
      %v2962 = vld [vmem:[%s2873 + $0x2c0] sm:$0xff]
      %v2963 = vld [vmem:[%s2873 + $0x2c8] sm:$0xff]
      %v2964 = vld [vmem:[%s2873 + $0x2d0] sm:$0xff]
      %v2965 = vld [vmem:[%s2873 + $0x2d8] sm:$0xff]
      %v2966 = vld [vmem:[%s2873 + $0x2e0] sm:$0xff]
      %v2967 = vld [vmem:[%s2873 + $0x2e8] sm:$0xff]
      %v2968 = vld [vmem:[%s2873 + $0x2f0] sm:$0xff]
      %v2969 = vld [vmem:[%s2873 + $0x2f8] sm:$0xff]
      %v2970 = vld [vmem:[%s2873 + $0x300] sm:$0xff]
      %v2971 = vld [vmem:[%s2873 + $0x308] sm:$0xff]
      %v2972 = vld [vmem:[%s2873 + $0x310] sm:$0xff]
      %v2973 = vld [vmem:[%s2873 + $0x318] sm:$0xff]
      %v2974 = vld [vmem:[%s2873 + $0x320] sm:$0xff]
      %v2975 = vld [vmem:[%s2873 + $0x328] sm:$0xff]
      %v2976 = vld [vmem:[%s2873 + $0x330] sm:$0xff]
      %v2977 = vld [vmem:[%s2873 + $0x338] sm:$0xff]
      %v2978 = vld [vmem:[%s2873 + $0x340] sm:$0xff]
      %v2979 = vld [vmem:[%s2873 + $0x348] sm:$0xff]
      %v2980 = vld [vmem:[%s2873 + $0x350] sm:$0xff]
      %v2981 = vld [vmem:[%s2873 + $0x358] sm:$0xff]
      %v2982 = vld [vmem:[%s2873 + $0x360] sm:$0xff]
      %v2983 = vld [vmem:[%s2873 + $0x368] sm:$0xff]
      %v2984 = vld [vmem:[%s2873 + $0x370] sm:$0xff]
      %v2985 = vld [vmem:[%s2873 + $0x378] sm:$0xff]
      %v2986 = vld [vmem:[%s2873 + $0x380] sm:$0xff]
      %v2987 = vld [vmem:[%s2873 + $0x388] sm:$0xff]
      %v2988 = vld [vmem:[%s2873 + $0x390] sm:$0xff]
      %v2989 = vld [vmem:[%s2873 + $0x398] sm:$0xff]
      %v2990 = vld [vmem:[%s2873 + $0x3a0] sm:$0xff]
      %v2991 = vld [vmem:[%s2873 + $0x3a8] sm:$0xff]
      %v2992 = vld [vmem:[%s2873 + $0x3b0] sm:$0xff]
      %v2993 = vld [vmem:[%s2873 + $0x3b8] sm:$0xff]
      %v2994 = vld [vmem:[%s2873 + $0x3c0] sm:$0xff]
      %v2995 = vld [vmem:[%s2873 + $0x3c8] sm:$0xff]
      %v2996 = vld [vmem:[%s2873 + $0x3d0] sm:$0xff]
      %v2997 = vld [vmem:[%s2873 + $0x3d8] sm:$0xff]
      %v2998 = vld [vmem:[%s2873 + $0x3e0] sm:$0xff]
      %v2999 = vld [vmem:[%s2873 + $0x3e8] sm:$0xff]
      %v3000 = vld [vmem:[%s2873 + $0x3f0] sm:$0xff]
      %v3001 = vld [vmem:[%s2873 + $0x3f8] sm:$0xff]
      %v3002 = vld [vmem:[%s2873 + $0x400] sm:$0xff]
      %v3003 = vld [vmem:[%s2873 + $0x408] sm:$0xff]
      %v3004 = vld [vmem:[%s2873 + $0x410] sm:$0xff]
      %v3005 = vld [vmem:[%s2873 + $0x418] sm:$0xff]
      %v3006 = vld [vmem:[%s2873 + $0x420] sm:$0xff]
      %v3007 = vld [vmem:[%s2873 + $0x428] sm:$0xff]
      %v3008 = vld [vmem:[%s2873 + $0x430] sm:$0xff]
      %v3009 = vld [vmem:[%s2873 + $0x438] sm:$0xff]
      %v3010 = vld [vmem:[%s2873 + $0x440] sm:$0xff]
      %v3011 = vld [vmem:[%s2873 + $0x448] sm:$0xff]
      %v3012 = vld [vmem:[%s2873 + $0x450] sm:$0xff]
      %v3013 = vld [vmem:[%s2873 + $0x458] sm:$0xff]
      %v3014 = vld [vmem:[%s2873 + $0x460] sm:$0xff]
      %v3015 = vld [vmem:[%s2873 + $0x468] sm:$0xff]
      %v3016 = vld [vmem:[%s2873 + $0x470] sm:$0xff]
      %v3017 = vld [vmem:[%s2873 + $0x478] sm:$0xff]
      %v3018 = vld [vmem:[%s2873 + $0x480] sm:$0xff]
      %v3019 = vld [vmem:[%s2873 + $0x488] sm:$0xff]
      %v3020 = vld [vmem:[%s2873 + $0x490] sm:$0xff]
      %v3021 = vld [vmem:[%s2873 + $0x498] sm:$0xff]
      %v3022 = vld [vmem:[%s2873 + $0x4a0] sm:$0xff]
      %v3023 = vld [vmem:[%s2873 + $0x4a8] sm:$0xff]
      %v3024 = vld [vmem:[%s2873 + $0x4b0] sm:$0xff]
      %v3025 = vld [vmem:[%s2873 + $0x4b8] sm:$0xff]
      %v3026 = vld [vmem:[%s2873 + $0x4c0] sm:$0xff]
      %v3027 = vld [vmem:[%s2873 + $0x4c8] sm:$0xff]
      %v3028 = vld [vmem:[%s2873 + $0x4d0] sm:$0xff]
      %v3029 = vld [vmem:[%s2873 + $0x4d8] sm:$0xff]
      %v3030 = vld [vmem:[%s2873 + $0x4e0] sm:$0xff]
      %v3031 = vld [vmem:[%s2873 + $0x4e8] sm:$0xff]
      %v3032 = vld [vmem:[%s2873 + $0x4f0] sm:$0xff]
      %v3033 = vld [vmem:[%s2873 + $0x4f8] sm:$0xff]
      %v3034 = vld [vmem:[%s2873 + $0x500] sm:$0xff]
      %v3035 = vld [vmem:[%s2873 + $0x508] sm:$0xff]
      %v3036 = vld [vmem:[%s2873 + $0x510] sm:$0xff]
      %v3037 = vld [vmem:[%s2873 + $0x518] sm:$0xff]
      %v3038 = vld [vmem:[%s2873 + $0x520] sm:$0xff]
      %v3039 = vld [vmem:[%s2873 + $0x528] sm:$0xff]
      %v3040 = vld [vmem:[%s2873 + $0x530] sm:$0xff]
      %v3041 = vld [vmem:[%s2873 + $0x538] sm:$0xff]
      %v3042 = vld [vmem:[%s2873 + $0x540] sm:$0xff]
      %v3043 = vld [vmem:[%s2873 + $0x548] sm:$0xff]
      %v3044 = vld [vmem:[%s2873 + $0x550] sm:$0xff]
      %v3045 = vld [vmem:[%s2873 + $0x558] sm:$0xff]
      %v3046 = vld [vmem:[%s2873 + $0x560] sm:$0xff]
      %v3047 = vld [vmem:[%s2873 + $0x568] sm:$0xff]
      %v3048 = vld [vmem:[%s2873 + $0x570] sm:$0xff]
      %v3049 = vld [vmem:[%s2873 + $0x578] sm:$0xff]
      %v3050 = vld [vmem:[%s2873 + $0x580] sm:$0xff]
      %v3051 = vld [vmem:[%s2873 + $0x588] sm:$0xff]
      %v3052 = vld [vmem:[%s2873 + $0x590] sm:$0xff]
      %v3053 = vld [vmem:[%s2873 + $0x598] sm:$0xff]
      %v3054 = vld [vmem:[%s2873 + $0x5a0] sm:$0xff]
      %v3055 = vld [vmem:[%s2873 + $0x5a8] sm:$0xff]
      %v3056 = vld [vmem:[%s2873 + $0x5b0] sm:$0xff]
      %v3057 = vld [vmem:[%s2873 + $0x5b8] sm:$0xff]
      %v3058 = vld [vmem:[%s2873 + $0x5c0] sm:$0xff]
      %v3059 = vld [vmem:[%s2873 + $0x5c8] sm:$0xff]
      %v3060 = vld [vmem:[%s2873 + $0x5d0] sm:$0xff]
      %v3061 = vld [vmem:[%s2873 + $0x5d8] sm:$0xff]
      %v3062 = vld [vmem:[%s2873 + $0x5e0] sm:$0xff]
      %v3063 = vld [vmem:[%s2873 + $0x5e8] sm:$0xff]
      %v3064 = vld [vmem:[%s2873 + $0x5f0] sm:$0xff]
      %v3065 = vld [vmem:[%s2873 + $0x5f8] sm:$0xff]
      %3066 = vmatprep.subr.mxu0 %v2875
      %3067 = vmatpush1.msra.mxu0 %v2874
      %3068 = vmatprep.subr.mxu0 %v2879
      %3069 = vmatpush1.msra.mxu0 %v2878
      %3070 = vmatprep.subr.mxu0 %v2883
      %3071 = vmatpush1.msra.mxu0 %v2882
      %3072 = vmatprep.subr.mxu0 %v2887
      %3073 = vmatpush1.msra.mxu0 %v2886
      %3074 = vmatprep.subr.mxu0 %v2891
      %3075 = vmatpush1.msra.mxu0 %v2890
      %3076 = vmatprep.subr.mxu0 %v2895
      %3077 = vmatpush1.msra.mxu0 %v2894
      %3078 = vmatprep.subr.mxu0 %v2899
      %3079 = vmatpush1.msra.mxu0 %v2898
      %3080 = vmatprep.subr.mxu0 %v2903
      %3081 = vmatpush1.msra.mxu0 %v2902
      %3082 = vmatprep.subr.mxu0 %v2907
      %3083 = vmatpush1.msra.mxu0 %v2906
      %3084 = vmatprep.subr.mxu0 %v2911
      %3085 = vmatpush1.msra.mxu0 %v2910
      %3086 = vmatprep.subr.mxu0 %v2915
      %3087 = vmatpush1.msra.mxu0 %v2914
      %3088 = vmatprep.subr.mxu0 %v2919
      %3089 = vmatpush1.msra.mxu0 %v2918
      %3090 = vmatprep.subr.mxu0 %v2923
      %3091 = vmatpush1.msra.mxu0 %v2922
      %3092 = vmatprep.subr.mxu0 %v2927
      %3093 = vmatpush1.msra.mxu0 %v2926
      %3094 = vmatprep.subr.mxu0 %v2931
      %3095 = vmatpush1.msra.mxu0 %v2930
      %3096 = vmatprep.subr.mxu0 %v2935
      %3097 = vmatpush1.msra.mxu0 %v2934
      %3098 = vmatprep.subr.mxu0 %v2939
      %3099 = vmatpush1.msra.mxu0 %v2938
      %3100 = vmatprep.subr.mxu0 %v2943
      %3101 = vmatpush1.msra.mxu0 %v2942
      %3102 = vmatprep.subr.mxu0 %v2947
      %3103 = vmatpush1.msra.mxu0 %v2946
      %3104 = vmatprep.subr.mxu0 %v2951
      %3105 = vmatpush1.msra.mxu0 %v2950
      %3106 = vmatprep.subr.mxu0 %v2955
      %3107 = vmatpush1.msra.mxu0 %v2954
      %3108 = vmatprep.subr.mxu0 %v2959
      %3109 = vmatpush1.msra.mxu0 %v2958
      %3110 = vmatprep.subr.mxu0 %v2963
      %3111 = vmatpush1.msra.mxu0 %v2962
      %3112 = vmatprep.subr.mxu0 %v2967
      %3113 = vmatpush1.msra.mxu0 %v2966
      %3114 = vmatprep.subr.mxu0 %v2971
      %3115 = vmatpush1.msra.mxu0 %v2970
      %3116 = vmatprep.subr.mxu0 %v2975
      %3117 = vmatpush1.msra.mxu0 %v2974
      %3118 = vmatprep.subr.mxu0 %v2979
      %3119 = vmatpush1.msra.mxu0 %v2978
      %3120 = vmatprep.subr.mxu0 %v2983
      %3121 = vmatpush1.msra.mxu0 %v2982
      %3122 = vmatprep.subr.mxu0 %v2987
      %3123 = vmatpush1.msra.mxu0 %v2986
      %3124 = vmatprep.subr.mxu0 %v2991
      %3125 = vmatpush1.msra.mxu0 %v2990
      %3126 = vmatprep.subr.mxu0 %v2995
      %3127 = vmatpush1.msra.mxu0 %v2994
      %3128 = vmatprep.subr.mxu0 %v2999
      %3129 = vmatpush1.msra.mxu0 %v2998
      %3130 = vmatprep.mubr.f32.mxu0 %v1567
      %3131 = vmatmul.mubr.f32.gmra.mrb[0].mxu0 %v1566
      %v3132 = vpop.f32.mrb[0].mxu0
      %v3133 = vadd.f32 0.0, %v3132
      %v3134 = vpop.f32.mrb[0].mxu0
      %v3135 = vadd.f32 0.0, %v3134
      %3136 = vdwg.mxu0
      %3137 = vmatprep.subr.mxu0 %v3003
      %3138 = vmatpush1.msra.mxu0 %v3002
      %3139 = vmatprep.subr.mxu0 %v3007
      %3140 = vmatpush1.msra.mxu0 %v3006
      %3141 = vmatprep.subr.mxu0 %v3011
      %3142 = vmatpush1.msra.mxu0 %v3010
      %3143 = vmatprep.subr.mxu0 %v3015
      %3144 = vmatpush1.msra.mxu0 %v3014
      %3145 = vmatprep.subr.mxu0 %v3019
      %3146 = vmatpush1.msra.mxu0 %v3018
      %3147 = vmatprep.subr.mxu0 %v3023
      %3148 = vmatpush1.msra.mxu0 %v3022
      %3149 = vmatprep.subr.mxu0 %v3027
      %3150 = vmatpush1.msra.mxu0 %v3026
      %3151 = vmatprep.subr.mxu0 %v3031
      %3152 = vmatpush1.msra.mxu0 %v3030
      %3153 = vmatprep.subr.mxu0 %v3035
      %3154 = vmatpush1.msra.mxu0 %v3034
      %3155 = vmatprep.subr.mxu0 %v3039
      %3156 = vmatpush1.msra.mxu0 %v3038
      %3157 = vmatprep.subr.mxu0 %v3043
      %3158 = vmatpush1.msra.mxu0 %v3042
      %3159 = vmatprep.subr.mxu0 %v3047
      %3160 = vmatpush1.msra.mxu0 %v3046
      %3161 = vmatprep.subr.mxu0 %v3051
      %3162 = vmatpush1.msra.mxu0 %v3050
      %3163 = vmatprep.subr.mxu0 %v3055
      %3164 = vmatpush1.msra.mxu0 %v3054
      %3165 = vmatprep.subr.mxu0 %v3059
      %3166 = vmatpush1.msra.mxu0 %v3058
      %3167 = vmatprep.subr.mxu0 %v3063
      %3168 = vmatpush1.msra.mxu0 %v3062
      %3169 = vmatprep.subr.mxu0 0.0
      %3170 = vmatpush1.msra.mxu0 0.0
      %3171 = vmatprep.subr.mxu0 0.0
      %3172 = vmatpush1.msra.mxu0 0.0
      %3173 = vmatprep.subr.mxu0 0.0
      %3174 = vmatpush1.msra.mxu0 0.0
      %3175 = vmatprep.subr.mxu0 0.0
      %3176 = vmatpush1.msra.mxu0 0.0
      %3177 = vmatprep.subr.mxu0 0.0
      %3178 = vmatpush1.msra.mxu0 0.0
      %3179 = vmatprep.subr.mxu0 0.0
      %3180 = vmatpush1.msra.mxu0 0.0
      %3181 = vmatprep.subr.mxu0 0.0
      %3182 = vmatpush1.msra.mxu0 0.0
      %3183 = vmatprep.subr.mxu0 0.0
      %3184 = vmatpush1.msra.mxu0 0.0
      %3185 = vmatprep.subr.mxu0 0.0
      %3186 = vmatpush1.msra.mxu0 0.0
      %3187 = vmatprep.subr.mxu0 0.0
      %3188 = vmatpush1.msra.mxu0 0.0
      %3189 = vmatprep.subr.mxu0 0.0
      %3190 = vmatpush1.msra.mxu0 0.0
      %3191 = vmatprep.subr.mxu0 0.0
      %3192 = vmatpush1.msra.mxu0 0.0
      %3193 = vmatprep.subr.mxu0 0.0
      %3194 = vmatpush1.msra.mxu0 0.0
      %3195 = vmatprep.subr.mxu0 0.0
      %3196 = vmatpush1.msra.mxu0 0.0
      %3197 = vmatprep.subr.mxu0 0.0
      %3198 = vmatpush1.msra.mxu0 0.0
      %3199 = vmatprep.subr.mxu0 0.0
      %3200 = vmatpush1.msra.mxu0 0.0
      %3201 = vmatprep.mubr.f32.mxu0 0.0
      %3202 = vmatmul.mubr.f32.gmra.mrb[0].mxu0 %v1568
      %v3203 = vpop.f32.mrb[0].mxu0
      %v3204 = vadd.f32 %v3133, %v3203
      %v3205 = vpop.f32.mrb[0].mxu0
      %v3206 = vadd.f32 %v3135, %v3205
      %3207 = vdwg.mxu0
      %3208 = vmatprep.subr.mxu0 %v2877
      %3209 = vmatpush1.msra.mxu0 %v2876
      %3210 = vmatprep.subr.mxu0 %v2881
      %3211 = vmatpush1.msra.mxu0 %v2880
      %3212 = vmatprep.subr.mxu0 %v2885
      %3213 = vmatpush1.msra.mxu0 %v2884
      %3214 = vmatprep.subr.mxu0 %v2889
      %3215 = vmatpush1.msra.mxu0 %v2888
      %3216 = vmatprep.subr.mxu0 %v2893
      %3217 = vmatpush1.msra.mxu0 %v2892
      %3218 = vmatprep.subr.mxu0 %v2897
      %3219 = vmatpush1.msra.mxu0 %v2896
      %3220 = vmatprep.subr.mxu0 %v2901
      %3221 = vmatpush1.msra.mxu0 %v2900
      %3222 = vmatprep.subr.mxu0 %v2905
      %3223 = vmatpush1.msra.mxu0 %v2904
      %3224 = vmatprep.subr.mxu0 %v2909
      %3225 = vmatpush1.msra.mxu0 %v2908
      %3226 = vmatprep.subr.mxu0 %v2913
      %3227 = vmatpush1.msra.mxu0 %v2912
      %3228 = vmatprep.subr.mxu0 %v2917
      %3229 = vmatpush1.msra.mxu0 %v2916
      %3230 = vmatprep.subr.mxu0 %v2921
      %3231 = vmatpush1.msra.mxu0 %v2920
      %3232 = vmatprep.subr.mxu0 %v2925
      %3233 = vmatpush1.msra.mxu0 %v2924
      %3234 = vmatprep.subr.mxu0 %v2929
      %3235 = vmatpush1.msra.mxu0 %v2928
      %3236 = vmatprep.subr.mxu0 %v2933
      %3237 = vmatpush1.msra.mxu0 %v2932
      %3238 = vmatprep.subr.mxu0 %v2937
      %3239 = vmatpush1.msra.mxu0 %v2936
      %3240 = vmatprep.subr.mxu0 %v2941
      %3241 = vmatpush1.msra.mxu0 %v2940
      %3242 = vmatprep.subr.mxu0 %v2945
      %3243 = vmatpush1.msra.mxu0 %v2944
      %3244 = vmatprep.subr.mxu0 %v2949
      %3245 = vmatpush1.msra.mxu0 %v2948
      %3246 = vmatprep.subr.mxu0 %v2953
      %3247 = vmatpush1.msra.mxu0 %v2952
      %3248 = vmatprep.subr.mxu0 %v2957
      %3249 = vmatpush1.msra.mxu0 %v2956
      %3250 = vmatprep.subr.mxu0 %v2961
      %3251 = vmatpush1.msra.mxu0 %v2960
      %3252 = vmatprep.subr.mxu0 %v2965
      %3253 = vmatpush1.msra.mxu0 %v2964
      %3254 = vmatprep.subr.mxu0 %v2969
      %3255 = vmatpush1.msra.mxu0 %v2968
      %3256 = vmatprep.subr.mxu0 %v2973
      %3257 = vmatpush1.msra.mxu0 %v2972
      %3258 = vmatprep.subr.mxu0 %v2977
      %3259 = vmatpush1.msra.mxu0 %v2976
      %3260 = vmatprep.subr.mxu0 %v2981
      %3261 = vmatpush1.msra.mxu0 %v2980
      %3262 = vmatprep.subr.mxu0 %v2985
      %3263 = vmatpush1.msra.mxu0 %v2984
      %3264 = vmatprep.subr.mxu0 %v2989
      %3265 = vmatpush1.msra.mxu0 %v2988
      %3266 = vmatprep.subr.mxu0 %v2993
      %3267 = vmatpush1.msra.mxu0 %v2992
      %3268 = vmatprep.subr.mxu0 %v2997
      %3269 = vmatpush1.msra.mxu0 %v2996
      %3270 = vmatprep.subr.mxu0 %v3001
      %3271 = vmatpush1.msra.mxu0 %v3000
      %3272 = vmatprep.mubr.f32.mxu0 %v1567
      %3273 = vmatmul.mubr.f32.gmra.mrb[0].mxu0 %v1566
      %v3274 = vpop.f32.mrb[0].mxu0
      %v3275 = vadd.f32 0.0, %v3274
      %v3276 = vpop.f32.mrb[0].mxu0
      %v3277 = vadd.f32 0.0, %v3276
      %3278 = vdwg.mxu0
      %3279 = vmatprep.subr.mxu0 %v3005
      %3280 = vmatpush1.msra.mxu0 %v3004
      %3281 = vmatprep.subr.mxu0 %v3009
      %3282 = vmatpush1.msra.mxu0 %v3008
      %3283 = vmatprep.subr.mxu0 %v3013
      %3284 = vmatpush1.msra.mxu0 %v3012
      %3285 = vmatprep.subr.mxu0 %v3017
      %3286 = vmatpush1.msra.mxu0 %v3016
      %3287 = vmatprep.subr.mxu0 %v3021
      %3288 = vmatpush1.msra.mxu0 %v3020
      %3289 = vmatprep.subr.mxu0 %v3025
      %3290 = vmatpush1.msra.mxu0 %v3024
      %3291 = vmatprep.subr.mxu0 %v3029
      %3292 = vmatpush1.msra.mxu0 %v3028
      %3293 = vmatprep.subr.mxu0 %v3033
      %3294 = vmatpush1.msra.mxu0 %v3032
      %3295 = vmatprep.subr.mxu0 %v3037
      %3296 = vmatpush1.msra.mxu0 %v3036
      %3297 = vmatprep.subr.mxu0 %v3041
      %3298 = vmatpush1.msra.mxu0 %v3040
      %3299 = vmatprep.subr.mxu0 %v3045
      %3300 = vmatpush1.msra.mxu0 %v3044
      %3301 = vmatprep.subr.mxu0 %v3049
      %3302 = vmatpush1.msra.mxu0 %v3048
      %3303 = vmatprep.subr.mxu0 %v3053
      %3304 = vmatpush1.msra.mxu0 %v3052
      %3305 = vmatprep.subr.mxu0 %v3057
      %3306 = vmatpush1.msra.mxu0 %v3056
      %3307 = vmatprep.subr.mxu0 %v3061
      %3308 = vmatpush1.msra.mxu0 %v3060
      %3309 = vmatprep.subr.mxu0 %v3065
      %3310 = vmatpush1.msra.mxu0 %v3064
      %3311 = vmatprep.subr.mxu0 0.0
      %3312 = vmatpush1.msra.mxu0 0.0
      %3313 = vmatprep.subr.mxu0 0.0
      %3314 = vmatpush1.msra.mxu0 0.0
      %3315 = vmatprep.subr.mxu0 0.0
      %3316 = vmatpush1.msra.mxu0 0.0
      %3317 = vmatprep.subr.mxu0 0.0
      %3318 = vmatpush1.msra.mxu0 0.0
      %3319 = vmatprep.subr.mxu0 0.0
      %3320 = vmatpush1.msra.mxu0 0.0
      %3321 = vmatprep.subr.mxu0 0.0
      %3322 = vmatpush1.msra.mxu0 0.0
      %3323 = vmatprep.subr.mxu0 0.0
      %3324 = vmatpush1.msra.mxu0 0.0
      %3325 = vmatprep.subr.mxu0 0.0
      %3326 = vmatpush1.msra.mxu0 0.0
      %3327 = vmatprep.subr.mxu0 0.0
      %3328 = vmatpush1.msra.mxu0 0.0
      %3329 = vmatprep.subr.mxu0 0.0
      %3330 = vmatpush1.msra.mxu0 0.0
      %3331 = vmatprep.subr.mxu0 0.0
      %3332 = vmatpush1.msra.mxu0 0.0
      %3333 = vmatprep.subr.mxu0 0.0
      %3334 = vmatpush1.msra.mxu0 0.0
      %3335 = vmatprep.subr.mxu0 0.0
      %3336 = vmatpush1.msra.mxu0 0.0
      %3337 = vmatprep.subr.mxu0 0.0
      %3338 = vmatpush1.msra.mxu0 0.0
      %3339 = vmatprep.subr.mxu0 0.0
      %3340 = vmatpush1.msra.mxu0 0.0
      %3341 = vmatprep.subr.mxu0 0.0
      %3342 = vmatpush1.msra.mxu0 0.0
      %3343 = vmatprep.mubr.f32.mxu0 0.0
      %3344 = vmatmul.mubr.f32.gmra.mrb[0].mxu0 %v1568
      %v3345 = vpop.f32.mrb[0].mxu0
      %v3346 = vadd.f32 %v3275, %v3345
      %v3347 = vpop.f32.mrb[0].mxu0
      %v3348 = vadd.f32 %v3277, %v3347
      %3349 = vdwg.mxu0
      %s3350 = scalar_lea.vmem %s5, 32
      %v3351 = vld [vmem:[%s3350] sm:$0xff]
      %v3352 = vld [vmem:[%s3350 + $0x8] sm:$0x3f]
      %v3354 = vsel %vm2527, %v3351, 0
      %v3357 = vsel %vm2527, %v3352, 0
      %v3360 = vsel %vm2534, %v3204, 0
      %v3363 = vsel %vm2534, %v3206, 0
      %v3366 = vsel %vm2534, %v3346, 0
      %v3369 = vsel %vm2534, %v3348, 0
      %3371 = vmatprep.subr.mxu0 %v3363
      %3372 = vmatpush1.msra.mxu0 %v3360
      %3373 = vmatprep.subr.mxu0 0.0
      %3374 = vmatpush1.msra.mxu0 0.0
      %3375 = vmatprep.subr.mxu0 0.0
      %3376 = vmatpush1.msra.mxu0 0.0
      %3377 = vmatprep.subr.mxu0 0.0
      %3378 = vmatpush1.msra.mxu0 0.0
      %3379 = vmatprep.subr.mxu0 0.0
      %3380 = vmatpush1.msra.mxu0 0.0
      %3381 = vmatprep.subr.mxu0 0.0
      %3382 = vmatpush1.msra.mxu0 0.0
      %3383 = vmatprep.subr.mxu0 0.0
      %3384 = vmatpush1.msra.mxu0 0.0
      %3385 = vmatprep.subr.mxu0 0.0
      %3386 = vmatpush1.msra.mxu0 0.0
      %3387 = vmatprep.subr.mxu0 0.0
      %3388 = vmatpush1.msra.mxu0 0.0
      %3389 = vmatprep.subr.mxu0 0.0
      %3390 = vmatpush1.msra.mxu0 0.0
      %3391 = vmatprep.subr.mxu0 0.0
      %3392 = vmatpush1.msra.mxu0 0.0
      %3393 = vmatprep.subr.mxu0 0.0
      %3394 = vmatpush1.msra.mxu0 0.0
      %3395 = vmatprep.subr.mxu0 0.0
      %3396 = vmatpush1.msra.mxu0 0.0
      %3397 = vmatprep.subr.mxu0 0.0
      %3398 = vmatpush1.msra.mxu0 0.0
      %3399 = vmatprep.subr.mxu0 0.0
      %3400 = vmatpush1.msra.mxu0 0.0
      %3401 = vmatprep.subr.mxu0 0.0
      %3402 = vmatpush1.msra.mxu0 0.0
      %3403 = vmatprep.subr.mxu0 0.0
      %3404 = vmatpush1.msra.mxu0 0.0
      %3405 = vmatprep.subr.mxu0 0.0
      %3406 = vmatpush1.msra.mxu0 0.0
      %3407 = vmatprep.subr.mxu0 0.0
      %3408 = vmatpush1.msra.mxu0 0.0
      %3409 = vmatprep.subr.mxu0 0.0
      %3410 = vmatpush1.msra.mxu0 0.0
      %3411 = vmatprep.subr.mxu0 0.0
      %3412 = vmatpush1.msra.mxu0 0.0
      %3413 = vmatprep.subr.mxu0 0.0
      %3414 = vmatpush1.msra.mxu0 0.0
      %3415 = vmatprep.subr.mxu0 0.0
      %3416 = vmatpush1.msra.mxu0 0.0
      %3417 = vmatprep.subr.mxu0 0.0
      %3418 = vmatpush1.msra.mxu0 0.0
      %3419 = vmatprep.subr.mxu0 0.0
      %3420 = vmatpush1.msra.mxu0 0.0
      %3421 = vmatprep.subr.mxu0 0.0
      %3422 = vmatpush1.msra.mxu0 0.0
      %3423 = vmatprep.subr.mxu0 0.0
      %3424 = vmatpush1.msra.mxu0 0.0
      %3425 = vmatprep.subr.mxu0 0.0
      %3426 = vmatpush1.msra.mxu0 0.0
      %3427 = vmatprep.subr.mxu0 0.0
      %3428 = vmatpush1.msra.mxu0 0.0
      %3429 = vmatprep.subr.mxu0 0.0
      %3430 = vmatpush1.msra.mxu0 0.0
      %3431 = vmatprep.subr.mxu0 0.0
      %3432 = vmatpush1.msra.mxu0 0.0
      %3433 = vmatprep.subr.mxu0 0.0
      %3434 = vmatpush1.msra.mxu0 0.0
      %3435 = vmatprep.mubr.f32.mxu0 0.0
      %3436 = vmatmul.mubr.f32.gmra.mrb[0].mxu0 %v3354
      %v3437 = vpop.f32.mrb[0].mxu0
      %v3438 = vadd.f32 0.0, %v3437
      %v3439 = vpop.f32.mrb[0].mxu0
      %v3440 = vadd.f32 0.0, %v3439
      %3441 = vmatprep.mubr.f32.mxu0 0.0
      %3442 = vmatmul.mubr.f32.gmra.mrb[0].mxu0 %v3357
      %v3443 = vpop.f32.mrb[0].mxu0
      %v3444 = vadd.f32 0.0, %v3443
      %v3445 = vpop.f32.mrb[0].mxu0
      %v3446 = vadd.f32 0.0, %v3445
      %3447 = vdwg.mxu0
      %3448 = vmatprep.subr.mxu0 %v3369
      %3449 = vmatpush1.msra.mxu0 %v3366
      %3450 = vmatprep.subr.mxu0 0.0
      %3451 = vmatpush1.msra.mxu0 0.0
      %3452 = vmatprep.subr.mxu0 0.0
      %3453 = vmatpush1.msra.mxu0 0.0
      %3454 = vmatprep.subr.mxu0 0.0
      %3455 = vmatpush1.msra.mxu0 0.0
      %3456 = vmatprep.subr.mxu0 0.0
      %3457 = vmatpush1.msra.mxu0 0.0
      %3458 = vmatprep.subr.mxu0 0.0
      %3459 = vmatpush1.msra.mxu0 0.0
      %3460 = vmatprep.subr.mxu0 0.0
      %3461 = vmatpush1.msra.mxu0 0.0
      %3462 = vmatprep.subr.mxu0 0.0
      %3463 = vmatpush1.msra.mxu0 0.0
      %3464 = vmatprep.subr.mxu0 0.0
      %3465 = vmatpush1.msra.mxu0 0.0
      %3466 = vmatprep.subr.mxu0 0.0
      %3467 = vmatpush1.msra.mxu0 0.0
      %3468 = vmatprep.subr.mxu0 0.0
      %3469 = vmatpush1.msra.mxu0 0.0
      %3470 = vmatprep.subr.mxu0 0.0
      %3471 = vmatpush1.msra.mxu0 0.0
      %3472 = vmatprep.subr.mxu0 0.0
      %3473 = vmatpush1.msra.mxu0 0.0
      %3474 = vmatprep.subr.mxu0 0.0
      %3475 = vmatpush1.msra.mxu0 0.0
      %3476 = vmatprep.subr.mxu0 0.0
      %3477 = vmatpush1.msra.mxu0 0.0
      %3478 = vmatprep.subr.mxu0 0.0
      %3479 = vmatpush1.msra.mxu0 0.0
      %3480 = vmatprep.subr.mxu0 0.0
      %3481 = vmatpush1.msra.mxu0 0.0
      %3482 = vmatprep.subr.mxu0 0.0
      %3483 = vmatpush1.msra.mxu0 0.0
      %3484 = vmatprep.subr.mxu0 0.0
      %3485 = vmatpush1.msra.mxu0 0.0
      %3486 = vmatprep.subr.mxu0 0.0
      %3487 = vmatpush1.msra.mxu0 0.0
      %3488 = vmatprep.subr.mxu0 0.0
      %3489 = vmatpush1.msra.mxu0 0.0
      %3490 = vmatprep.subr.mxu0 0.0
      %3491 = vmatpush1.msra.mxu0 0.0
      %3492 = vmatprep.subr.mxu0 0.0
      %3493 = vmatpush1.msra.mxu0 0.0
      %3494 = vmatprep.subr.mxu0 0.0
      %3495 = vmatpush1.msra.mxu0 0.0
      %3496 = vmatprep.subr.mxu0 0.0
      %3497 = vmatpush1.msra.mxu0 0.0
      %3498 = vmatprep.subr.mxu0 0.0
      %3499 = vmatpush1.msra.mxu0 0.0
      %3500 = vmatprep.subr.mxu0 0.0
      %3501 = vmatpush1.msra.mxu0 0.0
      %3502 = vmatprep.subr.mxu0 0.0
      %3503 = vmatpush1.msra.mxu0 0.0
      %3504 = vmatprep.subr.mxu0 0.0
      %3505 = vmatpush1.msra.mxu0 0.0
      %3506 = vmatprep.subr.mxu0 0.0
      %3507 = vmatpush1.msra.mxu0 0.0
      %3508 = vmatprep.subr.mxu0 0.0
      %3509 = vmatpush1.msra.mxu0 0.0
      %3510 = vmatprep.subr.mxu0 0.0
      %3511 = vmatpush1.msra.mxu0 0.0
      %3512 = vmatprep.mubr.f32.mxu0 0.0
      %3513 = vmatmul.mubr.f32.gmra.mrb[0].mxu0 %v3354
      %v3514 = vpop.f32.mrb[0].mxu0
      %v3515 = vadd.f32 0.0, %v3514
      %v3516 = vpop.f32.mrb[0].mxu0
      %v3517 = vadd.f32 0.0, %v3516
      %3518 = vmatprep.mubr.f32.mxu0 0.0
      %3519 = vmatmul.mubr.f32.gmra.mrb[0].mxu0 %v3357
      %v3520 = vpop.f32.mrb[0].mxu0
      %v3521 = vadd.f32 0.0, %v3520
      %v3522 = vpop.f32.mrb[0].mxu0
      %v3523 = vadd.f32 0.0, %v3522
      %3524 = vdwg.mxu0
      %v3525 = vadd.f32 %v2786, %v3438
      %v3526 = vadd.f32 %v2788, %v3440
      %v3527 = vadd.f32 %v2863, %v3515
      %v3528 = vadd.f32 %v2865, %v3517
      %v3529 = vadd.f32 %v2792, %v3444
      %v3530 = vadd.f32 %v2794, %v3446
      %v3531 = vadd.f32 %v2869, %v3521
      %v3532 = vadd.f32 %v2871, %v3523
      %s3533 = scalar_lea.vmem %s4, 4608
      %v3534 = vld [vmem:[%s3533] sm:$0xff]
      %v3535 = vld [vmem:[%s3533 + $0x8] sm:$0xff]
      %v3536 = vld [vmem:[%s3533 + $0x10] sm:$0xff]
      %v3537 = vld [vmem:[%s3533 + $0x18] sm:$0xff]
      %v3538 = vld [vmem:[%s3533 + $0x20] sm:$0xff]
      %v3539 = vld [vmem:[%s3533 + $0x28] sm:$0xff]
      %v3540 = vld [vmem:[%s3533 + $0x30] sm:$0xff]
      %v3541 = vld [vmem:[%s3533 + $0x38] sm:$0xff]
      %v3542 = vld [vmem:[%s3533 + $0x40] sm:$0xff]
      %v3543 = vld [vmem:[%s3533 + $0x48] sm:$0xff]
      %v3544 = vld [vmem:[%s3533 + $0x50] sm:$0xff]
      %v3545 = vld [vmem:[%s3533 + $0x58] sm:$0xff]
      %v3546 = vld [vmem:[%s3533 + $0x60] sm:$0xff]
      %v3547 = vld [vmem:[%s3533 + $0x68] sm:$0xff]
      %v3548 = vld [vmem:[%s3533 + $0x70] sm:$0xff]
      %v3549 = vld [vmem:[%s3533 + $0x78] sm:$0xff]
      %v3550 = vld [vmem:[%s3533 + $0x80] sm:$0xff]
      %v3551 = vld [vmem:[%s3533 + $0x88] sm:$0xff]
      %v3552 = vld [vmem:[%s3533 + $0x90] sm:$0xff]
      %v3553 = vld [vmem:[%s3533 + $0x98] sm:$0xff]
      %v3554 = vld [vmem:[%s3533 + $0xa0] sm:$0xff]
      %v3555 = vld [vmem:[%s3533 + $0xa8] sm:$0xff]
      %v3556 = vld [vmem:[%s3533 + $0xb0] sm:$0xff]
      %v3557 = vld [vmem:[%s3533 + $0xb8] sm:$0xff]
      %v3558 = vld [vmem:[%s3533 + $0xc0] sm:$0xff]
      %v3559 = vld [vmem:[%s3533 + $0xc8] sm:$0xff]
      %v3560 = vld [vmem:[%s3533 + $0xd0] sm:$0xff]
      %v3561 = vld [vmem:[%s3533 + $0xd8] sm:$0xff]
      %v3562 = vld [vmem:[%s3533 + $0xe0] sm:$0xff]
      %v3563 = vld [vmem:[%s3533 + $0xe8] sm:$0xff]
      %v3564 = vld [vmem:[%s3533 + $0xf0] sm:$0xff]
      %v3565 = vld [vmem:[%s3533 + $0xf8] sm:$0xff]
      %v3566 = vld [vmem:[%s3533 + $0x100] sm:$0xff]
      %v3567 = vld [vmem:[%s3533 + $0x108] sm:$0xff]
      %v3568 = vld [vmem:[%s3533 + $0x110] sm:$0xff]
      %v3569 = vld [vmem:[%s3533 + $0x118] sm:$0xff]
      %v3570 = vld [vmem:[%s3533 + $0x120] sm:$0xff]
      %v3571 = vld [vmem:[%s3533 + $0x128] sm:$0xff]
      %v3572 = vld [vmem:[%s3533 + $0x130] sm:$0xff]
      %v3573 = vld [vmem:[%s3533 + $0x138] sm:$0xff]
      %v3574 = vld [vmem:[%s3533 + $0x140] sm:$0xff]
      %v3575 = vld [vmem:[%s3533 + $0x148] sm:$0xff]
      %v3576 = vld [vmem:[%s3533 + $0x150] sm:$0xff]
      %v3577 = vld [vmem:[%s3533 + $0x158] sm:$0xff]
      %v3578 = vld [vmem:[%s3533 + $0x160] sm:$0xff]
      %v3579 = vld [vmem:[%s3533 + $0x168] sm:$0xff]
      %v3580 = vld [vmem:[%s3533 + $0x170] sm:$0xff]
      %v3581 = vld [vmem:[%s3533 + $0x178] sm:$0xff]
      %v3582 = vld [vmem:[%s3533 + $0x180] sm:$0xff]
      %v3583 = vld [vmem:[%s3533 + $0x188] sm:$0xff]
      %v3584 = vld [vmem:[%s3533 + $0x190] sm:$0xff]
      %v3585 = vld [vmem:[%s3533 + $0x198] sm:$0xff]
      %v3586 = vld [vmem:[%s3533 + $0x1a0] sm:$0xff]
      %v3587 = vld [vmem:[%s3533 + $0x1a8] sm:$0xff]
      %v3588 = vld [vmem:[%s3533 + $0x1b0] sm:$0xff]
      %v3589 = vld [vmem:[%s3533 + $0x1b8] sm:$0xff]
      %v3590 = vld [vmem:[%s3533 + $0x1c0] sm:$0xff]
      %v3591 = vld [vmem:[%s3533 + $0x1c8] sm:$0xff]
      %v3592 = vld [vmem:[%s3533 + $0x1d0] sm:$0xff]
      %v3593 = vld [vmem:[%s3533 + $0x1d8] sm:$0xff]
      %v3594 = vld [vmem:[%s3533 + $0x1e0] sm:$0xff]
      %v3595 = vld [vmem:[%s3533 + $0x1e8] sm:$0xff]
      %v3596 = vld [vmem:[%s3533 + $0x1f0] sm:$0xff]
      %v3597 = vld [vmem:[%s3533 + $0x1f8] sm:$0xff]
      %v3598 = vld [vmem:[%s3533 + $0x200] sm:$0xff]
      %v3599 = vld [vmem:[%s3533 + $0x208] sm:$0xff]
      %v3600 = vld [vmem:[%s3533 + $0x210] sm:$0xff]
      %v3601 = vld [vmem:[%s3533 + $0x218] sm:$0xff]
      %v3602 = vld [vmem:[%s3533 + $0x220] sm:$0xff]
      %v3603 = vld [vmem:[%s3533 + $0x228] sm:$0xff]
      %v3604 = vld [vmem:[%s3533 + $0x230] sm:$0xff]
      %v3605 = vld [vmem:[%s3533 + $0x238] sm:$0xff]
      %v3606 = vld [vmem:[%s3533 + $0x240] sm:$0xff]
      %v3607 = vld [vmem:[%s3533 + $0x248] sm:$0xff]
      %v3608 = vld [vmem:[%s3533 + $0x250] sm:$0xff]
      %v3609 = vld [vmem:[%s3533 + $0x258] sm:$0xff]
      %v3610 = vld [vmem:[%s3533 + $0x260] sm:$0xff]
      %v3611 = vld [vmem:[%s3533 + $0x268] sm:$0xff]
      %v3612 = vld [vmem:[%s3533 + $0x270] sm:$0xff]
      %v3613 = vld [vmem:[%s3533 + $0x278] sm:$0xff]
      %v3614 = vld [vmem:[%s3533 + $0x280] sm:$0xff]
      %v3615 = vld [vmem:[%s3533 + $0x288] sm:$0xff]
      %v3616 = vld [vmem:[%s3533 + $0x290] sm:$0xff]
      %v3617 = vld [vmem:[%s3533 + $0x298] sm:$0xff]
      %v3618 = vld [vmem:[%s3533 + $0x2a0] sm:$0xff]
      %v3619 = vld [vmem:[%s3533 + $0x2a8] sm:$0xff]
      %v3620 = vld [vmem:[%s3533 + $0x2b0] sm:$0xff]
      %v3621 = vld [vmem:[%s3533 + $0x2b8] sm:$0xff]
      %v3622 = vld [vmem:[%s3533 + $0x2c0] sm:$0xff]
      %v3623 = vld [vmem:[%s3533 + $0x2c8] sm:$0xff]
      %v3624 = vld [vmem:[%s3533 + $0x2d0] sm:$0xff]
      %v3625 = vld [vmem:[%s3533 + $0x2d8] sm:$0xff]
      %v3626 = vld [vmem:[%s3533 + $0x2e0] sm:$0xff]
      %v3627 = vld [vmem:[%s3533 + $0x2e8] sm:$0xff]
      %v3628 = vld [vmem:[%s3533 + $0x2f0] sm:$0xff]
      %v3629 = vld [vmem:[%s3533 + $0x2f8] sm:$0xff]
      %v3630 = vld [vmem:[%s3533 + $0x300] sm:$0xff]
      %v3631 = vld [vmem:[%s3533 + $0x308] sm:$0xff]
      %v3632 = vld [vmem:[%s3533 + $0x310] sm:$0xff]
      %v3633 = vld [vmem:[%s3533 + $0x318] sm:$0xff]
      %v3634 = vld [vmem:[%s3533 + $0x320] sm:$0xff]
      %v3635 = vld [vmem:[%s3533 + $0x328] sm:$0xff]
      %v3636 = vld [vmem:[%s3533 + $0x330] sm:$0xff]
      %v3637 = vld [vmem:[%s3533 + $0x338] sm:$0xff]
      %v3638 = vld [vmem:[%s3533 + $0x340] sm:$0xff]
      %v3639 = vld [vmem:[%s3533 + $0x348] sm:$0xff]
      %v3640 = vld [vmem:[%s3533 + $0x350] sm:$0xff]
      %v3641 = vld [vmem:[%s3533 + $0x358] sm:$0xff]
      %v3642 = vld [vmem:[%s3533 + $0x360] sm:$0xff]
      %v3643 = vld [vmem:[%s3533 + $0x368] sm:$0xff]
      %v3644 = vld [vmem:[%s3533 + $0x370] sm:$0xff]
      %v3645 = vld [vmem:[%s3533 + $0x378] sm:$0xff]
      %v3646 = vld [vmem:[%s3533 + $0x380] sm:$0xff]
      %v3647 = vld [vmem:[%s3533 + $0x388] sm:$0xff]
      %v3648 = vld [vmem:[%s3533 + $0x390] sm:$0xff]
      %v3649 = vld [vmem:[%s3533 + $0x398] sm:$0xff]
      %v3650 = vld [vmem:[%s3533 + $0x3a0] sm:$0xff]
      %v3651 = vld [vmem:[%s3533 + $0x3a8] sm:$0xff]
      %v3652 = vld [vmem:[%s3533 + $0x3b0] sm:$0xff]
      %v3653 = vld [vmem:[%s3533 + $0x3b8] sm:$0xff]
      %v3654 = vld [vmem:[%s3533 + $0x3c0] sm:$0xff]
      %v3655 = vld [vmem:[%s3533 + $0x3c8] sm:$0xff]
      %v3656 = vld [vmem:[%s3533 + $0x3d0] sm:$0xff]
      %v3657 = vld [vmem:[%s3533 + $0x3d8] sm:$0xff]
      %v3658 = vld [vmem:[%s3533 + $0x3e0] sm:$0xff]
      %v3659 = vld [vmem:[%s3533 + $0x3e8] sm:$0xff]
      %v3660 = vld [vmem:[%s3533 + $0x3f0] sm:$0xff]
      %v3661 = vld [vmem:[%s3533 + $0x3f8] sm:$0xff]
      %v3662 = vld [vmem:[%s3533 + $0x400] sm:$0xff]
      %v3663 = vld [vmem:[%s3533 + $0x408] sm:$0xff]
      %v3664 = vld [vmem:[%s3533 + $0x410] sm:$0xff]
      %v3665 = vld [vmem:[%s3533 + $0x418] sm:$0xff]
      %v3666 = vld [vmem:[%s3533 + $0x420] sm:$0xff]
      %v3667 = vld [vmem:[%s3533 + $0x428] sm:$0xff]
      %v3668 = vld [vmem:[%s3533 + $0x430] sm:$0xff]
      %v3669 = vld [vmem:[%s3533 + $0x438] sm:$0xff]
      %v3670 = vld [vmem:[%s3533 + $0x440] sm:$0xff]
      %v3671 = vld [vmem:[%s3533 + $0x448] sm:$0xff]
      %v3672 = vld [vmem:[%s3533 + $0x450] sm:$0xff]
      %v3673 = vld [vmem:[%s3533 + $0x458] sm:$0xff]
      %v3674 = vld [vmem:[%s3533 + $0x460] sm:$0xff]
      %v3675 = vld [vmem:[%s3533 + $0x468] sm:$0xff]
      %v3676 = vld [vmem:[%s3533 + $0x470] sm:$0xff]
      %v3677 = vld [vmem:[%s3533 + $0x478] sm:$0xff]
      %v3678 = vld [vmem:[%s3533 + $0x480] sm:$0xff]
      %v3679 = vld [vmem:[%s3533 + $0x488] sm:$0xff]
      %v3680 = vld [vmem:[%s3533 + $0x490] sm:$0xff]
      %v3681 = vld [vmem:[%s3533 + $0x498] sm:$0xff]
      %v3682 = vld [vmem:[%s3533 + $0x4a0] sm:$0xff]
      %v3683 = vld [vmem:[%s3533 + $0x4a8] sm:$0xff]
      %v3684 = vld [vmem:[%s3533 + $0x4b0] sm:$0xff]
      %v3685 = vld [vmem:[%s3533 + $0x4b8] sm:$0xff]
      %v3686 = vld [vmem:[%s3533 + $0x4c0] sm:$0xff]
      %v3687 = vld [vmem:[%s3533 + $0x4c8] sm:$0xff]
      %v3688 = vld [vmem:[%s3533 + $0x4d0] sm:$0xff]
      %v3689 = vld [vmem:[%s3533 + $0x4d8] sm:$0xff]
      %v3690 = vld [vmem:[%s3533 + $0x4e0] sm:$0xff]
      %v3691 = vld [vmem:[%s3533 + $0x4e8] sm:$0xff]
      %v3692 = vld [vmem:[%s3533 + $0x4f0] sm:$0xff]
      %v3693 = vld [vmem:[%s3533 + $0x4f8] sm:$0xff]
      %v3694 = vld [vmem:[%s3533 + $0x500] sm:$0xff]
      %v3695 = vld [vmem:[%s3533 + $0x508] sm:$0xff]
      %v3696 = vld [vmem:[%s3533 + $0x510] sm:$0xff]
      %v3697 = vld [vmem:[%s3533 + $0x518] sm:$0xff]
      %v3698 = vld [vmem:[%s3533 + $0x520] sm:$0xff]
      %v3699 = vld [vmem:[%s3533 + $0x528] sm:$0xff]
      %v3700 = vld [vmem:[%s3533 + $0x530] sm:$0xff]
      %v3701 = vld [vmem:[%s3533 + $0x538] sm:$0xff]
      %v3702 = vld [vmem:[%s3533 + $0x540] sm:$0xff]
      %v3703 = vld [vmem:[%s3533 + $0x548] sm:$0xff]
      %v3704 = vld [vmem:[%s3533 + $0x550] sm:$0xff]
      %v3705 = vld [vmem:[%s3533 + $0x558] sm:$0xff]
      %v3706 = vld [vmem:[%s3533 + $0x560] sm:$0xff]
      %v3707 = vld [vmem:[%s3533 + $0x568] sm:$0xff]
      %v3708 = vld [vmem:[%s3533 + $0x570] sm:$0xff]
      %v3709 = vld [vmem:[%s3533 + $0x578] sm:$0xff]
      %v3710 = vld [vmem:[%s3533 + $0x580] sm:$0xff]
      %v3711 = vld [vmem:[%s3533 + $0x588] sm:$0xff]
      %v3712 = vld [vmem:[%s3533 + $0x590] sm:$0xff]
      %v3713 = vld [vmem:[%s3533 + $0x598] sm:$0xff]
      %v3714 = vld [vmem:[%s3533 + $0x5a0] sm:$0xff]
      %v3715 = vld [vmem:[%s3533 + $0x5a8] sm:$0xff]
      %v3716 = vld [vmem:[%s3533 + $0x5b0] sm:$0xff]
      %v3717 = vld [vmem:[%s3533 + $0x5b8] sm:$0xff]
      %v3718 = vld [vmem:[%s3533 + $0x5c0] sm:$0xff]
      %v3719 = vld [vmem:[%s3533 + $0x5c8] sm:$0xff]
      %v3720 = vld [vmem:[%s3533 + $0x5d0] sm:$0xff]
      %v3721 = vld [vmem:[%s3533 + $0x5d8] sm:$0xff]
      %v3722 = vld [vmem:[%s3533 + $0x5e0] sm:$0xff]
      %v3723 = vld [vmem:[%s3533 + $0x5e8] sm:$0xff]
      %v3724 = vld [vmem:[%s3533 + $0x5f0] sm:$0xff]
      %v3725 = vld [vmem:[%s3533 + $0x5f8] sm:$0xff]
      %3726 = vmatprep.subr.mxu0 %v3535
      %3727 = vmatpush1.msra.mxu0 %v3534
      %3728 = vmatprep.subr.mxu0 %v3539
      %3729 = vmatpush1.msra.mxu0 %v3538
      %3730 = vmatprep.subr.mxu0 %v3543
      %3731 = vmatpush1.msra.mxu0 %v3542
      %3732 = vmatprep.subr.mxu0 %v3547
      %3733 = vmatpush1.msra.mxu0 %v3546
      %3734 = vmatprep.subr.mxu0 %v3551
      %3735 = vmatpush1.msra.mxu0 %v3550
      %3736 = vmatprep.subr.mxu0 %v3555
      %3737 = vmatpush1.msra.mxu0 %v3554
      %3738 = vmatprep.subr.mxu0 %v3559
      %3739 = vmatpush1.msra.mxu0 %v3558
      %3740 = vmatprep.subr.mxu0 %v3563
      %3741 = vmatpush1.msra.mxu0 %v3562
      %3742 = vmatprep.subr.mxu0 %v3567
      %3743 = vmatpush1.msra.mxu0 %v3566
      %3744 = vmatprep.subr.mxu0 %v3571
      %3745 = vmatpush1.msra.mxu0 %v3570
      %3746 = vmatprep.subr.mxu0 %v3575
      %3747 = vmatpush1.msra.mxu0 %v3574
      %3748 = vmatprep.subr.mxu0 %v3579
      %3749 = vmatpush1.msra.mxu0 %v3578
      %3750 = vmatprep.subr.mxu0 %v3583
      %3751 = vmatpush1.msra.mxu0 %v3582
      %3752 = vmatprep.subr.mxu0 %v3587
      %3753 = vmatpush1.msra.mxu0 %v3586
      %3754 = vmatprep.subr.mxu0 %v3591
      %3755 = vmatpush1.msra.mxu0 %v3590
      %3756 = vmatprep.subr.mxu0 %v3595
      %3757 = vmatpush1.msra.mxu0 %v3594
      %3758 = vmatprep.subr.mxu0 %v3599
      %3759 = vmatpush1.msra.mxu0 %v3598
      %3760 = vmatprep.subr.mxu0 %v3603
      %3761 = vmatpush1.msra.mxu0 %v3602
      %3762 = vmatprep.subr.mxu0 %v3607
      %3763 = vmatpush1.msra.mxu0 %v3606
      %3764 = vmatprep.subr.mxu0 %v3611
      %3765 = vmatpush1.msra.mxu0 %v3610
      %3766 = vmatprep.subr.mxu0 %v3615
      %3767 = vmatpush1.msra.mxu0 %v3614
      %3768 = vmatprep.subr.mxu0 %v3619
      %3769 = vmatpush1.msra.mxu0 %v3618
      %3770 = vmatprep.subr.mxu0 %v3623
      %3771 = vmatpush1.msra.mxu0 %v3622
      %3772 = vmatprep.subr.mxu0 %v3627
      %3773 = vmatpush1.msra.mxu0 %v3626
      %3774 = vmatprep.subr.mxu0 %v3631
      %3775 = vmatpush1.msra.mxu0 %v3630
      %3776 = vmatprep.subr.mxu0 %v3635
      %3777 = vmatpush1.msra.mxu0 %v3634
      %3778 = vmatprep.subr.mxu0 %v3639
      %3779 = vmatpush1.msra.mxu0 %v3638
      %3780 = vmatprep.subr.mxu0 %v3643
      %3781 = vmatpush1.msra.mxu0 %v3642
      %3782 = vmatprep.subr.mxu0 %v3647
      %3783 = vmatpush1.msra.mxu0 %v3646
      %3784 = vmatprep.subr.mxu0 %v3651
      %3785 = vmatpush1.msra.mxu0 %v3650
      %3786 = vmatprep.subr.mxu0 %v3655
      %3787 = vmatpush1.msra.mxu0 %v3654
      %3788 = vmatprep.subr.mxu0 %v3659
      %3789 = vmatpush1.msra.mxu0 %v3658
      %3790 = vmatprep.mubr.f32.mxu0 %v1567
      %3791 = vmatmul.mubr.f32.gmra.mrb[0].mxu0 %v1566
      %v3792 = vpop.f32.mrb[0].mxu0
      %v3793 = vadd.f32 0.0, %v3792
      %v3794 = vpop.f32.mrb[0].mxu0
      %v3795 = vadd.f32 0.0, %v3794
      %3796 = vdwg.mxu0
      %3797 = vmatprep.subr.mxu0 %v3663
      %3798 = vmatpush1.msra.mxu0 %v3662
      %3799 = vmatprep.subr.mxu0 %v3667
      %3800 = vmatpush1.msra.mxu0 %v3666
      %3801 = vmatprep.subr.mxu0 %v3671
      %3802 = vmatpush1.msra.mxu0 %v3670
      %3803 = vmatprep.subr.mxu0 %v3675
      %3804 = vmatpush1.msra.mxu0 %v3674
      %3805 = vmatprep.subr.mxu0 %v3679
      %3806 = vmatpush1.msra.mxu0 %v3678
      %3807 = vmatprep.subr.mxu0 %v3683
      %3808 = vmatpush1.msra.mxu0 %v3682
      %3809 = vmatprep.subr.mxu0 %v3687
      %3810 = vmatpush1.msra.mxu0 %v3686
      %3811 = vmatprep.subr.mxu0 %v3691
      %3812 = vmatpush1.msra.mxu0 %v3690
      %3813 = vmatprep.subr.mxu0 %v3695
      %3814 = vmatpush1.msra.mxu0 %v3694
      %3815 = vmatprep.subr.mxu0 %v3699
      %3816 = vmatpush1.msra.mxu0 %v3698
      %3817 = vmatprep.subr.mxu0 %v3703
      %3818 = vmatpush1.msra.mxu0 %v3702
      %3819 = vmatprep.subr.mxu0 %v3707
      %3820 = vmatpush1.msra.mxu0 %v3706
      %3821 = vmatprep.subr.mxu0 %v3711
      %3822 = vmatpush1.msra.mxu0 %v3710
      %3823 = vmatprep.subr.mxu0 %v3715
      %3824 = vmatpush1.msra.mxu0 %v3714
      %3825 = vmatprep.subr.mxu0 %v3719
      %3826 = vmatpush1.msra.mxu0 %v3718
      %3827 = vmatprep.subr.mxu0 %v3723
      %3828 = vmatpush1.msra.mxu0 %v3722
      %3829 = vmatprep.subr.mxu0 0.0
      %3830 = vmatpush1.msra.mxu0 0.0
      %3831 = vmatprep.subr.mxu0 0.0
      %3832 = vmatpush1.msra.mxu0 0.0
      %3833 = vmatprep.subr.mxu0 0.0
      %3834 = vmatpush1.msra.mxu0 0.0
      %3835 = vmatprep.subr.mxu0 0.0
      %3836 = vmatpush1.msra.mxu0 0.0
      %3837 = vmatprep.subr.mxu0 0.0
      %3838 = vmatpush1.msra.mxu0 0.0
      %3839 = vmatprep.subr.mxu0 0.0
      %3840 = vmatpush1.msra.mxu0 0.0
      %3841 = vmatprep.subr.mxu0 0.0
      %3842 = vmatpush1.msra.mxu0 0.0
      %3843 = vmatprep.subr.mxu0 0.0
      %3844 = vmatpush1.msra.mxu0 0.0
      %3845 = vmatprep.subr.mxu0 0.0
      %3846 = vmatpush1.msra.mxu0 0.0
      %3847 = vmatprep.subr.mxu0 0.0
      %3848 = vmatpush1.msra.mxu0 0.0
      %3849 = vmatprep.subr.mxu0 0.0
      %3850 = vmatpush1.msra.mxu0 0.0
      %3851 = vmatprep.subr.mxu0 0.0
      %3852 = vmatpush1.msra.mxu0 0.0
      %3853 = vmatprep.subr.mxu0 0.0
      %3854 = vmatpush1.msra.mxu0 0.0
      %3855 = vmatprep.subr.mxu0 0.0
      %3856 = vmatpush1.msra.mxu0 0.0
      %3857 = vmatprep.subr.mxu0 0.0
      %3858 = vmatpush1.msra.mxu0 0.0
      %3859 = vmatprep.subr.mxu0 0.0
      %3860 = vmatpush1.msra.mxu0 0.0
      %3861 = vmatprep.mubr.f32.mxu0 0.0
      %3862 = vmatmul.mubr.f32.gmra.mrb[0].mxu0 %v1568
      %v3863 = vpop.f32.mrb[0].mxu0
      %v3864 = vadd.f32 %v3793, %v3863
      %v3865 = vpop.f32.mrb[0].mxu0
      %v3866 = vadd.f32 %v3795, %v3865
      %3867 = vdwg.mxu0
      %3868 = vmatprep.subr.mxu0 %v3537
      %3869 = vmatpush1.msra.mxu0 %v3536
      %3870 = vmatprep.subr.mxu0 %v3541
      %3871 = vmatpush1.msra.mxu0 %v3540
      %3872 = vmatprep.subr.mxu0 %v3545
      %3873 = vmatpush1.msra.mxu0 %v3544
      %3874 = vmatprep.subr.mxu0 %v3549
      %3875 = vmatpush1.msra.mxu0 %v3548
      %3876 = vmatprep.subr.mxu0 %v3553
      %3877 = vmatpush1.msra.mxu0 %v3552
      %3878 = vmatprep.subr.mxu0 %v3557
      %3879 = vmatpush1.msra.mxu0 %v3556
      %3880 = vmatprep.subr.mxu0 %v3561
      %3881 = vmatpush1.msra.mxu0 %v3560
      %3882 = vmatprep.subr.mxu0 %v3565
      %3883 = vmatpush1.msra.mxu0 %v3564
      %3884 = vmatprep.subr.mxu0 %v3569
      %3885 = vmatpush1.msra.mxu0 %v3568
      %3886 = vmatprep.subr.mxu0 %v3573
      %3887 = vmatpush1.msra.mxu0 %v3572
      %3888 = vmatprep.subr.mxu0 %v3577
      %3889 = vmatpush1.msra.mxu0 %v3576
      %3890 = vmatprep.subr.mxu0 %v3581
      %3891 = vmatpush1.msra.mxu0 %v3580
      %3892 = vmatprep.subr.mxu0 %v3585
      %3893 = vmatpush1.msra.mxu0 %v3584
      %3894 = vmatprep.subr.mxu0 %v3589
      %3895 = vmatpush1.msra.mxu0 %v3588
      %3896 = vmatprep.subr.mxu0 %v3593
      %3897 = vmatpush1.msra.mxu0 %v3592
      %3898 = vmatprep.subr.mxu0 %v3597
      %3899 = vmatpush1.msra.mxu0 %v3596
      %3900 = vmatprep.subr.mxu0 %v3601
      %3901 = vmatpush1.msra.mxu0 %v3600
      %3902 = vmatprep.subr.mxu0 %v3605
      %3903 = vmatpush1.msra.mxu0 %v3604
      %3904 = vmatprep.subr.mxu0 %v3609
      %3905 = vmatpush1.msra.mxu0 %v3608
      %3906 = vmatprep.subr.mxu0 %v3613
      %3907 = vmatpush1.msra.mxu0 %v3612
      %3908 = vmatprep.subr.mxu0 %v3617
      %3909 = vmatpush1.msra.mxu0 %v3616
      %3910 = vmatprep.subr.mxu0 %v3621
      %3911 = vmatpush1.msra.mxu0 %v3620
      %3912 = vmatprep.subr.mxu0 %v3625
      %3913 = vmatpush1.msra.mxu0 %v3624
      %3914 = vmatprep.subr.mxu0 %v3629
      %3915 = vmatpush1.msra.mxu0 %v3628
      %3916 = vmatprep.subr.mxu0 %v3633
      %3917 = vmatpush1.msra.mxu0 %v3632
      %3918 = vmatprep.subr.mxu0 %v3637
      %3919 = vmatpush1.msra.mxu0 %v3636
      %3920 = vmatprep.subr.mxu0 %v3641
      %3921 = vmatpush1.msra.mxu0 %v3640
      %3922 = vmatprep.subr.mxu0 %v3645
      %3923 = vmatpush1.msra.mxu0 %v3644
      %3924 = vmatprep.subr.mxu0 %v3649
      %3925 = vmatpush1.msra.mxu0 %v3648
      %3926 = vmatprep.subr.mxu0 %v3653
      %3927 = vmatpush1.msra.mxu0 %v3652
      %3928 = vmatprep.subr.mxu0 %v3657
      %3929 = vmatpush1.msra.mxu0 %v3656
      %3930 = vmatprep.subr.mxu0 %v3661
      %3931 = vmatpush1.msra.mxu0 %v3660
      %3932 = vmatprep.mubr.f32.mxu0 %v1567
      %3933 = vmatmul.mubr.f32.gmra.mrb[0].mxu0 %v1566
      %v3934 = vpop.f32.mrb[0].mxu0
      %v3935 = vadd.f32 0.0, %v3934
      %v3936 = vpop.f32.mrb[0].mxu0
      %v3937 = vadd.f32 0.0, %v3936
      %3938 = vdwg.mxu0
      %3939 = vmatprep.subr.mxu0 %v3665
      %3940 = vmatpush1.msra.mxu0 %v3664
      %3941 = vmatprep.subr.mxu0 %v3669
      %3942 = vmatpush1.msra.mxu0 %v3668
      %3943 = vmatprep.subr.mxu0 %v3673
      %3944 = vmatpush1.msra.mxu0 %v3672
      %3945 = vmatprep.subr.mxu0 %v3677
      %3946 = vmatpush1.msra.mxu0 %v3676
      %3947 = vmatprep.subr.mxu0 %v3681
      %3948 = vmatpush1.msra.mxu0 %v3680
      %3949 = vmatprep.subr.mxu0 %v3685
      %3950 = vmatpush1.msra.mxu0 %v3684
      %3951 = vmatprep.subr.mxu0 %v3689
      %3952 = vmatpush1.msra.mxu0 %v3688
      %3953 = vmatprep.subr.mxu0 %v3693
      %3954 = vmatpush1.msra.mxu0 %v3692
      %3955 = vmatprep.subr.mxu0 %v3697
      %3956 = vmatpush1.msra.mxu0 %v3696
      %3957 = vmatprep.subr.mxu0 %v3701
      %3958 = vmatpush1.msra.mxu0 %v3700
      %3959 = vmatprep.subr.mxu0 %v3705
      %3960 = vmatpush1.msra.mxu0 %v3704
      %3961 = vmatprep.subr.mxu0 %v3709
      %3962 = vmatpush1.msra.mxu0 %v3708
      %3963 = vmatprep.subr.mxu0 %v3713
      %3964 = vmatpush1.msra.mxu0 %v3712
      %3965 = vmatprep.subr.mxu0 %v3717
      %3966 = vmatpush1.msra.mxu0 %v3716
      %3967 = vmatprep.subr.mxu0 %v3721
      %3968 = vmatpush1.msra.mxu0 %v3720
      %3969 = vmatprep.subr.mxu0 %v3725
      %3970 = vmatpush1.msra.mxu0 %v3724
      %3971 = vmatprep.subr.mxu0 0.0
      %3972 = vmatpush1.msra.mxu0 0.0
      %3973 = vmatprep.subr.mxu0 0.0
      %3974 = vmatpush1.msra.mxu0 0.0
      %3975 = vmatprep.subr.mxu0 0.0
      %3976 = vmatpush1.msra.mxu0 0.0
      %3977 = vmatprep.subr.mxu0 0.0
      %3978 = vmatpush1.msra.mxu0 0.0
      %3979 = vmatprep.subr.mxu0 0.0
      %3980 = vmatpush1.msra.mxu0 0.0
      %3981 = vmatprep.subr.mxu0 0.0
      %3982 = vmatpush1.msra.mxu0 0.0
      %3983 = vmatprep.subr.mxu0 0.0
      %3984 = vmatpush1.msra.mxu0 0.0
      %3985 = vmatprep.subr.mxu0 0.0
      %3986 = vmatpush1.msra.mxu0 0.0
      %3987 = vmatprep.subr.mxu0 0.0
      %3988 = vmatpush1.msra.mxu0 0.0
      %3989 = vmatprep.subr.mxu0 0.0
      %3990 = vmatpush1.msra.mxu0 0.0
      %3991 = vmatprep.subr.mxu0 0.0
      %3992 = vmatpush1.msra.mxu0 0.0
      %3993 = vmatprep.subr.mxu0 0.0
      %3994 = vmatpush1.msra.mxu0 0.0
      %3995 = vmatprep.subr.mxu0 0.0
      %3996 = vmatpush1.msra.mxu0 0.0
      %3997 = vmatprep.subr.mxu0 0.0
      %3998 = vmatpush1.msra.mxu0 0.0
      %3999 = vmatprep.subr.mxu0 0.0
      %4000 = vmatpush1.msra.mxu0 0.0
      %4001 = vmatprep.subr.mxu0 0.0
      %4002 = vmatpush1.msra.mxu0 0.0
      %4003 = vmatprep.mubr.f32.mxu0 0.0
      %4004 = vmatmul.mubr.f32.gmra.mrb[0].mxu0 %v1568
      %v4005 = vpop.f32.mrb[0].mxu0
      %v4006 = vadd.f32 %v3935, %v4005
      %v4007 = vpop.f32.mrb[0].mxu0
      %v4008 = vadd.f32 %v3937, %v4007
      %4009 = vdwg.mxu0
      %s4010 = scalar_lea.vmem %s5, 48
      %v4011 = vld [vmem:[%s4010] sm:$0xff]
      %v4012 = vld [vmem:[%s4010 + $0x8] sm:$0x3f]
      %v4014 = vsel %vm2527, %v4011, 0
      %v4017 = vsel %vm2527, %v4012, 0
      %v4020 = vsel %vm2534, %v3864, 0
      %v4023 = vsel %vm2534, %v3866, 0
      %v4026 = vsel %vm2534, %v4006, 0
      %v4029 = vsel %vm2534, %v4008, 0
      %4031 = vmatprep.subr.mxu0 %v4023
      %4032 = vmatpush1.msra.mxu0 %v4020
      %4033 = vmatprep.subr.mxu0 0.0
      %4034 = vmatpush1.msra.mxu0 0.0
      %4035 = vmatprep.subr.mxu0 0.0
      %4036 = vmatpush1.msra.mxu0 0.0
      %4037 = vmatprep.subr.mxu0 0.0
      %4038 = vmatpush1.msra.mxu0 0.0
      %4039 = vmatprep.subr.mxu0 0.0
      %4040 = vmatpush1.msra.mxu0 0.0
      %4041 = vmatprep.subr.mxu0 0.0
      %4042 = vmatpush1.msra.mxu0 0.0
      %4043 = vmatprep.subr.mxu0 0.0
      %4044 = vmatpush1.msra.mxu0 0.0
      %4045 = vmatprep.subr.mxu0 0.0
      %4046 = vmatpush1.msra.mxu0 0.0
      %4047 = vmatprep.subr.mxu0 0.0
      %4048 = vmatpush1.msra.mxu0 0.0
      %4049 = vmatprep.subr.mxu0 0.0
      %4050 = vmatpush1.msra.mxu0 0.0
      %4051 = vmatprep.subr.mxu0 0.0
      %4052 = vmatpush1.msra.mxu0 0.0
      %4053 = vmatprep.subr.mxu0 0.0
      %4054 = vmatpush1.msra.mxu0 0.0
      %4055 = vmatprep.subr.mxu0 0.0
      %4056 = vmatpush1.msra.mxu0 0.0
      %4057 = vmatprep.subr.mxu0 0.0
      %4058 = vmatpush1.msra.mxu0 0.0
      %4059 = vmatprep.subr.mxu0 0.0
      %4060 = vmatpush1.msra.mxu0 0.0
      %4061 = vmatprep.subr.mxu0 0.0
      %4062 = vmatpush1.msra.mxu0 0.0
      %4063 = vmatprep.subr.mxu0 0.0
      %4064 = vmatpush1.msra.mxu0 0.0
      %4065 = vmatprep.subr.mxu0 0.0
      %4066 = vmatpush1.msra.mxu0 0.0
      %4067 = vmatprep.subr.mxu0 0.0
      %4068 = vmatpush1.msra.mxu0 0.0
      %4069 = vmatprep.subr.mxu0 0.0
      %4070 = vmatpush1.msra.mxu0 0.0
      %4071 = vmatprep.subr.mxu0 0.0
      %4072 = vmatpush1.msra.mxu0 0.0
      %4073 = vmatprep.subr.mxu0 0.0
      %4074 = vmatpush1.msra.mxu0 0.0
      %4075 = vmatprep.subr.mxu0 0.0
      %4076 = vmatpush1.msra.mxu0 0.0
      %4077 = vmatprep.subr.mxu0 0.0
      %4078 = vmatpush1.msra.mxu0 0.0
      %4079 = vmatprep.subr.mxu0 0.0
      %4080 = vmatpush1.msra.mxu0 0.0
      %4081 = vmatprep.subr.mxu0 0.0
      %4082 = vmatpush1.msra.mxu0 0.0
      %4083 = vmatprep.subr.mxu0 0.0
      %4084 = vmatpush1.msra.mxu0 0.0
      %4085 = vmatprep.subr.mxu0 0.0
      %4086 = vmatpush1.msra.mxu0 0.0
      %4087 = vmatprep.subr.mxu0 0.0
      %4088 = vmatpush1.msra.mxu0 0.0
      %4089 = vmatprep.subr.mxu0 0.0
      %4090 = vmatpush1.msra.mxu0 0.0
      %4091 = vmatprep.subr.mxu0 0.0
      %4092 = vmatpush1.msra.mxu0 0.0
      %4093 = vmatprep.subr.mxu0 0.0
      %4094 = vmatpush1.msra.mxu0 0.0
      %4095 = vmatprep.mubr.f32.mxu0 0.0
      %4096 = vmatmul.mubr.f32.gmra.mrb[0].mxu0 %v4014
      %v4097 = vpop.f32.mrb[0].mxu0
      %v4098 = vadd.f32 0.0, %v4097
      %v4099 = vpop.f32.mrb[0].mxu0
      %v4100 = vadd.f32 0.0, %v4099
      %4101 = vmatprep.mubr.f32.mxu0 0.0
      %4102 = vmatmul.mubr.f32.gmra.mrb[0].mxu0 %v4017
      %v4103 = vpop.f32.mrb[0].mxu0
      %v4104 = vadd.f32 0.0, %v4103
      %v4105 = vpop.f32.mrb[0].mxu0
      %v4106 = vadd.f32 0.0, %v4105
      %4107 = vdwg.mxu0
      %4108 = vmatprep.subr.mxu0 %v4029
      %4109 = vmatpush1.msra.mxu0 %v4026
      %4110 = vmatprep.subr.mxu0 0.0
      %4111 = vmatpush1.msra.mxu0 0.0
      %4112 = vmatprep.subr.mxu0 0.0
      %4113 = vmatpush1.msra.mxu0 0.0
      %4114 = vmatprep.subr.mxu0 0.0
      %4115 = vmatpush1.msra.mxu0 0.0
      %4116 = vmatprep.subr.mxu0 0.0
      %4117 = vmatpush1.msra.mxu0 0.0
      %4118 = vmatprep.subr.mxu0 0.0
      %4119 = vmatpush1.msra.mxu0 0.0
      %4120 = vmatprep.subr.mxu0 0.0
      %4121 = vmatpush1.msra.mxu0 0.0
      %4122 = vmatprep.subr.mxu0 0.0
      %4123 = vmatpush1.msra.mxu0 0.0
      %4124 = vmatprep.subr.mxu0 0.0
      %4125 = vmatpush1.msra.mxu0 0.0
      %4126 = vmatprep.subr.mxu0 0.0
      %4127 = vmatpush1.msra.mxu0 0.0
      %4128 = vmatprep.subr.mxu0 0.0
      %4129 = vmatpush1.msra.mxu0 0.0
      %4130 = vmatprep.subr.mxu0 0.0
      %4131 = vmatpush1.msra.mxu0 0.0
      %4132 = vmatprep.subr.mxu0 0.0
      %4133 = vmatpush1.msra.mxu0 0.0
      %4134 = vmatprep.subr.mxu0 0.0
      %4135 = vmatpush1.msra.mxu0 0.0
      %4136 = vmatprep.subr.mxu0 0.0
      %4137 = vmatpush1.msra.mxu0 0.0
      %4138 = vmatprep.subr.mxu0 0.0
      %4139 = vmatpush1.msra.mxu0 0.0
      %4140 = vmatprep.subr.mxu0 0.0
      %4141 = vmatpush1.msra.mxu0 0.0
      %4142 = vmatprep.subr.mxu0 0.0
      %4143 = vmatpush1.msra.mxu0 0.0
      %4144 = vmatprep.subr.mxu0 0.0
      %4145 = vmatpush1.msra.mxu0 0.0
      %4146 = vmatprep.subr.mxu0 0.0
      %4147 = vmatpush1.msra.mxu0 0.0
      %4148 = vmatprep.subr.mxu0 0.0
      %4149 = vmatpush1.msra.mxu0 0.0
      %4150 = vmatprep.subr.mxu0 0.0
      %4151 = vmatpush1.msra.mxu0 0.0
      %4152 = vmatprep.subr.mxu0 0.0
      %4153 = vmatpush1.msra.mxu0 0.0
      %4154 = vmatprep.subr.mxu0 0.0
      %4155 = vmatpush1.msra.mxu0 0.0
      %4156 = vmatprep.subr.mxu0 0.0
      %4157 = vmatpush1.msra.mxu0 0.0
      %4158 = vmatprep.subr.mxu0 0.0
      %4159 = vmatpush1.msra.mxu0 0.0
      %4160 = vmatprep.subr.mxu0 0.0
      %4161 = vmatpush1.msra.mxu0 0.0
      %4162 = vmatprep.subr.mxu0 0.0
      %4163 = vmatpush1.msra.mxu0 0.0
      %4164 = vmatprep.subr.mxu0 0.0
      %4165 = vmatpush1.msra.mxu0 0.0
      %4166 = vmatprep.subr.mxu0 0.0
      %4167 = vmatpush1.msra.mxu0 0.0
      %4168 = vmatprep.subr.mxu0 0.0
      %4169 = vmatpush1.msra.mxu0 0.0
      %4170 = vmatprep.subr.mxu0 0.0
      %4171 = vmatpush1.msra.mxu0 0.0
      %4172 = vmatprep.mubr.f32.mxu0 0.0
      %4173 = vmatmul.mubr.f32.gmra.mrb[0].mxu0 %v4014
      %v4174 = vpop.f32.mrb[0].mxu0
      %v4175 = vadd.f32 0.0, %v4174
      %v4176 = vpop.f32.mrb[0].mxu0
      %v4177 = vadd.f32 0.0, %v4176
      %4178 = vmatprep.mubr.f32.mxu0 0.0
      %4179 = vmatmul.mubr.f32.gmra.mrb[0].mxu0 %v4017
      %v4180 = vpop.f32.mrb[0].mxu0
      %v4181 = vadd.f32 0.0, %v4180
      %v4182 = vpop.f32.mrb[0].mxu0
      %v4183 = vadd.f32 0.0, %v4182
      %4184 = vdwg.mxu0
      %v4185 = vadd.f32 %v3525, %v4098
      %v4186 = vadd.f32 %v3526, %v4100
      %v4187 = vadd.f32 %v3527, %v4175
      %v4188 = vadd.f32 %v3528, %v4177
      %v4189 = vadd.f32 %v3529, %v4104
      %v4190 = vadd.f32 %v3530, %v4106
      %v4191 = vadd.f32 %v3531, %v4181
      %v4192 = vadd.f32 %v3532, %v4183
      %v4193 = vld [vmem:[%s6] sm:$0xf]
      %v4195 = vlaneseq
      %v4196 = vshrl.u32 %v4195, 7
      %v4197 = vsub.s32 0, %v4196
      %v4198 = vrot.slane %v4193, %v4197
      %v4199 = vlaneseq
      %v4200 = vshrl.u32 %v4199, 7
      %v4201 = vsub.s32 1, %v4200
      %v4202 = vrot.slane %v4193, %v4201
      %v4203 = vlaneseq
      %v4204 = vshrl.u32 %v4203, 7
      %v4205 = vsub.s32 2, %v4204
      %v4206 = vrot.slane %v4193, %v4205
      %v4207 = vlaneseq
      %v4208 = vshrl.u32 %v4207, 7
      %v4209 = vsub.s32 3, %v4208
      %v4210 = vrot.slane %v4193, %v4209
      %v4215 = vadd.f32 %v4185, %v4198
      %v4216 = vadd.f32 %v4186, %v4202
      %v4217 = vadd.f32 %v4187, %v4206
      %v4218 = vadd.f32 %v4188, %v4210
      %v4219 = vadd.f32 %v4189, %v4198
      %v4220 = vadd.f32 %v4190, %v4202
      %v4221 = vadd.f32 %v4191, %v4206
      %v4222 = vadd.f32 %v4192, %v4210
      %v4223 = vmax.f32 %v4215, 0.0
      %v4224 = vmax.f32 %v4216, 0.0
      %v4225 = vmax.f32 %v4217, 0.0
      %v4226 = vmax.f32 %v4218, 0.0
      %v4227 = vmax.f32 %v4219, 0.0
      %v4228 = vmax.f32 %v4220, 0.0
      %v4229 = vmax.f32 %v4221, 0.0
      %v4230 = vmax.f32 %v4222, 0.0
      %v4231 = vld [vmem:[%s7] sm:$0xff]
      %v4232 = vld [vmem:[%s7 + $0x8] sm:$0xff]
      %v4233 = vld [vmem:[%s7 + $0x10] sm:$0xff]
      %v4234 = vld [vmem:[%s7 + $0x18] sm:$0xff]
      %v4235 = vld [vmem:[%s7 + $0x20] sm:$0xff]
      %v4236 = vld [vmem:[%s7 + $0x28] sm:$0xff]
      %v4237 = vld [vmem:[%s7 + $0x30] sm:$0xff]
      %v4238 = vld [vmem:[%s7 + $0x38] sm:$0xff]
      %v4239 = vld [vmem:[%s7 + $0x40] sm:$0xff]
      %v4240 = vld [vmem:[%s7 + $0x48] sm:$0xff]
      %v4241 = vld [vmem:[%s7 + $0x50] sm:$0xff]
      %v4242 = vld [vmem:[%s7 + $0x58] sm:$0xff]
      %v4243 = vld [vmem:[%s7 + $0x60] sm:$0xff]
      %v4244 = vld [vmem:[%s7 + $0x68] sm:$0xff]
      %v4245 = vld [vmem:[%s7 + $0x70] sm:$0xff]
      %v4246 = vld [vmem:[%s7 + $0x78] sm:$0xff]
      %v4247 = vld [vmem:[%s7 + $0x80] sm:$0xff]
      %v4248 = vld [vmem:[%s7 + $0x88] sm:$0xff]
      %v4249 = vld [vmem:[%s7 + $0x90] sm:$0xff]
      %v4250 = vld [vmem:[%s7 + $0x98] sm:$0xff]
      %v4251 = vld [vmem:[%s7 + $0xa0] sm:$0xff]
      %v4252 = vld [vmem:[%s7 + $0xa8] sm:$0xff]
      %v4253 = vld [vmem:[%s7 + $0xb0] sm:$0xff]
      %v4254 = vld [vmem:[%s7 + $0xb8] sm:$0xff]
      %v4255 = vld [vmem:[%s7 + $0xc0] sm:$0xff]
      %v4256 = vld [vmem:[%s7 + $0xc8] sm:$0xff]
      %v4257 = vld [vmem:[%s7 + $0xd0] sm:$0xff]
      %v4258 = vld [vmem:[%s7 + $0xd8] sm:$0xff]
      %v4259 = vld [vmem:[%s7 + $0xe0] sm:$0xff]
      %v4260 = vld [vmem:[%s7 + $0xe8] sm:$0xff]
      %v4261 = vld [vmem:[%s7 + $0xf0] sm:$0xff]
      %v4262 = vld [vmem:[%s7 + $0xf8] sm:$0xff]
      %v4263 = vld [vmem:[%s7 + $0x100] sm:$0xff]
      %v4264 = vld [vmem:[%s7 + $0x108] sm:$0xff]
      %v4265 = vld [vmem:[%s7 + $0x110] sm:$0xff]
      %v4266 = vld [vmem:[%s7 + $0x118] sm:$0xff]
      %v4267 = vld [vmem:[%s7 + $0x120] sm:$0xff]
      %v4268 = vld [vmem:[%s7 + $0x128] sm:$0xff]
      %v4269 = vld [vmem:[%s7 + $0x130] sm:$0xff]
      %v4270 = vld [vmem:[%s7 + $0x138] sm:$0xff]
      %v4271 = vld [vmem:[%s7 + $0x140] sm:$0xff]
      %v4272 = vld [vmem:[%s7 + $0x148] sm:$0xff]
      %v4273 = vld [vmem:[%s7 + $0x150] sm:$0xff]
      %v4274 = vld [vmem:[%s7 + $0x158] sm:$0xff]
      %v4275 = vld [vmem:[%s7 + $0x160] sm:$0xff]
      %v4276 = vld [vmem:[%s7 + $0x168] sm:$0xff]
      %v4277 = vld [vmem:[%s7 + $0x170] sm:$0xff]
      %v4278 = vld [vmem:[%s7 + $0x178] sm:$0xff]
      %v4279 = vld [vmem:[%s7 + $0x180] sm:$0xff]
      %v4280 = vld [vmem:[%s7 + $0x188] sm:$0xff]
      %v4281 = vld [vmem:[%s7 + $0x190] sm:$0xff]
      %v4282 = vld [vmem:[%s7 + $0x198] sm:$0xff]
      %v4283 = vld [vmem:[%s7 + $0x1a0] sm:$0xff]
      %v4284 = vld [vmem:[%s7 + $0x1a8] sm:$0xff]
      %v4285 = vld [vmem:[%s7 + $0x1b0] sm:$0xff]
      %v4286 = vld [vmem:[%s7 + $0x1b8] sm:$0xff]
      %v4287 = vld [vmem:[%s7 + $0x1c0] sm:$0xff]
      %v4288 = vld [vmem:[%s7 + $0x1c8] sm:$0xff]
      %v4289 = vld [vmem:[%s7 + $0x1d0] sm:$0xff]
      %v4290 = vld [vmem:[%s7 + $0x1d8] sm:$0xff]
      %v4291 = vld [vmem:[%s7 + $0x1e0] sm:$0xff]
      %v4292 = vld [vmem:[%s7 + $0x1e8] sm:$0xff]
      %v4293 = vld [vmem:[%s7 + $0x1f0] sm:$0xff]
      %v4294 = vld [vmem:[%s7 + $0x1f8] sm:$0xff]
      %v4295 = vld [vmem:[%s7 + $0x200] sm:$0xff]
      %v4296 = vld [vmem:[%s7 + $0x208] sm:$0xff]
      %v4297 = vld [vmem:[%s7 + $0x210] sm:$0xff]
      %v4298 = vld [vmem:[%s7 + $0x218] sm:$0xff]
      %v4299 = vld [vmem:[%s7 + $0x220] sm:$0xff]
      %v4300 = vld [vmem:[%s7 + $0x228] sm:$0xff]
      %v4301 = vld [vmem:[%s7 + $0x230] sm:$0xff]
      %v4302 = vld [vmem:[%s7 + $0x238] sm:$0xff]
      %v4303 = vld [vmem:[%s7 + $0x240] sm:$0xff]
      %v4304 = vld [vmem:[%s7 + $0x248] sm:$0xff]
      %v4305 = vld [vmem:[%s7 + $0x250] sm:$0xff]
      %v4306 = vld [vmem:[%s7 + $0x258] sm:$0xff]
      %v4307 = vld [vmem:[%s7 + $0x260] sm:$0xff]
      %v4308 = vld [vmem:[%s7 + $0x268] sm:$0xff]
      %v4309 = vld [vmem:[%s7 + $0x270] sm:$0xff]
      %v4310 = vld [vmem:[%s7 + $0x278] sm:$0xff]
      %v4311 = vld [vmem:[%s7 + $0x280] sm:$0xff]
      %v4312 = vld [vmem:[%s7 + $0x288] sm:$0xff]
      %v4313 = vld [vmem:[%s7 + $0x290] sm:$0xff]
      %v4314 = vld [vmem:[%s7 + $0x298] sm:$0xff]
      %v4315 = vld [vmem:[%s7 + $0x2a0] sm:$0xff]
      %v4316 = vld [vmem:[%s7 + $0x2a8] sm:$0xff]
      %v4317 = vld [vmem:[%s7 + $0x2b0] sm:$0xff]
      %v4318 = vld [vmem:[%s7 + $0x2b8] sm:$0xff]
      %v4319 = vld [vmem:[%s7 + $0x2c0] sm:$0xff]
      %v4320 = vld [vmem:[%s7 + $0x2c8] sm:$0xff]
      %v4321 = vld [vmem:[%s7 + $0x2d0] sm:$0xff]
      %v4322 = vld [vmem:[%s7 + $0x2d8] sm:$0xff]
      %v4323 = vld [vmem:[%s7 + $0x2e0] sm:$0xff]
      %v4324 = vld [vmem:[%s7 + $0x2e8] sm:$0xff]
      %v4325 = vld [vmem:[%s7 + $0x2f0] sm:$0xff]
      %v4326 = vld [vmem:[%s7 + $0x2f8] sm:$0xff]
      %v4327 = vld [vmem:[%s7 + $0x300] sm:$0xff]
      %v4328 = vld [vmem:[%s7 + $0x308] sm:$0xff]
      %v4329 = vld [vmem:[%s7 + $0x310] sm:$0xff]
      %v4330 = vld [vmem:[%s7 + $0x318] sm:$0xff]
      %v4331 = vld [vmem:[%s7 + $0x320] sm:$0xff]
      %v4332 = vld [vmem:[%s7 + $0x328] sm:$0xff]
      %v4333 = vld [vmem:[%s7 + $0x330] sm:$0xff]
      %v4334 = vld [vmem:[%s7 + $0x338] sm:$0xff]
      %v4335 = vld [vmem:[%s7 + $0x340] sm:$0xff]
      %v4336 = vld [vmem:[%s7 + $0x348] sm:$0xff]
      %v4337 = vld [vmem:[%s7 + $0x350] sm:$0xff]
      %v4338 = vld [vmem:[%s7 + $0x358] sm:$0xff]
      %v4339 = vld [vmem:[%s7 + $0x360] sm:$0xff]
      %v4340 = vld [vmem:[%s7 + $0x368] sm:$0xff]
      %v4341 = vld [vmem:[%s7 + $0x370] sm:$0xff]
      %v4342 = vld [vmem:[%s7 + $0x378] sm:$0xff]
      %vm4343 = vcmask 523264
      %v4345 = vsel %vm4343, %v4226, 0
      %v4348 = vsel %vm4343, %v4230, 0
      %4350 = vmatprep.subr.mxu0 %v4232
      %4351 = vmatpush1.msra.mxu0 %v4231
      %4352 = vmatprep.subr.mxu0 %v4234
      %4353 = vmatpush1.msra.mxu0 %v4233
      %4354 = vmatprep.subr.mxu0 %v4236
      %4355 = vmatpush1.msra.mxu0 %v4235
      %4356 = vmatprep.subr.mxu0 %v4238
      %4357 = vmatpush1.msra.mxu0 %v4237
      %4358 = vmatprep.subr.mxu0 %v4240
      %4359 = vmatpush1.msra.mxu0 %v4239
      %4360 = vmatprep.subr.mxu0 %v4242
      %4361 = vmatpush1.msra.mxu0 %v4241
      %4362 = vmatprep.subr.mxu0 %v4244
      %4363 = vmatpush1.msra.mxu0 %v4243
      %4364 = vmatprep.subr.mxu0 %v4246
      %4365 = vmatpush1.msra.mxu0 %v4245
      %4366 = vmatprep.subr.mxu0 %v4248
      %4367 = vmatpush1.msra.mxu0 %v4247
      %4368 = vmatprep.subr.mxu0 %v4250
      %4369 = vmatpush1.msra.mxu0 %v4249
      %4370 = vmatprep.subr.mxu0 %v4252
      %4371 = vmatpush1.msra.mxu0 %v4251
      %4372 = vmatprep.subr.mxu0 %v4254
      %4373 = vmatpush1.msra.mxu0 %v4253
      %4374 = vmatprep.subr.mxu0 %v4256
      %4375 = vmatpush1.msra.mxu0 %v4255
      %4376 = vmatprep.subr.mxu0 %v4258
      %4377 = vmatpush1.msra.mxu0 %v4257
      %4378 = vmatprep.subr.mxu0 %v4260
      %4379 = vmatpush1.msra.mxu0 %v4259
      %4380 = vmatprep.subr.mxu0 %v4262
      %4381 = vmatpush1.msra.mxu0 %v4261
      %4382 = vmatprep.subr.mxu0 %v4264
      %4383 = vmatpush1.msra.mxu0 %v4263
      %4384 = vmatprep.subr.mxu0 %v4266
      %4385 = vmatpush1.msra.mxu0 %v4265
      %4386 = vmatprep.subr.mxu0 %v4268
      %4387 = vmatpush1.msra.mxu0 %v4267
      %4388 = vmatprep.subr.mxu0 %v4270
      %4389 = vmatpush1.msra.mxu0 %v4269
      %4390 = vmatprep.subr.mxu0 %v4272
      %4391 = vmatpush1.msra.mxu0 %v4271
      %4392 = vmatprep.subr.mxu0 %v4274
      %4393 = vmatpush1.msra.mxu0 %v4273
      %4394 = vmatprep.subr.mxu0 %v4276
      %4395 = vmatpush1.msra.mxu0 %v4275
      %4396 = vmatprep.subr.mxu0 %v4278
      %4397 = vmatpush1.msra.mxu0 %v4277
      %4398 = vmatprep.subr.mxu0 %v4280
      %4399 = vmatpush1.msra.mxu0 %v4279
      %4400 = vmatprep.subr.mxu0 %v4282
      %4401 = vmatpush1.msra.mxu0 %v4281
      %4402 = vmatprep.subr.mxu0 %v4284
      %4403 = vmatpush1.msra.mxu0 %v4283
      %4404 = vmatprep.subr.mxu0 %v4286
      %4405 = vmatpush1.msra.mxu0 %v4285
      %4406 = vmatprep.subr.mxu0 %v4288
      %4407 = vmatpush1.msra.mxu0 %v4287
      %4408 = vmatprep.subr.mxu0 %v4290
      %4409 = vmatpush1.msra.mxu0 %v4289
      %4410 = vmatprep.subr.mxu0 %v4292
      %4411 = vmatpush1.msra.mxu0 %v4291
      %4412 = vmatprep.subr.mxu0 %v4294
      %4413 = vmatpush1.msra.mxu0 %v4293
      %4414 = vmatprep.mubr.f32.mxu0 %v4224
      %4415 = vmatmul.mubr.f32.gmra.mrb[0].mxu0 %v4223
      %v4416 = vpop.f32.mrb[0].mxu0
      %v4417 = vadd.f32 0.0, %v4416
      %v4418 = vpop.f32.mrb[0].mxu0
      %v4419 = vadd.f32 0.0, %v4418
      %4420 = vmatprep.mubr.f32.mxu0 %v4228
      %4421 = vmatmul.mubr.f32.gmra.mrb[0].mxu0 %v4227
      %v4422 = vpop.f32.mrb[0].mxu0
      %v4423 = vadd.f32 0.0, %v4422
      %v4424 = vpop.f32.mrb[0].mxu0
      %v4425 = vadd.f32 0.0, %v4424
      %4426 = vdwg.mxu0
      %4427 = vmatprep.subr.mxu0 %v4296
      %4428 = vmatpush1.msra.mxu0 %v4295
      %4429 = vmatprep.subr.mxu0 %v4298
      %4430 = vmatpush1.msra.mxu0 %v4297
      %4431 = vmatprep.subr.mxu0 %v4300
      %4432 = vmatpush1.msra.mxu0 %v4299
      %4433 = vmatprep.subr.mxu0 %v4302
      %4434 = vmatpush1.msra.mxu0 %v4301
      %4435 = vmatprep.subr.mxu0 %v4304
      %4436 = vmatpush1.msra.mxu0 %v4303
      %4437 = vmatprep.subr.mxu0 %v4306
      %4438 = vmatpush1.msra.mxu0 %v4305
      %4439 = vmatprep.subr.mxu0 %v4308
      %4440 = vmatpush1.msra.mxu0 %v4307
      %4441 = vmatprep.subr.mxu0 %v4310
      %4442 = vmatpush1.msra.mxu0 %v4309
      %4443 = vmatprep.subr.mxu0 %v4312
      %4444 = vmatpush1.msra.mxu0 %v4311
      %4445 = vmatprep.subr.mxu0 %v4314
      %4446 = vmatpush1.msra.mxu0 %v4313
      %4447 = vmatprep.subr.mxu0 %v4316
      %4448 = vmatpush1.msra.mxu0 %v4315
      %4449 = vmatprep.subr.mxu0 %v4318
      %4450 = vmatpush1.msra.mxu0 %v4317
      %4451 = vmatprep.subr.mxu0 %v4320
      %4452 = vmatpush1.msra.mxu0 %v4319
      %4453 = vmatprep.subr.mxu0 %v4322
      %4454 = vmatpush1.msra.mxu0 %v4321
      %4455 = vmatprep.subr.mxu0 %v4324
      %4456 = vmatpush1.msra.mxu0 %v4323
      %4457 = vmatprep.subr.mxu0 %v4326
      %4458 = vmatpush1.msra.mxu0 %v4325
      %4459 = vmatprep.subr.mxu0 %v4328
      %4460 = vmatpush1.msra.mxu0 %v4327
      %4461 = vmatprep.subr.mxu0 %v4330
      %4462 = vmatpush1.msra.mxu0 %v4329
      %4463 = vmatprep.subr.mxu0 %v4332
      %4464 = vmatpush1.msra.mxu0 %v4331
      %4465 = vmatprep.subr.mxu0 %v4334
      %4466 = vmatpush1.msra.mxu0 %v4333
      %4467 = vmatprep.subr.mxu0 %v4336
      %4468 = vmatpush1.msra.mxu0 %v4335
      %4469 = vmatprep.subr.mxu0 %v4338
      %4470 = vmatpush1.msra.mxu0 %v4337
      %4471 = vmatprep.subr.mxu0 %v4340
      %4472 = vmatpush1.msra.mxu0 %v4339
      %4473 = vmatprep.subr.mxu0 %v4342
      %4474 = vmatpush1.msra.mxu0 %v4341
      %4475 = vmatprep.subr.mxu0 0.0
      %4476 = vmatpush1.msra.mxu0 0.0
      %4477 = vmatprep.subr.mxu0 0.0
      %4478 = vmatpush1.msra.mxu0 0.0
      %4479 = vmatprep.subr.mxu0 0.0
      %4480 = vmatpush1.msra.mxu0 0.0
      %4481 = vmatprep.subr.mxu0 0.0
      %4482 = vmatpush1.msra.mxu0 0.0
      %4483 = vmatprep.subr.mxu0 0.0
      %4484 = vmatpush1.msra.mxu0 0.0
      %4485 = vmatprep.subr.mxu0 0.0
      %4486 = vmatpush1.msra.mxu0 0.0
      %4487 = vmatprep.subr.mxu0 0.0
      %4488 = vmatpush1.msra.mxu0 0.0
      %4489 = vmatprep.subr.mxu0 0.0
      %4490 = vmatpush1.msra.mxu0 0.0
      %4491 = vmatprep.mubr.f32.mxu0 %v4345
      %4492 = vmatmul.mubr.f32.gmra.mrb[0].mxu0 %v4225
      %v4493 = vpop.f32.mrb[0].mxu0
      %v4494 = vadd.f32 %v4417, %v4493
      %v4495 = vpop.f32.mrb[0].mxu0
      %v4496 = vadd.f32 %v4419, %v4495
      %4497 = vmatprep.mubr.f32.mxu0 %v4348
      %4498 = vmatmul.mubr.f32.gmra.mrb[0].mxu0 %v4229
      %v4499 = vpop.f32.mrb[0].mxu0
      %v4500 = vadd.f32 %v4423, %v4499
      %v4501 = vpop.f32.mrb[0].mxu0
      %v4502 = vadd.f32 %v4425, %v4501
      %4503 = vdwg.mxu0
      %v4504 = vld [vmem:[%s8] sm:$0xff]
      %v4505 = vld [vmem:[%s8 + $0x8] sm:$0xff]
      %v4506 = vld [vmem:[%s8 + $0x10] sm:$0xff]
      %v4507 = vld [vmem:[%s8 + $0x18] sm:$0xff]
      %v4508 = vld [vmem:[%s8 + $0x20] sm:$0xff]
      %v4509 = vld [vmem:[%s8 + $0x28] sm:$0xff]
      %v4510 = vld [vmem:[%s8 + $0x30] sm:$0xff]
      %v4511 = vld [vmem:[%s8 + $0x38] sm:$0x3]
      %s4512 = scalar_lea.vmem %s7, 896
      %v4513 = vld [vmem:[%s4512] sm:$0xff]
      %v4514 = vld [vmem:[%s4512 + $0x8] sm:$0xff]
      %v4515 = vld [vmem:[%s4512 + $0x10] sm:$0xff]
      %v4516 = vld [vmem:[%s4512 + $0x18] sm:$0xff]
      %v4517 = vld [vmem:[%s4512 + $0x20] sm:$0xff]
      %v4518 = vld [vmem:[%s4512 + $0x28] sm:$0xff]
      %v4519 = vld [vmem:[%s4512 + $0x30] sm:$0xff]
      %v4520 = vld [vmem:[%s4512 + $0x38] sm:$0xff]
      %v4521 = vld [vmem:[%s4512 + $0x40] sm:$0xff]
      %v4522 = vld [vmem:[%s4512 + $0x48] sm:$0xff]
      %v4523 = vld [vmem:[%s4512 + $0x50] sm:$0xff]
      %v4524 = vld [vmem:[%s4512 + $0x58] sm:$0xff]
      %v4525 = vld [vmem:[%s4512 + $0x60] sm:$0xff]
      %v4526 = vld [vmem:[%s4512 + $0x68] sm:$0xff]
      %v4527 = vld [vmem:[%s4512 + $0x70] sm:$0xff]
      %v4528 = vld [vmem:[%s4512 + $0x78] sm:$0xff]
      %v4529 = vld [vmem:[%s4512 + $0x80] sm:$0xff]
      %v4530 = vld [vmem:[%s4512 + $0x88] sm:$0xff]
      %v4531 = vld [vmem:[%s4512 + $0x90] sm:$0xff]
      %v4532 = vld [vmem:[%s4512 + $0x98] sm:$0xff]
      %v4533 = vld [vmem:[%s4512 + $0xa0] sm:$0xff]
      %v4534 = vld [vmem:[%s4512 + $0xa8] sm:$0xff]
      %v4535 = vld [vmem:[%s4512 + $0xb0] sm:$0xff]
      %v4536 = vld [vmem:[%s4512 + $0xb8] sm:$0xff]
      %v4537 = vld [vmem:[%s4512 + $0xc0] sm:$0xff]
      %v4538 = vld [vmem:[%s4512 + $0xc8] sm:$0xff]
      %v4539 = vld [vmem:[%s4512 + $0xd0] sm:$0xff]
      %v4540 = vld [vmem:[%s4512 + $0xd8] sm:$0xff]
      %v4541 = vld [vmem:[%s4512 + $0xe0] sm:$0xff]
      %v4542 = vld [vmem:[%s4512 + $0xe8] sm:$0xff]
      %v4543 = vld [vmem:[%s4512 + $0xf0] sm:$0xff]
      %v4544 = vld [vmem:[%s4512 + $0xf8] sm:$0xff]
      %v4545 = vld [vmem:[%s4512 + $0x100] sm:$0xff]
      %v4546 = vld [vmem:[%s4512 + $0x108] sm:$0xff]
      %v4547 = vld [vmem:[%s4512 + $0x110] sm:$0xff]
      %v4548 = vld [vmem:[%s4512 + $0x118] sm:$0xff]
      %v4549 = vld [vmem:[%s4512 + $0x120] sm:$0xff]
      %v4550 = vld [vmem:[%s4512 + $0x128] sm:$0xff]
      %v4551 = vld [vmem:[%s4512 + $0x130] sm:$0xff]
      %v4552 = vld [vmem:[%s4512 + $0x138] sm:$0xff]
      %v4553 = vld [vmem:[%s4512 + $0x140] sm:$0xff]
      %v4554 = vld [vmem:[%s4512 + $0x148] sm:$0xff]
      %v4555 = vld [vmem:[%s4512 + $0x150] sm:$0xff]
      %v4556 = vld [vmem:[%s4512 + $0x158] sm:$0xff]
      %v4557 = vld [vmem:[%s4512 + $0x160] sm:$0xff]
      %v4558 = vld [vmem:[%s4512 + $0x168] sm:$0xff]
      %v4559 = vld [vmem:[%s4512 + $0x170] sm:$0xff]
      %v4560 = vld [vmem:[%s4512 + $0x178] sm:$0xff]
      %v4561 = vld [vmem:[%s4512 + $0x180] sm:$0xff]
      %v4562 = vld [vmem:[%s4512 + $0x188] sm:$0xff]
      %v4563 = vld [vmem:[%s4512 + $0x190] sm:$0xff]
      %v4564 = vld [vmem:[%s4512 + $0x198] sm:$0xff]
      %v4565 = vld [vmem:[%s4512 + $0x1a0] sm:$0xff]
      %v4566 = vld [vmem:[%s4512 + $0x1a8] sm:$0xff]
      %v4567 = vld [vmem:[%s4512 + $0x1b0] sm:$0xff]
      %v4568 = vld [vmem:[%s4512 + $0x1b8] sm:$0xff]
      %v4569 = vld [vmem:[%s4512 + $0x1c0] sm:$0xff]
      %v4570 = vld [vmem:[%s4512 + $0x1c8] sm:$0xff]
      %v4571 = vld [vmem:[%s4512 + $0x1d0] sm:$0xff]
      %v4572 = vld [vmem:[%s4512 + $0x1d8] sm:$0xff]
      %v4573 = vld [vmem:[%s4512 + $0x1e0] sm:$0xff]
      %v4574 = vld [vmem:[%s4512 + $0x1e8] sm:$0xff]
      %v4575 = vld [vmem:[%s4512 + $0x1f0] sm:$0xff]
      %v4576 = vld [vmem:[%s4512 + $0x1f8] sm:$0xff]
      %v4577 = vld [vmem:[%s4512 + $0x200] sm:$0xff]
      %v4578 = vld [vmem:[%s4512 + $0x208] sm:$0xff]
      %v4579 = vld [vmem:[%s4512 + $0x210] sm:$0xff]
      %v4580 = vld [vmem:[%s4512 + $0x218] sm:$0xff]
      %v4581 = vld [vmem:[%s4512 + $0x220] sm:$0xff]
      %v4582 = vld [vmem:[%s4512 + $0x228] sm:$0xff]
      %v4583 = vld [vmem:[%s4512 + $0x230] sm:$0xff]
      %v4584 = vld [vmem:[%s4512 + $0x238] sm:$0xff]
      %v4585 = vld [vmem:[%s4512 + $0x240] sm:$0xff]
      %v4586 = vld [vmem:[%s4512 + $0x248] sm:$0xff]
      %v4587 = vld [vmem:[%s4512 + $0x250] sm:$0xff]
      %v4588 = vld [vmem:[%s4512 + $0x258] sm:$0xff]
      %v4589 = vld [vmem:[%s4512 + $0x260] sm:$0xff]
      %v4590 = vld [vmem:[%s4512 + $0x268] sm:$0xff]
      %v4591 = vld [vmem:[%s4512 + $0x270] sm:$0xff]
      %v4592 = vld [vmem:[%s4512 + $0x278] sm:$0xff]
      %v4593 = vld [vmem:[%s4512 + $0x280] sm:$0xff]
      %v4594 = vld [vmem:[%s4512 + $0x288] sm:$0xff]
      %v4595 = vld [vmem:[%s4512 + $0x290] sm:$0xff]
      %v4596 = vld [vmem:[%s4512 + $0x298] sm:$0xff]
      %v4597 = vld [vmem:[%s4512 + $0x2a0] sm:$0xff]
      %v4598 = vld [vmem:[%s4512 + $0x2a8] sm:$0xff]
      %v4599 = vld [vmem:[%s4512 + $0x2b0] sm:$0xff]
      %v4600 = vld [vmem:[%s4512 + $0x2b8] sm:$0xff]
      %v4601 = vld [vmem:[%s4512 + $0x2c0] sm:$0xff]
      %v4602 = vld [vmem:[%s4512 + $0x2c8] sm:$0xff]
      %v4603 = vld [vmem:[%s4512 + $0x2d0] sm:$0xff]
      %v4604 = vld [vmem:[%s4512 + $0x2d8] sm:$0xff]
      %v4605 = vld [vmem:[%s4512 + $0x2e0] sm:$0xff]
      %v4606 = vld [vmem:[%s4512 + $0x2e8] sm:$0xff]
      %v4607 = vld [vmem:[%s4512 + $0x2f0] sm:$0xff]
      %v4608 = vld [vmem:[%s4512 + $0x2f8] sm:$0xff]
      %v4609 = vld [vmem:[%s4512 + $0x300] sm:$0xff]
      %v4610 = vld [vmem:[%s4512 + $0x308] sm:$0xff]
      %v4611 = vld [vmem:[%s4512 + $0x310] sm:$0xff]
      %v4612 = vld [vmem:[%s4512 + $0x318] sm:$0xff]
      %v4613 = vld [vmem:[%s4512 + $0x320] sm:$0xff]
      %v4614 = vld [vmem:[%s4512 + $0x328] sm:$0xff]
      %v4615 = vld [vmem:[%s4512 + $0x330] sm:$0xff]
      %v4616 = vld [vmem:[%s4512 + $0x338] sm:$0xff]
      %v4617 = vld [vmem:[%s4512 + $0x340] sm:$0xff]
      %v4618 = vld [vmem:[%s4512 + $0x348] sm:$0xff]
      %v4619 = vld [vmem:[%s4512 + $0x350] sm:$0xff]
      %v4620 = vld [vmem:[%s4512 + $0x358] sm:$0xff]
      %v4621 = vld [vmem:[%s4512 + $0x360] sm:$0xff]
      %v4622 = vld [vmem:[%s4512 + $0x368] sm:$0xff]
      %v4623 = vld [vmem:[%s4512 + $0x370] sm:$0xff]
      %v4624 = vld [vmem:[%s4512 + $0x378] sm:$0xff]
      %4625 = vmatprep.subr.mxu0 %v4514
      %4626 = vmatpush1.msra.mxu0 %v4513
      %4627 = vmatprep.subr.mxu0 %v4516
      %4628 = vmatpush1.msra.mxu0 %v4515
      %4629 = vmatprep.subr.mxu0 %v4518
      %4630 = vmatpush1.msra.mxu0 %v4517
      %4631 = vmatprep.subr.mxu0 %v4520
      %4632 = vmatpush1.msra.mxu0 %v4519
      %4633 = vmatprep.subr.mxu0 %v4522
      %4634 = vmatpush1.msra.mxu0 %v4521
      %4635 = vmatprep.subr.mxu0 %v4524
      %4636 = vmatpush1.msra.mxu0 %v4523
      %4637 = vmatprep.subr.mxu0 %v4526
      %4638 = vmatpush1.msra.mxu0 %v4525
      %4639 = vmatprep.subr.mxu0 %v4528
      %4640 = vmatpush1.msra.mxu0 %v4527
      %4641 = vmatprep.subr.mxu0 %v4530
      %4642 = vmatpush1.msra.mxu0 %v4529
      %4643 = vmatprep.subr.mxu0 %v4532
      %4644 = vmatpush1.msra.mxu0 %v4531
      %4645 = vmatprep.subr.mxu0 %v4534
      %4646 = vmatpush1.msra.mxu0 %v4533
      %4647 = vmatprep.subr.mxu0 %v4536
      %4648 = vmatpush1.msra.mxu0 %v4535
      %4649 = vmatprep.subr.mxu0 %v4538
      %4650 = vmatpush1.msra.mxu0 %v4537
      %4651 = vmatprep.subr.mxu0 %v4540
      %4652 = vmatpush1.msra.mxu0 %v4539
      %4653 = vmatprep.subr.mxu0 %v4542
      %4654 = vmatpush1.msra.mxu0 %v4541
      %4655 = vmatprep.subr.mxu0 %v4544
      %4656 = vmatpush1.msra.mxu0 %v4543
      %4657 = vmatprep.subr.mxu0 %v4546
      %4658 = vmatpush1.msra.mxu0 %v4545
      %4659 = vmatprep.subr.mxu0 %v4548
      %4660 = vmatpush1.msra.mxu0 %v4547
      %4661 = vmatprep.subr.mxu0 %v4550
      %4662 = vmatpush1.msra.mxu0 %v4549
      %4663 = vmatprep.subr.mxu0 %v4552
      %4664 = vmatpush1.msra.mxu0 %v4551
      %4665 = vmatprep.subr.mxu0 %v4554
      %4666 = vmatpush1.msra.mxu0 %v4553
      %4667 = vmatprep.subr.mxu0 %v4556
      %4668 = vmatpush1.msra.mxu0 %v4555
      %4669 = vmatprep.subr.mxu0 %v4558
      %4670 = vmatpush1.msra.mxu0 %v4557
      %4671 = vmatprep.subr.mxu0 %v4560
      %4672 = vmatpush1.msra.mxu0 %v4559
      %4673 = vmatprep.subr.mxu0 %v4562
      %4674 = vmatpush1.msra.mxu0 %v4561
      %4675 = vmatprep.subr.mxu0 %v4564
      %4676 = vmatpush1.msra.mxu0 %v4563
      %4677 = vmatprep.subr.mxu0 %v4566
      %4678 = vmatpush1.msra.mxu0 %v4565
      %4679 = vmatprep.subr.mxu0 %v4568
      %4680 = vmatpush1.msra.mxu0 %v4567
      %4681 = vmatprep.subr.mxu0 %v4570
      %4682 = vmatpush1.msra.mxu0 %v4569
      %4683 = vmatprep.subr.mxu0 %v4572
      %4684 = vmatpush1.msra.mxu0 %v4571
      %4685 = vmatprep.subr.mxu0 %v4574
      %4686 = vmatpush1.msra.mxu0 %v4573
      %4687 = vmatprep.subr.mxu0 %v4576
      %4688 = vmatpush1.msra.mxu0 %v4575
      %4689 = vmatprep.mubr.f32.mxu0 %v4224
      %4690 = vmatmul.mubr.f32.gmra.mrb[0].mxu0 %v4223
      %v4691 = vpop.f32.mrb[0].mxu0
      %v4692 = vadd.f32 0.0, %v4691
      %v4693 = vpop.f32.mrb[0].mxu0
      %v4694 = vadd.f32 0.0, %v4693
      %4695 = vmatprep.mubr.f32.mxu0 %v4228
      %4696 = vmatmul.mubr.f32.gmra.mrb[0].mxu0 %v4227
      %v4697 = vpop.f32.mrb[0].mxu0
      %v4698 = vadd.f32 0.0, %v4697
      %v4699 = vpop.f32.mrb[0].mxu0
      %v4700 = vadd.f32 0.0, %v4699
      %4701 = vdwg.mxu0
      %4702 = vmatprep.subr.mxu0 %v4578
      %4703 = vmatpush1.msra.mxu0 %v4577
      %4704 = vmatprep.subr.mxu0 %v4580
      %4705 = vmatpush1.msra.mxu0 %v4579
      %4706 = vmatprep.subr.mxu0 %v4582
      %4707 = vmatpush1.msra.mxu0 %v4581
      %4708 = vmatprep.subr.mxu0 %v4584
      %4709 = vmatpush1.msra.mxu0 %v4583
      %4710 = vmatprep.subr.mxu0 %v4586
      %4711 = vmatpush1.msra.mxu0 %v4585
      %4712 = vmatprep.subr.mxu0 %v4588
      %4713 = vmatpush1.msra.mxu0 %v4587
      %4714 = vmatprep.subr.mxu0 %v4590
      %4715 = vmatpush1.msra.mxu0 %v4589
      %4716 = vmatprep.subr.mxu0 %v4592
      %4717 = vmatpush1.msra.mxu0 %v4591
      %4718 = vmatprep.subr.mxu0 %v4594
      %4719 = vmatpush1.msra.mxu0 %v4593
      %4720 = vmatprep.subr.mxu0 %v4596
      %4721 = vmatpush1.msra.mxu0 %v4595
      %4722 = vmatprep.subr.mxu0 %v4598
      %4723 = vmatpush1.msra.mxu0 %v4597
      %4724 = vmatprep.subr.mxu0 %v4600
      %4725 = vmatpush1.msra.mxu0 %v4599
      %4726 = vmatprep.subr.mxu0 %v4602
      %4727 = vmatpush1.msra.mxu0 %v4601
      %4728 = vmatprep.subr.mxu0 %v4604
      %4729 = vmatpush1.msra.mxu0 %v4603
      %4730 = vmatprep.subr.mxu0 %v4606
      %4731 = vmatpush1.msra.mxu0 %v4605
      %4732 = vmatprep.subr.mxu0 %v4608
      %4733 = vmatpush1.msra.mxu0 %v4607
      %4734 = vmatprep.subr.mxu0 %v4610
      %4735 = vmatpush1.msra.mxu0 %v4609
      %4736 = vmatprep.subr.mxu0 %v4612
      %4737 = vmatpush1.msra.mxu0 %v4611
      %4738 = vmatprep.subr.mxu0 %v4614
      %4739 = vmatpush1.msra.mxu0 %v4613
      %4740 = vmatprep.subr.mxu0 %v4616
      %4741 = vmatpush1.msra.mxu0 %v4615
      %4742 = vmatprep.subr.mxu0 %v4618
      %4743 = vmatpush1.msra.mxu0 %v4617
      %4744 = vmatprep.subr.mxu0 %v4620
      %4745 = vmatpush1.msra.mxu0 %v4619
      %4746 = vmatprep.subr.mxu0 %v4622
      %4747 = vmatpush1.msra.mxu0 %v4621
      %4748 = vmatprep.subr.mxu0 %v4624
      %4749 = vmatpush1.msra.mxu0 %v4623
      %4750 = vmatprep.subr.mxu0 0.0
      %4751 = vmatpush1.msra.mxu0 0.0
      %4752 = vmatprep.subr.mxu0 0.0
      %4753 = vmatpush1.msra.mxu0 0.0
      %4754 = vmatprep.subr.mxu0 0.0
      %4755 = vmatpush1.msra.mxu0 0.0
      %4756 = vmatprep.subr.mxu0 0.0
      %4757 = vmatpush1.msra.mxu0 0.0
      %4758 = vmatprep.subr.mxu0 0.0
      %4759 = vmatpush1.msra.mxu0 0.0
      %4760 = vmatprep.subr.mxu0 0.0
      %4761 = vmatpush1.msra.mxu0 0.0
      %4762 = vmatprep.subr.mxu0 0.0
      %4763 = vmatpush1.msra.mxu0 0.0
      %4764 = vmatprep.subr.mxu0 0.0
      %4765 = vmatpush1.msra.mxu0 0.0
      %4766 = vmatprep.mubr.f32.mxu0 %v4345
      %4767 = vmatmul.mubr.f32.gmra.mrb[0].mxu0 %v4225
      %v4768 = vpop.f32.mrb[0].mxu0
      %v4769 = vadd.f32 %v4692, %v4768
      %v4770 = vpop.f32.mrb[0].mxu0
      %v4771 = vadd.f32 %v4694, %v4770
      %4772 = vmatprep.mubr.f32.mxu0 %v4348
      %4773 = vmatmul.mubr.f32.gmra.mrb[0].mxu0 %v4229
      %v4774 = vpop.f32.mrb[0].mxu0
      %v4775 = vadd.f32 %v4698, %v4774
      %v4776 = vpop.f32.mrb[0].mxu0
      %v4777 = vadd.f32 %v4700, %v4776
      %4778 = vdwg.mxu0
      %s4779 = scalar_lea.vmem %s8, 64
      %v4780 = vld [vmem:[%s4779] sm:$0xff]
      %v4781 = vld [vmem:[%s4779 + $0x8] sm:$0xff]
      %v4782 = vld [vmem:[%s4779 + $0x10] sm:$0xff]
      %v4783 = vld [vmem:[%s4779 + $0x18] sm:$0xff]
      %v4784 = vld [vmem:[%s4779 + $0x20] sm:$0xff]
      %v4785 = vld [vmem:[%s4779 + $0x28] sm:$0xff]
      %v4786 = vld [vmem:[%s4779 + $0x30] sm:$0xff]
      %v4787 = vld [vmem:[%s4779 + $0x38] sm:$0x3]
      %vm4788 = vcmask 113664
      %v4790 = vsel %vm4788, %v4780, 0
      %v4793 = vsel %vm4788, %v4781, 0
      %v4796 = vsel %vm4788, %v4782, 0
      %v4799 = vsel %vm4788, %v4783, 0
      %v4802 = vsel %vm4788, %v4784, 0
      %v4805 = vsel %vm4788, %v4785, 0
      %v4808 = vsel %vm4788, %v4786, 0
      %v4811 = vsel %vm4788, %v4787, 0
      %v4814 = vsel %vm2534, %v4775, 0
      %v4817 = vsel %vm2534, %v4777, 0
      %4819 = vmatprep.subr.mxu0 %v4771
      %4820 = vmatpush1.msra.mxu0 %v4769
      %4821 = vmatprep.subr.mxu0 %v4817
      %4822 = vmatpush1.msra.mxu0 %v4814
      %4823 = vmatprep.subr.mxu0 0.0
      %4824 = vmatpush1.msra.mxu0 0.0
      %4825 = vmatprep.subr.mxu0 0.0
      %4826 = vmatpush1.msra.mxu0 0.0
      %4827 = vmatprep.subr.mxu0 0.0
      %4828 = vmatpush1.msra.mxu0 0.0
      %4829 = vmatprep.subr.mxu0 0.0
      %4830 = vmatpush1.msra.mxu0 0.0
      %4831 = vmatprep.subr.mxu0 0.0
      %4832 = vmatpush1.msra.mxu0 0.0
      %4833 = vmatprep.subr.mxu0 0.0
      %4834 = vmatpush1.msra.mxu0 0.0
      %4835 = vmatprep.subr.mxu0 0.0
      %4836 = vmatpush1.msra.mxu0 0.0
      %4837 = vmatprep.subr.mxu0 0.0
      %4838 = vmatpush1.msra.mxu0 0.0
      %4839 = vmatprep.subr.mxu0 0.0
      %4840 = vmatpush1.msra.mxu0 0.0
      %4841 = vmatprep.subr.mxu0 0.0
      %4842 = vmatpush1.msra.mxu0 0.0
      %4843 = vmatprep.subr.mxu0 0.0
      %4844 = vmatpush1.msra.mxu0 0.0
      %4845 = vmatprep.subr.mxu0 0.0
      %4846 = vmatpush1.msra.mxu0 0.0
      %4847 = vmatprep.subr.mxu0 0.0
      %4848 = vmatpush1.msra.mxu0 0.0
      %4849 = vmatprep.subr.mxu0 0.0
      %4850 = vmatpush1.msra.mxu0 0.0
      %4851 = vmatprep.subr.mxu0 0.0
      %4852 = vmatpush1.msra.mxu0 0.0
      %4853 = vmatprep.subr.mxu0 0.0
      %4854 = vmatpush1.msra.mxu0 0.0
      %4855 = vmatprep.subr.mxu0 0.0
      %4856 = vmatpush1.msra.mxu0 0.0
      %4857 = vmatprep.subr.mxu0 0.0
      %4858 = vmatpush1.msra.mxu0 0.0
      %4859 = vmatprep.subr.mxu0 0.0
      %4860 = vmatpush1.msra.mxu0 0.0
      %4861 = vmatprep.subr.mxu0 0.0
      %4862 = vmatpush1.msra.mxu0 0.0
      %4863 = vmatprep.subr.mxu0 0.0
      %4864 = vmatpush1.msra.mxu0 0.0
      %4865 = vmatprep.subr.mxu0 0.0
      %4866 = vmatpush1.msra.mxu0 0.0
      %4867 = vmatprep.subr.mxu0 0.0
      %4868 = vmatpush1.msra.mxu0 0.0
      %4869 = vmatprep.subr.mxu0 0.0
      %4870 = vmatpush1.msra.mxu0 0.0
      %4871 = vmatprep.subr.mxu0 0.0
      %4872 = vmatpush1.msra.mxu0 0.0
      %4873 = vmatprep.subr.mxu0 0.0
      %4874 = vmatpush1.msra.mxu0 0.0
      %4875 = vmatprep.subr.mxu0 0.0
      %4876 = vmatpush1.msra.mxu0 0.0
      %4877 = vmatprep.subr.mxu0 0.0
      %4878 = vmatpush1.msra.mxu0 0.0
      %4879 = vmatprep.subr.mxu0 0.0
      %4880 = vmatpush1.msra.mxu0 0.0
      %4881 = vmatprep.subr.mxu0 0.0
      %4882 = vmatpush1.msra.mxu0 0.0
      %4883 = vmatprep.mubr.f32.mxu0 0.0
      %4884 = vmatmul.mubr.f32.gmra.mrb[0].mxu0 %v4790
      %v4885 = vpop.f32.mrb[0].mxu0
      %v4886 = vadd.f32 0.0, %v4885
      %v4887 = vpop.f32.mrb[0].mxu0
      %v4888 = vadd.f32 0.0, %v4887
      %4889 = vmatprep.mubr.f32.mxu0 0.0
      %4890 = vmatmul.mubr.f32.gmra.mrb[0].mxu0 %v4793
      %v4891 = vpop.f32.mrb[0].mxu0
      %v4892 = vadd.f32 0.0, %v4891
      %v4893 = vpop.f32.mrb[0].mxu0
      %v4894 = vadd.f32 0.0, %v4893
      %4895 = vmatprep.mubr.f32.mxu0 0.0
      %4896 = vmatmul.mubr.f32.gmra.mrb[0].mxu0 %v4796
      %v4897 = vpop.f32.mrb[0].mxu0
      %v4898 = vadd.f32 0.0, %v4897
      %v4899 = vpop.f32.mrb[0].mxu0
      %v4900 = vadd.f32 0.0, %v4899
      %4901 = vmatprep.mubr.f32.mxu0 0.0
      %4902 = vmatmul.mubr.f32.gmra.mrb[0].mxu0 %v4799
      %v4903 = vpop.f32.mrb[0].mxu0
      %v4904 = vadd.f32 0.0, %v4903
      %v4905 = vpop.f32.mrb[0].mxu0
      %v4906 = vadd.f32 0.0, %v4905
      %4907 = vmatprep.mubr.f32.mxu0 0.0
      %4908 = vmatmul.mubr.f32.gmra.mrb[0].mxu0 %v4802
      %v4909 = vpop.f32.mrb[0].mxu0
      %v4910 = vadd.f32 0.0, %v4909
      %v4911 = vpop.f32.mrb[0].mxu0
      %v4912 = vadd.f32 0.0, %v4911
      %4913 = vmatprep.mubr.f32.mxu0 0.0
      %4914 = vmatmul.mubr.f32.gmra.mrb[0].mxu0 %v4805
      %v4915 = vpop.f32.mrb[0].mxu0
      %v4916 = vadd.f32 0.0, %v4915
      %v4917 = vpop.f32.mrb[0].mxu0
      %v4918 = vadd.f32 0.0, %v4917
      %4919 = vmatprep.mubr.f32.mxu0 0.0
      %4920 = vmatmul.mubr.f32.gmra.mrb[0].mxu0 %v4808
      %v4921 = vpop.f32.mrb[0].mxu0
      %v4922 = vadd.f32 0.0, %v4921
      %v4923 = vpop.f32.mrb[0].mxu0
      %v4924 = vadd.f32 0.0, %v4923
      %4925 = vmatprep.mubr.f32.mxu0 0.0
      %4926 = vmatmul.mubr.f32.gmra.mrb[0].mxu0 %v4811
      %v4927 = vpop.f32.mrb[0].mxu0
      %v4928 = vadd.f32 0.0, %v4927
      %v4929 = vpop.f32.mrb[0].mxu0
      %v4930 = vadd.f32 0.0, %v4929
      %4931 = vdwg.mxu0
      %v4933 = vsel %vm4788, %v4504, 0
      %v4936 = vsel %vm4788, %v4505, 0
      %v4939 = vsel %vm4788, %v4506, 0
      %v4942 = vsel %vm4788, %v4507, 0
      %v4945 = vsel %vm4788, %v4508, 0
      %v4948 = vsel %vm4788, %v4509, 0
      %v4951 = vsel %vm4788, %v4510, 0
      %v4954 = vsel %vm4788, %v4511, 0
      %v4957 = vsel %vm2534, %v4500, 0
      %v4960 = vsel %vm2534, %v4502, 0
      %4962 = vmatprep.subr.mxu0 %v4496
      %4963 = vmatpush1.msra.mxu0 %v4494
      %4964 = vmatprep.subr.mxu0 %v4960
      %4965 = vmatpush1.msra.mxu0 %v4957
      %4966 = vmatprep.subr.mxu0 0.0
      %4967 = vmatpush1.msra.mxu0 0.0
      %4968 = vmatprep.subr.mxu0 0.0
      %4969 = vmatpush1.msra.mxu0 0.0
      %4970 = vmatprep.subr.mxu0 0.0
      %4971 = vmatpush1.msra.mxu0 0.0
      %4972 = vmatprep.subr.mxu0 0.0
      %4973 = vmatpush1.msra.mxu0 0.0
      %4974 = vmatprep.subr.mxu0 0.0
      %4975 = vmatpush1.msra.mxu0 0.0
      %4976 = vmatprep.subr.mxu0 0.0
      %4977 = vmatpush1.msra.mxu0 0.0
      %4978 = vmatprep.subr.mxu0 0.0
      %4979 = vmatpush1.msra.mxu0 0.0
      %4980 = vmatprep.subr.mxu0 0.0
      %4981 = vmatpush1.msra.mxu0 0.0
      %4982 = vmatprep.subr.mxu0 0.0
      %4983 = vmatpush1.msra.mxu0 0.0
      %4984 = vmatprep.subr.mxu0 0.0
      %4985 = vmatpush1.msra.mxu0 0.0
      %4986 = vmatprep.subr.mxu0 0.0
      %4987 = vmatpush1.msra.mxu0 0.0
      %4988 = vmatprep.subr.mxu0 0.0
      %4989 = vmatpush1.msra.mxu0 0.0
      %4990 = vmatprep.subr.mxu0 0.0
      %4991 = vmatpush1.msra.mxu0 0.0
      %4992 = vmatprep.subr.mxu0 0.0
      %4993 = vmatpush1.msra.mxu0 0.0
      %4994 = vmatprep.subr.mxu0 0.0
      %4995 = vmatpush1.msra.mxu0 0.0
      %4996 = vmatprep.subr.mxu0 0.0
      %4997 = vmatpush1.msra.mxu0 0.0
      %4998 = vmatprep.subr.mxu0 0.0
      %4999 = vmatpush1.msra.mxu0 0.0
      %5000 = vmatprep.subr.mxu0 0.0
      %5001 = vmatpush1.msra.mxu0 0.0
      %5002 = vmatprep.subr.mxu0 0.0
      %5003 = vmatpush1.msra.mxu0 0.0
      %5004 = vmatprep.subr.mxu0 0.0
      %5005 = vmatpush1.msra.mxu0 0.0
      %5006 = vmatprep.subr.mxu0 0.0
      %5007 = vmatpush1.msra.mxu0 0.0
      %5008 = vmatprep.subr.mxu0 0.0
      %5009 = vmatpush1.msra.mxu0 0.0
      %5010 = vmatprep.subr.mxu0 0.0
      %5011 = vmatpush1.msra.mxu0 0.0
      %5012 = vmatprep.subr.mxu0 0.0
      %5013 = vmatpush1.msra.mxu0 0.0
      %5014 = vmatprep.subr.mxu0 0.0
      %5015 = vmatpush1.msra.mxu0 0.0
      %5016 = vmatprep.subr.mxu0 0.0
      %5017 = vmatpush1.msra.mxu0 0.0
      %5018 = vmatprep.subr.mxu0 0.0
      %5019 = vmatpush1.msra.mxu0 0.0
      %5020 = vmatprep.subr.mxu0 0.0
      %5021 = vmatpush1.msra.mxu0 0.0
      %5022 = vmatprep.subr.mxu0 0.0
      %5023 = vmatpush1.msra.mxu0 0.0
      %5024 = vmatprep.subr.mxu0 0.0
      %5025 = vmatpush1.msra.mxu0 0.0
      %5026 = vmatprep.mubr.f32.mxu0 0.0
      %5027 = vmatmul.mubr.f32.gmra.mrb[0].mxu0 %v4933
      %v5028 = vpop.f32.mrb[0].mxu0
      %v5029 = vadd.f32 %v4886, %v5028
      %v5030 = vpop.f32.mrb[0].mxu0
      %v5031 = vadd.f32 %v4888, %v5030
      %5032 = vmatprep.mubr.f32.mxu0 0.0
      %5033 = vmatmul.mubr.f32.gmra.mrb[0].mxu0 %v4936
      %v5034 = vpop.f32.mrb[0].mxu0
      %v5035 = vadd.f32 %v4892, %v5034
      %v5036 = vpop.f32.mrb[0].mxu0
      %v5037 = vadd.f32 %v4894, %v5036
      %5038 = vmatprep.mubr.f32.mxu0 0.0
      %5039 = vmatmul.mubr.f32.gmra.mrb[0].mxu0 %v4939
      %v5040 = vpop.f32.mrb[0].mxu0
      %v5041 = vadd.f32 %v4898, %v5040
      %v5042 = vpop.f32.mrb[0].mxu0
      %v5043 = vadd.f32 %v4900, %v5042
      %5044 = vmatprep.mubr.f32.mxu0 0.0
      %5045 = vmatmul.mubr.f32.gmra.mrb[0].mxu0 %v4942
      %v5046 = vpop.f32.mrb[0].mxu0
      %v5047 = vadd.f32 %v4904, %v5046
      %v5048 = vpop.f32.mrb[0].mxu0
      %v5049 = vadd.f32 %v4906, %v5048
      %5050 = vmatprep.mubr.f32.mxu0 0.0
      %5051 = vmatmul.mubr.f32.gmra.mrb[0].mxu0 %v4945
      %v5052 = vpop.f32.mrb[0].mxu0
      %v5053 = vadd.f32 %v4910, %v5052
      %v5054 = vpop.f32.mrb[0].mxu0
      %v5055 = vadd.f32 %v4912, %v5054
      %5056 = vmatprep.mubr.f32.mxu0 0.0
      %5057 = vmatmul.mubr.f32.gmra.mrb[0].mxu0 %v4948
      %v5058 = vpop.f32.mrb[0].mxu0
      %v5059 = vadd.f32 %v4916, %v5058
      %v5060 = vpop.f32.mrb[0].mxu0
      %v5061 = vadd.f32 %v4918, %v5060
      %5062 = vmatprep.mubr.f32.mxu0 0.0
      %5063 = vmatmul.mubr.f32.gmra.mrb[0].mxu0 %v4951
      %v5064 = vpop.f32.mrb[0].mxu0
      %v5065 = vadd.f32 %v4922, %v5064
      %v5066 = vpop.f32.mrb[0].mxu0
      %v5067 = vadd.f32 %v4924, %v5066
      %5068 = vmatprep.mubr.f32.mxu0 0.0
      %5069 = vmatmul.mubr.f32.gmra.mrb[0].mxu0 %v4954
      %v5070 = vpop.f32.mrb[0].mxu0
      %v5071 = vadd.f32 %v4928, %v5070
      %v5072 = vpop.f32.mrb[0].mxu0
      %v5073 = vadd.f32 %v4930, %v5072
      %5074 = vdwg.mxu0
      %s5075 = scalar_lea.vmem %s7, 1792
      %v5076 = vld [vmem:[%s5075] sm:$0xff]
      %v5077 = vld [vmem:[%s5075 + $0x8] sm:$0xff]
      %v5078 = vld [vmem:[%s5075 + $0x10] sm:$0xff]
      %v5079 = vld [vmem:[%s5075 + $0x18] sm:$0xff]
      %v5080 = vld [vmem:[%s5075 + $0x20] sm:$0xff]
      %v5081 = vld [vmem:[%s5075 + $0x28] sm:$0xff]
      %v5082 = vld [vmem:[%s5075 + $0x30] sm:$0xff]
      %v5083 = vld [vmem:[%s5075 + $0x38] sm:$0xff]
      %v5084 = vld [vmem:[%s5075 + $0x40] sm:$0xff]
      %v5085 = vld [vmem:[%s5075 + $0x48] sm:$0xff]
      %v5086 = vld [vmem:[%s5075 + $0x50] sm:$0xff]
      %v5087 = vld [vmem:[%s5075 + $0x58] sm:$0xff]
      %v5088 = vld [vmem:[%s5075 + $0x60] sm:$0xff]
      %v5089 = vld [vmem:[%s5075 + $0x68] sm:$0xff]
      %v5090 = vld [vmem:[%s5075 + $0x70] sm:$0xff]
      %v5091 = vld [vmem:[%s5075 + $0x78] sm:$0xff]
      %v5092 = vld [vmem:[%s5075 + $0x80] sm:$0xff]
      %v5093 = vld [vmem:[%s5075 + $0x88] sm:$0xff]
      %v5094 = vld [vmem:[%s5075 + $0x90] sm:$0xff]
      %v5095 = vld [vmem:[%s5075 + $0x98] sm:$0xff]
      %v5096 = vld [vmem:[%s5075 + $0xa0] sm:$0xff]
      %v5097 = vld [vmem:[%s5075 + $0xa8] sm:$0xff]
      %v5098 = vld [vmem:[%s5075 + $0xb0] sm:$0xff]
      %v5099 = vld [vmem:[%s5075 + $0xb8] sm:$0xff]
      %v5100 = vld [vmem:[%s5075 + $0xc0] sm:$0xff]
      %v5101 = vld [vmem:[%s5075 + $0xc8] sm:$0xff]
      %v5102 = vld [vmem:[%s5075 + $0xd0] sm:$0xff]
      %v5103 = vld [vmem:[%s5075 + $0xd8] sm:$0xff]
      %v5104 = vld [vmem:[%s5075 + $0xe0] sm:$0xff]
      %v5105 = vld [vmem:[%s5075 + $0xe8] sm:$0xff]
      %v5106 = vld [vmem:[%s5075 + $0xf0] sm:$0xff]
      %v5107 = vld [vmem:[%s5075 + $0xf8] sm:$0xff]
      %v5108 = vld [vmem:[%s5075 + $0x100] sm:$0xff]
      %v5109 = vld [vmem:[%s5075 + $0x108] sm:$0xff]
      %v5110 = vld [vmem:[%s5075 + $0x110] sm:$0xff]
      %v5111 = vld [vmem:[%s5075 + $0x118] sm:$0xff]
      %v5112 = vld [vmem:[%s5075 + $0x120] sm:$0xff]
      %v5113 = vld [vmem:[%s5075 + $0x128] sm:$0xff]
      %v5114 = vld [vmem:[%s5075 + $0x130] sm:$0xff]
      %v5115 = vld [vmem:[%s5075 + $0x138] sm:$0xff]
      %v5116 = vld [vmem:[%s5075 + $0x140] sm:$0xff]
      %v5117 = vld [vmem:[%s5075 + $0x148] sm:$0xff]
      %v5118 = vld [vmem:[%s5075 + $0x150] sm:$0xff]
      %v5119 = vld [vmem:[%s5075 + $0x158] sm:$0xff]
      %v5120 = vld [vmem:[%s5075 + $0x160] sm:$0xff]
      %v5121 = vld [vmem:[%s5075 + $0x168] sm:$0xff]
      %v5122 = vld [vmem:[%s5075 + $0x170] sm:$0xff]
      %v5123 = vld [vmem:[%s5075 + $0x178] sm:$0xff]
      %v5124 = vld [vmem:[%s5075 + $0x180] sm:$0xff]
      %v5125 = vld [vmem:[%s5075 + $0x188] sm:$0xff]
      %v5126 = vld [vmem:[%s5075 + $0x190] sm:$0xff]
      %v5127 = vld [vmem:[%s5075 + $0x198] sm:$0xff]
      %v5128 = vld [vmem:[%s5075 + $0x1a0] sm:$0xff]
      %v5129 = vld [vmem:[%s5075 + $0x1a8] sm:$0xff]
      %v5130 = vld [vmem:[%s5075 + $0x1b0] sm:$0xff]
      %v5131 = vld [vmem:[%s5075 + $0x1b8] sm:$0xff]
      %v5132 = vld [vmem:[%s5075 + $0x1c0] sm:$0xff]
      %v5133 = vld [vmem:[%s5075 + $0x1c8] sm:$0xff]
      %v5134 = vld [vmem:[%s5075 + $0x1d0] sm:$0xff]
      %v5135 = vld [vmem:[%s5075 + $0x1d8] sm:$0xff]
      %v5136 = vld [vmem:[%s5075 + $0x1e0] sm:$0xff]
      %v5137 = vld [vmem:[%s5075 + $0x1e8] sm:$0xff]
      %v5138 = vld [vmem:[%s5075 + $0x1f0] sm:$0xff]
      %v5139 = vld [vmem:[%s5075 + $0x1f8] sm:$0xff]
      %v5140 = vld [vmem:[%s5075 + $0x200] sm:$0xff]
      %v5141 = vld [vmem:[%s5075 + $0x208] sm:$0xff]
      %v5142 = vld [vmem:[%s5075 + $0x210] sm:$0xff]
      %v5143 = vld [vmem:[%s5075 + $0x218] sm:$0xff]
      %v5144 = vld [vmem:[%s5075 + $0x220] sm:$0xff]
      %v5145 = vld [vmem:[%s5075 + $0x228] sm:$0xff]
      %v5146 = vld [vmem:[%s5075 + $0x230] sm:$0xff]
      %v5147 = vld [vmem:[%s5075 + $0x238] sm:$0xff]
      %v5148 = vld [vmem:[%s5075 + $0x240] sm:$0xff]
      %v5149 = vld [vmem:[%s5075 + $0x248] sm:$0xff]
      %v5150 = vld [vmem:[%s5075 + $0x250] sm:$0xff]
      %v5151 = vld [vmem:[%s5075 + $0x258] sm:$0xff]
      %v5152 = vld [vmem:[%s5075 + $0x260] sm:$0xff]
      %v5153 = vld [vmem:[%s5075 + $0x268] sm:$0xff]
      %v5154 = vld [vmem:[%s5075 + $0x270] sm:$0xff]
      %v5155 = vld [vmem:[%s5075 + $0x278] sm:$0xff]
      %v5156 = vld [vmem:[%s5075 + $0x280] sm:$0xff]
      %v5157 = vld [vmem:[%s5075 + $0x288] sm:$0xff]
      %v5158 = vld [vmem:[%s5075 + $0x290] sm:$0xff]
      %v5159 = vld [vmem:[%s5075 + $0x298] sm:$0xff]
      %v5160 = vld [vmem:[%s5075 + $0x2a0] sm:$0xff]
      %v5161 = vld [vmem:[%s5075 + $0x2a8] sm:$0xff]
      %v5162 = vld [vmem:[%s5075 + $0x2b0] sm:$0xff]
      %v5163 = vld [vmem:[%s5075 + $0x2b8] sm:$0xff]
      %v5164 = vld [vmem:[%s5075 + $0x2c0] sm:$0xff]
      %v5165 = vld [vmem:[%s5075 + $0x2c8] sm:$0xff]
      %v5166 = vld [vmem:[%s5075 + $0x2d0] sm:$0xff]
      %v5167 = vld [vmem:[%s5075 + $0x2d8] sm:$0xff]
      %v5168 = vld [vmem:[%s5075 + $0x2e0] sm:$0xff]
      %v5169 = vld [vmem:[%s5075 + $0x2e8] sm:$0xff]
      %v5170 = vld [vmem:[%s5075 + $0x2f0] sm:$0xff]
      %v5171 = vld [vmem:[%s5075 + $0x2f8] sm:$0xff]
      %v5172 = vld [vmem:[%s5075 + $0x300] sm:$0xff]
      %v5173 = vld [vmem:[%s5075 + $0x308] sm:$0xff]
      %v5174 = vld [vmem:[%s5075 + $0x310] sm:$0xff]
      %v5175 = vld [vmem:[%s5075 + $0x318] sm:$0xff]
      %v5176 = vld [vmem:[%s5075 + $0x320] sm:$0xff]
      %v5177 = vld [vmem:[%s5075 + $0x328] sm:$0xff]
      %v5178 = vld [vmem:[%s5075 + $0x330] sm:$0xff]
      %v5179 = vld [vmem:[%s5075 + $0x338] sm:$0xff]
      %v5180 = vld [vmem:[%s5075 + $0x340] sm:$0xff]
      %v5181 = vld [vmem:[%s5075 + $0x348] sm:$0xff]
      %v5182 = vld [vmem:[%s5075 + $0x350] sm:$0xff]
      %v5183 = vld [vmem:[%s5075 + $0x358] sm:$0xff]
      %v5184 = vld [vmem:[%s5075 + $0x360] sm:$0xff]
      %v5185 = vld [vmem:[%s5075 + $0x368] sm:$0xff]
      %v5186 = vld [vmem:[%s5075 + $0x370] sm:$0xff]
      %v5187 = vld [vmem:[%s5075 + $0x378] sm:$0xff]
      %5188 = vmatprep.subr.mxu0 %v5077
      %5189 = vmatpush1.msra.mxu0 %v5076
      %5190 = vmatprep.subr.mxu0 %v5079
      %5191 = vmatpush1.msra.mxu0 %v5078
      %5192 = vmatprep.subr.mxu0 %v5081
      %5193 = vmatpush1.msra.mxu0 %v5080
      %5194 = vmatprep.subr.mxu0 %v5083
      %5195 = vmatpush1.msra.mxu0 %v5082
      %5196 = vmatprep.subr.mxu0 %v5085
      %5197 = vmatpush1.msra.mxu0 %v5084
      %5198 = vmatprep.subr.mxu0 %v5087
      %5199 = vmatpush1.msra.mxu0 %v5086
      %5200 = vmatprep.subr.mxu0 %v5089
      %5201 = vmatpush1.msra.mxu0 %v5088
      %5202 = vmatprep.subr.mxu0 %v5091
      %5203 = vmatpush1.msra.mxu0 %v5090
      %5204 = vmatprep.subr.mxu0 %v5093
      %5205 = vmatpush1.msra.mxu0 %v5092
      %5206 = vmatprep.subr.mxu0 %v5095
      %5207 = vmatpush1.msra.mxu0 %v5094
      %5208 = vmatprep.subr.mxu0 %v5097
      %5209 = vmatpush1.msra.mxu0 %v5096
      %5210 = vmatprep.subr.mxu0 %v5099
      %5211 = vmatpush1.msra.mxu0 %v5098
      %5212 = vmatprep.subr.mxu0 %v5101
      %5213 = vmatpush1.msra.mxu0 %v5100
      %5214 = vmatprep.subr.mxu0 %v5103
      %5215 = vmatpush1.msra.mxu0 %v5102
      %5216 = vmatprep.subr.mxu0 %v5105
      %5217 = vmatpush1.msra.mxu0 %v5104
      %5218 = vmatprep.subr.mxu0 %v5107
      %5219 = vmatpush1.msra.mxu0 %v5106
      %5220 = vmatprep.subr.mxu0 %v5109
      %5221 = vmatpush1.msra.mxu0 %v5108
      %5222 = vmatprep.subr.mxu0 %v5111
      %5223 = vmatpush1.msra.mxu0 %v5110
      %5224 = vmatprep.subr.mxu0 %v5113
      %5225 = vmatpush1.msra.mxu0 %v5112
      %5226 = vmatprep.subr.mxu0 %v5115
      %5227 = vmatpush1.msra.mxu0 %v5114
      %5228 = vmatprep.subr.mxu0 %v5117
      %5229 = vmatpush1.msra.mxu0 %v5116
      %5230 = vmatprep.subr.mxu0 %v5119
      %5231 = vmatpush1.msra.mxu0 %v5118
      %5232 = vmatprep.subr.mxu0 %v5121
      %5233 = vmatpush1.msra.mxu0 %v5120
      %5234 = vmatprep.subr.mxu0 %v5123
      %5235 = vmatpush1.msra.mxu0 %v5122
      %5236 = vmatprep.subr.mxu0 %v5125
      %5237 = vmatpush1.msra.mxu0 %v5124
      %5238 = vmatprep.subr.mxu0 %v5127
      %5239 = vmatpush1.msra.mxu0 %v5126
      %5240 = vmatprep.subr.mxu0 %v5129
      %5241 = vmatpush1.msra.mxu0 %v5128
      %5242 = vmatprep.subr.mxu0 %v5131
      %5243 = vmatpush1.msra.mxu0 %v5130
      %5244 = vmatprep.subr.mxu0 %v5133
      %5245 = vmatpush1.msra.mxu0 %v5132
      %5246 = vmatprep.subr.mxu0 %v5135
      %5247 = vmatpush1.msra.mxu0 %v5134
      %5248 = vmatprep.subr.mxu0 %v5137
      %5249 = vmatpush1.msra.mxu0 %v5136
      %5250 = vmatprep.subr.mxu0 %v5139
      %5251 = vmatpush1.msra.mxu0 %v5138
      %5252 = vmatprep.mubr.f32.mxu0 %v4224
      %5253 = vmatmul.mubr.f32.gmra.mrb[0].mxu0 %v4223
      %v5254 = vpop.f32.mrb[0].mxu0
      %v5255 = vadd.f32 0.0, %v5254
      %v5256 = vpop.f32.mrb[0].mxu0
      %v5257 = vadd.f32 0.0, %v5256
      %5258 = vmatprep.mubr.f32.mxu0 %v4228
      %5259 = vmatmul.mubr.f32.gmra.mrb[0].mxu0 %v4227
      %v5260 = vpop.f32.mrb[0].mxu0
      %v5261 = vadd.f32 0.0, %v5260
      %v5262 = vpop.f32.mrb[0].mxu0
      %v5263 = vadd.f32 0.0, %v5262
      %5264 = vdwg.mxu0
      %5265 = vmatprep.subr.mxu0 %v5141
      %5266 = vmatpush1.msra.mxu0 %v5140
      %5267 = vmatprep.subr.mxu0 %v5143
      %5268 = vmatpush1.msra.mxu0 %v5142
      %5269 = vmatprep.subr.mxu0 %v5145
      %5270 = vmatpush1.msra.mxu0 %v5144
      %5271 = vmatprep.subr.mxu0 %v5147
      %5272 = vmatpush1.msra.mxu0 %v5146
      %5273 = vmatprep.subr.mxu0 %v5149
      %5274 = vmatpush1.msra.mxu0 %v5148
      %5275 = vmatprep.subr.mxu0 %v5151
      %5276 = vmatpush1.msra.mxu0 %v5150
      %5277 = vmatprep.subr.mxu0 %v5153
      %5278 = vmatpush1.msra.mxu0 %v5152
      %5279 = vmatprep.subr.mxu0 %v5155
      %5280 = vmatpush1.msra.mxu0 %v5154
      %5281 = vmatprep.subr.mxu0 %v5157
      %5282 = vmatpush1.msra.mxu0 %v5156
      %5283 = vmatprep.subr.mxu0 %v5159
      %5284 = vmatpush1.msra.mxu0 %v5158
      %5285 = vmatprep.subr.mxu0 %v5161
      %5286 = vmatpush1.msra.mxu0 %v5160
      %5287 = vmatprep.subr.mxu0 %v5163
      %5288 = vmatpush1.msra.mxu0 %v5162
      %5289 = vmatprep.subr.mxu0 %v5165
      %5290 = vmatpush1.msra.mxu0 %v5164
      %5291 = vmatprep.subr.mxu0 %v5167
      %5292 = vmatpush1.msra.mxu0 %v5166
      %5293 = vmatprep.subr.mxu0 %v5169
      %5294 = vmatpush1.msra.mxu0 %v5168
      %5295 = vmatprep.subr.mxu0 %v5171
      %5296 = vmatpush1.msra.mxu0 %v5170
      %5297 = vmatprep.subr.mxu0 %v5173
      %5298 = vmatpush1.msra.mxu0 %v5172
      %5299 = vmatprep.subr.mxu0 %v5175
      %5300 = vmatpush1.msra.mxu0 %v5174
      %5301 = vmatprep.subr.mxu0 %v5177
      %5302 = vmatpush1.msra.mxu0 %v5176
      %5303 = vmatprep.subr.mxu0 %v5179
      %5304 = vmatpush1.msra.mxu0 %v5178
      %5305 = vmatprep.subr.mxu0 %v5181
      %5306 = vmatpush1.msra.mxu0 %v5180
      %5307 = vmatprep.subr.mxu0 %v5183
      %5308 = vmatpush1.msra.mxu0 %v5182
      %5309 = vmatprep.subr.mxu0 %v5185
      %5310 = vmatpush1.msra.mxu0 %v5184
      %5311 = vmatprep.subr.mxu0 %v5187
      %5312 = vmatpush1.msra.mxu0 %v5186
      %5313 = vmatprep.subr.mxu0 0.0
      %5314 = vmatpush1.msra.mxu0 0.0
      %5315 = vmatprep.subr.mxu0 0.0
      %5316 = vmatpush1.msra.mxu0 0.0
      %5317 = vmatprep.subr.mxu0 0.0
      %5318 = vmatpush1.msra.mxu0 0.0
      %5319 = vmatprep.subr.mxu0 0.0
      %5320 = vmatpush1.msra.mxu0 0.0
      %5321 = vmatprep.subr.mxu0 0.0
      %5322 = vmatpush1.msra.mxu0 0.0
      %5323 = vmatprep.subr.mxu0 0.0
      %5324 = vmatpush1.msra.mxu0 0.0
      %5325 = vmatprep.subr.mxu0 0.0
      %5326 = vmatpush1.msra.mxu0 0.0
      %5327 = vmatprep.subr.mxu0 0.0
      %5328 = vmatpush1.msra.mxu0 0.0
      %5329 = vmatprep.mubr.f32.mxu0 %v4345
      %5330 = vmatmul.mubr.f32.gmra.mrb[0].mxu0 %v4225
      %v5331 = vpop.f32.mrb[0].mxu0
      %v5332 = vadd.f32 %v5255, %v5331
      %v5333 = vpop.f32.mrb[0].mxu0
      %v5334 = vadd.f32 %v5257, %v5333
      %5335 = vmatprep.mubr.f32.mxu0 %v4348
      %5336 = vmatmul.mubr.f32.gmra.mrb[0].mxu0 %v4229
      %v5337 = vpop.f32.mrb[0].mxu0
      %v5338 = vadd.f32 %v5261, %v5337
      %v5339 = vpop.f32.mrb[0].mxu0
      %v5340 = vadd.f32 %v5263, %v5339
      %5341 = vdwg.mxu0
      %s5342 = scalar_lea.vmem %s8, 128
      %v5343 = vld [vmem:[%s5342] sm:$0xff]
      %v5344 = vld [vmem:[%s5342 + $0x8] sm:$0xff]
      %v5345 = vld [vmem:[%s5342 + $0x10] sm:$0xff]
      %v5346 = vld [vmem:[%s5342 + $0x18] sm:$0xff]
      %v5347 = vld [vmem:[%s5342 + $0x20] sm:$0xff]
      %v5348 = vld [vmem:[%s5342 + $0x28] sm:$0xff]
      %v5349 = vld [vmem:[%s5342 + $0x30] sm:$0xff]
      %v5350 = vld [vmem:[%s5342 + $0x38] sm:$0x3]
      %v5352 = vsel %vm4788, %v5343, 0
      %v5355 = vsel %vm4788, %v5344, 0
      %v5358 = vsel %vm4788, %v5345, 0
      %v5361 = vsel %vm4788, %v5346, 0
      %v5364 = vsel %vm4788, %v5347, 0
      %v5367 = vsel %vm4788, %v5348, 0
      %v5370 = vsel %vm4788, %v5349, 0
      %v5373 = vsel %vm4788, %v5350, 0
      %v5376 = vsel %vm2534, %v5338, 0
      %v5379 = vsel %vm2534, %v5340, 0
      %5381 = vmatprep.subr.mxu0 %v5334
      %5382 = vmatpush1.msra.mxu0 %v5332
      %5383 = vmatprep.subr.mxu0 %v5379
      %5384 = vmatpush1.msra.mxu0 %v5376
      %5385 = vmatprep.subr.mxu0 0.0
      %5386 = vmatpush1.msra.mxu0 0.0
      %5387 = vmatprep.subr.mxu0 0.0
      %5388 = vmatpush1.msra.mxu0 0.0
      %5389 = vmatprep.subr.mxu0 0.0
      %5390 = vmatpush1.msra.mxu0 0.0
      %5391 = vmatprep.subr.mxu0 0.0
      %5392 = vmatpush1.msra.mxu0 0.0
      %5393 = vmatprep.subr.mxu0 0.0
      %5394 = vmatpush1.msra.mxu0 0.0
      %5395 = vmatprep.subr.mxu0 0.0
      %5396 = vmatpush1.msra.mxu0 0.0
      %5397 = vmatprep.subr.mxu0 0.0
      %5398 = vmatpush1.msra.mxu0 0.0
      %5399 = vmatprep.subr.mxu0 0.0
      %5400 = vmatpush1.msra.mxu0 0.0
      %5401 = vmatprep.subr.mxu0 0.0
      %5402 = vmatpush1.msra.mxu0 0.0
      %5403 = vmatprep.subr.mxu0 0.0
      %5404 = vmatpush1.msra.mxu0 0.0
      %5405 = vmatprep.subr.mxu0 0.0
      %5406 = vmatpush1.msra.mxu0 0.0
      %5407 = vmatprep.subr.mxu0 0.0
      %5408 = vmatpush1.msra.mxu0 0.0
      %5409 = vmatprep.subr.mxu0 0.0
      %5410 = vmatpush1.msra.mxu0 0.0
      %5411 = vmatprep.subr.mxu0 0.0
      %5412 = vmatpush1.msra.mxu0 0.0
      %5413 = vmatprep.subr.mxu0 0.0
      %5414 = vmatpush1.msra.mxu0 0.0
      %5415 = vmatprep.subr.mxu0 0.0
      %5416 = vmatpush1.msra.mxu0 0.0
      %5417 = vmatprep.subr.mxu0 0.0
      %5418 = vmatpush1.msra.mxu0 0.0
      %5419 = vmatprep.subr.mxu0 0.0
      %5420 = vmatpush1.msra.mxu0 0.0
      %5421 = vmatprep.subr.mxu0 0.0
      %5422 = vmatpush1.msra.mxu0 0.0
      %5423 = vmatprep.subr.mxu0 0.0
      %5424 = vmatpush1.msra.mxu0 0.0
      %5425 = vmatprep.subr.mxu0 0.0
      %5426 = vmatpush1.msra.mxu0 0.0
      %5427 = vmatprep.subr.mxu0 0.0
      %5428 = vmatpush1.msra.mxu0 0.0
      %5429 = vmatprep.subr.mxu0 0.0
      %5430 = vmatpush1.msra.mxu0 0.0
      %5431 = vmatprep.subr.mxu0 0.0
      %5432 = vmatpush1.msra.mxu0 0.0
      %5433 = vmatprep.subr.mxu0 0.0
      %5434 = vmatpush1.msra.mxu0 0.0
      %5435 = vmatprep.subr.mxu0 0.0
      %5436 = vmatpush1.msra.mxu0 0.0
      %5437 = vmatprep.subr.mxu0 0.0
      %5438 = vmatpush1.msra.mxu0 0.0
      %5439 = vmatprep.subr.mxu0 0.0
      %5440 = vmatpush1.msra.mxu0 0.0
      %5441 = vmatprep.subr.mxu0 0.0
      %5442 = vmatpush1.msra.mxu0 0.0
      %5443 = vmatprep.subr.mxu0 0.0
      %5444 = vmatpush1.msra.mxu0 0.0
      %5445 = vmatprep.mubr.f32.mxu0 0.0
      %5446 = vmatmul.mubr.f32.gmra.mrb[0].mxu0 %v5352
      %v5447 = vpop.f32.mrb[0].mxu0
      %v5448 = vadd.f32 0.0, %v5447
      %v5449 = vpop.f32.mrb[0].mxu0
      %v5450 = vadd.f32 0.0, %v5449
      %5451 = vmatprep.mubr.f32.mxu0 0.0
      %5452 = vmatmul.mubr.f32.gmra.mrb[0].mxu0 %v5355
      %v5453 = vpop.f32.mrb[0].mxu0
      %v5454 = vadd.f32 0.0, %v5453
      %v5455 = vpop.f32.mrb[0].mxu0
      %v5456 = vadd.f32 0.0, %v5455
      %5457 = vmatprep.mubr.f32.mxu0 0.0
      %5458 = vmatmul.mubr.f32.gmra.mrb[0].mxu0 %v5358
      %v5459 = vpop.f32.mrb[0].mxu0
      %v5460 = vadd.f32 0.0, %v5459
      %v5461 = vpop.f32.mrb[0].mxu0
      %v5462 = vadd.f32 0.0, %v5461
      %5463 = vmatprep.mubr.f32.mxu0 0.0
      %5464 = vmatmul.mubr.f32.gmra.mrb[0].mxu0 %v5361
      %v5465 = vpop.f32.mrb[0].mxu0
      %v5466 = vadd.f32 0.0, %v5465
      %v5467 = vpop.f32.mrb[0].mxu0
      %v5468 = vadd.f32 0.0, %v5467
      %5469 = vmatprep.mubr.f32.mxu0 0.0
      %5470 = vmatmul.mubr.f32.gmra.mrb[0].mxu0 %v5364
      %v5471 = vpop.f32.mrb[0].mxu0
      %v5472 = vadd.f32 0.0, %v5471
      %v5473 = vpop.f32.mrb[0].mxu0
      %v5474 = vadd.f32 0.0, %v5473
      %5475 = vmatprep.mubr.f32.mxu0 0.0
      %5476 = vmatmul.mubr.f32.gmra.mrb[0].mxu0 %v5367
      %v5477 = vpop.f32.mrb[0].mxu0
      %v5478 = vadd.f32 0.0, %v5477
      %v5479 = vpop.f32.mrb[0].mxu0
      %v5480 = vadd.f32 0.0, %v5479
      %5481 = vmatprep.mubr.f32.mxu0 0.0
      %5482 = vmatmul.mubr.f32.gmra.mrb[0].mxu0 %v5370
      %v5483 = vpop.f32.mrb[0].mxu0
      %v5484 = vadd.f32 0.0, %v5483
      %v5485 = vpop.f32.mrb[0].mxu0
      %v5486 = vadd.f32 0.0, %v5485
      %5487 = vmatprep.mubr.f32.mxu0 0.0
      %5488 = vmatmul.mubr.f32.gmra.mrb[0].mxu0 %v5373
      %v5489 = vpop.f32.mrb[0].mxu0
      %v5490 = vadd.f32 0.0, %v5489
      %v5491 = vpop.f32.mrb[0].mxu0
      %v5492 = vadd.f32 0.0, %v5491
      %5493 = vdwg.mxu0
      %v5494 = vadd.f32 %v5029, %v5448
      %v5495 = vadd.f32 %v5031, %v5450
      %v5496 = vadd.f32 %v5035, %v5454
      %v5497 = vadd.f32 %v5037, %v5456
      %v5498 = vadd.f32 %v5041, %v5460
      %v5499 = vadd.f32 %v5043, %v5462
      %v5500 = vadd.f32 %v5047, %v5466
      %v5501 = vadd.f32 %v5049, %v5468
      %v5502 = vadd.f32 %v5053, %v5472
      %v5503 = vadd.f32 %v5055, %v5474
      %v5504 = vadd.f32 %v5059, %v5478
      %v5505 = vadd.f32 %v5061, %v5480
      %v5506 = vadd.f32 %v5065, %v5484
      %v5507 = vadd.f32 %v5067, %v5486
      %v5508 = vadd.f32 %v5071, %v5490
      %v5509 = vadd.f32 %v5073, %v5492
      %s5510 = scalar_lea.vmem %s7, 2688
      %v5511 = vld [vmem:[%s5510] sm:$0xff]
      %v5512 = vld [vmem:[%s5510 + $0x8] sm:$0xff]
      %v5513 = vld [vmem:[%s5510 + $0x10] sm:$0xff]
      %v5514 = vld [vmem:[%s5510 + $0x18] sm:$0xff]
      %v5515 = vld [vmem:[%s5510 + $0x20] sm:$0xff]
      %v5516 = vld [vmem:[%s5510 + $0x28] sm:$0xff]
      %v5517 = vld [vmem:[%s5510 + $0x30] sm:$0xff]
      %v5518 = vld [vmem:[%s5510 + $0x38] sm:$0xff]
      %v5519 = vld [vmem:[%s5510 + $0x40] sm:$0xff]
      %v5520 = vld [vmem:[%s5510 + $0x48] sm:$0xff]
      %v5521 = vld [vmem:[%s5510 + $0x50] sm:$0xff]
      %v5522 = vld [vmem:[%s5510 + $0x58] sm:$0xff]
      %v5523 = vld [vmem:[%s5510 + $0x60] sm:$0xff]
      %v5524 = vld [vmem:[%s5510 + $0x68] sm:$0xff]
      %v5525 = vld [vmem:[%s5510 + $0x70] sm:$0xff]
      %v5526 = vld [vmem:[%s5510 + $0x78] sm:$0xff]
      %v5527 = vld [vmem:[%s5510 + $0x80] sm:$0xff]
      %v5528 = vld [vmem:[%s5510 + $0x88] sm:$0xff]
      %v5529 = vld [vmem:[%s5510 + $0x90] sm:$0xff]
      %v5530 = vld [vmem:[%s5510 + $0x98] sm:$0xff]
      %v5531 = vld [vmem:[%s5510 + $0xa0] sm:$0xff]
      %v5532 = vld [vmem:[%s5510 + $0xa8] sm:$0xff]
      %v5533 = vld [vmem:[%s5510 + $0xb0] sm:$0xff]
      %v5534 = vld [vmem:[%s5510 + $0xb8] sm:$0xff]
      %v5535 = vld [vmem:[%s5510 + $0xc0] sm:$0xff]
      %v5536 = vld [vmem:[%s5510 + $0xc8] sm:$0xff]
      %v5537 = vld [vmem:[%s5510 + $0xd0] sm:$0xff]
      %v5538 = vld [vmem:[%s5510 + $0xd8] sm:$0xff]
      %v5539 = vld [vmem:[%s5510 + $0xe0] sm:$0xff]
      %v5540 = vld [vmem:[%s5510 + $0xe8] sm:$0xff]
      %v5541 = vld [vmem:[%s5510 + $0xf0] sm:$0xff]
      %v5542 = vld [vmem:[%s5510 + $0xf8] sm:$0xff]
      %v5543 = vld [vmem:[%s5510 + $0x100] sm:$0xff]
      %v5544 = vld [vmem:[%s5510 + $0x108] sm:$0xff]
      %v5545 = vld [vmem:[%s5510 + $0x110] sm:$0xff]
      %v5546 = vld [vmem:[%s5510 + $0x118] sm:$0xff]
      %v5547 = vld [vmem:[%s5510 + $0x120] sm:$0xff]
      %v5548 = vld [vmem:[%s5510 + $0x128] sm:$0xff]
      %v5549 = vld [vmem:[%s5510 + $0x130] sm:$0xff]
      %v5550 = vld [vmem:[%s5510 + $0x138] sm:$0xff]
      %v5551 = vld [vmem:[%s5510 + $0x140] sm:$0xff]
      %v5552 = vld [vmem:[%s5510 + $0x148] sm:$0xff]
      %v5553 = vld [vmem:[%s5510 + $0x150] sm:$0xff]
      %v5554 = vld [vmem:[%s5510 + $0x158] sm:$0xff]
      %v5555 = vld [vmem:[%s5510 + $0x160] sm:$0xff]
      %v5556 = vld [vmem:[%s5510 + $0x168] sm:$0xff]
      %v5557 = vld [vmem:[%s5510 + $0x170] sm:$0xff]
      %v5558 = vld [vmem:[%s5510 + $0x178] sm:$0xff]
      %v5559 = vld [vmem:[%s5510 + $0x180] sm:$0xff]
      %v5560 = vld [vmem:[%s5510 + $0x188] sm:$0xff]
      %v5561 = vld [vmem:[%s5510 + $0x190] sm:$0xff]
      %v5562 = vld [vmem:[%s5510 + $0x198] sm:$0xff]
      %v5563 = vld [vmem:[%s5510 + $0x1a0] sm:$0xff]
      %v5564 = vld [vmem:[%s5510 + $0x1a8] sm:$0xff]
      %v5565 = vld [vmem:[%s5510 + $0x1b0] sm:$0xff]
      %v5566 = vld [vmem:[%s5510 + $0x1b8] sm:$0xff]
      %v5567 = vld [vmem:[%s5510 + $0x1c0] sm:$0xff]
      %v5568 = vld [vmem:[%s5510 + $0x1c8] sm:$0xff]
      %v5569 = vld [vmem:[%s5510 + $0x1d0] sm:$0xff]
      %v5570 = vld [vmem:[%s5510 + $0x1d8] sm:$0xff]
      %v5571 = vld [vmem:[%s5510 + $0x1e0] sm:$0xff]
      %v5572 = vld [vmem:[%s5510 + $0x1e8] sm:$0xff]
      %v5573 = vld [vmem:[%s5510 + $0x1f0] sm:$0xff]
      %v5574 = vld [vmem:[%s5510 + $0x1f8] sm:$0xff]
      %v5575 = vld [vmem:[%s5510 + $0x200] sm:$0xff]
      %v5576 = vld [vmem:[%s5510 + $0x208] sm:$0xff]
      %v5577 = vld [vmem:[%s5510 + $0x210] sm:$0xff]
      %v5578 = vld [vmem:[%s5510 + $0x218] sm:$0xff]
      %v5579 = vld [vmem:[%s5510 + $0x220] sm:$0xff]
      %v5580 = vld [vmem:[%s5510 + $0x228] sm:$0xff]
      %v5581 = vld [vmem:[%s5510 + $0x230] sm:$0xff]
      %v5582 = vld [vmem:[%s5510 + $0x238] sm:$0xff]
      %v5583 = vld [vmem:[%s5510 + $0x240] sm:$0xff]
      %v5584 = vld [vmem:[%s5510 + $0x248] sm:$0xff]
      %v5585 = vld [vmem:[%s5510 + $0x250] sm:$0xff]
      %v5586 = vld [vmem:[%s5510 + $0x258] sm:$0xff]
      %v5587 = vld [vmem:[%s5510 + $0x260] sm:$0xff]
      %v5588 = vld [vmem:[%s5510 + $0x268] sm:$0xff]
      %v5589 = vld [vmem:[%s5510 + $0x270] sm:$0xff]
      %v5590 = vld [vmem:[%s5510 + $0x278] sm:$0xff]
      %v5591 = vld [vmem:[%s5510 + $0x280] sm:$0xff]
      %v5592 = vld [vmem:[%s5510 + $0x288] sm:$0xff]
      %v5593 = vld [vmem:[%s5510 + $0x290] sm:$0xff]
      %v5594 = vld [vmem:[%s5510 + $0x298] sm:$0xff]
      %v5595 = vld [vmem:[%s5510 + $0x2a0] sm:$0xff]
      %v5596 = vld [vmem:[%s5510 + $0x2a8] sm:$0xff]
      %v5597 = vld [vmem:[%s5510 + $0x2b0] sm:$0xff]
      %v5598 = vld [vmem:[%s5510 + $0x2b8] sm:$0xff]
      %v5599 = vld [vmem:[%s5510 + $0x2c0] sm:$0xff]
      %v5600 = vld [vmem:[%s5510 + $0x2c8] sm:$0xff]
      %v5601 = vld [vmem:[%s5510 + $0x2d0] sm:$0xff]
      %v5602 = vld [vmem:[%s5510 + $0x2d8] sm:$0xff]
      %v5603 = vld [vmem:[%s5510 + $0x2e0] sm:$0xff]
      %v5604 = vld [vmem:[%s5510 + $0x2e8] sm:$0xff]
      %v5605 = vld [vmem:[%s5510 + $0x2f0] sm:$0xff]
      %v5606 = vld [vmem:[%s5510 + $0x2f8] sm:$0xff]
      %v5607 = vld [vmem:[%s5510 + $0x300] sm:$0xff]
      %v5608 = vld [vmem:[%s5510 + $0x308] sm:$0xff]
      %v5609 = vld [vmem:[%s5510 + $0x310] sm:$0xff]
      %v5610 = vld [vmem:[%s5510 + $0x318] sm:$0xff]
      %v5611 = vld [vmem:[%s5510 + $0x320] sm:$0xff]
      %v5612 = vld [vmem:[%s5510 + $0x328] sm:$0xff]
      %v5613 = vld [vmem:[%s5510 + $0x330] sm:$0xff]
      %v5614 = vld [vmem:[%s5510 + $0x338] sm:$0xff]
      %v5615 = vld [vmem:[%s5510 + $0x340] sm:$0xff]
      %v5616 = vld [vmem:[%s5510 + $0x348] sm:$0xff]
      %v5617 = vld [vmem:[%s5510 + $0x350] sm:$0xff]
      %v5618 = vld [vmem:[%s5510 + $0x358] sm:$0xff]
      %v5619 = vld [vmem:[%s5510 + $0x360] sm:$0xff]
      %v5620 = vld [vmem:[%s5510 + $0x368] sm:$0xff]
      %v5621 = vld [vmem:[%s5510 + $0x370] sm:$0xff]
      %v5622 = vld [vmem:[%s5510 + $0x378] sm:$0xff]
      %5623 = vmatprep.subr.mxu0 %v5512
      %5624 = vmatpush1.msra.mxu0 %v5511
      %5625 = vmatprep.subr.mxu0 %v5514
      %5626 = vmatpush1.msra.mxu0 %v5513
      %5627 = vmatprep.subr.mxu0 %v5516
      %5628 = vmatpush1.msra.mxu0 %v5515
      %5629 = vmatprep.subr.mxu0 %v5518
      %5630 = vmatpush1.msra.mxu0 %v5517
      %5631 = vmatprep.subr.mxu0 %v5520
      %5632 = vmatpush1.msra.mxu0 %v5519
      %5633 = vmatprep.subr.mxu0 %v5522
      %5634 = vmatpush1.msra.mxu0 %v5521
      %5635 = vmatprep.subr.mxu0 %v5524
      %5636 = vmatpush1.msra.mxu0 %v5523
      %5637 = vmatprep.subr.mxu0 %v5526
      %5638 = vmatpush1.msra.mxu0 %v5525
      %5639 = vmatprep.subr.mxu0 %v5528
      %5640 = vmatpush1.msra.mxu0 %v5527
      %5641 = vmatprep.subr.mxu0 %v5530
      %5642 = vmatpush1.msra.mxu0 %v5529
      %5643 = vmatprep.subr.mxu0 %v5532
      %5644 = vmatpush1.msra.mxu0 %v5531
      %5645 = vmatprep.subr.mxu0 %v5534
      %5646 = vmatpush1.msra.mxu0 %v5533
      %5647 = vmatprep.subr.mxu0 %v5536
      %5648 = vmatpush1.msra.mxu0 %v5535
      %5649 = vmatprep.subr.mxu0 %v5538
      %5650 = vmatpush1.msra.mxu0 %v5537
      %5651 = vmatprep.subr.mxu0 %v5540
      %5652 = vmatpush1.msra.mxu0 %v5539
      %5653 = vmatprep.subr.mxu0 %v5542
      %5654 = vmatpush1.msra.mxu0 %v5541
      %5655 = vmatprep.subr.mxu0 %v5544
      %5656 = vmatpush1.msra.mxu0 %v5543
      %5657 = vmatprep.subr.mxu0 %v5546
      %5658 = vmatpush1.msra.mxu0 %v5545
      %5659 = vmatprep.subr.mxu0 %v5548
      %5660 = vmatpush1.msra.mxu0 %v5547
      %5661 = vmatprep.subr.mxu0 %v5550
      %5662 = vmatpush1.msra.mxu0 %v5549
      %5663 = vmatprep.subr.mxu0 %v5552
      %5664 = vmatpush1.msra.mxu0 %v5551
      %5665 = vmatprep.subr.mxu0 %v5554
      %5666 = vmatpush1.msra.mxu0 %v5553
      %5667 = vmatprep.subr.mxu0 %v5556
      %5668 = vmatpush1.msra.mxu0 %v5555
      %5669 = vmatprep.subr.mxu0 %v5558
      %5670 = vmatpush1.msra.mxu0 %v5557
      %5671 = vmatprep.subr.mxu0 %v5560
      %5672 = vmatpush1.msra.mxu0 %v5559
      %5673 = vmatprep.subr.mxu0 %v5562
      %5674 = vmatpush1.msra.mxu0 %v5561
      %5675 = vmatprep.subr.mxu0 %v5564
      %5676 = vmatpush1.msra.mxu0 %v5563
      %5677 = vmatprep.subr.mxu0 %v5566
      %5678 = vmatpush1.msra.mxu0 %v5565
      %5679 = vmatprep.subr.mxu0 %v5568
      %5680 = vmatpush1.msra.mxu0 %v5567
      %5681 = vmatprep.subr.mxu0 %v5570
      %5682 = vmatpush1.msra.mxu0 %v5569
      %5683 = vmatprep.subr.mxu0 %v5572
      %5684 = vmatpush1.msra.mxu0 %v5571
      %5685 = vmatprep.subr.mxu0 %v5574
      %5686 = vmatpush1.msra.mxu0 %v5573
      %5687 = vmatprep.mubr.f32.mxu0 %v4224
      %5688 = vmatmul.mubr.f32.gmra.mrb[0].mxu0 %v4223
      %v5689 = vpop.f32.mrb[0].mxu0
      %v5690 = vadd.f32 0.0, %v5689
      %v5691 = vpop.f32.mrb[0].mxu0
      %v5692 = vadd.f32 0.0, %v5691
      %5693 = vmatprep.mubr.f32.mxu0 %v4228
      %5694 = vmatmul.mubr.f32.gmra.mrb[0].mxu0 %v4227
      %v5695 = vpop.f32.mrb[0].mxu0
      %v5696 = vadd.f32 0.0, %v5695
      %v5697 = vpop.f32.mrb[0].mxu0
      %v5698 = vadd.f32 0.0, %v5697
      %5699 = vdwg.mxu0
      %5700 = vmatprep.subr.mxu0 %v5576
      %5701 = vmatpush1.msra.mxu0 %v5575
      %5702 = vmatprep.subr.mxu0 %v5578
      %5703 = vmatpush1.msra.mxu0 %v5577
      %5704 = vmatprep.subr.mxu0 %v5580
      %5705 = vmatpush1.msra.mxu0 %v5579
      %5706 = vmatprep.subr.mxu0 %v5582
      %5707 = vmatpush1.msra.mxu0 %v5581
      %5708 = vmatprep.subr.mxu0 %v5584
      %5709 = vmatpush1.msra.mxu0 %v5583
      %5710 = vmatprep.subr.mxu0 %v5586
      %5711 = vmatpush1.msra.mxu0 %v5585
      %5712 = vmatprep.subr.mxu0 %v5588
      %5713 = vmatpush1.msra.mxu0 %v5587
      %5714 = vmatprep.subr.mxu0 %v5590
      %5715 = vmatpush1.msra.mxu0 %v5589
      %5716 = vmatprep.subr.mxu0 %v5592
      %5717 = vmatpush1.msra.mxu0 %v5591
      %5718 = vmatprep.subr.mxu0 %v5594
      %5719 = vmatpush1.msra.mxu0 %v5593
      %5720 = vmatprep.subr.mxu0 %v5596
      %5721 = vmatpush1.msra.mxu0 %v5595
      %5722 = vmatprep.subr.mxu0 %v5598
      %5723 = vmatpush1.msra.mxu0 %v5597
      %5724 = vmatprep.subr.mxu0 %v5600
      %5725 = vmatpush1.msra.mxu0 %v5599
      %5726 = vmatprep.subr.mxu0 %v5602
      %5727 = vmatpush1.msra.mxu0 %v5601
      %5728 = vmatprep.subr.mxu0 %v5604
      %5729 = vmatpush1.msra.mxu0 %v5603
      %5730 = vmatprep.subr.mxu0 %v5606
      %5731 = vmatpush1.msra.mxu0 %v5605
      %5732 = vmatprep.subr.mxu0 %v5608
      %5733 = vmatpush1.msra.mxu0 %v5607
      %5734 = vmatprep.subr.mxu0 %v5610
      %5735 = vmatpush1.msra.mxu0 %v5609
      %5736 = vmatprep.subr.mxu0 %v5612
      %5737 = vmatpush1.msra.mxu0 %v5611
      %5738 = vmatprep.subr.mxu0 %v5614
      %5739 = vmatpush1.msra.mxu0 %v5613
      %5740 = vmatprep.subr.mxu0 %v5616
      %5741 = vmatpush1.msra.mxu0 %v5615
      %5742 = vmatprep.subr.mxu0 %v5618
      %5743 = vmatpush1.msra.mxu0 %v5617
      %5744 = vmatprep.subr.mxu0 %v5620
      %5745 = vmatpush1.msra.mxu0 %v5619
      %5746 = vmatprep.subr.mxu0 %v5622
      %5747 = vmatpush1.msra.mxu0 %v5621
      %5748 = vmatprep.subr.mxu0 0.0
      %5749 = vmatpush1.msra.mxu0 0.0
      %5750 = vmatprep.subr.mxu0 0.0
      %5751 = vmatpush1.msra.mxu0 0.0
      %5752 = vmatprep.subr.mxu0 0.0
      %5753 = vmatpush1.msra.mxu0 0.0
      %5754 = vmatprep.subr.mxu0 0.0
      %5755 = vmatpush1.msra.mxu0 0.0
      %5756 = vmatprep.subr.mxu0 0.0
      %5757 = vmatpush1.msra.mxu0 0.0
      %5758 = vmatprep.subr.mxu0 0.0
      %5759 = vmatpush1.msra.mxu0 0.0
      %5760 = vmatprep.subr.mxu0 0.0
      %5761 = vmatpush1.msra.mxu0 0.0
      %5762 = vmatprep.subr.mxu0 0.0
      %5763 = vmatpush1.msra.mxu0 0.0
      %5764 = vmatprep.mubr.f32.mxu0 %v4345
      %5765 = vmatmul.mubr.f32.gmra.mrb[0].mxu0 %v4225
      %v5766 = vpop.f32.mrb[0].mxu0
      %v5767 = vadd.f32 %v5690, %v5766
      %v5768 = vpop.f32.mrb[0].mxu0
      %v5769 = vadd.f32 %v5692, %v5768
      %5770 = vmatprep.mubr.f32.mxu0 %v4348
      %5771 = vmatmul.mubr.f32.gmra.mrb[0].mxu0 %v4229
      %v5772 = vpop.f32.mrb[0].mxu0
      %v5773 = vadd.f32 %v5696, %v5772
      %v5774 = vpop.f32.mrb[0].mxu0
      %v5775 = vadd.f32 %v5698, %v5774
      %5776 = vdwg.mxu0
      %s5777 = scalar_lea.vmem %s8, 192
      %v5778 = vld [vmem:[%s5777] sm:$0xff]
      %v5779 = vld [vmem:[%s5777 + $0x8] sm:$0xff]
      %v5780 = vld [vmem:[%s5777 + $0x10] sm:$0xff]
      %v5781 = vld [vmem:[%s5777 + $0x18] sm:$0xff]
      %v5782 = vld [vmem:[%s5777 + $0x20] sm:$0xff]
      %v5783 = vld [vmem:[%s5777 + $0x28] sm:$0xff]
      %v5784 = vld [vmem:[%s5777 + $0x30] sm:$0xff]
      %v5785 = vld [vmem:[%s5777 + $0x38] sm:$0x3]
      %v5787 = vsel %vm4788, %v5778, 0
      %v5790 = vsel %vm4788, %v5779, 0
      %v5793 = vsel %vm4788, %v5780, 0
      %v5796 = vsel %vm4788, %v5781, 0
      %v5799 = vsel %vm4788, %v5782, 0
      %v5802 = vsel %vm4788, %v5783, 0
      %v5805 = vsel %vm4788, %v5784, 0
      %v5808 = vsel %vm4788, %v5785, 0
      %v5811 = vsel %vm2534, %v5773, 0
      %v5814 = vsel %vm2534, %v5775, 0
      %5816 = vmatprep.subr.mxu0 %v5769
      %5817 = vmatpush1.msra.mxu0 %v5767
      %5818 = vmatprep.subr.mxu0 %v5814
      %5819 = vmatpush1.msra.mxu0 %v5811
      %5820 = vmatprep.subr.mxu0 0.0
      %5821 = vmatpush1.msra.mxu0 0.0
      %5822 = vmatprep.subr.mxu0 0.0
      %5823 = vmatpush1.msra.mxu0 0.0
      %5824 = vmatprep.subr.mxu0 0.0
      %5825 = vmatpush1.msra.mxu0 0.0
      %5826 = vmatprep.subr.mxu0 0.0
      %5827 = vmatpush1.msra.mxu0 0.0
      %5828 = vmatprep.subr.mxu0 0.0
      %5829 = vmatpush1.msra.mxu0 0.0
      %5830 = vmatprep.subr.mxu0 0.0
      %5831 = vmatpush1.msra.mxu0 0.0
      %5832 = vmatprep.subr.mxu0 0.0
      %5833 = vmatpush1.msra.mxu0 0.0
      %5834 = vmatprep.subr.mxu0 0.0
      %5835 = vmatpush1.msra.mxu0 0.0
      %5836 = vmatprep.subr.mxu0 0.0
      %5837 = vmatpush1.msra.mxu0 0.0
      %5838 = vmatprep.subr.mxu0 0.0
      %5839 = vmatpush1.msra.mxu0 0.0
      %5840 = vmatprep.subr.mxu0 0.0
      %5841 = vmatpush1.msra.mxu0 0.0
      %5842 = vmatprep.subr.mxu0 0.0
      %5843 = vmatpush1.msra.mxu0 0.0
      %5844 = vmatprep.subr.mxu0 0.0
      %5845 = vmatpush1.msra.mxu0 0.0
      %5846 = vmatprep.subr.mxu0 0.0
      %5847 = vmatpush1.msra.mxu0 0.0
      %5848 = vmatprep.subr.mxu0 0.0
      %5849 = vmatpush1.msra.mxu0 0.0
      %5850 = vmatprep.subr.mxu0 0.0
      %5851 = vmatpush1.msra.mxu0 0.0
      %5852 = vmatprep.subr.mxu0 0.0
      %5853 = vmatpush1.msra.mxu0 0.0
      %5854 = vmatprep.subr.mxu0 0.0
      %5855 = vmatpush1.msra.mxu0 0.0
      %5856 = vmatprep.subr.mxu0 0.0
      %5857 = vmatpush1.msra.mxu0 0.0
      %5858 = vmatprep.subr.mxu0 0.0
      %5859 = vmatpush1.msra.mxu0 0.0
      %5860 = vmatprep.subr.mxu0 0.0
      %5861 = vmatpush1.msra.mxu0 0.0
      %5862 = vmatprep.subr.mxu0 0.0
      %5863 = vmatpush1.msra.mxu0 0.0
      %5864 = vmatprep.subr.mxu0 0.0
      %5865 = vmatpush1.msra.mxu0 0.0
      %5866 = vmatprep.subr.mxu0 0.0
      %5867 = vmatpush1.msra.mxu0 0.0
      %5868 = vmatprep.subr.mxu0 0.0
      %5869 = vmatpush1.msra.mxu0 0.0
      %5870 = vmatprep.subr.mxu0 0.0
      %5871 = vmatpush1.msra.mxu0 0.0
      %5872 = vmatprep.subr.mxu0 0.0
      %5873 = vmatpush1.msra.mxu0 0.0
      %5874 = vmatprep.subr.mxu0 0.0
      %5875 = vmatpush1.msra.mxu0 0.0
      %5876 = vmatprep.subr.mxu0 0.0
      %5877 = vmatpush1.msra.mxu0 0.0
      %5878 = vmatprep.subr.mxu0 0.0
      %5879 = vmatpush1.msra.mxu0 0.0
      %5880 = vmatprep.mubr.f32.mxu0 0.0
      %5881 = vmatmul.mubr.f32.gmra.mrb[0].mxu0 %v5787
      %v5882 = vpop.f32.mrb[0].mxu0
      %v5883 = vadd.f32 0.0, %v5882
      %v5884 = vpop.f32.mrb[0].mxu0
      %v5885 = vadd.f32 0.0, %v5884
      %5886 = vmatprep.mubr.f32.mxu0 0.0
      %5887 = vmatmul.mubr.f32.gmra.mrb[0].mxu0 %v5790
      %v5888 = vpop.f32.mrb[0].mxu0
      %v5889 = vadd.f32 0.0, %v5888
      %v5890 = vpop.f32.mrb[0].mxu0
      %v5891 = vadd.f32 0.0, %v5890
      %5892 = vmatprep.mubr.f32.mxu0 0.0
      %5893 = vmatmul.mubr.f32.gmra.mrb[0].mxu0 %v5793
      %v5894 = vpop.f32.mrb[0].mxu0
      %v5895 = vadd.f32 0.0, %v5894
      %v5896 = vpop.f32.mrb[0].mxu0
      %v5897 = vadd.f32 0.0, %v5896
      %5898 = vmatprep.mubr.f32.mxu0 0.0
      %5899 = vmatmul.mubr.f32.gmra.mrb[0].mxu0 %v5796
      %v5900 = vpop.f32.mrb[0].mxu0
      %v5901 = vadd.f32 0.0, %v5900
      %v5902 = vpop.f32.mrb[0].mxu0
      %v5903 = vadd.f32 0.0, %v5902
      %5904 = vmatprep.mubr.f32.mxu0 0.0
      %5905 = vmatmul.mubr.f32.gmra.mrb[0].mxu0 %v5799
      %v5906 = vpop.f32.mrb[0].mxu0
      %v5907 = vadd.f32 0.0, %v5906
      %v5908 = vpop.f32.mrb[0].mxu0
      %v5909 = vadd.f32 0.0, %v5908
      %5910 = vmatprep.mubr.f32.mxu0 0.0
      %5911 = vmatmul.mubr.f32.gmra.mrb[0].mxu0 %v5802
      %v5912 = vpop.f32.mrb[0].mxu0
      %v5913 = vadd.f32 0.0, %v5912
      %v5914 = vpop.f32.mrb[0].mxu0
      %v5915 = vadd.f32 0.0, %v5914
      %5916 = vmatprep.mubr.f32.mxu0 0.0
      %5917 = vmatmul.mubr.f32.gmra.mrb[0].mxu0 %v5805
      %v5918 = vpop.f32.mrb[0].mxu0
      %v5919 = vadd.f32 0.0, %v5918
      %v5920 = vpop.f32.mrb[0].mxu0
      %v5921 = vadd.f32 0.0, %v5920
      %5922 = vmatprep.mubr.f32.mxu0 0.0
      %5923 = vmatmul.mubr.f32.gmra.mrb[0].mxu0 %v5808
      %v5924 = vpop.f32.mrb[0].mxu0
      %v5925 = vadd.f32 0.0, %v5924
      %v5926 = vpop.f32.mrb[0].mxu0
      %v5927 = vadd.f32 0.0, %v5926
      %5928 = vdwg.mxu0
      %v5929 = vadd.f32 %v5494, %v5883
      %v5930 = vadd.f32 %v5495, %v5885
      %v5931 = vadd.f32 %v5496, %v5889
      %v5932 = vadd.f32 %v5497, %v5891
      %v5933 = vadd.f32 %v5498, %v5895
      %v5934 = vadd.f32 %v5499, %v5897
      %v5935 = vadd.f32 %v5500, %v5901
      %v5936 = vadd.f32 %v5501, %v5903
      %v5937 = vadd.f32 %v5502, %v5907
      %v5938 = vadd.f32 %v5503, %v5909
      %v5939 = vadd.f32 %v5504, %v5913
      %v5940 = vadd.f32 %v5505, %v5915
      %v5941 = vadd.f32 %v5506, %v5919
      %v5942 = vadd.f32 %v5507, %v5921
      %v5943 = vadd.f32 %v5508, %v5925
      %v5944 = vadd.f32 %v5509, %v5927
      %s5945 = scalar_lea.vmem %s7, 3584
      %v5946 = vld [vmem:[%s5945] sm:$0xff]
      %v5947 = vld [vmem:[%s5945 + $0x8] sm:$0xff]
      %v5948 = vld [vmem:[%s5945 + $0x10] sm:$0xff]
      %v5949 = vld [vmem:[%s5945 + $0x18] sm:$0xff]
      %v5950 = vld [vmem:[%s5945 + $0x20] sm:$0xff]
      %v5951 = vld [vmem:[%s5945 + $0x28] sm:$0xff]
      %v5952 = vld [vmem:[%s5945 + $0x30] sm:$0xff]
      %v5953 = vld [vmem:[%s5945 + $0x38] sm:$0xff]
      %v5954 = vld [vmem:[%s5945 + $0x40] sm:$0xff]
      %v5955 = vld [vmem:[%s5945 + $0x48] sm:$0xff]
      %v5956 = vld [vmem:[%s5945 + $0x50] sm:$0xff]
      %v5957 = vld [vmem:[%s5945 + $0x58] sm:$0xff]
      %v5958 = vld [vmem:[%s5945 + $0x60] sm:$0xff]
      %v5959 = vld [vmem:[%s5945 + $0x68] sm:$0xff]
      %v5960 = vld [vmem:[%s5945 + $0x70] sm:$0xff]
      %v5961 = vld [vmem:[%s5945 + $0x78] sm:$0xff]
      %v5962 = vld [vmem:[%s5945 + $0x80] sm:$0xff]
      %v5963 = vld [vmem:[%s5945 + $0x88] sm:$0xff]
      %v5964 = vld [vmem:[%s5945 + $0x90] sm:$0xff]
      %v5965 = vld [vmem:[%s5945 + $0x98] sm:$0xff]
      %v5966 = vld [vmem:[%s5945 + $0xa0] sm:$0xff]
      %v5967 = vld [vmem:[%s5945 + $0xa8] sm:$0xff]
      %v5968 = vld [vmem:[%s5945 + $0xb0] sm:$0xff]
      %v5969 = vld [vmem:[%s5945 + $0xb8] sm:$0xff]
      %v5970 = vld [vmem:[%s5945 + $0xc0] sm:$0xff]
      %v5971 = vld [vmem:[%s5945 + $0xc8] sm:$0xff]
      %v5972 = vld [vmem:[%s5945 + $0xd0] sm:$0xff]
      %v5973 = vld [vmem:[%s5945 + $0xd8] sm:$0xff]
      %v5974 = vld [vmem:[%s5945 + $0xe0] sm:$0xff]
      %v5975 = vld [vmem:[%s5945 + $0xe8] sm:$0xff]
      %v5976 = vld [vmem:[%s5945 + $0xf0] sm:$0xff]
      %v5977 = vld [vmem:[%s5945 + $0xf8] sm:$0xff]
      %v5978 = vld [vmem:[%s5945 + $0x100] sm:$0xff]
      %v5979 = vld [vmem:[%s5945 + $0x108] sm:$0xff]
      %v5980 = vld [vmem:[%s5945 + $0x110] sm:$0xff]
      %v5981 = vld [vmem:[%s5945 + $0x118] sm:$0xff]
      %v5982 = vld [vmem:[%s5945 + $0x120] sm:$0xff]
      %v5983 = vld [vmem:[%s5945 + $0x128] sm:$0xff]
      %v5984 = vld [vmem:[%s5945 + $0x130] sm:$0xff]
      %v5985 = vld [vmem:[%s5945 + $0x138] sm:$0xff]
      %v5986 = vld [vmem:[%s5945 + $0x140] sm:$0xff]
      %v5987 = vld [vmem:[%s5945 + $0x148] sm:$0xff]
      %v5988 = vld [vmem:[%s5945 + $0x150] sm:$0xff]
      %v5989 = vld [vmem:[%s5945 + $0x158] sm:$0xff]
      %v5990 = vld [vmem:[%s5945 + $0x160] sm:$0xff]
      %v5991 = vld [vmem:[%s5945 + $0x168] sm:$0xff]
      %v5992 = vld [vmem:[%s5945 + $0x170] sm:$0xff]
      %v5993 = vld [vmem:[%s5945 + $0x178] sm:$0xff]
      %v5994 = vld [vmem:[%s5945 + $0x180] sm:$0xff]
      %v5995 = vld [vmem:[%s5945 + $0x188] sm:$0xff]
      %v5996 = vld [vmem:[%s5945 + $0x190] sm:$0xff]
      %v5997 = vld [vmem:[%s5945 + $0x198] sm:$0xff]
      %v5998 = vld [vmem:[%s5945 + $0x1a0] sm:$0xff]
      %v5999 = vld [vmem:[%s5945 + $0x1a8] sm:$0xff]
      %v6000 = vld [vmem:[%s5945 + $0x1b0] sm:$0xff]
      %v6001 = vld [vmem:[%s5945 + $0x1b8] sm:$0xff]
      %v6002 = vld [vmem:[%s5945 + $0x1c0] sm:$0xff]
      %v6003 = vld [vmem:[%s5945 + $0x1c8] sm:$0xff]
      %v6004 = vld [vmem:[%s5945 + $0x1d0] sm:$0xff]
      %v6005 = vld [vmem:[%s5945 + $0x1d8] sm:$0xff]
      %v6006 = vld [vmem:[%s5945 + $0x1e0] sm:$0xff]
      %v6007 = vld [vmem:[%s5945 + $0x1e8] sm:$0xff]
      %v6008 = vld [vmem:[%s5945 + $0x1f0] sm:$0xff]
      %v6009 = vld [vmem:[%s5945 + $0x1f8] sm:$0xff]
      %v6010 = vld [vmem:[%s5945 + $0x200] sm:$0xff]
      %v6011 = vld [vmem:[%s5945 + $0x208] sm:$0xff]
      %v6012 = vld [vmem:[%s5945 + $0x210] sm:$0xff]
      %v6013 = vld [vmem:[%s5945 + $0x218] sm:$0xff]
      %v6014 = vld [vmem:[%s5945 + $0x220] sm:$0xff]
      %v6015 = vld [vmem:[%s5945 + $0x228] sm:$0xff]
      %v6016 = vld [vmem:[%s5945 + $0x230] sm:$0xff]
      %v6017 = vld [vmem:[%s5945 + $0x238] sm:$0xff]
      %v6018 = vld [vmem:[%s5945 + $0x240] sm:$0xff]
      %v6019 = vld [vmem:[%s5945 + $0x248] sm:$0xff]
      %v6020 = vld [vmem:[%s5945 + $0x250] sm:$0xff]
      %v6021 = vld [vmem:[%s5945 + $0x258] sm:$0xff]
      %v6022 = vld [vmem:[%s5945 + $0x260] sm:$0xff]
      %v6023 = vld [vmem:[%s5945 + $0x268] sm:$0xff]
      %v6024 = vld [vmem:[%s5945 + $0x270] sm:$0xff]
      %v6025 = vld [vmem:[%s5945 + $0x278] sm:$0xff]
      %v6026 = vld [vmem:[%s5945 + $0x280] sm:$0xff]
      %v6027 = vld [vmem:[%s5945 + $0x288] sm:$0xff]
      %v6028 = vld [vmem:[%s5945 + $0x290] sm:$0xff]
      %v6029 = vld [vmem:[%s5945 + $0x298] sm:$0xff]
      %v6030 = vld [vmem:[%s5945 + $0x2a0] sm:$0xff]
      %v6031 = vld [vmem:[%s5945 + $0x2a8] sm:$0xff]
      %v6032 = vld [vmem:[%s5945 + $0x2b0] sm:$0xff]
      %v6033 = vld [vmem:[%s5945 + $0x2b8] sm:$0xff]
      %v6034 = vld [vmem:[%s5945 + $0x2c0] sm:$0xff]
      %v6035 = vld [vmem:[%s5945 + $0x2c8] sm:$0xff]
      %v6036 = vld [vmem:[%s5945 + $0x2d0] sm:$0xff]
      %v6037 = vld [vmem:[%s5945 + $0x2d8] sm:$0xff]
      %v6038 = vld [vmem:[%s5945 + $0x2e0] sm:$0xff]
      %v6039 = vld [vmem:[%s5945 + $0x2e8] sm:$0xff]
      %v6040 = vld [vmem:[%s5945 + $0x2f0] sm:$0xff]
      %v6041 = vld [vmem:[%s5945 + $0x2f8] sm:$0xff]
      %v6042 = vld [vmem:[%s5945 + $0x300] sm:$0xff]
      %v6043 = vld [vmem:[%s5945 + $0x308] sm:$0xff]
      %v6044 = vld [vmem:[%s5945 + $0x310] sm:$0xff]
      %v6045 = vld [vmem:[%s5945 + $0x318] sm:$0xff]
      %v6046 = vld [vmem:[%s5945 + $0x320] sm:$0xff]
      %v6047 = vld [vmem:[%s5945 + $0x328] sm:$0xff]
      %v6048 = vld [vmem:[%s5945 + $0x330] sm:$0xff]
      %v6049 = vld [vmem:[%s5945 + $0x338] sm:$0xff]
      %v6050 = vld [vmem:[%s5945 + $0x340] sm:$0xff]
      %v6051 = vld [vmem:[%s5945 + $0x348] sm:$0xff]
      %v6052 = vld [vmem:[%s5945 + $0x350] sm:$0xff]
      %v6053 = vld [vmem:[%s5945 + $0x358] sm:$0xff]
      %v6054 = vld [vmem:[%s5945 + $0x360] sm:$0xff]
      %v6055 = vld [vmem:[%s5945 + $0x368] sm:$0xff]
      %v6056 = vld [vmem:[%s5945 + $0x370] sm:$0xff]
      %v6057 = vld [vmem:[%s5945 + $0x378] sm:$0xff]
      %6058 = vmatprep.subr.mxu0 %v5947
      %6059 = vmatpush1.msra.mxu0 %v5946
      %6060 = vmatprep.subr.mxu0 %v5949
      %6061 = vmatpush1.msra.mxu0 %v5948
      %6062 = vmatprep.subr.mxu0 %v5951
      %6063 = vmatpush1.msra.mxu0 %v5950
      %6064 = vmatprep.subr.mxu0 %v5953
      %6065 = vmatpush1.msra.mxu0 %v5952
      %6066 = vmatprep.subr.mxu0 %v5955
      %6067 = vmatpush1.msra.mxu0 %v5954
      %6068 = vmatprep.subr.mxu0 %v5957
      %6069 = vmatpush1.msra.mxu0 %v5956
      %6070 = vmatprep.subr.mxu0 %v5959
      %6071 = vmatpush1.msra.mxu0 %v5958
      %6072 = vmatprep.subr.mxu0 %v5961
      %6073 = vmatpush1.msra.mxu0 %v5960
      %6074 = vmatprep.subr.mxu0 %v5963
      %6075 = vmatpush1.msra.mxu0 %v5962
      %6076 = vmatprep.subr.mxu0 %v5965
      %6077 = vmatpush1.msra.mxu0 %v5964
      %6078 = vmatprep.subr.mxu0 %v5967
      %6079 = vmatpush1.msra.mxu0 %v5966
      %6080 = vmatprep.subr.mxu0 %v5969
      %6081 = vmatpush1.msra.mxu0 %v5968
      %6082 = vmatprep.subr.mxu0 %v5971
      %6083 = vmatpush1.msra.mxu0 %v5970
      %6084 = vmatprep.subr.mxu0 %v5973
      %6085 = vmatpush1.msra.mxu0 %v5972
      %6086 = vmatprep.subr.mxu0 %v5975
      %6087 = vmatpush1.msra.mxu0 %v5974
      %6088 = vmatprep.subr.mxu0 %v5977
      %6089 = vmatpush1.msra.mxu0 %v5976
      %6090 = vmatprep.subr.mxu0 %v5979
      %6091 = vmatpush1.msra.mxu0 %v5978
      %6092 = vmatprep.subr.mxu0 %v5981
      %6093 = vmatpush1.msra.mxu0 %v5980
      %6094 = vmatprep.subr.mxu0 %v5983
      %6095 = vmatpush1.msra.mxu0 %v5982
      %6096 = vmatprep.subr.mxu0 %v5985
      %6097 = vmatpush1.msra.mxu0 %v5984
      %6098 = vmatprep.subr.mxu0 %v5987
      %6099 = vmatpush1.msra.mxu0 %v5986
      %6100 = vmatprep.subr.mxu0 %v5989
      %6101 = vmatpush1.msra.mxu0 %v5988
      %6102 = vmatprep.subr.mxu0 %v5991
      %6103 = vmatpush1.msra.mxu0 %v5990
      %6104 = vmatprep.subr.mxu0 %v5993
      %6105 = vmatpush1.msra.mxu0 %v5992
      %6106 = vmatprep.subr.mxu0 %v5995
      %6107 = vmatpush1.msra.mxu0 %v5994
      %6108 = vmatprep.subr.mxu0 %v5997
      %6109 = vmatpush1.msra.mxu0 %v5996
      %6110 = vmatprep.subr.mxu0 %v5999
      %6111 = vmatpush1.msra.mxu0 %v5998
      %6112 = vmatprep.subr.mxu0 %v6001
      %6113 = vmatpush1.msra.mxu0 %v6000
      %6114 = vmatprep.subr.mxu0 %v6003
      %6115 = vmatpush1.msra.mxu0 %v6002
      %6116 = vmatprep.subr.mxu0 %v6005
      %6117 = vmatpush1.msra.mxu0 %v6004
      %6118 = vmatprep.subr.mxu0 %v6007
      %6119 = vmatpush1.msra.mxu0 %v6006
      %6120 = vmatprep.subr.mxu0 %v6009
      %6121 = vmatpush1.msra.mxu0 %v6008
      %6122 = vmatprep.mubr.f32.mxu0 %v4224
      %6123 = vmatmul.mubr.f32.gmra.mrb[0].mxu0 %v4223
      %v6124 = vpop.f32.mrb[0].mxu0
      %v6125 = vadd.f32 0.0, %v6124
      %v6126 = vpop.f32.mrb[0].mxu0
      %v6127 = vadd.f32 0.0, %v6126
      %6128 = vmatprep.mubr.f32.mxu0 %v4228
      %6129 = vmatmul.mubr.f32.gmra.mrb[0].mxu0 %v4227
      %v6130 = vpop.f32.mrb[0].mxu0
      %v6131 = vadd.f32 0.0, %v6130
      %v6132 = vpop.f32.mrb[0].mxu0
      %v6133 = vadd.f32 0.0, %v6132
      %6134 = vdwg.mxu0
      %6135 = vmatprep.subr.mxu0 %v6011
      %6136 = vmatpush1.msra.mxu0 %v6010
      %6137 = vmatprep.subr.mxu0 %v6013
      %6138 = vmatpush1.msra.mxu0 %v6012
      %6139 = vmatprep.subr.mxu0 %v6015
      %6140 = vmatpush1.msra.mxu0 %v6014
      %6141 = vmatprep.subr.mxu0 %v6017
      %6142 = vmatpush1.msra.mxu0 %v6016
      %6143 = vmatprep.subr.mxu0 %v6019
      %6144 = vmatpush1.msra.mxu0 %v6018
      %6145 = vmatprep.subr.mxu0 %v6021
      %6146 = vmatpush1.msra.mxu0 %v6020
      %6147 = vmatprep.subr.mxu0 %v6023
      %6148 = vmatpush1.msra.mxu0 %v6022
      %6149 = vmatprep.subr.mxu0 %v6025
      %6150 = vmatpush1.msra.mxu0 %v6024
      %6151 = vmatprep.subr.mxu0 %v6027
      %6152 = vmatpush1.msra.mxu0 %v6026
      %6153 = vmatprep.subr.mxu0 %v6029
      %6154 = vmatpush1.msra.mxu0 %v6028
      %6155 = vmatprep.subr.mxu0 %v6031
      %6156 = vmatpush1.msra.mxu0 %v6030
      %6157 = vmatprep.subr.mxu0 %v6033
      %6158 = vmatpush1.msra.mxu0 %v6032
      %6159 = vmatprep.subr.mxu0 %v6035
      %6160 = vmatpush1.msra.mxu0 %v6034
      %6161 = vmatprep.subr.mxu0 %v6037
      %6162 = vmatpush1.msra.mxu0 %v6036
      %6163 = vmatprep.subr.mxu0 %v6039
      %6164 = vmatpush1.msra.mxu0 %v6038
      %6165 = vmatprep.subr.mxu0 %v6041
      %6166 = vmatpush1.msra.mxu0 %v6040
      %6167 = vmatprep.subr.mxu0 %v6043
      %6168 = vmatpush1.msra.mxu0 %v6042
      %6169 = vmatprep.subr.mxu0 %v6045
      %6170 = vmatpush1.msra.mxu0 %v6044
      %6171 = vmatprep.subr.mxu0 %v6047
      %6172 = vmatpush1.msra.mxu0 %v6046
      %6173 = vmatprep.subr.mxu0 %v6049
      %6174 = vmatpush1.msra.mxu0 %v6048
      %6175 = vmatprep.subr.mxu0 %v6051
      %6176 = vmatpush1.msra.mxu0 %v6050
      %6177 = vmatprep.subr.mxu0 %v6053
      %6178 = vmatpush1.msra.mxu0 %v6052
      %6179 = vmatprep.subr.mxu0 %v6055
      %6180 = vmatpush1.msra.mxu0 %v6054
      %6181 = vmatprep.subr.mxu0 %v6057
      %6182 = vmatpush1.msra.mxu0 %v6056
      %6183 = vmatprep.subr.mxu0 0.0
      %6184 = vmatpush1.msra.mxu0 0.0
      %6185 = vmatprep.subr.mxu0 0.0
      %6186 = vmatpush1.msra.mxu0 0.0
      %6187 = vmatprep.subr.mxu0 0.0
      %6188 = vmatpush1.msra.mxu0 0.0
      %6189 = vmatprep.subr.mxu0 0.0
      %6190 = vmatpush1.msra.mxu0 0.0
      %6191 = vmatprep.subr.mxu0 0.0
      %6192 = vmatpush1.msra.mxu0 0.0
      %6193 = vmatprep.subr.mxu0 0.0
      %6194 = vmatpush1.msra.mxu0 0.0
      %6195 = vmatprep.subr.mxu0 0.0
      %6196 = vmatpush1.msra.mxu0 0.0
      %6197 = vmatprep.subr.mxu0 0.0
      %6198 = vmatpush1.msra.mxu0 0.0
      %6199 = vmatprep.mubr.f32.mxu0 %v4345
      %6200 = vmatmul.mubr.f32.gmra.mrb[0].mxu0 %v4225
      %v6201 = vpop.f32.mrb[0].mxu0
      %v6202 = vadd.f32 %v6125, %v6201
      %v6203 = vpop.f32.mrb[0].mxu0
      %v6204 = vadd.f32 %v6127, %v6203
      %6205 = vmatprep.mubr.f32.mxu0 %v4348
      %6206 = vmatmul.mubr.f32.gmra.mrb[0].mxu0 %v4229
      %v6207 = vpop.f32.mrb[0].mxu0
      %v6208 = vadd.f32 %v6131, %v6207
      %v6209 = vpop.f32.mrb[0].mxu0
      %v6210 = vadd.f32 %v6133, %v6209
      %6211 = vdwg.mxu0
      %s6212 = scalar_lea.vmem %s8, 256
      %v6213 = vld [vmem:[%s6212] sm:$0xff]
      %v6214 = vld [vmem:[%s6212 + $0x8] sm:$0xff]
      %v6215 = vld [vmem:[%s6212 + $0x10] sm:$0xff]
      %v6216 = vld [vmem:[%s6212 + $0x18] sm:$0xff]
      %v6217 = vld [vmem:[%s6212 + $0x20] sm:$0xff]
      %v6218 = vld [vmem:[%s6212 + $0x28] sm:$0xff]
      %v6219 = vld [vmem:[%s6212 + $0x30] sm:$0xff]
      %v6220 = vld [vmem:[%s6212 + $0x38] sm:$0x3]
      %v6222 = vsel %vm4788, %v6213, 0
      %v6225 = vsel %vm4788, %v6214, 0
      %v6228 = vsel %vm4788, %v6215, 0
      %v6231 = vsel %vm4788, %v6216, 0
      %v6234 = vsel %vm4788, %v6217, 0
      %v6237 = vsel %vm4788, %v6218, 0
      %v6240 = vsel %vm4788, %v6219, 0
      %v6243 = vsel %vm4788, %v6220, 0
      %v6246 = vsel %vm2534, %v6208, 0
      %v6249 = vsel %vm2534, %v6210, 0
      %6251 = vmatprep.subr.mxu0 %v6204
      %6252 = vmatpush1.msra.mxu0 %v6202
      %6253 = vmatprep.subr.mxu0 %v6249
      %6254 = vmatpush1.msra.mxu0 %v6246
      %6255 = vmatprep.subr.mxu0 0.0
      %6256 = vmatpush1.msra.mxu0 0.0
      %6257 = vmatprep.subr.mxu0 0.0
      %6258 = vmatpush1.msra.mxu0 0.0
      %6259 = vmatprep.subr.mxu0 0.0
      %6260 = vmatpush1.msra.mxu0 0.0
      %6261 = vmatprep.subr.mxu0 0.0
      %6262 = vmatpush1.msra.mxu0 0.0
      %6263 = vmatprep.subr.mxu0 0.0
      %6264 = vmatpush1.msra.mxu0 0.0
      %6265 = vmatprep.subr.mxu0 0.0
      %6266 = vmatpush1.msra.mxu0 0.0
      %6267 = vmatprep.subr.mxu0 0.0
      %6268 = vmatpush1.msra.mxu0 0.0
      %6269 = vmatprep.subr.mxu0 0.0
      %6270 = vmatpush1.msra.mxu0 0.0
      %6271 = vmatprep.subr.mxu0 0.0
      %6272 = vmatpush1.msra.mxu0 0.0
      %6273 = vmatprep.subr.mxu0 0.0
      %6274 = vmatpush1.msra.mxu0 0.0
      %6275 = vmatprep.subr.mxu0 0.0
      %6276 = vmatpush1.msra.mxu0 0.0
      %6277 = vmatprep.subr.mxu0 0.0
      %6278 = vmatpush1.msra.mxu0 0.0
      %6279 = vmatprep.subr.mxu0 0.0
      %6280 = vmatpush1.msra.mxu0 0.0
      %6281 = vmatprep.subr.mxu0 0.0
      %6282 = vmatpush1.msra.mxu0 0.0
      %6283 = vmatprep.subr.mxu0 0.0
      %6284 = vmatpush1.msra.mxu0 0.0
      %6285 = vmatprep.subr.mxu0 0.0
      %6286 = vmatpush1.msra.mxu0 0.0
      %6287 = vmatprep.subr.mxu0 0.0
      %6288 = vmatpush1.msra.mxu0 0.0
      %6289 = vmatprep.subr.mxu0 0.0
      %6290 = vmatpush1.msra.mxu0 0.0
      %6291 = vmatprep.subr.mxu0 0.0
      %6292 = vmatpush1.msra.mxu0 0.0
      %6293 = vmatprep.subr.mxu0 0.0
      %6294 = vmatpush1.msra.mxu0 0.0
      %6295 = vmatprep.subr.mxu0 0.0
      %6296 = vmatpush1.msra.mxu0 0.0
      %6297 = vmatprep.subr.mxu0 0.0
      %6298 = vmatpush1.msra.mxu0 0.0
      %6299 = vmatprep.subr.mxu0 0.0
      %6300 = vmatpush1.msra.mxu0 0.0
      %6301 = vmatprep.subr.mxu0 0.0
      %6302 = vmatpush1.msra.mxu0 0.0
      %6303 = vmatprep.subr.mxu0 0.0
      %6304 = vmatpush1.msra.mxu0 0.0
      %6305 = vmatprep.subr.mxu0 0.0
      %6306 = vmatpush1.msra.mxu0 0.0
      %6307 = vmatprep.subr.mxu0 0.0
      %6308 = vmatpush1.msra.mxu0 0.0
      %6309 = vmatprep.subr.mxu0 0.0
      %6310 = vmatpush1.msra.mxu0 0.0
      %6311 = vmatprep.subr.mxu0 0.0
      %6312 = vmatpush1.msra.mxu0 0.0
      %6313 = vmatprep.subr.mxu0 0.0
      %6314 = vmatpush1.msra.mxu0 0.0
      %6315 = vmatprep.mubr.f32.mxu0 0.0
      %6316 = vmatmul.mubr.f32.gmra.mrb[0].mxu0 %v6222
      %v6317 = vpop.f32.mrb[0].mxu0
      %v6318 = vadd.f32 0.0, %v6317
      %v6319 = vpop.f32.mrb[0].mxu0
      %v6320 = vadd.f32 0.0, %v6319
      %6321 = vmatprep.mubr.f32.mxu0 0.0
      %6322 = vmatmul.mubr.f32.gmra.mrb[0].mxu0 %v6225
      %v6323 = vpop.f32.mrb[0].mxu0
      %v6324 = vadd.f32 0.0, %v6323
      %v6325 = vpop.f32.mrb[0].mxu0
      %v6326 = vadd.f32 0.0, %v6325
      %6327 = vmatprep.mubr.f32.mxu0 0.0
      %6328 = vmatmul.mubr.f32.gmra.mrb[0].mxu0 %v6228
      %v6329 = vpop.f32.mrb[0].mxu0
      %v6330 = vadd.f32 0.0, %v6329
      %v6331 = vpop.f32.mrb[0].mxu0
      %v6332 = vadd.f32 0.0, %v6331
      %6333 = vmatprep.mubr.f32.mxu0 0.0
      %6334 = vmatmul.mubr.f32.gmra.mrb[0].mxu0 %v6231
      %v6335 = vpop.f32.mrb[0].mxu0
      %v6336 = vadd.f32 0.0, %v6335
      %v6337 = vpop.f32.mrb[0].mxu0
      %v6338 = vadd.f32 0.0, %v6337
      %6339 = vmatprep.mubr.f32.mxu0 0.0
      %6340 = vmatmul.mubr.f32.gmra.mrb[0].mxu0 %v6234
      %v6341 = vpop.f32.mrb[0].mxu0
      %v6342 = vadd.f32 0.0, %v6341
      %v6343 = vpop.f32.mrb[0].mxu0
      %v6344 = vadd.f32 0.0, %v6343
      %6345 = vmatprep.mubr.f32.mxu0 0.0
      %6346 = vmatmul.mubr.f32.gmra.mrb[0].mxu0 %v6237
      %v6347 = vpop.f32.mrb[0].mxu0
      %v6348 = vadd.f32 0.0, %v6347
      %v6349 = vpop.f32.mrb[0].mxu0
      %v6350 = vadd.f32 0.0, %v6349
      %6351 = vmatprep.mubr.f32.mxu0 0.0
      %6352 = vmatmul.mubr.f32.gmra.mrb[0].mxu0 %v6240
      %v6353 = vpop.f32.mrb[0].mxu0
      %v6354 = vadd.f32 0.0, %v6353
      %v6355 = vpop.f32.mrb[0].mxu0
      %v6356 = vadd.f32 0.0, %v6355
      %6357 = vmatprep.mubr.f32.mxu0 0.0
      %6358 = vmatmul.mubr.f32.gmra.mrb[0].mxu0 %v6243
      %v6359 = vpop.f32.mrb[0].mxu0
      %v6360 = vadd.f32 0.0, %v6359
      %v6361 = vpop.f32.mrb[0].mxu0
      %v6362 = vadd.f32 0.0, %v6361
      %6363 = vdwg.mxu0
      %v6364 = vadd.f32 %v5929, %v6318
      %v6365 = vadd.f32 %v5930, %v6320
      %v6366 = vadd.f32 %v5931, %v6324
      %v6367 = vadd.f32 %v5932, %v6326
      %v6368 = vadd.f32 %v5933, %v6330
      %v6369 = vadd.f32 %v5934, %v6332
      %v6370 = vadd.f32 %v5935, %v6336
      %v6371 = vadd.f32 %v5936, %v6338
      %v6372 = vadd.f32 %v5937, %v6342
      %v6373 = vadd.f32 %v5938, %v6344
      %v6374 = vadd.f32 %v5939, %v6348
      %v6375 = vadd.f32 %v5940, %v6350
      %v6376 = vadd.f32 %v5941, %v6354
      %v6377 = vadd.f32 %v5942, %v6356
      %v6378 = vadd.f32 %v5943, %v6360
      %v6379 = vadd.f32 %v5944, %v6362
      %s6380 = scalar_lea.vmem %s7, 4480
      %v6381 = vld [vmem:[%s6380] sm:$0xff]
      %v6382 = vld [vmem:[%s6380 + $0x8] sm:$0xff]
      %v6383 = vld [vmem:[%s6380 + $0x10] sm:$0xff]
      %v6384 = vld [vmem:[%s6380 + $0x18] sm:$0xff]
      %v6385 = vld [vmem:[%s6380 + $0x20] sm:$0xff]
      %v6386 = vld [vmem:[%s6380 + $0x28] sm:$0xff]
      %v6387 = vld [vmem:[%s6380 + $0x30] sm:$0xff]
      %v6388 = vld [vmem:[%s6380 + $0x38] sm:$0xff]
      %v6389 = vld [vmem:[%s6380 + $0x40] sm:$0xff]
      %v6390 = vld [vmem:[%s6380 + $0x48] sm:$0xff]
      %v6391 = vld [vmem:[%s6380 + $0x50] sm:$0xff]
      %v6392 = vld [vmem:[%s6380 + $0x58] sm:$0xff]
      %v6393 = vld [vmem:[%s6380 + $0x60] sm:$0xff]
      %v6394 = vld [vmem:[%s6380 + $0x68] sm:$0xff]
      %v6395 = vld [vmem:[%s6380 + $0x70] sm:$0xff]
      %v6396 = vld [vmem:[%s6380 + $0x78] sm:$0xff]
      %v6397 = vld [vmem:[%s6380 + $0x80] sm:$0xff]
      %v6398 = vld [vmem:[%s6380 + $0x88] sm:$0xff]
      %v6399 = vld [vmem:[%s6380 + $0x90] sm:$0xff]
      %v6400 = vld [vmem:[%s6380 + $0x98] sm:$0xff]
      %v6401 = vld [vmem:[%s6380 + $0xa0] sm:$0xff]
      %v6402 = vld [vmem:[%s6380 + $0xa8] sm:$0xff]
      %v6403 = vld [vmem:[%s6380 + $0xb0] sm:$0xff]
      %v6404 = vld [vmem:[%s6380 + $0xb8] sm:$0xff]
      %v6405 = vld [vmem:[%s6380 + $0xc0] sm:$0xff]
      %v6406 = vld [vmem:[%s6380 + $0xc8] sm:$0xff]
      %v6407 = vld [vmem:[%s6380 + $0xd0] sm:$0xff]
      %v6408 = vld [vmem:[%s6380 + $0xd8] sm:$0xff]
      %v6409 = vld [vmem:[%s6380 + $0xe0] sm:$0xff]
      %v6410 = vld [vmem:[%s6380 + $0xe8] sm:$0xff]
      %v6411 = vld [vmem:[%s6380 + $0xf0] sm:$0xff]
      %v6412 = vld [vmem:[%s6380 + $0xf8] sm:$0xff]
      %v6413 = vld [vmem:[%s6380 + $0x100] sm:$0xff]
      %v6414 = vld [vmem:[%s6380 + $0x108] sm:$0xff]
      %v6415 = vld [vmem:[%s6380 + $0x110] sm:$0xff]
      %v6416 = vld [vmem:[%s6380 + $0x118] sm:$0xff]
      %v6417 = vld [vmem:[%s6380 + $0x120] sm:$0xff]
      %v6418 = vld [vmem:[%s6380 + $0x128] sm:$0xff]
      %v6419 = vld [vmem:[%s6380 + $0x130] sm:$0xff]
      %v6420 = vld [vmem:[%s6380 + $0x138] sm:$0xff]
      %v6421 = vld [vmem:[%s6380 + $0x140] sm:$0xff]
      %v6422 = vld [vmem:[%s6380 + $0x148] sm:$0xff]
      %v6423 = vld [vmem:[%s6380 + $0x150] sm:$0xff]
      %v6424 = vld [vmem:[%s6380 + $0x158] sm:$0xff]
      %v6425 = vld [vmem:[%s6380 + $0x160] sm:$0xff]
      %v6426 = vld [vmem:[%s6380 + $0x168] sm:$0xff]
      %v6427 = vld [vmem:[%s6380 + $0x170] sm:$0xff]
      %v6428 = vld [vmem:[%s6380 + $0x178] sm:$0xff]
      %v6429 = vld [vmem:[%s6380 + $0x180] sm:$0xff]
      %v6430 = vld [vmem:[%s6380 + $0x188] sm:$0xff]
      %v6431 = vld [vmem:[%s6380 + $0x190] sm:$0xff]
      %v6432 = vld [vmem:[%s6380 + $0x198] sm:$0xff]
      %v6433 = vld [vmem:[%s6380 + $0x1a0] sm:$0xff]
      %v6434 = vld [vmem:[%s6380 + $0x1a8] sm:$0xff]
      %v6435 = vld [vmem:[%s6380 + $0x1b0] sm:$0xff]
      %v6436 = vld [vmem:[%s6380 + $0x1b8] sm:$0xff]
      %v6437 = vld [vmem:[%s6380 + $0x1c0] sm:$0xff]
      %v6438 = vld [vmem:[%s6380 + $0x1c8] sm:$0xff]
      %v6439 = vld [vmem:[%s6380 + $0x1d0] sm:$0xff]
      %v6440 = vld [vmem:[%s6380 + $0x1d8] sm:$0xff]
      %v6441 = vld [vmem:[%s6380 + $0x1e0] sm:$0xff]
      %v6442 = vld [vmem:[%s6380 + $0x1e8] sm:$0xff]
      %v6443 = vld [vmem:[%s6380 + $0x1f0] sm:$0xff]
      %v6444 = vld [vmem:[%s6380 + $0x1f8] sm:$0xff]
      %v6445 = vld [vmem:[%s6380 + $0x200] sm:$0xff]
      %v6446 = vld [vmem:[%s6380 + $0x208] sm:$0xff]
      %v6447 = vld [vmem:[%s6380 + $0x210] sm:$0xff]
      %v6448 = vld [vmem:[%s6380 + $0x218] sm:$0xff]
      %v6449 = vld [vmem:[%s6380 + $0x220] sm:$0xff]
      %v6450 = vld [vmem:[%s6380 + $0x228] sm:$0xff]
      %v6451 = vld [vmem:[%s6380 + $0x230] sm:$0xff]
      %v6452 = vld [vmem:[%s6380 + $0x238] sm:$0xff]
      %v6453 = vld [vmem:[%s6380 + $0x240] sm:$0xff]
      %v6454 = vld [vmem:[%s6380 + $0x248] sm:$0xff]
      %v6455 = vld [vmem:[%s6380 + $0x250] sm:$0xff]
      %v6456 = vld [vmem:[%s6380 + $0x258] sm:$0xff]
      %v6457 = vld [vmem:[%s6380 + $0x260] sm:$0xff]
      %v6458 = vld [vmem:[%s6380 + $0x268] sm:$0xff]
      %v6459 = vld [vmem:[%s6380 + $0x270] sm:$0xff]
      %v6460 = vld [vmem:[%s6380 + $0x278] sm:$0xff]
      %v6461 = vld [vmem:[%s6380 + $0x280] sm:$0xff]
      %v6462 = vld [vmem:[%s6380 + $0x288] sm:$0xff]
      %v6463 = vld [vmem:[%s6380 + $0x290] sm:$0xff]
      %v6464 = vld [vmem:[%s6380 + $0x298] sm:$0xff]
      %v6465 = vld [vmem:[%s6380 + $0x2a0] sm:$0xff]
      %v6466 = vld [vmem:[%s6380 + $0x2a8] sm:$0xff]
      %v6467 = vld [vmem:[%s6380 + $0x2b0] sm:$0xff]
      %v6468 = vld [vmem:[%s6380 + $0x2b8] sm:$0xff]
      %v6469 = vld [vmem:[%s6380 + $0x2c0] sm:$0xff]
      %v6470 = vld [vmem:[%s6380 + $0x2c8] sm:$0xff]
      %v6471 = vld [vmem:[%s6380 + $0x2d0] sm:$0xff]
      %v6472 = vld [vmem:[%s6380 + $0x2d8] sm:$0xff]
      %v6473 = vld [vmem:[%s6380 + $0x2e0] sm:$0xff]
      %v6474 = vld [vmem:[%s6380 + $0x2e8] sm:$0xff]
      %v6475 = vld [vmem:[%s6380 + $0x2f0] sm:$0xff]
      %v6476 = vld [vmem:[%s6380 + $0x2f8] sm:$0xff]
      %v6477 = vld [vmem:[%s6380 + $0x300] sm:$0xff]
      %v6478 = vld [vmem:[%s6380 + $0x308] sm:$0xff]
      %v6479 = vld [vmem:[%s6380 + $0x310] sm:$0xff]
      %v6480 = vld [vmem:[%s6380 + $0x318] sm:$0xff]
      %v6481 = vld [vmem:[%s6380 + $0x320] sm:$0xff]
      %v6482 = vld [vmem:[%s6380 + $0x328] sm:$0xff]
      %v6483 = vld [vmem:[%s6380 + $0x330] sm:$0xff]
      %v6484 = vld [vmem:[%s6380 + $0x338] sm:$0xff]
      %v6485 = vld [vmem:[%s6380 + $0x340] sm:$0xff]
      %v6486 = vld [vmem:[%s6380 + $0x348] sm:$0xff]
      %v6487 = vld [vmem:[%s6380 + $0x350] sm:$0xff]
      %v6488 = vld [vmem:[%s6380 + $0x358] sm:$0xff]
      %v6489 = vld [vmem:[%s6380 + $0x360] sm:$0xff]
      %v6490 = vld [vmem:[%s6380 + $0x368] sm:$0xff]
      %v6491 = vld [vmem:[%s6380 + $0x370] sm:$0xff]
      %v6492 = vld [vmem:[%s6380 + $0x378] sm:$0xff]
      %6493 = vmatprep.subr.mxu0 %v6382
      %6494 = vmatpush1.msra.mxu0 %v6381
      %6495 = vmatprep.subr.mxu0 %v6384
      %6496 = vmatpush1.msra.mxu0 %v6383
      %6497 = vmatprep.subr.mxu0 %v6386
      %6498 = vmatpush1.msra.mxu0 %v6385
      %6499 = vmatprep.subr.mxu0 %v6388
      %6500 = vmatpush1.msra.mxu0 %v6387
      %6501 = vmatprep.subr.mxu0 %v6390
      %6502 = vmatpush1.msra.mxu0 %v6389
      %6503 = vmatprep.subr.mxu0 %v6392
      %6504 = vmatpush1.msra.mxu0 %v6391
      %6505 = vmatprep.subr.mxu0 %v6394
      %6506 = vmatpush1.msra.mxu0 %v6393
      %6507 = vmatprep.subr.mxu0 %v6396
      %6508 = vmatpush1.msra.mxu0 %v6395
      %6509 = vmatprep.subr.mxu0 %v6398
      %6510 = vmatpush1.msra.mxu0 %v6397
      %6511 = vmatprep.subr.mxu0 %v6400
      %6512 = vmatpush1.msra.mxu0 %v6399
      %6513 = vmatprep.subr.mxu0 %v6402
      %6514 = vmatpush1.msra.mxu0 %v6401
      %6515 = vmatprep.subr.mxu0 %v6404
      %6516 = vmatpush1.msra.mxu0 %v6403
      %6517 = vmatprep.subr.mxu0 %v6406
      %6518 = vmatpush1.msra.mxu0 %v6405
      %6519 = vmatprep.subr.mxu0 %v6408
      %6520 = vmatpush1.msra.mxu0 %v6407
      %6521 = vmatprep.subr.mxu0 %v6410
      %6522 = vmatpush1.msra.mxu0 %v6409
      %6523 = vmatprep.subr.mxu0 %v6412
      %6524 = vmatpush1.msra.mxu0 %v6411
      %6525 = vmatprep.subr.mxu0 %v6414
      %6526 = vmatpush1.msra.mxu0 %v6413
      %6527 = vmatprep.subr.mxu0 %v6416
      %6528 = vmatpush1.msra.mxu0 %v6415
      %6529 = vmatprep.subr.mxu0 %v6418
      %6530 = vmatpush1.msra.mxu0 %v6417
      %6531 = vmatprep.subr.mxu0 %v6420
      %6532 = vmatpush1.msra.mxu0 %v6419
      %6533 = vmatprep.subr.mxu0 %v6422
      %6534 = vmatpush1.msra.mxu0 %v6421
      %6535 = vmatprep.subr.mxu0 %v6424
      %6536 = vmatpush1.msra.mxu0 %v6423
      %6537 = vmatprep.subr.mxu0 %v6426
      %6538 = vmatpush1.msra.mxu0 %v6425
      %6539 = vmatprep.subr.mxu0 %v6428
      %6540 = vmatpush1.msra.mxu0 %v6427
      %6541 = vmatprep.subr.mxu0 %v6430
      %6542 = vmatpush1.msra.mxu0 %v6429
      %6543 = vmatprep.subr.mxu0 %v6432
      %6544 = vmatpush1.msra.mxu0 %v6431
      %6545 = vmatprep.subr.mxu0 %v6434
      %6546 = vmatpush1.msra.mxu0 %v6433
      %6547 = vmatprep.subr.mxu0 %v6436
      %6548 = vmatpush1.msra.mxu0 %v6435
      %6549 = vmatprep.subr.mxu0 %v6438
      %6550 = vmatpush1.msra.mxu0 %v6437
      %6551 = vmatprep.subr.mxu0 %v6440
      %6552 = vmatpush1.msra.mxu0 %v6439
      %6553 = vmatprep.subr.mxu0 %v6442
      %6554 = vmatpush1.msra.mxu0 %v6441
      %6555 = vmatprep.subr.mxu0 %v6444
      %6556 = vmatpush1.msra.mxu0 %v6443
      %6557 = vmatprep.mubr.f32.mxu0 %v4224
      %6558 = vmatmul.mubr.f32.gmra.mrb[0].mxu0 %v4223
      %v6559 = vpop.f32.mrb[0].mxu0
      %v6560 = vadd.f32 0.0, %v6559
      %v6561 = vpop.f32.mrb[0].mxu0
      %v6562 = vadd.f32 0.0, %v6561
      %6563 = vmatprep.mubr.f32.mxu0 %v4228
      %6564 = vmatmul.mubr.f32.gmra.mrb[0].mxu0 %v4227
      %v6565 = vpop.f32.mrb[0].mxu0
      %v6566 = vadd.f32 0.0, %v6565
      %v6567 = vpop.f32.mrb[0].mxu0
      %v6568 = vadd.f32 0.0, %v6567
      %6569 = vdwg.mxu0
      %6570 = vmatprep.subr.mxu0 %v6446
      %6571 = vmatpush1.msra.mxu0 %v6445
      %6572 = vmatprep.subr.mxu0 %v6448
      %6573 = vmatpush1.msra.mxu0 %v6447
      %6574 = vmatprep.subr.mxu0 %v6450
      %6575 = vmatpush1.msra.mxu0 %v6449
      %6576 = vmatprep.subr.mxu0 %v6452
      %6577 = vmatpush1.msra.mxu0 %v6451
      %6578 = vmatprep.subr.mxu0 %v6454
      %6579 = vmatpush1.msra.mxu0 %v6453
      %6580 = vmatprep.subr.mxu0 %v6456
      %6581 = vmatpush1.msra.mxu0 %v6455
      %6582 = vmatprep.subr.mxu0 %v6458
      %6583 = vmatpush1.msra.mxu0 %v6457
      %6584 = vmatprep.subr.mxu0 %v6460
      %6585 = vmatpush1.msra.mxu0 %v6459
      %6586 = vmatprep.subr.mxu0 %v6462
      %6587 = vmatpush1.msra.mxu0 %v6461
      %6588 = vmatprep.subr.mxu0 %v6464
      %6589 = vmatpush1.msra.mxu0 %v6463
      %6590 = vmatprep.subr.mxu0 %v6466
      %6591 = vmatpush1.msra.mxu0 %v6465
      %6592 = vmatprep.subr.mxu0 %v6468
      %6593 = vmatpush1.msra.mxu0 %v6467
      %6594 = vmatprep.subr.mxu0 %v6470
      %6595 = vmatpush1.msra.mxu0 %v6469
      %6596 = vmatprep.subr.mxu0 %v6472
      %6597 = vmatpush1.msra.mxu0 %v6471
      %6598 = vmatprep.subr.mxu0 %v6474
      %6599 = vmatpush1.msra.mxu0 %v6473
      %6600 = vmatprep.subr.mxu0 %v6476
      %6601 = vmatpush1.msra.mxu0 %v6475
      %6602 = vmatprep.subr.mxu0 %v6478
      %6603 = vmatpush1.msra.mxu0 %v6477
      %6604 = vmatprep.subr.mxu0 %v6480
      %6605 = vmatpush1.msra.mxu0 %v6479
      %6606 = vmatprep.subr.mxu0 %v6482
      %6607 = vmatpush1.msra.mxu0 %v6481
      %6608 = vmatprep.subr.mxu0 %v6484
      %6609 = vmatpush1.msra.mxu0 %v6483
      %6610 = vmatprep.subr.mxu0 %v6486
      %6611 = vmatpush1.msra.mxu0 %v6485
      %6612 = vmatprep.subr.mxu0 %v6488
      %6613 = vmatpush1.msra.mxu0 %v6487
      %6614 = vmatprep.subr.mxu0 %v6490
      %6615 = vmatpush1.msra.mxu0 %v6489
      %6616 = vmatprep.subr.mxu0 %v6492
      %6617 = vmatpush1.msra.mxu0 %v6491
      %6618 = vmatprep.subr.mxu0 0.0
      %6619 = vmatpush1.msra.mxu0 0.0
      %6620 = vmatprep.subr.mxu0 0.0
      %6621 = vmatpush1.msra.mxu0 0.0
      %6622 = vmatprep.subr.mxu0 0.0
      %6623 = vmatpush1.msra.mxu0 0.0
      %6624 = vmatprep.subr.mxu0 0.0
      %6625 = vmatpush1.msra.mxu0 0.0
      %6626 = vmatprep.subr.mxu0 0.0
      %6627 = vmatpush1.msra.mxu0 0.0
      %6628 = vmatprep.subr.mxu0 0.0
      %6629 = vmatpush1.msra.mxu0 0.0
      %6630 = vmatprep.subr.mxu0 0.0
      %6631 = vmatpush1.msra.mxu0 0.0
      %6632 = vmatprep.subr.mxu0 0.0
      %6633 = vmatpush1.msra.mxu0 0.0
      %6634 = vmatprep.mubr.f32.mxu0 %v4345
      %6635 = vmatmul.mubr.f32.gmra.mrb[0].mxu0 %v4225
      %v6636 = vpop.f32.mrb[0].mxu0
      %v6637 = vadd.f32 %v6560, %v6636
      %v6638 = vpop.f32.mrb[0].mxu0
      %v6639 = vadd.f32 %v6562, %v6638
      %6640 = vmatprep.mubr.f32.mxu0 %v4348
      %6641 = vmatmul.mubr.f32.gmra.mrb[0].mxu0 %v4229
      %v6642 = vpop.f32.mrb[0].mxu0
      %v6643 = vadd.f32 %v6566, %v6642
      %v6644 = vpop.f32.mrb[0].mxu0
      %v6645 = vadd.f32 %v6568, %v6644
      %6646 = vdwg.mxu0
      %s6647 = scalar_lea.vmem %s8, 320
      %v6648 = vld [vmem:[%s6647] sm:$0xff]
      %v6649 = vld [vmem:[%s6647 + $0x8] sm:$0xff]
      %v6650 = vld [vmem:[%s6647 + $0x10] sm:$0xff]
      %v6651 = vld [vmem:[%s6647 + $0x18] sm:$0xff]
      %v6652 = vld [vmem:[%s6647 + $0x20] sm:$0xff]
      %v6653 = vld [vmem:[%s6647 + $0x28] sm:$0xff]
      %v6654 = vld [vmem:[%s6647 + $0x30] sm:$0xff]
      %v6655 = vld [vmem:[%s6647 + $0x38] sm:$0x3]
      %v6657 = vsel %vm4788, %v6648, 0
      %v6660 = vsel %vm4788, %v6649, 0
      %v6663 = vsel %vm4788, %v6650, 0
      %v6666 = vsel %vm4788, %v6651, 0
      %v6669 = vsel %vm4788, %v6652, 0
      %v6672 = vsel %vm4788, %v6653, 0
      %v6675 = vsel %vm4788, %v6654, 0
      %v6678 = vsel %vm4788, %v6655, 0
      %v6681 = vsel %vm2534, %v6643, 0
      %v6684 = vsel %vm2534, %v6645, 0
      %6686 = vmatprep.subr.mxu0 %v6639
      %6687 = vmatpush1.msra.mxu0 %v6637
      %6688 = vmatprep.subr.mxu0 %v6684
      %6689 = vmatpush1.msra.mxu0 %v6681
      %6690 = vmatprep.subr.mxu0 0.0
      %6691 = vmatpush1.msra.mxu0 0.0
      %6692 = vmatprep.subr.mxu0 0.0
      %6693 = vmatpush1.msra.mxu0 0.0
      %6694 = vmatprep.subr.mxu0 0.0
      %6695 = vmatpush1.msra.mxu0 0.0
      %6696 = vmatprep.subr.mxu0 0.0
      %6697 = vmatpush1.msra.mxu0 0.0
      %6698 = vmatprep.subr.mxu0 0.0
      %6699 = vmatpush1.msra.mxu0 0.0
      %6700 = vmatprep.subr.mxu0 0.0
      %6701 = vmatpush1.msra.mxu0 0.0
      %6702 = vmatprep.subr.mxu0 0.0
      %6703 = vmatpush1.msra.mxu0 0.0
      %6704 = vmatprep.subr.mxu0 0.0
      %6705 = vmatpush1.msra.mxu0 0.0
      %6706 = vmatprep.subr.mxu0 0.0
      %6707 = vmatpush1.msra.mxu0 0.0
      %6708 = vmatprep.subr.mxu0 0.0
      %6709 = vmatpush1.msra.mxu0 0.0
      %6710 = vmatprep.subr.mxu0 0.0
      %6711 = vmatpush1.msra.mxu0 0.0
      %6712 = vmatprep.subr.mxu0 0.0
      %6713 = vmatpush1.msra.mxu0 0.0
      %6714 = vmatprep.subr.mxu0 0.0
      %6715 = vmatpush1.msra.mxu0 0.0
      %6716 = vmatprep.subr.mxu0 0.0
      %6717 = vmatpush1.msra.mxu0 0.0
      %6718 = vmatprep.subr.mxu0 0.0
      %6719 = vmatpush1.msra.mxu0 0.0
      %6720 = vmatprep.subr.mxu0 0.0
      %6721 = vmatpush1.msra.mxu0 0.0
      %6722 = vmatprep.subr.mxu0 0.0
      %6723 = vmatpush1.msra.mxu0 0.0
      %6724 = vmatprep.subr.mxu0 0.0
      %6725 = vmatpush1.msra.mxu0 0.0
      %6726 = vmatprep.subr.mxu0 0.0
      %6727 = vmatpush1.msra.mxu0 0.0
      %6728 = vmatprep.subr.mxu0 0.0
      %6729 = vmatpush1.msra.mxu0 0.0
      %6730 = vmatprep.subr.mxu0 0.0
      %6731 = vmatpush1.msra.mxu0 0.0
      %6732 = vmatprep.subr.mxu0 0.0
      %6733 = vmatpush1.msra.mxu0 0.0
      %6734 = vmatprep.subr.mxu0 0.0
      %6735 = vmatpush1.msra.mxu0 0.0
      %6736 = vmatprep.subr.mxu0 0.0
      %6737 = vmatpush1.msra.mxu0 0.0
      %6738 = vmatprep.subr.mxu0 0.0
      %6739 = vmatpush1.msra.mxu0 0.0
      %6740 = vmatprep.subr.mxu0 0.0
      %6741 = vmatpush1.msra.mxu0 0.0
      %6742 = vmatprep.subr.mxu0 0.0
      %6743 = vmatpush1.msra.mxu0 0.0
      %6744 = vmatprep.subr.mxu0 0.0
      %6745 = vmatpush1.msra.mxu0 0.0
      %6746 = vmatprep.subr.mxu0 0.0
      %6747 = vmatpush1.msra.mxu0 0.0
      %6748 = vmatprep.subr.mxu0 0.0
      %6749 = vmatpush1.msra.mxu0 0.0
      %6750 = vmatprep.mubr.f32.mxu0 0.0
      %6751 = vmatmul.mubr.f32.gmra.mrb[0].mxu0 %v6657
      %v6752 = vpop.f32.mrb[0].mxu0
      %v6753 = vadd.f32 0.0, %v6752
      %v6754 = vpop.f32.mrb[0].mxu0
      %v6755 = vadd.f32 0.0, %v6754
      %6756 = vmatprep.mubr.f32.mxu0 0.0
      %6757 = vmatmul.mubr.f32.gmra.mrb[0].mxu0 %v6660
      %v6758 = vpop.f32.mrb[0].mxu0
      %v6759 = vadd.f32 0.0, %v6758
      %v6760 = vpop.f32.mrb[0].mxu0
      %v6761 = vadd.f32 0.0, %v6760
      %6762 = vmatprep.mubr.f32.mxu0 0.0
      %6763 = vmatmul.mubr.f32.gmra.mrb[0].mxu0 %v6663
      %v6764 = vpop.f32.mrb[0].mxu0
      %v6765 = vadd.f32 0.0, %v6764
      %v6766 = vpop.f32.mrb[0].mxu0
      %v6767 = vadd.f32 0.0, %v6766
      %6768 = vmatprep.mubr.f32.mxu0 0.0
      %6769 = vmatmul.mubr.f32.gmra.mrb[0].mxu0 %v6666
      %v6770 = vpop.f32.mrb[0].mxu0
      %v6771 = vadd.f32 0.0, %v6770
      %v6772 = vpop.f32.mrb[0].mxu0
      %v6773 = vadd.f32 0.0, %v6772
      %6774 = vmatprep.mubr.f32.mxu0 0.0
      %6775 = vmatmul.mubr.f32.gmra.mrb[0].mxu0 %v6669
      %v6776 = vpop.f32.mrb[0].mxu0
      %v6777 = vadd.f32 0.0, %v6776
      %v6778 = vpop.f32.mrb[0].mxu0
      %v6779 = vadd.f32 0.0, %v6778
      %6780 = vmatprep.mubr.f32.mxu0 0.0
      %6781 = vmatmul.mubr.f32.gmra.mrb[0].mxu0 %v6672
      %v6782 = vpop.f32.mrb[0].mxu0
      %v6783 = vadd.f32 0.0, %v6782
      %v6784 = vpop.f32.mrb[0].mxu0
      %v6785 = vadd.f32 0.0, %v6784
      %6786 = vmatprep.mubr.f32.mxu0 0.0
      %6787 = vmatmul.mubr.f32.gmra.mrb[0].mxu0 %v6675
      %v6788 = vpop.f32.mrb[0].mxu0
      %v6789 = vadd.f32 0.0, %v6788
      %v6790 = vpop.f32.mrb[0].mxu0
      %v6791 = vadd.f32 0.0, %v6790
      %6792 = vmatprep.mubr.f32.mxu0 0.0
      %6793 = vmatmul.mubr.f32.gmra.mrb[0].mxu0 %v6678
      %v6794 = vpop.f32.mrb[0].mxu0
      %v6795 = vadd.f32 0.0, %v6794
      %v6796 = vpop.f32.mrb[0].mxu0
      %v6797 = vadd.f32 0.0, %v6796
      %6798 = vdwg.mxu0
      %v6799 = vadd.f32 %v6364, %v6753
      %v6800 = vadd.f32 %v6365, %v6755
      %v6801 = vadd.f32 %v6366, %v6759
      %v6802 = vadd.f32 %v6367, %v6761
      %v6803 = vadd.f32 %v6368, %v6765
      %v6804 = vadd.f32 %v6369, %v6767
      %v6805 = vadd.f32 %v6370, %v6771
      %v6806 = vadd.f32 %v6371, %v6773
      %v6807 = vadd.f32 %v6372, %v6777
      %v6808 = vadd.f32 %v6373, %v6779
      %v6809 = vadd.f32 %v6374, %v6783
      %v6810 = vadd.f32 %v6375, %v6785
      %v6811 = vadd.f32 %v6376, %v6789
      %v6812 = vadd.f32 %v6377, %v6791
      %v6813 = vadd.f32 %v6378, %v6795
      %v6814 = vadd.f32 %v6379, %v6797
      %s6815 = scalar_lea.vmem %s7, 5376
      %v6816 = vld [vmem:[%s6815] sm:$0xff]
      %v6817 = vld [vmem:[%s6815 + $0x8] sm:$0xff]
      %v6818 = vld [vmem:[%s6815 + $0x10] sm:$0xff]
      %v6819 = vld [vmem:[%s6815 + $0x18] sm:$0xff]
      %v6820 = vld [vmem:[%s6815 + $0x20] sm:$0xff]
      %v6821 = vld [vmem:[%s6815 + $0x28] sm:$0xff]
      %v6822 = vld [vmem:[%s6815 + $0x30] sm:$0xff]
      %v6823 = vld [vmem:[%s6815 + $0x38] sm:$0xff]
      %v6824 = vld [vmem:[%s6815 + $0x40] sm:$0xff]
      %v6825 = vld [vmem:[%s6815 + $0x48] sm:$0xff]
      %v6826 = vld [vmem:[%s6815 + $0x50] sm:$0xff]
      %v6827 = vld [vmem:[%s6815 + $0x58] sm:$0xff]
      %v6828 = vld [vmem:[%s6815 + $0x60] sm:$0xff]
      %v6829 = vld [vmem:[%s6815 + $0x68] sm:$0xff]
      %v6830 = vld [vmem:[%s6815 + $0x70] sm:$0xff]
      %v6831 = vld [vmem:[%s6815 + $0x78] sm:$0xff]
      %v6832 = vld [vmem:[%s6815 + $0x80] sm:$0xff]
      %v6833 = vld [vmem:[%s6815 + $0x88] sm:$0xff]
      %v6834 = vld [vmem:[%s6815 + $0x90] sm:$0xff]
      %v6835 = vld [vmem:[%s6815 + $0x98] sm:$0xff]
      %v6836 = vld [vmem:[%s6815 + $0xa0] sm:$0xff]
      %v6837 = vld [vmem:[%s6815 + $0xa8] sm:$0xff]
      %v6838 = vld [vmem:[%s6815 + $0xb0] sm:$0xff]
      %v6839 = vld [vmem:[%s6815 + $0xb8] sm:$0xff]
      %v6840 = vld [vmem:[%s6815 + $0xc0] sm:$0xff]
      %v6841 = vld [vmem:[%s6815 + $0xc8] sm:$0xff]
      %v6842 = vld [vmem:[%s6815 + $0xd0] sm:$0xff]
      %v6843 = vld [vmem:[%s6815 + $0xd8] sm:$0xff]
      %v6844 = vld [vmem:[%s6815 + $0xe0] sm:$0xff]
      %v6845 = vld [vmem:[%s6815 + $0xe8] sm:$0xff]
      %v6846 = vld [vmem:[%s6815 + $0xf0] sm:$0xff]
      %v6847 = vld [vmem:[%s6815 + $0xf8] sm:$0xff]
      %v6848 = vld [vmem:[%s6815 + $0x100] sm:$0xff]
      %v6849 = vld [vmem:[%s6815 + $0x108] sm:$0xff]
      %v6850 = vld [vmem:[%s6815 + $0x110] sm:$0xff]
      %v6851 = vld [vmem:[%s6815 + $0x118] sm:$0xff]
      %v6852 = vld [vmem:[%s6815 + $0x120] sm:$0xff]
      %v6853 = vld [vmem:[%s6815 + $0x128] sm:$0xff]
      %v6854 = vld [vmem:[%s6815 + $0x130] sm:$0xff]
      %v6855 = vld [vmem:[%s6815 + $0x138] sm:$0xff]
      %v6856 = vld [vmem:[%s6815 + $0x140] sm:$0xff]
      %v6857 = vld [vmem:[%s6815 + $0x148] sm:$0xff]
      %v6858 = vld [vmem:[%s6815 + $0x150] sm:$0xff]
      %v6859 = vld [vmem:[%s6815 + $0x158] sm:$0xff]
      %v6860 = vld [vmem:[%s6815 + $0x160] sm:$0xff]
      %v6861 = vld [vmem:[%s6815 + $0x168] sm:$0xff]
      %v6862 = vld [vmem:[%s6815 + $0x170] sm:$0xff]
      %v6863 = vld [vmem:[%s6815 + $0x178] sm:$0xff]
      %v6864 = vld [vmem:[%s6815 + $0x180] sm:$0xff]
      %v6865 = vld [vmem:[%s6815 + $0x188] sm:$0xff]
      %v6866 = vld [vmem:[%s6815 + $0x190] sm:$0xff]
      %v6867 = vld [vmem:[%s6815 + $0x198] sm:$0xff]
      %v6868 = vld [vmem:[%s6815 + $0x1a0] sm:$0xff]
      %v6869 = vld [vmem:[%s6815 + $0x1a8] sm:$0xff]
      %v6870 = vld [vmem:[%s6815 + $0x1b0] sm:$0xff]
      %v6871 = vld [vmem:[%s6815 + $0x1b8] sm:$0xff]
      %v6872 = vld [vmem:[%s6815 + $0x1c0] sm:$0xff]
      %v6873 = vld [vmem:[%s6815 + $0x1c8] sm:$0xff]
      %v6874 = vld [vmem:[%s6815 + $0x1d0] sm:$0xff]
      %v6875 = vld [vmem:[%s6815 + $0x1d8] sm:$0xff]
      %v6876 = vld [vmem:[%s6815 + $0x1e0] sm:$0xff]
      %v6877 = vld [vmem:[%s6815 + $0x1e8] sm:$0xff]
      %v6878 = vld [vmem:[%s6815 + $0x1f0] sm:$0xff]
      %v6879 = vld [vmem:[%s6815 + $0x1f8] sm:$0xff]
      %v6880 = vld [vmem:[%s6815 + $0x200] sm:$0xff]
      %v6881 = vld [vmem:[%s6815 + $0x208] sm:$0xff]
      %v6882 = vld [vmem:[%s6815 + $0x210] sm:$0xff]
      %v6883 = vld [vmem:[%s6815 + $0x218] sm:$0xff]
      %v6884 = vld [vmem:[%s6815 + $0x220] sm:$0xff]
      %v6885 = vld [vmem:[%s6815 + $0x228] sm:$0xff]
      %v6886 = vld [vmem:[%s6815 + $0x230] sm:$0xff]
      %v6887 = vld [vmem:[%s6815 + $0x238] sm:$0xff]
      %v6888 = vld [vmem:[%s6815 + $0x240] sm:$0xff]
      %v6889 = vld [vmem:[%s6815 + $0x248] sm:$0xff]
      %v6890 = vld [vmem:[%s6815 + $0x250] sm:$0xff]
      %v6891 = vld [vmem:[%s6815 + $0x258] sm:$0xff]
      %v6892 = vld [vmem:[%s6815 + $0x260] sm:$0xff]
      %v6893 = vld [vmem:[%s6815 + $0x268] sm:$0xff]
      %v6894 = vld [vmem:[%s6815 + $0x270] sm:$0xff]
      %v6895 = vld [vmem:[%s6815 + $0x278] sm:$0xff]
      %v6896 = vld [vmem:[%s6815 + $0x280] sm:$0xff]
      %v6897 = vld [vmem:[%s6815 + $0x288] sm:$0xff]
      %v6898 = vld [vmem:[%s6815 + $0x290] sm:$0xff]
      %v6899 = vld [vmem:[%s6815 + $0x298] sm:$0xff]
      %v6900 = vld [vmem:[%s6815 + $0x2a0] sm:$0xff]
      %v6901 = vld [vmem:[%s6815 + $0x2a8] sm:$0xff]
      %v6902 = vld [vmem:[%s6815 + $0x2b0] sm:$0xff]
      %v6903 = vld [vmem:[%s6815 + $0x2b8] sm:$0xff]
      %v6904 = vld [vmem:[%s6815 + $0x2c0] sm:$0xff]
      %v6905 = vld [vmem:[%s6815 + $0x2c8] sm:$0xff]
      %v6906 = vld [vmem:[%s6815 + $0x2d0] sm:$0xff]
      %v6907 = vld [vmem:[%s6815 + $0x2d8] sm:$0xff]
      %v6908 = vld [vmem:[%s6815 + $0x2e0] sm:$0xff]
      %v6909 = vld [vmem:[%s6815 + $0x2e8] sm:$0xff]
      %v6910 = vld [vmem:[%s6815 + $0x2f0] sm:$0xff]
      %v6911 = vld [vmem:[%s6815 + $0x2f8] sm:$0xff]
      %v6912 = vld [vmem:[%s6815 + $0x300] sm:$0xff]
      %v6913 = vld [vmem:[%s6815 + $0x308] sm:$0xff]
      %v6914 = vld [vmem:[%s6815 + $0x310] sm:$0xff]
      %v6915 = vld [vmem:[%s6815 + $0x318] sm:$0xff]
      %v6916 = vld [vmem:[%s6815 + $0x320] sm:$0xff]
      %v6917 = vld [vmem:[%s6815 + $0x328] sm:$0xff]
      %v6918 = vld [vmem:[%s6815 + $0x330] sm:$0xff]
      %v6919 = vld [vmem:[%s6815 + $0x338] sm:$0xff]
      %v6920 = vld [vmem:[%s6815 + $0x340] sm:$0xff]
      %v6921 = vld [vmem:[%s6815 + $0x348] sm:$0xff]
      %v6922 = vld [vmem:[%s6815 + $0x350] sm:$0xff]
      %v6923 = vld [vmem:[%s6815 + $0x358] sm:$0xff]
      %v6924 = vld [vmem:[%s6815 + $0x360] sm:$0xff]
      %v6925 = vld [vmem:[%s6815 + $0x368] sm:$0xff]
      %v6926 = vld [vmem:[%s6815 + $0x370] sm:$0xff]
      %v6927 = vld [vmem:[%s6815 + $0x378] sm:$0xff]
      %6928 = vmatprep.subr.mxu0 %v6817
      %6929 = vmatpush1.msra.mxu0 %v6816
      %6930 = vmatprep.subr.mxu0 %v6819
      %6931 = vmatpush1.msra.mxu0 %v6818
      %6932 = vmatprep.subr.mxu0 %v6821
      %6933 = vmatpush1.msra.mxu0 %v6820
      %6934 = vmatprep.subr.mxu0 %v6823
      %6935 = vmatpush1.msra.mxu0 %v6822
      %6936 = vmatprep.subr.mxu0 %v6825
      %6937 = vmatpush1.msra.mxu0 %v6824
      %6938 = vmatprep.subr.mxu0 %v6827
      %6939 = vmatpush1.msra.mxu0 %v6826
      %6940 = vmatprep.subr.mxu0 %v6829
      %6941 = vmatpush1.msra.mxu0 %v6828
      %6942 = vmatprep.subr.mxu0 %v6831
      %6943 = vmatpush1.msra.mxu0 %v6830
      %6944 = vmatprep.subr.mxu0 %v6833
      %6945 = vmatpush1.msra.mxu0 %v6832
      %6946 = vmatprep.subr.mxu0 %v6835
      %6947 = vmatpush1.msra.mxu0 %v6834
      %6948 = vmatprep.subr.mxu0 %v6837
      %6949 = vmatpush1.msra.mxu0 %v6836
      %6950 = vmatprep.subr.mxu0 %v6839
      %6951 = vmatpush1.msra.mxu0 %v6838
      %6952 = vmatprep.subr.mxu0 %v6841
      %6953 = vmatpush1.msra.mxu0 %v6840
      %6954 = vmatprep.subr.mxu0 %v6843
      %6955 = vmatpush1.msra.mxu0 %v6842
      %6956 = vmatprep.subr.mxu0 %v6845
      %6957 = vmatpush1.msra.mxu0 %v6844
      %6958 = vmatprep.subr.mxu0 %v6847
      %6959 = vmatpush1.msra.mxu0 %v6846
      %6960 = vmatprep.subr.mxu0 %v6849
      %6961 = vmatpush1.msra.mxu0 %v6848
      %6962 = vmatprep.subr.mxu0 %v6851
      %6963 = vmatpush1.msra.mxu0 %v6850
      %6964 = vmatprep.subr.mxu0 %v6853
      %6965 = vmatpush1.msra.mxu0 %v6852
      %6966 = vmatprep.subr.mxu0 %v6855
      %6967 = vmatpush1.msra.mxu0 %v6854
      %6968 = vmatprep.subr.mxu0 %v6857
      %6969 = vmatpush1.msra.mxu0 %v6856
      %6970 = vmatprep.subr.mxu0 %v6859
      %6971 = vmatpush1.msra.mxu0 %v6858
      %6972 = vmatprep.subr.mxu0 %v6861
      %6973 = vmatpush1.msra.mxu0 %v6860
      %6974 = vmatprep.subr.mxu0 %v6863
      %6975 = vmatpush1.msra.mxu0 %v6862
      %6976 = vmatprep.subr.mxu0 %v6865
      %6977 = vmatpush1.msra.mxu0 %v6864
      %6978 = vmatprep.subr.mxu0 %v6867
      %6979 = vmatpush1.msra.mxu0 %v6866
      %6980 = vmatprep.subr.mxu0 %v6869
      %6981 = vmatpush1.msra.mxu0 %v6868
      %6982 = vmatprep.subr.mxu0 %v6871
      %6983 = vmatpush1.msra.mxu0 %v6870
      %6984 = vmatprep.subr.mxu0 %v6873
      %6985 = vmatpush1.msra.mxu0 %v6872
      %6986 = vmatprep.subr.mxu0 %v6875
      %6987 = vmatpush1.msra.mxu0 %v6874
      %6988 = vmatprep.subr.mxu0 %v6877
      %6989 = vmatpush1.msra.mxu0 %v6876
      %6990 = vmatprep.subr.mxu0 %v6879
      %6991 = vmatpush1.msra.mxu0 %v6878
      %6992 = vmatprep.mubr.f32.mxu0 %v4224
      %6993 = vmatmul.mubr.f32.gmra.mrb[0].mxu0 %v4223
      %v6994 = vpop.f32.mrb[0].mxu0
      %v6995 = vadd.f32 0.0, %v6994
      %v6996 = vpop.f32.mrb[0].mxu0
      %v6997 = vadd.f32 0.0, %v6996
      %6998 = vmatprep.mubr.f32.mxu0 %v4228
      %6999 = vmatmul.mubr.f32.gmra.mrb[0].mxu0 %v4227
      %v7000 = vpop.f32.mrb[0].mxu0
      %v7001 = vadd.f32 0.0, %v7000
      %v7002 = vpop.f32.mrb[0].mxu0
      %v7003 = vadd.f32 0.0, %v7002
      %7004 = vdwg.mxu0
      %7005 = vmatprep.subr.mxu0 %v6881
      %7006 = vmatpush1.msra.mxu0 %v6880
      %7007 = vmatprep.subr.mxu0 %v6883
      %7008 = vmatpush1.msra.mxu0 %v6882
      %7009 = vmatprep.subr.mxu0 %v6885
      %7010 = vmatpush1.msra.mxu0 %v6884
      %7011 = vmatprep.subr.mxu0 %v6887
      %7012 = vmatpush1.msra.mxu0 %v6886
      %7013 = vmatprep.subr.mxu0 %v6889
      %7014 = vmatpush1.msra.mxu0 %v6888
      %7015 = vmatprep.subr.mxu0 %v6891
      %7016 = vmatpush1.msra.mxu0 %v6890
      %7017 = vmatprep.subr.mxu0 %v6893
      %7018 = vmatpush1.msra.mxu0 %v6892
      %7019 = vmatprep.subr.mxu0 %v6895
      %7020 = vmatpush1.msra.mxu0 %v6894
      %7021 = vmatprep.subr.mxu0 %v6897
      %7022 = vmatpush1.msra.mxu0 %v6896
      %7023 = vmatprep.subr.mxu0 %v6899
      %7024 = vmatpush1.msra.mxu0 %v6898
      %7025 = vmatprep.subr.mxu0 %v6901
      %7026 = vmatpush1.msra.mxu0 %v6900
      %7027 = vmatprep.subr.mxu0 %v6903
      %7028 = vmatpush1.msra.mxu0 %v6902
      %7029 = vmatprep.subr.mxu0 %v6905
      %7030 = vmatpush1.msra.mxu0 %v6904
      %7031 = vmatprep.subr.mxu0 %v6907
      %7032 = vmatpush1.msra.mxu0 %v6906
      %7033 = vmatprep.subr.mxu0 %v6909
      %7034 = vmatpush1.msra.mxu0 %v6908
      %7035 = vmatprep.subr.mxu0 %v6911
      %7036 = vmatpush1.msra.mxu0 %v6910
      %7037 = vmatprep.subr.mxu0 %v6913
      %7038 = vmatpush1.msra.mxu0 %v6912
      %7039 = vmatprep.subr.mxu0 %v6915
      %7040 = vmatpush1.msra.mxu0 %v6914
      %7041 = vmatprep.subr.mxu0 %v6917
      %7042 = vmatpush1.msra.mxu0 %v6916
      %7043 = vmatprep.subr.mxu0 %v6919
      %7044 = vmatpush1.msra.mxu0 %v6918
      %7045 = vmatprep.subr.mxu0 %v6921
      %7046 = vmatpush1.msra.mxu0 %v6920
      %7047 = vmatprep.subr.mxu0 %v6923
      %7048 = vmatpush1.msra.mxu0 %v6922
      %7049 = vmatprep.subr.mxu0 %v6925
      %7050 = vmatpush1.msra.mxu0 %v6924
      %7051 = vmatprep.subr.mxu0 %v6927
      %7052 = vmatpush1.msra.mxu0 %v6926
      %7053 = vmatprep.subr.mxu0 0.0
      %7054 = vmatpush1.msra.mxu0 0.0
      %7055 = vmatprep.subr.mxu0 0.0
      %7056 = vmatpush1.msra.mxu0 0.0
      %7057 = vmatprep.subr.mxu0 0.0
      %7058 = vmatpush1.msra.mxu0 0.0
      %7059 = vmatprep.subr.mxu0 0.0
      %7060 = vmatpush1.msra.mxu0 0.0
      %7061 = vmatprep.subr.mxu0 0.0
      %7062 = vmatpush1.msra.mxu0 0.0
      %7063 = vmatprep.subr.mxu0 0.0
      %7064 = vmatpush1.msra.mxu0 0.0
      %7065 = vmatprep.subr.mxu0 0.0
      %7066 = vmatpush1.msra.mxu0 0.0
      %7067 = vmatprep.subr.mxu0 0.0
      %7068 = vmatpush1.msra.mxu0 0.0
      %7069 = vmatprep.mubr.f32.mxu0 %v4345
      %7070 = vmatmul.mubr.f32.gmra.mrb[0].mxu0 %v4225
      %v7071 = vpop.f32.mrb[0].mxu0
      %v7072 = vadd.f32 %v6995, %v7071
      %v7073 = vpop.f32.mrb[0].mxu0
      %v7074 = vadd.f32 %v6997, %v7073
      %7075 = vmatprep.mubr.f32.mxu0 %v4348
      %7076 = vmatmul.mubr.f32.gmra.mrb[0].mxu0 %v4229
      %v7077 = vpop.f32.mrb[0].mxu0
      %v7078 = vadd.f32 %v7001, %v7077
      %v7079 = vpop.f32.mrb[0].mxu0
      %v7080 = vadd.f32 %v7003, %v7079
      %7081 = vdwg.mxu0
      %s7082 = scalar_lea.vmem %s8, 384
      %v7083 = vld [vmem:[%s7082] sm:$0xff]
      %v7084 = vld [vmem:[%s7082 + $0x8] sm:$0xff]
      %v7085 = vld [vmem:[%s7082 + $0x10] sm:$0xff]
      %v7086 = vld [vmem:[%s7082 + $0x18] sm:$0xff]
      %v7087 = vld [vmem:[%s7082 + $0x20] sm:$0xff]
      %v7088 = vld [vmem:[%s7082 + $0x28] sm:$0xff]
      %v7089 = vld [vmem:[%s7082 + $0x30] sm:$0xff]
      %v7090 = vld [vmem:[%s7082 + $0x38] sm:$0x3]
      %v7092 = vsel %vm4788, %v7083, 0
      %v7095 = vsel %vm4788, %v7084, 0
      %v7098 = vsel %vm4788, %v7085, 0
      %v7101 = vsel %vm4788, %v7086, 0
      %v7104 = vsel %vm4788, %v7087, 0
      %v7107 = vsel %vm4788, %v7088, 0
      %v7110 = vsel %vm4788, %v7089, 0
      %v7113 = vsel %vm4788, %v7090, 0
      %v7116 = vsel %vm2534, %v7078, 0
      %v7119 = vsel %vm2534, %v7080, 0
      %7121 = vmatprep.subr.mxu0 %v7074
      %7122 = vmatpush1.msra.mxu0 %v7072
      %7123 = vmatprep.subr.mxu0 %v7119
      %7124 = vmatpush1.msra.mxu0 %v7116
      %7125 = vmatprep.subr.mxu0 0.0
      %7126 = vmatpush1.msra.mxu0 0.0
      %7127 = vmatprep.subr.mxu0 0.0
      %7128 = vmatpush1.msra.mxu0 0.0
      %7129 = vmatprep.subr.mxu0 0.0
      %7130 = vmatpush1.msra.mxu0 0.0
      %7131 = vmatprep.subr.mxu0 0.0
      %7132 = vmatpush1.msra.mxu0 0.0
      %7133 = vmatprep.subr.mxu0 0.0
      %7134 = vmatpush1.msra.mxu0 0.0
      %7135 = vmatprep.subr.mxu0 0.0
      %7136 = vmatpush1.msra.mxu0 0.0
      %7137 = vmatprep.subr.mxu0 0.0
      %7138 = vmatpush1.msra.mxu0 0.0
      %7139 = vmatprep.subr.mxu0 0.0
      %7140 = vmatpush1.msra.mxu0 0.0
      %7141 = vmatprep.subr.mxu0 0.0
      %7142 = vmatpush1.msra.mxu0 0.0
      %7143 = vmatprep.subr.mxu0 0.0
      %7144 = vmatpush1.msra.mxu0 0.0
      %7145 = vmatprep.subr.mxu0 0.0
      %7146 = vmatpush1.msra.mxu0 0.0
      %7147 = vmatprep.subr.mxu0 0.0
      %7148 = vmatpush1.msra.mxu0 0.0
      %7149 = vmatprep.subr.mxu0 0.0
      %7150 = vmatpush1.msra.mxu0 0.0
      %7151 = vmatprep.subr.mxu0 0.0
      %7152 = vmatpush1.msra.mxu0 0.0
      %7153 = vmatprep.subr.mxu0 0.0
      %7154 = vmatpush1.msra.mxu0 0.0
      %7155 = vmatprep.subr.mxu0 0.0
      %7156 = vmatpush1.msra.mxu0 0.0
      %7157 = vmatprep.subr.mxu0 0.0
      %7158 = vmatpush1.msra.mxu0 0.0
      %7159 = vmatprep.subr.mxu0 0.0
      %7160 = vmatpush1.msra.mxu0 0.0
      %7161 = vmatprep.subr.mxu0 0.0
      %7162 = vmatpush1.msra.mxu0 0.0
      %7163 = vmatprep.subr.mxu0 0.0
      %7164 = vmatpush1.msra.mxu0 0.0
      %7165 = vmatprep.subr.mxu0 0.0
      %7166 = vmatpush1.msra.mxu0 0.0
      %7167 = vmatprep.subr.mxu0 0.0
      %7168 = vmatpush1.msra.mxu0 0.0
      %7169 = vmatprep.subr.mxu0 0.0
      %7170 = vmatpush1.msra.mxu0 0.0
      %7171 = vmatprep.subr.mxu0 0.0
      %7172 = vmatpush1.msra.mxu0 0.0
      %7173 = vmatprep.subr.mxu0 0.0
      %7174 = vmatpush1.msra.mxu0 0.0
      %7175 = vmatprep.subr.mxu0 0.0
      %7176 = vmatpush1.msra.mxu0 0.0
      %7177 = vmatprep.subr.mxu0 0.0
      %7178 = vmatpush1.msra.mxu0 0.0
      %7179 = vmatprep.subr.mxu0 0.0
      %7180 = vmatpush1.msra.mxu0 0.0
      %7181 = vmatprep.subr.mxu0 0.0
      %7182 = vmatpush1.msra.mxu0 0.0
      %7183 = vmatprep.subr.mxu0 0.0
      %7184 = vmatpush1.msra.mxu0 0.0
      %7185 = vmatprep.mubr.f32.mxu0 0.0
      %7186 = vmatmul.mubr.f32.gmra.mrb[0].mxu0 %v7092
      %v7187 = vpop.f32.mrb[0].mxu0
      %v7188 = vadd.f32 0.0, %v7187
      %v7189 = vpop.f32.mrb[0].mxu0
      %v7190 = vadd.f32 0.0, %v7189
      %7191 = vmatprep.mubr.f32.mxu0 0.0
      %7192 = vmatmul.mubr.f32.gmra.mrb[0].mxu0 %v7095
      %v7193 = vpop.f32.mrb[0].mxu0
      %v7194 = vadd.f32 0.0, %v7193
      %v7195 = vpop.f32.mrb[0].mxu0
      %v7196 = vadd.f32 0.0, %v7195
      %7197 = vmatprep.mubr.f32.mxu0 0.0
      %7198 = vmatmul.mubr.f32.gmra.mrb[0].mxu0 %v7098
      %v7199 = vpop.f32.mrb[0].mxu0
      %v7200 = vadd.f32 0.0, %v7199
      %v7201 = vpop.f32.mrb[0].mxu0
      %v7202 = vadd.f32 0.0, %v7201
      %7203 = vmatprep.mubr.f32.mxu0 0.0
      %7204 = vmatmul.mubr.f32.gmra.mrb[0].mxu0 %v7101
      %v7205 = vpop.f32.mrb[0].mxu0
      %v7206 = vadd.f32 0.0, %v7205
      %v7207 = vpop.f32.mrb[0].mxu0
      %v7208 = vadd.f32 0.0, %v7207
      %7209 = vmatprep.mubr.f32.mxu0 0.0
      %7210 = vmatmul.mubr.f32.gmra.mrb[0].mxu0 %v7104
      %v7211 = vpop.f32.mrb[0].mxu0
      %v7212 = vadd.f32 0.0, %v7211
      %v7213 = vpop.f32.mrb[0].mxu0
      %v7214 = vadd.f32 0.0, %v7213
      %7215 = vmatprep.mubr.f32.mxu0 0.0
      %7216 = vmatmul.mubr.f32.gmra.mrb[0].mxu0 %v7107
      %v7217 = vpop.f32.mrb[0].mxu0
      %v7218 = vadd.f32 0.0, %v7217
      %v7219 = vpop.f32.mrb[0].mxu0
      %v7220 = vadd.f32 0.0, %v7219
      %7221 = vmatprep.mubr.f32.mxu0 0.0
      %7222 = vmatmul.mubr.f32.gmra.mrb[0].mxu0 %v7110
      %v7223 = vpop.f32.mrb[0].mxu0
      %v7224 = vadd.f32 0.0, %v7223
      %v7225 = vpop.f32.mrb[0].mxu0
      %v7226 = vadd.f32 0.0, %v7225
      %7227 = vmatprep.mubr.f32.mxu0 0.0
      %7228 = vmatmul.mubr.f32.gmra.mrb[0].mxu0 %v7113
      %v7229 = vpop.f32.mrb[0].mxu0
      %v7230 = vadd.f32 0.0, %v7229
      %v7231 = vpop.f32.mrb[0].mxu0
      %v7232 = vadd.f32 0.0, %v7231
      %7233 = vdwg.mxu0
      %v7234 = vadd.f32 %v6799, %v7188
      %v7235 = vadd.f32 %v6800, %v7190
      %v7236 = vadd.f32 %v6801, %v7194
      %v7237 = vadd.f32 %v6802, %v7196
      %v7238 = vadd.f32 %v6803, %v7200
      %v7239 = vadd.f32 %v6804, %v7202
      %v7240 = vadd.f32 %v6805, %v7206
      %v7241 = vadd.f32 %v6806, %v7208
      %v7242 = vadd.f32 %v6807, %v7212
      %v7243 = vadd.f32 %v6808, %v7214
      %v7244 = vadd.f32 %v6809, %v7218
      %v7245 = vadd.f32 %v6810, %v7220
      %v7246 = vadd.f32 %v6811, %v7224
      %v7247 = vadd.f32 %v6812, %v7226
      %v7248 = vadd.f32 %v6813, %v7230
      %v7249 = vadd.f32 %v6814, %v7232
      %s7250 = scalar_lea.vmem %s7, 6272
      %v7251 = vld [vmem:[%s7250] sm:$0xff]
      %v7252 = vld [vmem:[%s7250 + $0x8] sm:$0xff]
      %v7253 = vld [vmem:[%s7250 + $0x10] sm:$0xff]
      %v7254 = vld [vmem:[%s7250 + $0x18] sm:$0xff]
      %v7255 = vld [vmem:[%s7250 + $0x20] sm:$0xff]
      %v7256 = vld [vmem:[%s7250 + $0x28] sm:$0xff]
      %v7257 = vld [vmem:[%s7250 + $0x30] sm:$0xff]
      %v7258 = vld [vmem:[%s7250 + $0x38] sm:$0xff]
      %v7259 = vld [vmem:[%s7250 + $0x40] sm:$0xff]
      %v7260 = vld [vmem:[%s7250 + $0x48] sm:$0xff]
      %v7261 = vld [vmem:[%s7250 + $0x50] sm:$0xff]
      %v7262 = vld [vmem:[%s7250 + $0x58] sm:$0xff]
      %v7263 = vld [vmem:[%s7250 + $0x60] sm:$0xff]
      %v7264 = vld [vmem:[%s7250 + $0x68] sm:$0xff]
      %v7265 = vld [vmem:[%s7250 + $0x70] sm:$0xff]
      %v7266 = vld [vmem:[%s7250 + $0x78] sm:$0xff]
      %v7267 = vld [vmem:[%s7250 + $0x80] sm:$0xff]
      %v7268 = vld [vmem:[%s7250 + $0x88] sm:$0xff]
      %v7269 = vld [vmem:[%s7250 + $0x90] sm:$0xff]
      %v7270 = vld [vmem:[%s7250 + $0x98] sm:$0xff]
      %v7271 = vld [vmem:[%s7250 + $0xa0] sm:$0xff]
      %v7272 = vld [vmem:[%s7250 + $0xa8] sm:$0xff]
      %v7273 = vld [vmem:[%s7250 + $0xb0] sm:$0xff]
      %v7274 = vld [vmem:[%s7250 + $0xb8] sm:$0xff]
      %v7275 = vld [vmem:[%s7250 + $0xc0] sm:$0xff]
      %v7276 = vld [vmem:[%s7250 + $0xc8] sm:$0xff]
      %v7277 = vld [vmem:[%s7250 + $0xd0] sm:$0xff]
      %v7278 = vld [vmem:[%s7250 + $0xd8] sm:$0xff]
      %v7279 = vld [vmem:[%s7250 + $0xe0] sm:$0xff]
      %v7280 = vld [vmem:[%s7250 + $0xe8] sm:$0xff]
      %v7281 = vld [vmem:[%s7250 + $0xf0] sm:$0xff]
      %v7282 = vld [vmem:[%s7250 + $0xf8] sm:$0xff]
      %v7283 = vld [vmem:[%s7250 + $0x100] sm:$0xff]
      %v7284 = vld [vmem:[%s7250 + $0x108] sm:$0xff]
      %v7285 = vld [vmem:[%s7250 + $0x110] sm:$0xff]
      %v7286 = vld [vmem:[%s7250 + $0x118] sm:$0xff]
      %v7287 = vld [vmem:[%s7250 + $0x120] sm:$0xff]
      %v7288 = vld [vmem:[%s7250 + $0x128] sm:$0xff]
      %v7289 = vld [vmem:[%s7250 + $0x130] sm:$0xff]
      %v7290 = vld [vmem:[%s7250 + $0x138] sm:$0xff]
      %v7291 = vld [vmem:[%s7250 + $0x140] sm:$0xff]
      %v7292 = vld [vmem:[%s7250 + $0x148] sm:$0xff]
      %v7293 = vld [vmem:[%s7250 + $0x150] sm:$0xff]
      %v7294 = vld [vmem:[%s7250 + $0x158] sm:$0xff]
      %v7295 = vld [vmem:[%s7250 + $0x160] sm:$0xff]
      %v7296 = vld [vmem:[%s7250 + $0x168] sm:$0xff]
      %v7297 = vld [vmem:[%s7250 + $0x170] sm:$0xff]
      %v7298 = vld [vmem:[%s7250 + $0x178] sm:$0xff]
      %v7299 = vld [vmem:[%s7250 + $0x180] sm:$0xff]
      %v7300 = vld [vmem:[%s7250 + $0x188] sm:$0xff]
      %v7301 = vld [vmem:[%s7250 + $0x190] sm:$0xff]
      %v7302 = vld [vmem:[%s7250 + $0x198] sm:$0xff]
      %v7303 = vld [vmem:[%s7250 + $0x1a0] sm:$0xff]
      %v7304 = vld [vmem:[%s7250 + $0x1a8] sm:$0xff]
      %v7305 = vld [vmem:[%s7250 + $0x1b0] sm:$0xff]
      %v7306 = vld [vmem:[%s7250 + $0x1b8] sm:$0xff]
      %v7307 = vld [vmem:[%s7250 + $0x1c0] sm:$0xff]
      %v7308 = vld [vmem:[%s7250 + $0x1c8] sm:$0xff]
      %v7309 = vld [vmem:[%s7250 + $0x1d0] sm:$0xff]
      %v7310 = vld [vmem:[%s7250 + $0x1d8] sm:$0xff]
      %v7311 = vld [vmem:[%s7250 + $0x1e0] sm:$0xff]
      %v7312 = vld [vmem:[%s7250 + $0x1e8] sm:$0xff]
      %v7313 = vld [vmem:[%s7250 + $0x1f0] sm:$0xff]
      %v7314 = vld [vmem:[%s7250 + $0x1f8] sm:$0xff]
      %v7315 = vld [vmem:[%s7250 + $0x200] sm:$0xff]
      %v7316 = vld [vmem:[%s7250 + $0x208] sm:$0xff]
      %v7317 = vld [vmem:[%s7250 + $0x210] sm:$0xff]
      %v7318 = vld [vmem:[%s7250 + $0x218] sm:$0xff]
      %v7319 = vld [vmem:[%s7250 + $0x220] sm:$0xff]
      %v7320 = vld [vmem:[%s7250 + $0x228] sm:$0xff]
      %v7321 = vld [vmem:[%s7250 + $0x230] sm:$0xff]
      %v7322 = vld [vmem:[%s7250 + $0x238] sm:$0xff]
      %v7323 = vld [vmem:[%s7250 + $0x240] sm:$0xff]
      %v7324 = vld [vmem:[%s7250 + $0x248] sm:$0xff]
      %v7325 = vld [vmem:[%s7250 + $0x250] sm:$0xff]
      %v7326 = vld [vmem:[%s7250 + $0x258] sm:$0xff]
      %v7327 = vld [vmem:[%s7250 + $0x260] sm:$0xff]
      %v7328 = vld [vmem:[%s7250 + $0x268] sm:$0xff]
      %v7329 = vld [vmem:[%s7250 + $0x270] sm:$0xff]
      %v7330 = vld [vmem:[%s7250 + $0x278] sm:$0xff]
      %v7331 = vld [vmem:[%s7250 + $0x280] sm:$0xff]
      %v7332 = vld [vmem:[%s7250 + $0x288] sm:$0xff]
      %v7333 = vld [vmem:[%s7250 + $0x290] sm:$0xff]
      %v7334 = vld [vmem:[%s7250 + $0x298] sm:$0xff]
      %v7335 = vld [vmem:[%s7250 + $0x2a0] sm:$0xff]
      %v7336 = vld [vmem:[%s7250 + $0x2a8] sm:$0xff]
      %v7337 = vld [vmem:[%s7250 + $0x2b0] sm:$0xff]
      %v7338 = vld [vmem:[%s7250 + $0x2b8] sm:$0xff]
      %v7339 = vld [vmem:[%s7250 + $0x2c0] sm:$0xff]
      %v7340 = vld [vmem:[%s7250 + $0x2c8] sm:$0xff]
      %v7341 = vld [vmem:[%s7250 + $0x2d0] sm:$0xff]
      %v7342 = vld [vmem:[%s7250 + $0x2d8] sm:$0xff]
      %v7343 = vld [vmem:[%s7250 + $0x2e0] sm:$0xff]
      %v7344 = vld [vmem:[%s7250 + $0x2e8] sm:$0xff]
      %v7345 = vld [vmem:[%s7250 + $0x2f0] sm:$0xff]
      %v7346 = vld [vmem:[%s7250 + $0x2f8] sm:$0xff]
      %v7347 = vld [vmem:[%s7250 + $0x300] sm:$0xff]
      %v7348 = vld [vmem:[%s7250 + $0x308] sm:$0xff]
      %v7349 = vld [vmem:[%s7250 + $0x310] sm:$0xff]
      %v7350 = vld [vmem:[%s7250 + $0x318] sm:$0xff]
      %v7351 = vld [vmem:[%s7250 + $0x320] sm:$0xff]
      %v7352 = vld [vmem:[%s7250 + $0x328] sm:$0xff]
      %v7353 = vld [vmem:[%s7250 + $0x330] sm:$0xff]
      %v7354 = vld [vmem:[%s7250 + $0x338] sm:$0xff]
      %v7355 = vld [vmem:[%s7250 + $0x340] sm:$0xff]
      %v7356 = vld [vmem:[%s7250 + $0x348] sm:$0xff]
      %v7357 = vld [vmem:[%s7250 + $0x350] sm:$0xff]
      %v7358 = vld [vmem:[%s7250 + $0x358] sm:$0xff]
      %v7359 = vld [vmem:[%s7250 + $0x360] sm:$0xff]
      %v7360 = vld [vmem:[%s7250 + $0x368] sm:$0xff]
      %v7361 = vld [vmem:[%s7250 + $0x370] sm:$0xff]
      %v7362 = vld [vmem:[%s7250 + $0x378] sm:$0xff]
      %7363 = vmatprep.subr.mxu0 %v7252
      %7364 = vmatpush1.msra.mxu0 %v7251
      %7365 = vmatprep.subr.mxu0 %v7254
      %7366 = vmatpush1.msra.mxu0 %v7253
      %7367 = vmatprep.subr.mxu0 %v7256
      %7368 = vmatpush1.msra.mxu0 %v7255
      %7369 = vmatprep.subr.mxu0 %v7258
      %7370 = vmatpush1.msra.mxu0 %v7257
      %7371 = vmatprep.subr.mxu0 %v7260
      %7372 = vmatpush1.msra.mxu0 %v7259
      %7373 = vmatprep.subr.mxu0 %v7262
      %7374 = vmatpush1.msra.mxu0 %v7261
      %7375 = vmatprep.subr.mxu0 %v7264
      %7376 = vmatpush1.msra.mxu0 %v7263
      %7377 = vmatprep.subr.mxu0 %v7266
      %7378 = vmatpush1.msra.mxu0 %v7265
      %7379 = vmatprep.subr.mxu0 %v7268
      %7380 = vmatpush1.msra.mxu0 %v7267
      %7381 = vmatprep.subr.mxu0 %v7270
      %7382 = vmatpush1.msra.mxu0 %v7269
      %7383 = vmatprep.subr.mxu0 %v7272
      %7384 = vmatpush1.msra.mxu0 %v7271
      %7385 = vmatprep.subr.mxu0 %v7274
      %7386 = vmatpush1.msra.mxu0 %v7273
      %7387 = vmatprep.subr.mxu0 %v7276
      %7388 = vmatpush1.msra.mxu0 %v7275
      %7389 = vmatprep.subr.mxu0 %v7278
      %7390 = vmatpush1.msra.mxu0 %v7277
      %7391 = vmatprep.subr.mxu0 %v7280
      %7392 = vmatpush1.msra.mxu0 %v7279
      %7393 = vmatprep.subr.mxu0 %v7282
      %7394 = vmatpush1.msra.mxu0 %v7281
      %7395 = vmatprep.subr.mxu0 %v7284
      %7396 = vmatpush1.msra.mxu0 %v7283
      %7397 = vmatprep.subr.mxu0 %v7286
      %7398 = vmatpush1.msra.mxu0 %v7285
      %7399 = vmatprep.subr.mxu0 %v7288
      %7400 = vmatpush1.msra.mxu0 %v7287
      %7401 = vmatprep.subr.mxu0 %v7290
      %7402 = vmatpush1.msra.mxu0 %v7289
      %7403 = vmatprep.subr.mxu0 %v7292
      %7404 = vmatpush1.msra.mxu0 %v7291
      %7405 = vmatprep.subr.mxu0 %v7294
      %7406 = vmatpush1.msra.mxu0 %v7293
      %7407 = vmatprep.subr.mxu0 %v7296
      %7408 = vmatpush1.msra.mxu0 %v7295
      %7409 = vmatprep.subr.mxu0 %v7298
      %7410 = vmatpush1.msra.mxu0 %v7297
      %7411 = vmatprep.subr.mxu0 %v7300
      %7412 = vmatpush1.msra.mxu0 %v7299
      %7413 = vmatprep.subr.mxu0 %v7302
      %7414 = vmatpush1.msra.mxu0 %v7301
      %7415 = vmatprep.subr.mxu0 %v7304
      %7416 = vmatpush1.msra.mxu0 %v7303
      %7417 = vmatprep.subr.mxu0 %v7306
      %7418 = vmatpush1.msra.mxu0 %v7305
      %7419 = vmatprep.subr.mxu0 %v7308
      %7420 = vmatpush1.msra.mxu0 %v7307
      %7421 = vmatprep.subr.mxu0 %v7310
      %7422 = vmatpush1.msra.mxu0 %v7309
      %7423 = vmatprep.subr.mxu0 %v7312
      %7424 = vmatpush1.msra.mxu0 %v7311
      %7425 = vmatprep.subr.mxu0 %v7314
      %7426 = vmatpush1.msra.mxu0 %v7313
      %7427 = vmatprep.mubr.f32.mxu0 %v4224
      %7428 = vmatmul.mubr.f32.gmra.mrb[0].mxu0 %v4223
      %v7429 = vpop.f32.mrb[0].mxu0
      %v7430 = vadd.f32 0.0, %v7429
      %v7431 = vpop.f32.mrb[0].mxu0
      %v7432 = vadd.f32 0.0, %v7431
      %7433 = vmatprep.mubr.f32.mxu0 %v4228
      %7434 = vmatmul.mubr.f32.gmra.mrb[0].mxu0 %v4227
      %v7435 = vpop.f32.mrb[0].mxu0
      %v7436 = vadd.f32 0.0, %v7435
      %v7437 = vpop.f32.mrb[0].mxu0
      %v7438 = vadd.f32 0.0, %v7437
      %7439 = vdwg.mxu0
      %7440 = vmatprep.subr.mxu0 %v7316
      %7441 = vmatpush1.msra.mxu0 %v7315
      %7442 = vmatprep.subr.mxu0 %v7318
      %7443 = vmatpush1.msra.mxu0 %v7317
      %7444 = vmatprep.subr.mxu0 %v7320
      %7445 = vmatpush1.msra.mxu0 %v7319
      %7446 = vmatprep.subr.mxu0 %v7322
      %7447 = vmatpush1.msra.mxu0 %v7321
      %7448 = vmatprep.subr.mxu0 %v7324
      %7449 = vmatpush1.msra.mxu0 %v7323
      %7450 = vmatprep.subr.mxu0 %v7326
      %7451 = vmatpush1.msra.mxu0 %v7325
      %7452 = vmatprep.subr.mxu0 %v7328
      %7453 = vmatpush1.msra.mxu0 %v7327
      %7454 = vmatprep.subr.mxu0 %v7330
      %7455 = vmatpush1.msra.mxu0 %v7329
      %7456 = vmatprep.subr.mxu0 %v7332
      %7457 = vmatpush1.msra.mxu0 %v7331
      %7458 = vmatprep.subr.mxu0 %v7334
      %7459 = vmatpush1.msra.mxu0 %v7333
      %7460 = vmatprep.subr.mxu0 %v7336
      %7461 = vmatpush1.msra.mxu0 %v7335
      %7462 = vmatprep.subr.mxu0 %v7338
      %7463 = vmatpush1.msra.mxu0 %v7337
      %7464 = vmatprep.subr.mxu0 %v7340
      %7465 = vmatpush1.msra.mxu0 %v7339
      %7466 = vmatprep.subr.mxu0 %v7342
      %7467 = vmatpush1.msra.mxu0 %v7341
      %7468 = vmatprep.subr.mxu0 %v7344
      %7469 = vmatpush1.msra.mxu0 %v7343
      %7470 = vmatprep.subr.mxu0 %v7346
      %7471 = vmatpush1.msra.mxu0 %v7345
      %7472 = vmatprep.subr.mxu0 %v7348
      %7473 = vmatpush1.msra.mxu0 %v7347
      %7474 = vmatprep.subr.mxu0 %v7350
      %7475 = vmatpush1.msra.mxu0 %v7349
      %7476 = vmatprep.subr.mxu0 %v7352
      %7477 = vmatpush1.msra.mxu0 %v7351
      %7478 = vmatprep.subr.mxu0 %v7354
      %7479 = vmatpush1.msra.mxu0 %v7353
      %7480 = vmatprep.subr.mxu0 %v7356
      %7481 = vmatpush1.msra.mxu0 %v7355
      %7482 = vmatprep.subr.mxu0 %v7358
      %7483 = vmatpush1.msra.mxu0 %v7357
      %7484 = vmatprep.subr.mxu0 %v7360
      %7485 = vmatpush1.msra.mxu0 %v7359
      %7486 = vmatprep.subr.mxu0 %v7362
      %7487 = vmatpush1.msra.mxu0 %v7361
      %7488 = vmatprep.subr.mxu0 0.0
      %7489 = vmatpush1.msra.mxu0 0.0
      %7490 = vmatprep.subr.mxu0 0.0
      %7491 = vmatpush1.msra.mxu0 0.0
      %7492 = vmatprep.subr.mxu0 0.0
      %7493 = vmatpush1.msra.mxu0 0.0
      %7494 = vmatprep.subr.mxu0 0.0
      %7495 = vmatpush1.msra.mxu0 0.0
      %7496 = vmatprep.subr.mxu0 0.0
      %7497 = vmatpush1.msra.mxu0 0.0
      %7498 = vmatprep.subr.mxu0 0.0
      %7499 = vmatpush1.msra.mxu0 0.0
      %7500 = vmatprep.subr.mxu0 0.0
      %7501 = vmatpush1.msra.mxu0 0.0
      %7502 = vmatprep.subr.mxu0 0.0
      %7503 = vmatpush1.msra.mxu0 0.0
      %7504 = vmatprep.mubr.f32.mxu0 %v4345
      %7505 = vmatmul.mubr.f32.gmra.mrb[0].mxu0 %v4225
      %v7506 = vpop.f32.mrb[0].mxu0
      %v7507 = vadd.f32 %v7430, %v7506
      %v7508 = vpop.f32.mrb[0].mxu0
      %v7509 = vadd.f32 %v7432, %v7508
      %7510 = vmatprep.mubr.f32.mxu0 %v4348
      %7511 = vmatmul.mubr.f32.gmra.mrb[0].mxu0 %v4229
      %v7512 = vpop.f32.mrb[0].mxu0
      %v7513 = vadd.f32 %v7436, %v7512
      %v7514 = vpop.f32.mrb[0].mxu0
      %v7515 = vadd.f32 %v7438, %v7514
      %7516 = vdwg.mxu0
      %s7517 = scalar_lea.vmem %s8, 448
      %v7518 = vld [vmem:[%s7517] sm:$0xff]
      %v7519 = vld [vmem:[%s7517 + $0x8] sm:$0xff]
      %v7520 = vld [vmem:[%s7517 + $0x10] sm:$0xff]
      %v7521 = vld [vmem:[%s7517 + $0x18] sm:$0xff]
      %v7522 = vld [vmem:[%s7517 + $0x20] sm:$0xff]
      %v7523 = vld [vmem:[%s7517 + $0x28] sm:$0xff]
      %v7524 = vld [vmem:[%s7517 + $0x30] sm:$0xff]
      %v7525 = vld [vmem:[%s7517 + $0x38] sm:$0x3]
      %v7527 = vsel %vm4788, %v7518, 0
      %v7530 = vsel %vm4788, %v7519, 0
      %v7533 = vsel %vm4788, %v7520, 0
      %v7536 = vsel %vm4788, %v7521, 0
      %v7539 = vsel %vm4788, %v7522, 0
      %v7542 = vsel %vm4788, %v7523, 0
      %v7545 = vsel %vm4788, %v7524, 0
      %v7548 = vsel %vm4788, %v7525, 0
      %v7551 = vsel %vm2534, %v7513, 0
      %v7554 = vsel %vm2534, %v7515, 0
      %7556 = vmatprep.subr.mxu0 %v7509
      %7557 = vmatpush1.msra.mxu0 %v7507
      %7558 = vmatprep.subr.mxu0 %v7554
      %7559 = vmatpush1.msra.mxu0 %v7551
      %7560 = vmatprep.subr.mxu0 0.0
      %7561 = vmatpush1.msra.mxu0 0.0
      %7562 = vmatprep.subr.mxu0 0.0
      %7563 = vmatpush1.msra.mxu0 0.0
      %7564 = vmatprep.subr.mxu0 0.0
      %7565 = vmatpush1.msra.mxu0 0.0
      %7566 = vmatprep.subr.mxu0 0.0
      %7567 = vmatpush1.msra.mxu0 0.0
      %7568 = vmatprep.subr.mxu0 0.0
      %7569 = vmatpush1.msra.mxu0 0.0
      %7570 = vmatprep.subr.mxu0 0.0
      %7571 = vmatpush1.msra.mxu0 0.0
      %7572 = vmatprep.subr.mxu0 0.0
      %7573 = vmatpush1.msra.mxu0 0.0
      %7574 = vmatprep.subr.mxu0 0.0
      %7575 = vmatpush1.msra.mxu0 0.0
      %7576 = vmatprep.subr.mxu0 0.0
      %7577 = vmatpush1.msra.mxu0 0.0
      %7578 = vmatprep.subr.mxu0 0.0
      %7579 = vmatpush1.msra.mxu0 0.0
      %7580 = vmatprep.subr.mxu0 0.0
      %7581 = vmatpush1.msra.mxu0 0.0
      %7582 = vmatprep.subr.mxu0 0.0
      %7583 = vmatpush1.msra.mxu0 0.0
      %7584 = vmatprep.subr.mxu0 0.0
      %7585 = vmatpush1.msra.mxu0 0.0
      %7586 = vmatprep.subr.mxu0 0.0
      %7587 = vmatpush1.msra.mxu0 0.0
      %7588 = vmatprep.subr.mxu0 0.0
      %7589 = vmatpush1.msra.mxu0 0.0
      %7590 = vmatprep.subr.mxu0 0.0
      %7591 = vmatpush1.msra.mxu0 0.0
      %7592 = vmatprep.subr.mxu0 0.0
      %7593 = vmatpush1.msra.mxu0 0.0
      %7594 = vmatprep.subr.mxu0 0.0
      %7595 = vmatpush1.msra.mxu0 0.0
      %7596 = vmatprep.subr.mxu0 0.0
      %7597 = vmatpush1.msra.mxu0 0.0
      %7598 = vmatprep.subr.mxu0 0.0
      %7599 = vmatpush1.msra.mxu0 0.0
      %7600 = vmatprep.subr.mxu0 0.0
      %7601 = vmatpush1.msra.mxu0 0.0
      %7602 = vmatprep.subr.mxu0 0.0
      %7603 = vmatpush1.msra.mxu0 0.0
      %7604 = vmatprep.subr.mxu0 0.0
      %7605 = vmatpush1.msra.mxu0 0.0
      %7606 = vmatprep.subr.mxu0 0.0
      %7607 = vmatpush1.msra.mxu0 0.0
      %7608 = vmatprep.subr.mxu0 0.0
      %7609 = vmatpush1.msra.mxu0 0.0
      %7610 = vmatprep.subr.mxu0 0.0
      %7611 = vmatpush1.msra.mxu0 0.0
      %7612 = vmatprep.subr.mxu0 0.0
      %7613 = vmatpush1.msra.mxu0 0.0
      %7614 = vmatprep.subr.mxu0 0.0
      %7615 = vmatpush1.msra.mxu0 0.0
      %7616 = vmatprep.subr.mxu0 0.0
      %7617 = vmatpush1.msra.mxu0 0.0
      %7618 = vmatprep.subr.mxu0 0.0
      %7619 = vmatpush1.msra.mxu0 0.0
      %7620 = vmatprep.mubr.f32.mxu0 0.0
      %7621 = vmatmul.mubr.f32.gmra.mrb[0].mxu0 %v7527
      %v7622 = vpop.f32.mrb[0].mxu0
      %v7623 = vadd.f32 0.0, %v7622
      %v7624 = vpop.f32.mrb[0].mxu0
      %v7625 = vadd.f32 0.0, %v7624
      %7626 = vmatprep.mubr.f32.mxu0 0.0
      %7627 = vmatmul.mubr.f32.gmra.mrb[0].mxu0 %v7530
      %v7628 = vpop.f32.mrb[0].mxu0
      %v7629 = vadd.f32 0.0, %v7628
      %v7630 = vpop.f32.mrb[0].mxu0
      %v7631 = vadd.f32 0.0, %v7630
      %7632 = vmatprep.mubr.f32.mxu0 0.0
      %7633 = vmatmul.mubr.f32.gmra.mrb[0].mxu0 %v7533
      %v7634 = vpop.f32.mrb[0].mxu0
      %v7635 = vadd.f32 0.0, %v7634
      %v7636 = vpop.f32.mrb[0].mxu0
      %v7637 = vadd.f32 0.0, %v7636
      %7638 = vmatprep.mubr.f32.mxu0 0.0
      %7639 = vmatmul.mubr.f32.gmra.mrb[0].mxu0 %v7536
      %v7640 = vpop.f32.mrb[0].mxu0
      %v7641 = vadd.f32 0.0, %v7640
      %v7642 = vpop.f32.mrb[0].mxu0
      %v7643 = vadd.f32 0.0, %v7642
      %7644 = vmatprep.mubr.f32.mxu0 0.0
      %7645 = vmatmul.mubr.f32.gmra.mrb[0].mxu0 %v7539
      %v7646 = vpop.f32.mrb[0].mxu0
      %v7647 = vadd.f32 0.0, %v7646
      %v7648 = vpop.f32.mrb[0].mxu0
      %v7649 = vadd.f32 0.0, %v7648
      %7650 = vmatprep.mubr.f32.mxu0 0.0
      %7651 = vmatmul.mubr.f32.gmra.mrb[0].mxu0 %v7542
      %v7652 = vpop.f32.mrb[0].mxu0
      %v7653 = vadd.f32 0.0, %v7652
      %v7654 = vpop.f32.mrb[0].mxu0
      %v7655 = vadd.f32 0.0, %v7654
      %7656 = vmatprep.mubr.f32.mxu0 0.0
      %7657 = vmatmul.mubr.f32.gmra.mrb[0].mxu0 %v7545
      %v7658 = vpop.f32.mrb[0].mxu0
      %v7659 = vadd.f32 0.0, %v7658
      %v7660 = vpop.f32.mrb[0].mxu0
      %v7661 = vadd.f32 0.0, %v7660
      %7662 = vmatprep.mubr.f32.mxu0 0.0
      %7663 = vmatmul.mubr.f32.gmra.mrb[0].mxu0 %v7548
      %v7664 = vpop.f32.mrb[0].mxu0
      %v7665 = vadd.f32 0.0, %v7664
      %v7666 = vpop.f32.mrb[0].mxu0
      %v7667 = vadd.f32 0.0, %v7666
      %7668 = vdwg.mxu0
      %v7669 = vadd.f32 %v7234, %v7623
      %v7670 = vadd.f32 %v7235, %v7625
      %v7671 = vadd.f32 %v7236, %v7629
      %v7672 = vadd.f32 %v7237, %v7631
      %v7673 = vadd.f32 %v7238, %v7635
      %v7674 = vadd.f32 %v7239, %v7637
      %v7675 = vadd.f32 %v7240, %v7641
      %v7676 = vadd.f32 %v7241, %v7643
      %v7677 = vadd.f32 %v7242, %v7647
      %v7678 = vadd.f32 %v7243, %v7649
      %v7679 = vadd.f32 %v7244, %v7653
      %v7680 = vadd.f32 %v7245, %v7655
      %v7681 = vadd.f32 %v7246, %v7659
      %v7682 = vadd.f32 %v7247, %v7661
      %v7683 = vadd.f32 %v7248, %v7665
      %v7684 = vadd.f32 %v7249, %v7667
      %v7685 = vld [vmem:[%s9] sm:$0x3]
      %v7687 = vlaneseq
      %v7688 = vshrl.u32 %v7687, 7
      %v7689 = vsub.s32 0, %v7688
      %v7690 = vrot.slane %v7685, %v7689
      %v7691 = vlaneseq
      %v7692 = vshrl.u32 %v7691, 7
      %v7693 = vsub.s32 1, %v7692
      %v7694 = vrot.slane %v7685, %v7693
      %v7697 = vadd.f32 %v7669, %v7690
      %v7698 = vadd.f32 %v7670, %v7694
      %v7699 = vadd.f32 %v7671, %v7690
      %v7700 = vadd.f32 %v7672, %v7694
      %v7701 = vadd.f32 %v7673, %v7690
      %v7702 = vadd.f32 %v7674, %v7694
      %v7703 = vadd.f32 %v7675, %v7690
      %v7704 = vadd.f32 %v7676, %v7694
      %v7705 = vadd.f32 %v7677, %v7690
      %v7706 = vadd.f32 %v7678, %v7694
      %v7707 = vadd.f32 %v7679, %v7690
      %v7708 = vadd.f32 %v7680, %v7694
      %v7709 = vadd.f32 %v7681, %v7690
      %v7710 = vadd.f32 %v7682, %v7694
      %v7711 = vadd.f32 %v7683, %v7690
      %v7712 = vadd.f32 %v7684, %v7694
      %v7713 = vsub.f32 0.0, %v7697
      %v7714 = vsub.f32 0.0, %v7698
      %v7715 = vsub.f32 0.0, %v7699
      %v7716 = vsub.f32 0.0, %v7700
      %v7717 = vsub.f32 0.0, %v7701
      %v7718 = vsub.f32 0.0, %v7702
      %v7719 = vsub.f32 0.0, %v7703
      %v7720 = vsub.f32 0.0, %v7704
      %v7721 = vsub.f32 0.0, %v7705
      %v7722 = vsub.f32 0.0, %v7706
      %v7723 = vsub.f32 0.0, %v7707
      %v7724 = vsub.f32 0.0, %v7708
      %v7725 = vsub.f32 0.0, %v7709
      %v7726 = vsub.f32 0.0, %v7710
      %v7727 = vsub.f32 0.0, %v7711
      %v7728 = vsub.f32 0.0, %v7712
      %v7729 = vmul.f32 %v7713, 1.442695
      %v7730 = vpow.pop %v7729
      %v7731 = vmul.f32 %v7714, 1.442695
      %v7732 = vpow.pop %v7731
      %v7733 = vmul.f32 %v7715, 1.442695
      %v7734 = vpow.pop %v7733
      %v7735 = vmul.f32 %v7716, 1.442695
      %v7736 = vpow.pop %v7735
      %v7737 = vmul.f32 %v7717, 1.442695
      %v7738 = vpow.pop %v7737
      %v7739 = vmul.f32 %v7718, 1.442695
      %v7740 = vpow.pop %v7739
      %v7741 = vmul.f32 %v7719, 1.442695
      %v7742 = vpow.pop %v7741
      %v7743 = vmul.f32 %v7720, 1.442695
      %v7744 = vpow.pop %v7743
      %v7745 = vmul.f32 %v7721, 1.442695
      %v7746 = vpow.pop %v7745
      %v7747 = vmul.f32 %v7722, 1.442695
      %v7748 = vpow.pop %v7747
      %v7749 = vmul.f32 %v7723, 1.442695
      %v7750 = vpow.pop %v7749
      %v7751 = vmul.f32 %v7724, 1.442695
      %v7752 = vpow.pop %v7751
      %v7753 = vmul.f32 %v7725, 1.442695
      %v7754 = vpow.pop %v7753
      %v7755 = vmul.f32 %v7726, 1.442695
      %v7756 = vpow.pop %v7755
      %v7757 = vmul.f32 %v7727, 1.442695
      %v7758 = vpow.pop %v7757
      %v7759 = vmul.f32 %v7728, 1.442695
      %v7760 = vpow.pop %v7759
      %v7761 = vadd.f32 %v7730, 1.0
      %v7762 = vadd.f32 %v7732, 1.0
      %v7763 = vadd.f32 %v7734, 1.0
      %v7764 = vadd.f32 %v7736, 1.0
      %v7765 = vadd.f32 %v7738, 1.0
      %v7766 = vadd.f32 %v7740, 1.0
      %v7767 = vadd.f32 %v7742, 1.0
      %v7768 = vadd.f32 %v7744, 1.0
      %v7769 = vadd.f32 %v7746, 1.0
      %v7770 = vadd.f32 %v7748, 1.0
      %v7771 = vadd.f32 %v7750, 1.0
      %v7772 = vadd.f32 %v7752, 1.0
      %v7773 = vadd.f32 %v7754, 1.0
      %v7774 = vadd.f32 %v7756, 1.0
      %v7775 = vadd.f32 %v7758, 1.0
      %v7776 = vadd.f32 %v7760, 1.0
      %v7777 = vrcp.pop %v7761
      %v7778 = vmul.f32 1.0, %v7777
      %v7779 = vrcp.pop %v7762
      %v7780 = vmul.f32 1.0, %v7779
      %v7781 = vrcp.pop %v7763
      %v7782 = vmul.f32 1.0, %v7781
      %v7783 = vrcp.pop %v7764
      %v7784 = vmul.f32 1.0, %v7783
      %v7785 = vrcp.pop %v7765
      %v7786 = vmul.f32 1.0, %v7785
      %v7787 = vrcp.pop %v7766
      %v7788 = vmul.f32 1.0, %v7787
      %v7789 = vrcp.pop %v7767
      %v7790 = vmul.f32 1.0, %v7789
      %v7791 = vrcp.pop %v7768
      %v7792 = vmul.f32 1.0, %v7791
      %v7793 = vrcp.pop %v7769
      %v7794 = vmul.f32 1.0, %v7793
      %v7795 = vrcp.pop %v7770
      %v7796 = vmul.f32 1.0, %v7795
      %v7797 = vrcp.pop %v7771
      %v7798 = vmul.f32 1.0, %v7797
      %v7799 = vrcp.pop %v7772
      %v7800 = vmul.f32 1.0, %v7799
      %v7801 = vrcp.pop %v7773
      %v7802 = vmul.f32 1.0, %v7801
      %v7803 = vrcp.pop %v7774
      %v7804 = vmul.f32 1.0, %v7803
      %v7805 = vrcp.pop %v7775
      %v7806 = vmul.f32 1.0, %v7805
      %v7807 = vrcp.pop %v7776
      %v7808 = vmul.f32 1.0, %v7807
      %7809 = vst [vmem:[%s359] sm:$0xff] %v7778
      %vm7810 = vcmask 850944
      %7811 = vst.msk [vmem:[%s359 + $0x8] sm:$0xff] %vm7810, %v7780
      %7812 = vst [vmem:[%s359 + $0x10] sm:$0xff] %v7782
      %7813 = vst.msk [vmem:[%s359 + $0x18] sm:$0xff] %vm7810, %v7784
      %7814 = vst [vmem:[%s359 + $0x20] sm:$0xff] %v7786
      %7815 = vst.msk [vmem:[%s359 + $0x28] sm:$0xff] %vm7810, %v7788
      %7816 = vst [vmem:[%s359 + $0x30] sm:$0xff] %v7790
      %7817 = vst.msk [vmem:[%s359 + $0x38] sm:$0xff] %vm7810, %v7792
      %7818 = vst [vmem:[%s359 + $0x40] sm:$0xff] %v7794
      %7819 = vst.msk [vmem:[%s359 + $0x48] sm:$0xff] %vm7810, %v7796
      %7820 = vst [vmem:[%s359 + $0x50] sm:$0xff] %v7798
      %7821 = vst.msk [vmem:[%s359 + $0x58] sm:$0xff] %vm7810, %v7800
      %7822 = vst [vmem:[%s359 + $0x60] sm:$0xff] %v7802
      %7823 = vst.msk [vmem:[%s359 + $0x68] sm:$0xff] %vm7810, %v7804
      %7824 = vst [vmem:[%s359 + $0x70] sm:$0x3] %v7806
      %vm7825 = vcmask 844800
      %7826 = vst.msk [vmem:[%s359 + $0x78] sm:$0x3] %vm7825, %v7808
      %p7827 = scmp.lt.s32.totalorder %s21, 1
      %s7828 = scalar_select %p7827, %s21, 1
      %s7829 = smul.addr %s7828, 16
      %s7830 = smul.addr %s7829, 8
      %s7831 = scalar_lea.vmem %s10, %s7830
      // Predicated region
      $region61: #{tpu_custom_call.1} parent=59 // pred_check
        %p7832 = pneg %p254
      $region62: #{tpu_custom_call.1} parent=59 // pred_check_branch
        %7834 = sbr.rel (%p7832) target = $region64
      $region63: #{tpu_custom_call.1} parent=59 // pred_region
        _
      $region64: #{tpu_custom_call.1} parent=59 // pred_fallthru
        _
    $region60: #{tpu_custom_call.1} parent=5 // pred_fallthru
      _
    %p7835 = scmp.le.s32.totalorder 2, %s16
    // Predicated region
    $region65: #{tpu_custom_call.1} parent=5 // pred_check
      %p7836 = pneg %p7835
    $region66: #{tpu_custom_call.1} parent=5 // pred_check_branch
      %7838 = sbr.rel (%p7836) target = $region68
    $region67: #{tpu_custom_call.1} parent=5 // pred_region
      %s7839 = ssub.s32 %s16, 2
      // Predicated region
      $region69: #{tpu_custom_call.1} parent=67 // pred_check
        %p7840 = pneg %p260
      $region70: #{tpu_custom_call.1} parent=67 // pred_check_branch
        %7842 = sbr.rel (%p7840) target = $region72
      $region71: #{tpu_custom_call.1} parent=67 // pred_region
        %p7843 = scmp.lt.s32.totalorder %s22, 1
        %s7844 = scalar_select %p7843, %s22, 1
        %s7845 = smul.addr %s7844, 16
        %s7846 = smul.addr %s7845, 8
        %s7847 = scalar_lea.vmem %s10, %s7846
      $region72: #{tpu_custom_call.1} parent=67 // pred_fallthru
        _
    $region68: #{tpu_custom_call.1} parent=5 // pred_fallthru
      _
  $region6: #{tpu_custom_call.1} parent=0 // loop_footer
    %s20 = sadd.s32 1, %s16
  $region7: #{tpu_custom_call.1} parent=0 // loop_footer_branch
    %15 = sbr.rel target = $region3
  $region8: #{tpu_custom_call.1} parent=0 // loop_exit
    _

</llo_original>
